<compile_context>
chip_gen: v6e
topology: v6e:2x2x1
jax: 0.10.0
libtpu: 0.0.40
codegen_flags: <defaults>
</compile_context>

<pallas_src>
import functools

import jax
import jax.numpy as jnp
import numpy as np
from jax.experimental import pallas as pl
from jax.experimental.pallas import tpu as pltpu


def _unet_up_kernel(x_ref, w_ref, o_ref, col_ref, *, H, W, Cin, Cout):
    # x_ref  : (1, H+2, W+2, Cin)  bf16 -- padded NHWC input, single copy
    # w_ref  : (4, 4*Cin, Cout)    bf16 -- per output parity, taps fused along K
    # o_ref  : (1, H*W, 4*Cout)    f32  -- parity-packed (lane-dense) output
    # col_ref: (H*W, 4*Cin)        bf16 -- im2col scratch, reused per parity
    HW = H * W

    s1 = jnp.zeros((1, Cout), jnp.float32)   # per-channel sum
    s2 = jnp.zeros((1, Cout), jnp.float32)   # per-channel sum of squares

    # ConvTranspose2d(k=4, s=2, p=1): the output sub-grid of parity (dh, dw)
    # equals a stride-1 2x2 conv of the pad=1 input, where patch offset
    # (dh+th, dw+tw) uses kernel tap (3-dh-2*th, 3-dw-2*tw).  The weights were
    # pre-grouped accordingly in glue, so each parity is ONE matmul, K = 4*Cin.
    for dh in range(2):
        for dw in range(2):
            p = dh * 2 + dw
            for th in range(2):
                for tw in range(2):
                    t = th * 2 + tw
                    win = x_ref[0, dh + th:dh + th + H, dw + tw:dw + tw + W, :]
                    col_ref[:, t * Cin:(t + 1) * Cin] = win.reshape(HW, Cin)
            y = jnp.dot(col_ref[...], w_ref[p],
                        preferred_element_type=jnp.float32)        # (HW, Cout) f32
            # one-pass instance-norm statistics, accumulated as slabs are made
            s1 = s1 + y.sum(axis=0, keepdims=True)
            s2 = s2 + (y * y).sum(axis=0, keepdims=True)
            # stage the un-normalized parity slab into its lane block
            o_ref[0, :, p * Cout:(p + 1) * Cout] = y

    # InstanceNorm2d(affine=False, eps=1e-5) over all 4*HW spatial positions,
    # folded with ReLU into a single FMA + max pass over the packed output.
    total = 4.0 * HW
    mean = s1 / total
    var = jnp.maximum(s2 / total - mean * mean, 0.0)
    inv = jax.lax.rsqrt(var + 1e-5)
    scale = jnp.concatenate([inv] * 4, axis=-1)              # (1, 4*Cout)
    shift = jnp.concatenate([-mean * inv] * 4, axis=-1)      # (1, 4*Cout)
    o_ref[0] = jnp.maximum(o_ref[0] * scale + shift, 0.0)


def unet_up_forward(x_nchw, skip_nchw, w, b=None, *, compute_dtype=jnp.bfloat16):
    """ConvTranspose2d(k=4,s=2,p=1) + InstanceNorm2d + ReLU + channel-concat(skip).

    `b` (the ConvTranspose bias) is accepted for API parity but intentionally
    unused: a per-channel constant added before InstanceNorm2d(affine=False) is
    exactly cancelled by the mean subtraction.
    """
    del b
    N, Cin, H, W = x_nchw.shape
    Cout = w.shape[1]
    HW = H * W

    # ---- glue: one padded bf16 copy of the input (no 9x duplication) ----
    x = jnp.transpose(x_nchw, (0, 2, 3, 1)).astype(compute_dtype)     # NHWC
    xpad = jnp.pad(x, ((0, 0), (1, 1), (1, 1), (0, 0)))               # (N,H+2,W+2,Cin)

    # Per-parity fused weights, K axis ordered (th, tw, Cin) to match the
    # kernel's im2col layout.  Shape (4, 4*Cin, Cout).
    groups = []
    for dh in range(2):
        for dw in range(2):
            taps = [w[:, :, 3 - dh - 2 * th, 3 - dw - 2 * tw]
                    for th in range(2) for tw in range(2)]
            groups.append(jnp.concatenate(taps, axis=0))              # (4*Cin, Cout)
    wfused = jnp.stack(groups, axis=0).astype(compute_dtype)          # (4,4*Cin,Cout)

    kernel = functools.partial(_unet_up_kernel, H=H, W=W, Cin=Cin, Cout=Cout)

    out = pl.pallas_call(
        kernel,
        out_shape=jax.ShapeDtypeStruct((N, HW, 4 * Cout), jnp.float32),
        grid_spec=pltpu.PrefetchScalarGridSpec(
            num_scalar_prefetch=0,
            grid=(N,),
            in_specs=[
                pl.BlockSpec((1, H + 2, W + 2, Cin), lambda n: (n, 0, 0, 0)),
                # constant index_map -> weights stay resident, no per-step re-DMA
                pl.BlockSpec((4, 4 * Cin, Cout), lambda n: (0, 0, 0)),
            ],
            out_specs=pl.BlockSpec((1, HW, 4 * Cout), lambda n: (n, 0, 0)),
            scratch_shapes=[pltpu.VMEM((HW, 4 * Cin), compute_dtype)],
        ),
        compiler_params=pltpu.CompilerParams(
            dimension_semantics=("parallel",),
            vmem_limit_bytes=64 * 1024 * 1024,
        ),
    )(xpad, wfused)

    # ---- glue: interleave parity-packed output, concat skip, back to NCHW ----
    y = out.reshape(N, H, W, 2, 2, Cout)
    y = jnp.transpose(y, (0, 1, 3, 2, 4, 5)).reshape(N, 2 * H, 2 * W, Cout)
    skip = jnp.transpose(skip_nchw, (0, 2, 3, 1))
    res = jnp.concatenate([y, skip], axis=-1)
    return jnp.transpose(res, (0, 3, 1, 2))                           # NCHW


def reference(x, skip, w, b):
    """Pure-JAX f32 reference matching PyTorch semantics (NCHW), incl. bias."""
    wf = jnp.transpose(jnp.flip(w, axis=(2, 3)), (1, 0, 2, 3))        # (Cout,Cin,4,4)
    y = jax.lax.conv_general_dilated(
        x, wf, window_strides=(1, 1), padding=((2, 2), (2, 2)),
        lhs_dilation=(2, 2),
        dimension_numbers=('NCHW', 'OIHW', 'NCHW'))
    y = y + b[None, :, None, None]
    mu = y.mean(axis=(2, 3), keepdims=True)
    var = ((y - mu) ** 2).mean(axis=(2, 3), keepdims=True)
    y = (y - mu) * jax.lax.rsqrt(var + 1e-5)
    y = jnp.maximum(y, 0.0)
    return jnp.concatenate([y, skip], axis=1)


if __name__ == "__main__":
    key = jax.random.PRNGKey(0)
    k1, k2, k3, k4 = jax.random.split(key, 4)

    N, Cin, Cout, Cskip, H, W = 2, 8, 4, 4, 16, 16
    x = jax.random.normal(k1, (N, Cin, H, W), jnp.float32)
    skip = jax.random.normal(k2, (N, Cskip, 2 * H, 2 * W), jnp.float32)
    # PyTorch ConvTranspose2d weight layout: (Cin, Cout, 4, 4); bias: (Cout,)
    w = 0.1 * jax.random.normal(k3, (Cin, Cout, 4, 4), jnp.float32)
    b = 0.05 * jax.random.normal(k4, (Cout,), jnp.float32)

    out = jax.block_until_ready(unet_up_forward(x, skip, w, b))
    ref = jax.block_until_ready(reference(x, skip, w, b))

    assert out.shape == (N, Cout + Cskip, 2 * H, 2 * W), out.shape
    # bf16 activations/weights with f32 accumulation -> slightly looser tolerance
    np.testing.assert_allclose(np.asarray(out), np.asarray(ref), atol=3e-2, rtol=3e-2)
    print("KERNEL_OK")
</pallas_src>

<mosaic_0001>
module attributes {stable_mosaic.version = 11 : i64} {
  func.func @_unet_up_kernel(%arg0: i32, %arg1: memref<1x18x18x8xbf16, #tpu.memory_space<vmem>>, %arg2: memref<4x32x4xbf16, #tpu.memory_space<vmem>>, %arg3: memref<1x256x16xf32, #tpu.memory_space<vmem>>, %arg4: memref<256x32xbf16, #tpu.memory_space<vmem>>) attributes {dimension_semantics = [#tpu.dimension_semantics<parallel>], iteration_bounds = array<i64: 2>, scalar_prefetch = 0 : i64, scratch_operands = 1 : i64, tpu.core_type = #tpu.core_type<tc>, window_params = [{transform_indices = @transform_0, window_bounds = array<i64: 1, 18, 18, 8>}, {pipeline_mode = #tpu.pipeline_mode<synchronous>, transform_indices = @transform_1, window_bounds = array<i64: 4, 32, 4>}, {transform_indices = @transform_2, window_bounds = array<i64: 1, 256, 16>}]} {
    %cst = arith.constant 0.000000e+00 : f32
    %0 = vector.broadcast %cst : f32 to vector<1x4xf32>
    %cst_0 = arith.constant 0.000000e+00 : f32
    %1 = vector.broadcast %cst_0 : f32 to vector<1x4xf32>
    %c0 = arith.constant 0 : index
    %c0_1 = arith.constant 0 : index
    %c0_2 = arith.constant 0 : index
    %c0_3 = arith.constant 0 : index
    %2 = vector.load %arg1[%c0, %c0_1, %c0_2, %c0_3] : memref<1x18x18x8xbf16, #tpu.memory_space<vmem>>, vector<1x16x16x8xbf16>
    %3 = vector.shape_cast %2 : vector<1x16x16x8xbf16> to vector<16x16x8xbf16>
    %4 = vector.shape_cast %3 : vector<16x16x8xbf16> to vector<256x8xbf16>
    %c0_4 = arith.constant 0 : index
    %c0_5 = arith.constant 0 : index
    %5 = vector.load %arg4[%c0_4, %c0_5] : memref<256x32xbf16, #tpu.memory_space<vmem>>, vector<256x8xbf16>
    tpu.vector_store %arg4[%c0_4, %c0_5], %4 {strides = array<i32>} : memref<256x32xbf16, #tpu.memory_space<vmem>>, vector<256x8xbf16>,
    %c0_6 = arith.constant 0 : index
    %c0_7 = arith.constant 0 : index
    %c1 = arith.constant 1 : index
    %c0_8 = arith.constant 0 : index
    %6 = vector.load %arg1[%c0_6, %c0_7, %c1, %c0_8] : memref<1x18x18x8xbf16, #tpu.memory_space<vmem>>, vector<1x16x16x8xbf16>
    %7 = vector.shape_cast %6 : vector<1x16x16x8xbf16> to vector<16x16x8xbf16>
    %8 = vector.shape_cast %7 : vector<16x16x8xbf16> to vector<256x8xbf16>
    %c0_9 = arith.constant 0 : index
    %c8 = arith.constant 8 : index
    %9 = vector.load %arg4[%c0_9, %c8] : memref<256x32xbf16, #tpu.memory_space<vmem>>, vector<256x8xbf16>
    tpu.vector_store %arg4[%c0_9, %c8], %8 {strides = array<i32>} : memref<256x32xbf16, #tpu.memory_space<vmem>>, vector<256x8xbf16>,
    %c0_10 = arith.constant 0 : index
    %c1_11 = arith.constant 1 : index
    %c0_12 = arith.constant 0 : index
    %c0_13 = arith.constant 0 : index
    %10 = vector.load %arg1[%c0_10, %c1_11, %c0_12, %c0_13] : memref<1x18x18x8xbf16, #tpu.memory_space<vmem>>, vector<1x16x16x8xbf16>
    %11 = vector.shape_cast %10 : vector<1x16x16x8xbf16> to vector<16x16x8xbf16>
    %12 = vector.shape_cast %11 : vector<16x16x8xbf16> to vector<256x8xbf16>
    %c0_14 = arith.constant 0 : index
    %c16 = arith.constant 16 : index
    %13 = vector.load %arg4[%c0_14, %c16] : memref<256x32xbf16, #tpu.memory_space<vmem>>, vector<256x8xbf16>
    tpu.vector_store %arg4[%c0_14, %c16], %12 {strides = array<i32>} : memref<256x32xbf16, #tpu.memory_space<vmem>>, vector<256x8xbf16>,
    %c0_15 = arith.constant 0 : index
    %c1_16 = arith.constant 1 : index
    %c1_17 = arith.constant 1 : index
    %c0_18 = arith.constant 0 : index
    %14 = vector.load %arg1[%c0_15, %c1_16, %c1_17, %c0_18] : memref<1x18x18x8xbf16, #tpu.memory_space<vmem>>, vector<1x16x16x8xbf16>
    %15 = vector.shape_cast %14 : vector<1x16x16x8xbf16> to vector<16x16x8xbf16>
    %16 = vector.shape_cast %15 : vector<16x16x8xbf16> to vector<256x8xbf16>
    %c0_19 = arith.constant 0 : index
    %c24 = arith.constant 24 : index
    %17 = vector.load %arg4[%c0_19, %c24] : memref<256x32xbf16, #tpu.memory_space<vmem>>, vector<256x8xbf16>
    tpu.vector_store %arg4[%c0_19, %c24], %16 {strides = array<i32>} : memref<256x32xbf16, #tpu.memory_space<vmem>>, vector<256x8xbf16>,
    %c0_20 = arith.constant 0 : index
    %c0_21 = arith.constant 0 : index
    %18 = vector.load %arg4[%c0_20, %c0_21] : memref<256x32xbf16, #tpu.memory_space<vmem>>, vector<256x32xbf16>
    %c0_22 = arith.constant 0 : index
    %c0_23 = arith.constant 0 : index
    %c0_24 = arith.constant 0 : index
    %19 = vector.load %arg2[%c0_22, %c0_23, %c0_24] : memref<4x32x4xbf16, #tpu.memory_space<vmem>>, vector<1x32x4xbf16>
    %20 = vector.shape_cast %19 : vector<1x32x4xbf16> to vector<32x4xbf16>
    %cst_25 = arith.constant dense<0.000000e+00> : vector<256x4xf32>
    %21 = tpu.matmul %18, %20, %cst_25 {dimension_numbers = #tpu.dot_dimension_numbers<[1], [0], [0], [1], [0, 0, 1, 1], [], []>} : vector<256x32xbf16>, vector<32x4xbf16>, vector<256x4xf32> -> vector<256x4xf32>
    %cst_26 = arith.constant dense<0.000000e+00> : vector<4xf32>
    %22 = vector.multi_reduction <add>, %21, %cst_26 [0] : vector<256x4xf32> to vector<4xf32>
    %23 = vector.shape_cast %22 : vector<4xf32> to vector<1x4xf32>
    %24 = arith.addf %0, %23 : vector<1x4xf32>
    %25 = arith.mulf %21, %21 : vector<256x4xf32>
    %cst_27 = arith.constant dense<0.000000e+00> : vector<4xf32>
    %26 = vector.multi_reduction <add>, %25, %cst_27 [0] : vector<256x4xf32> to vector<4xf32>
    %27 = vector.shape_cast %26 : vector<4xf32> to vector<1x4xf32>
    %28 = arith.addf %1, %27 : vector<1x4xf32>
    %c0_28 = arith.constant 0 : index
    %c0_29 = arith.constant 0 : index
    %c0_30 = arith.constant 0 : index
    %29 = vector.load %arg3[%c0_28, %c0_29, %c0_30] : memref<1x256x16xf32, #tpu.memory_space<vmem>>, vector<1x256x4xf32>
    %30 = vector.shape_cast %29 : vector<1x256x4xf32> to vector<256x4xf32>
    %31 = vector.shape_cast %21 : vector<256x4xf32> to vector<1x256x4xf32>
    tpu.vector_store %arg3[%c0_28, %c0_29, %c0_30], %31 {strides = array<i32>} : memref<1x256x16xf32, #tpu.memory_space<vmem>>, vector<1x256x4xf32>,
    %c0_31 = arith.constant 0 : index
    %c0_32 = arith.constant 0 : index
    %c1_33 = arith.constant 1 : index
    %c0_34 = arith.constant 0 : index
    %32 = vector.load %arg1[%c0_31, %c0_32, %c1_33, %c0_34] : memref<1x18x18x8xbf16, #tpu.memory_space<vmem>>, vector<1x16x16x8xbf16>
    %33 = vector.shape_cast %32 : vector<1x16x16x8xbf16> to vector<16x16x8xbf16>
    %34 = vector.shape_cast %33 : vector<16x16x8xbf16> to vector<256x8xbf16>
    %c0_35 = arith.constant 0 : index
    %c0_36 = arith.constant 0 : index
    %35 = vector.load %arg4[%c0_35, %c0_36] : memref<256x32xbf16, #tpu.memory_space<vmem>>, vector<256x8xbf16>
    tpu.vector_store %arg4[%c0_35, %c0_36], %34 {strides = array<i32>} : memref<256x32xbf16, #tpu.memory_space<vmem>>, vector<256x8xbf16>,
    %c0_37 = arith.constant 0 : index
    %c0_38 = arith.constant 0 : index
    %c2 = arith.constant 2 : index
    %c0_39 = arith.constant 0 : index
    %36 = vector.load %arg1[%c0_37, %c0_38, %c2, %c0_39] : memref<1x18x18x8xbf16, #tpu.memory_space<vmem>>, vector<1x16x16x8xbf16>
    %37 = vector.shape_cast %36 : vector<1x16x16x8xbf16> to vector<16x16x8xbf16>
    %38 = vector.shape_cast %37 : vector<16x16x8xbf16> to vector<256x8xbf16>
    %c0_40 = arith.constant 0 : index
    %c8_41 = arith.constant 8 : index
    %39 = vector.load %arg4[%c0_40, %c8_41] : memref<256x32xbf16, #tpu.memory_space<vmem>>, vector<256x8xbf16>
    tpu.vector_store %arg4[%c0_40, %c8_41], %38 {strides = array<i32>} : memref<256x32xbf16, #tpu.memory_space<vmem>>, vector<256x8xbf16>,
    %c0_42 = arith.constant 0 : index
    %c1_43 = arith.constant 1 : index
    %c1_44 = arith.constant 1 : index
    %c0_45 = arith.constant 0 : index
    %40 = vector.load %arg1[%c0_42, %c1_43, %c1_44, %c0_45] : memref<1x18x18x8xbf16, #tpu.memory_space<vmem>>, vector<1x16x16x8xbf16>
    %41 = vector.shape_cast %40 : vector<1x16x16x8xbf16> to vector<16x16x8xbf16>
    %42 = vector.shape_cast %41 : vector<16x16x8xbf16> to vector<256x8xbf16>
    %c0_46 = arith.constant 0 : index
    %c16_47 = arith.constant 16 : index
    %43 = vector.load %arg4[%c0_46, %c16_47] : memref<256x32xbf16, #tpu.memory_space<vmem>>, vector<256x8xbf16>
    tpu.vector_store %arg4[%c0_46, %c16_47], %42 {strides = array<i32>} : memref<256x32xbf16, #tpu.memory_space<vmem>>, vector<256x8xbf16>,
    %c0_48 = arith.constant 0 : index
    %c1_49 = arith.constant 1 : index
    %c2_50 = arith.constant 2 : index
    %c0_51 = arith.constant 0 : index
    %44 = vector.load %arg1[%c0_48, %c1_49, %c2_50, %c0_51] : memref<1x18x18x8xbf16, #tpu.memory_space<vmem>>, vector<1x16x16x8xbf16>
    %45 = vector.shape_cast %44 : vector<1x16x16x8xbf16> to vector<16x16x8xbf16>
    %46 = vector.shape_cast %45 : vector<16x16x8xbf16> to vector<256x8xbf16>
    %c0_52 = arith.constant 0 : index
    %c24_53 = arith.constant 24 : index
    %47 = vector.load %arg4[%c0_52, %c24_53] : memref<256x32xbf16, #tpu.memory_space<vmem>>, vector<256x8xbf16>
    tpu.vector_store %arg4[%c0_52, %c24_53], %46 {strides = array<i32>} : memref<256x32xbf16, #tpu.memory_space<vmem>>, vector<256x8xbf16>,
    %c0_54 = arith.constant 0 : index
    %c0_55 = arith.constant 0 : index
    %48 = vector.load %arg4[%c0_54, %c0_55] : memref<256x32xbf16, #tpu.memory_space<vmem>>, vector<256x32xbf16>
    %c1_56 = arith.constant 1 : index
    %c0_57 = arith.constant 0 : index
    %c0_58 = arith.constant 0 : index
    %49 = vector.load %arg2[%c1_56, %c0_57, %c0_58] : memref<4x32x4xbf16, #tpu.memory_space<vmem>>, vector<1x32x4xbf16>
    %50 = vector.shape_cast %49 : vector<1x32x4xbf16> to vector<32x4xbf16>
    %cst_59 = arith.constant dense<0.000000e+00> : vector<256x4xf32>
    %51 = tpu.matmul %48, %50, %cst_59 {dimension_numbers = #tpu.dot_dimension_numbers<[1], [0], [0], [1], [0, 0, 1, 1], [], []>} : vector<256x32xbf16>, vector<32x4xbf16>, vector<256x4xf32> -> vector<256x4xf32>
    %cst_60 = arith.constant dense<0.000000e+00> : vector<4xf32>
    %52 = vector.multi_reduction <add>, %51, %cst_60 [0] : vector<256x4xf32> to vector<4xf32>
    %53 = vector.shape_cast %52 : vector<4xf32> to vector<1x4xf32>
    %54 = arith.addf %24, %53 : vector<1x4xf32>
    %55 = arith.mulf %51, %51 : vector<256x4xf32>
    %cst_61 = arith.constant dense<0.000000e+00> : vector<4xf32>
    %56 = vector.multi_reduction <add>, %55, %cst_61 [0] : vector<256x4xf32> to vector<4xf32>
    %57 = vector.shape_cast %56 : vector<4xf32> to vector<1x4xf32>
    %58 = arith.addf %28, %57 : vector<1x4xf32>
    %c0_62 = arith.constant 0 : index
    %c0_63 = arith.constant 0 : index
    %c4 = arith.constant 4 : index
    %59 = vector.load %arg3[%c0_62, %c0_63, %c4] : memref<1x256x16xf32, #tpu.memory_space<vmem>>, vector<1x256x4xf32>
    %60 = vector.shape_cast %59 : vector<1x256x4xf32> to vector<256x4xf32>
    %61 = vector.shape_cast %51 : vector<256x4xf32> to vector<1x256x4xf32>
    tpu.vector_store %arg3[%c0_62, %c0_63, %c4], %61 {strides = array<i32>} : memref<1x256x16xf32, #tpu.memory_space<vmem>>, vector<1x256x4xf32>,
    %c0_64 = arith.constant 0 : index
    %c1_65 = arith.constant 1 : index
    %c0_66 = arith.constant 0 : index
    %c0_67 = arith.constant 0 : index
    %62 = vector.load %arg1[%c0_64, %c1_65, %c0_66, %c0_67] : memref<1x18x18x8xbf16, #tpu.memory_space<vmem>>, vector<1x16x16x8xbf16>
    %63 = vector.shape_cast %62 : vector<1x16x16x8xbf16> to vector<16x16x8xbf16>
    %64 = vector.shape_cast %63 : vector<16x16x8xbf16> to vector<256x8xbf16>
    %c0_68 = arith.constant 0 : index
    %c0_69 = arith.constant 0 : index
    %65 = vector.load %arg4[%c0_68, %c0_69] : memref<256x32xbf16, #tpu.memory_space<vmem>>, vector<256x8xbf16>
    tpu.vector_store %arg4[%c0_68, %c0_69], %64 {strides = array<i32>} : memref<256x32xbf16, #tpu.memory_space<vmem>>, vector<256x8xbf16>,
    %c0_70 = arith.constant 0 : index
    %c1_71 = arith.constant 1 : index
    %c1_72 = arith.constant 1 : index
    %c0_73 = arith.constant 0 : index
    %66 = vector.load %arg1[%c0_70, %c1_71, %c1_72, %c0_73] : memref<1x18x18x8xbf16, #tpu.memory_space<vmem>>, vector<1x16x16x8xbf16>
    %67 = vector.shape_cast %66 : vector<1x16x16x8xbf16> to vector<16x16x8xbf16>
    %68 = vector.shape_cast %67 : vector<16x16x8xbf16> to vector<256x8xbf16>
    %c0_74 = arith.constant 0 : index
    %c8_75 = arith.constant 8 : index
    %69 = vector.load %arg4[%c0_74, %c8_75] : memref<256x32xbf16, #tpu.memory_space<vmem>>, vector<256x8xbf16>
    tpu.vector_store %arg4[%c0_74, %c8_75], %68 {strides = array<i32>} : memref<256x32xbf16, #tpu.memory_space<vmem>>, vector<256x8xbf16>,
    %c0_76 = arith.constant 0 : index
    %c2_77 = arith.constant 2 : index
    %c0_78 = arith.constant 0 : index
    %c0_79 = arith.constant 0 : index
    %70 = vector.load %arg1[%c0_76, %c2_77, %c0_78, %c0_79] : memref<1x18x18x8xbf16, #tpu.memory_space<vmem>>, vector<1x16x16x8xbf16>
    %71 = vector.shape_cast %70 : vector<1x16x16x8xbf16> to vector<16x16x8xbf16>
    %72 = vector.shape_cast %71 : vector<16x16x8xbf16> to vector<256x8xbf16>
    %c0_80 = arith.constant 0 : index
    %c16_81 = arith.constant 16 : index
    %73 = vector.load %arg4[%c0_80, %c16_81] : memref<256x32xbf16, #tpu.memory_space<vmem>>, vector<256x8xbf16>
    tpu.vector_store %arg4[%c0_80, %c16_81], %72 {strides = array<i32>} : memref<256x32xbf16, #tpu.memory_space<vmem>>, vector<256x8xbf16>,
    %c0_82 = arith.constant 0 : index
    %c2_83 = arith.constant 2 : index
    %c1_84 = arith.constant 1 : index
    %c0_85 = arith.constant 0 : index
    %74 = vector.load %arg1[%c0_82, %c2_83, %c1_84, %c0_85] : memref<1x18x18x8xbf16, #tpu.memory_space<vmem>>, vector<1x16x16x8xbf16>
    %75 = vector.shape_cast %74 : vector<1x16x16x8xbf16> to vector<16x16x8xbf16>
    %76 = vector.shape_cast %75 : vector<16x16x8xbf16> to vector<256x8xbf16>
    %c0_86 = arith.constant 0 : index
    %c24_87 = arith.constant 24 : index
    %77 = vector.load %arg4[%c0_86, %c24_87] : memref<256x32xbf16, #tpu.memory_space<vmem>>, vector<256x8xbf16>
    tpu.vector_store %arg4[%c0_86, %c24_87], %76 {strides = array<i32>} : memref<256x32xbf16, #tpu.memory_space<vmem>>, vector<256x8xbf16>,
    %c0_88 = arith.constant 0 : index
    %c0_89 = arith.constant 0 : index
    %78 = vector.load %arg4[%c0_88, %c0_89] : memref<256x32xbf16, #tpu.memory_space<vmem>>, vector<256x32xbf16>
    %c2_90 = arith.constant 2 : index
    %c0_91 = arith.constant 0 : index
    %c0_92 = arith.constant 0 : index
    %79 = vector.load %arg2[%c2_90, %c0_91, %c0_92] : memref<4x32x4xbf16, #tpu.memory_space<vmem>>, vector<1x32x4xbf16>
    %80 = vector.shape_cast %79 : vector<1x32x4xbf16> to vector<32x4xbf16>
    %cst_93 = arith.constant dense<0.000000e+00> : vector<256x4xf32>
    %81 = tpu.matmul %78, %80, %cst_93 {dimension_numbers = #tpu.dot_dimension_numbers<[1], [0], [0], [1], [0, 0, 1, 1], [], []>} : vector<256x32xbf16>, vector<32x4xbf16>, vector<256x4xf32> -> vector<256x4xf32>
    %cst_94 = arith.constant dense<0.000000e+00> : vector<4xf32>
    %82 = vector.multi_reduction <add>, %81, %cst_94 [0] : vector<256x4xf32> to vector<4xf32>
    %83 = vector.shape_cast %82 : vector<4xf32> to vector<1x4xf32>
    %84 = arith.addf %54, %83 : vector<1x4xf32>
    %85 = arith.mulf %81, %81 : vector<256x4xf32>
    %cst_95 = arith.constant dense<0.000000e+00> : vector<4xf32>
    %86 = vector.multi_reduction <add>, %85, %cst_95 [0] : vector<256x4xf32> to vector<4xf32>
    %87 = vector.shape_cast %86 : vector<4xf32> to vector<1x4xf32>
    %88 = arith.addf %58, %87 : vector<1x4xf32>
    %c0_96 = arith.constant 0 : index
    %c0_97 = arith.constant 0 : index
    %c8_98 = arith.constant 8 : index
    %89 = vector.load %arg3[%c0_96, %c0_97, %c8_98] : memref<1x256x16xf32, #tpu.memory_space<vmem>>, vector<1x256x4xf32>
    %90 = vector.shape_cast %89 : vector<1x256x4xf32> to vector<256x4xf32>
    %91 = vector.shape_cast %81 : vector<256x4xf32> to vector<1x256x4xf32>
    tpu.vector_store %arg3[%c0_96, %c0_97, %c8_98], %91 {strides = array<i32>} : memref<1x256x16xf32, #tpu.memory_space<vmem>>, vector<1x256x4xf32>,
    %c0_99 = arith.constant 0 : index
    %c1_100 = arith.constant 1 : index
    %c1_101 = arith.constant 1 : index
    %c0_102 = arith.constant 0 : index
    %92 = vector.load %arg1[%c0_99, %c1_100, %c1_101, %c0_102] : memref<1x18x18x8xbf16, #tpu.memory_space<vmem>>, vector<1x16x16x8xbf16>
    %93 = vector.shape_cast %92 : vector<1x16x16x8xbf16> to vector<16x16x8xbf16>
    %94 = vector.shape_cast %93 : vector<16x16x8xbf16> to vector<256x8xbf16>
    %c0_103 = arith.constant 0 : index
    %c0_104 = arith.constant 0 : index
    %95 = vector.load %arg4[%c0_103, %c0_104] : memref<256x32xbf16, #tpu.memory_space<vmem>>, vector<256x8xbf16>
    tpu.vector_store %arg4[%c0_103, %c0_104], %94 {strides = array<i32>} : memref<256x32xbf16, #tpu.memory_space<vmem>>, vector<256x8xbf16>,
    %c0_105 = arith.constant 0 : index
    %c1_106 = arith.constant 1 : index
    %c2_107 = arith.constant 2 : index
    %c0_108 = arith.constant 0 : index
    %96 = vector.load %arg1[%c0_105, %c1_106, %c2_107, %c0_108] : memref<1x18x18x8xbf16, #tpu.memory_space<vmem>>, vector<1x16x16x8xbf16>
    %97 = vector.shape_cast %96 : vector<1x16x16x8xbf16> to vector<16x16x8xbf16>
    %98 = vector.shape_cast %97 : vector<16x16x8xbf16> to vector<256x8xbf16>
    %c0_109 = arith.constant 0 : index
    %c8_110 = arith.constant 8 : index
    %99 = vector.load %arg4[%c0_109, %c8_110] : memref<256x32xbf16, #tpu.memory_space<vmem>>, vector<256x8xbf16>
    tpu.vector_store %arg4[%c0_109, %c8_110], %98 {strides = array<i32>} : memref<256x32xbf16, #tpu.memory_space<vmem>>, vector<256x8xbf16>,
    %c0_111 = arith.constant 0 : index
    %c2_112 = arith.constant 2 : index
    %c1_113 = arith.constant 1 : index
    %c0_114 = arith.constant 0 : index
    %100 = vector.load %arg1[%c0_111, %c2_112, %c1_113, %c0_114] : memref<1x18x18x8xbf16, #tpu.memory_space<vmem>>, vector<1x16x16x8xbf16>
    %101 = vector.shape_cast %100 : vector<1x16x16x8xbf16> to vector<16x16x8xbf16>
    %102 = vector.shape_cast %101 : vector<16x16x8xbf16> to vector<256x8xbf16>
    %c0_115 = arith.constant 0 : index
    %c16_116 = arith.constant 16 : index
    %103 = vector.load %arg4[%c0_115, %c16_116] : memref<256x32xbf16, #tpu.memory_space<vmem>>, vector<256x8xbf16>
    tpu.vector_store %arg4[%c0_115, %c16_116], %102 {strides = array<i32>} : memref<256x32xbf16, #tpu.memory_space<vmem>>, vector<256x8xbf16>,
    %c0_117 = arith.constant 0 : index
    %c2_118 = arith.constant 2 : index
    %c2_119 = arith.constant 2 : index
    %c0_120 = arith.constant 0 : index
    %104 = vector.load %arg1[%c0_117, %c2_118, %c2_119, %c0_120] : memref<1x18x18x8xbf16, #tpu.memory_space<vmem>>, vector<1x16x16x8xbf16>
    %105 = vector.shape_cast %104 : vector<1x16x16x8xbf16> to vector<16x16x8xbf16>
    %106 = vector.shape_cast %105 : vector<16x16x8xbf16> to vector<256x8xbf16>
    %c0_121 = arith.constant 0 : index
    %c24_122 = arith.constant 24 : index
    %107 = vector.load %arg4[%c0_121, %c24_122] : memref<256x32xbf16, #tpu.memory_space<vmem>>, vector<256x8xbf16>
    tpu.vector_store %arg4[%c0_121, %c24_122], %106 {strides = array<i32>} : memref<256x32xbf16, #tpu.memory_space<vmem>>, vector<256x8xbf16>,
    %c0_123 = arith.constant 0 : index
    %c0_124 = arith.constant 0 : index
    %108 = vector.load %arg4[%c0_123, %c0_124] : memref<256x32xbf16, #tpu.memory_space<vmem>>, vector<256x32xbf16>
    %c3 = arith.constant 3 : index
    %c0_125 = arith.constant 0 : index
    %c0_126 = arith.constant 0 : index
    %109 = vector.load %arg2[%c3, %c0_125, %c0_126] : memref<4x32x4xbf16, #tpu.memory_space<vmem>>, vector<1x32x4xbf16>
    %110 = vector.shape_cast %109 : vector<1x32x4xbf16> to vector<32x4xbf16>
    %cst_127 = arith.constant dense<0.000000e+00> : vector<256x4xf32>
    %111 = tpu.matmul %108, %110, %cst_127 {dimension_numbers = #tpu.dot_dimension_numbers<[1], [0], [0], [1], [0, 0, 1, 1], [], []>} : vector<256x32xbf16>, vector<32x4xbf16>, vector<256x4xf32> -> vector<256x4xf32>
    %cst_128 = arith.constant dense<0.000000e+00> : vector<4xf32>
    %112 = vector.multi_reduction <add>, %111, %cst_128 [0] : vector<256x4xf32> to vector<4xf32>
    %113 = vector.shape_cast %112 : vector<4xf32> to vector<1x4xf32>
    %114 = arith.addf %84, %113 : vector<1x4xf32>
    %115 = arith.mulf %111, %111 : vector<256x4xf32>
    %cst_129 = arith.constant dense<0.000000e+00> : vector<4xf32>
    %116 = vector.multi_reduction <add>, %115, %cst_129 [0] : vector<256x4xf32> to vector<4xf32>
    %117 = vector.shape_cast %116 : vector<4xf32> to vector<1x4xf32>
    %118 = arith.addf %88, %117 : vector<1x4xf32>
    %c0_130 = arith.constant 0 : index
    %c0_131 = arith.constant 0 : index
    %c12 = arith.constant 12 : index
    %119 = vector.load %arg3[%c0_130, %c0_131, %c12] : memref<1x256x16xf32, #tpu.memory_space<vmem>>, vector<1x256x4xf32>
    %120 = vector.shape_cast %119 : vector<1x256x4xf32> to vector<256x4xf32>
    %121 = vector.shape_cast %111 : vector<256x4xf32> to vector<1x256x4xf32>
    tpu.vector_store %arg3[%c0_130, %c0_131, %c12], %121 {strides = array<i32>} : memref<1x256x16xf32, #tpu.memory_space<vmem>>, vector<1x256x4xf32>,
    %cst_132 = arith.constant 1.024000e+03 : f32
    %122 = vector.broadcast %cst_132 : f32 to vector<1x4xf32>
    %123 = arith.divf %114, %122 : vector<1x4xf32>
    %cst_133 = arith.constant 1.024000e+03 : f32
    %124 = vector.broadcast %cst_133 : f32 to vector<1x4xf32>
    %125 = arith.divf %118, %124 : vector<1x4xf32>
    %126 = arith.mulf %123, %123 : vector<1x4xf32>
    %127 = arith.subf %125, %126 : vector<1x4xf32>
    %cst_134 = arith.constant 0.000000e+00 : f32
    %128 = vector.broadcast %cst_134 : f32 to vector<1x4xf32>
    %129 = arith.maximumf %127, %128 : vector<1x4xf32>
    %cst_135 = arith.constant 9.99999974E-6 : f32
    %130 = vector.broadcast %cst_135 : f32 to vector<1x4xf32>
    %131 = arith.addf %129, %130 : vector<1x4xf32>
    %132 = math.rsqrt %131 : vector<1x4xf32>
    %133 = tpu.concatenate %132, %132, %132, %132 in 1 : vector<1x4xf32>, vector<1x4xf32>, vector<1x4xf32>, vector<1x4xf32> -> vector<1x16xf32>
    %cst_136 = arith.constant 0.000000e+00 : f32
    %134 = vector.broadcast %cst_136 : f32 to vector<1x4xf32>
    %135 = arith.subf %134, %123 : vector<1x4xf32>
    %136 = arith.mulf %135, %132 : vector<1x4xf32>
    %137 = tpu.concatenate %136, %136, %136, %136 in 1 : vector<1x4xf32>, vector<1x4xf32>, vector<1x4xf32>, vector<1x4xf32> -> vector<1x16xf32>
    %c0_137 = arith.constant 0 : index
    %c0_138 = arith.constant 0 : index
    %c0_139 = arith.constant 0 : index
    %138 = vector.load %arg3[%c0_137, %c0_138, %c0_139] : memref<1x256x16xf32, #tpu.memory_space<vmem>>, vector<1x256x16xf32>
    %139 = vector.shape_cast %138 : vector<1x256x16xf32> to vector<256x16xf32>
    %140 = vector.broadcast %133 : vector<1x16xf32> to vector<256x16xf32>
    %141 = arith.mulf %139, %140 : vector<256x16xf32>
    %142 = vector.broadcast %137 : vector<1x16xf32> to vector<256x16xf32>
    %143 = arith.addf %141, %142 : vector<256x16xf32>
    %cst_140 = arith.constant 0.000000e+00 : f32
    %144 = vector.broadcast %cst_140 : f32 to vector<256x16xf32>
    %145 = arith.maximumf %143, %144 : vector<256x16xf32>
    %c0_141 = arith.constant 0 : index
    %c0_142 = arith.constant 0 : index
    %c0_143 = arith.constant 0 : index
    %146 = vector.load %arg3[%c0_141, %c0_142, %c0_143] : memref<1x256x16xf32, #tpu.memory_space<vmem>>, vector<1x256x16xf32>
    %147 = vector.shape_cast %146 : vector<1x256x16xf32> to vector<256x16xf32>
    %148 = vector.shape_cast %145 : vector<256x16xf32> to vector<1x256x16xf32>
    tpu.vector_store %arg3[%c0_141, %c0_142, %c0_143], %148 {strides = array<i32>} : memref<1x256x16xf32, #tpu.memory_space<vmem>>, vector<1x256x16xf32>,
    return
  }
  func.func @transform_0(%arg0: i32) -> (i32, i32, i32, i32) {
    %c0_i32 = arith.constant 0 : i32
    %c0_i32_0 = arith.constant 0 : i32
    %c0_i32_1 = arith.constant 0 : i32
    %c0_i32_2 = arith.constant 0 : i32
    return %arg0, %c0_i32, %c0_i32_0, %c0_i32_1 : i32, i32, i32, i32
  }
  func.func @transform_1(%arg0: i32) -> (i32, i32, i32) {
    %c0_i32 = arith.constant 0 : i32
    %c0_i32_0 = arith.constant 0 : i32
    %c0_i32_1 = arith.constant 0 : i32
    %c0_i32_2 = arith.constant 0 : i32
    return %c0_i32, %c0_i32_0, %c0_i32_1 : i32, i32, i32
  }
  func.func @transform_2(%arg0: i32) -> (i32, i32, i32) {
    %c0_i32 = arith.constant 0 : i32
    %c0_i32_0 = arith.constant 0 : i32
    %c0_i32_1 = arith.constant 0 : i32
    return %arg0, %c0_i32, %c0_i32_0 : i32, i32, i32
  }
}

</mosaic_0001>

<llo_original>
// kernel: tpu_custom_call.1
$region0: #{tpu_custom_call.1}
  #allocation0 [shape = 'u32[]', space=smem, size = 0x4, offset = 0x4, fixed_abs, tag = 'smem constant byte address 0x4 - core index']
  #allocation1 [shape = 'u32[144,128]{1,0:T(1,128)}', space=vmem, size = 0x12000, scoped, tag = 'internal scratch']
  #allocation2 [shape = 'bf16[256,32]{1,0:T(8,128)(2,1)}', space=vmem, size = 0x10000, scoped, tag = 'scratch operand']
  %s0 = inlined_call_operand.vmem [shape: bf16[2,18,18,8], index: 0, kind: input, shape index: {}]
  %s1 = inlined_call_operand.vmem [shape: bf16[4,32,4], index: 1, kind: input, shape index: {}]
  %s2 = inlined_call_operand.vmem [shape: f32[2,256,16], index: 2, kind: output, shape index: {}]
  %s3 = sld [smem:[#allocation0]]
  $region41: #{tpu_custom_call.1} parent=0
    _
  %s5 = ssub.s32 1, %s3
  %s6 = scalar_select 0, %s5, %s3
  loop: start=0, step=1, limit=4
  $region2: #{tpu_custom_call.1} parent=0 // loop_pre_header
    _
  $region3: #{tpu_custom_call.1} parent=0 // loop_header
    %s8 = sphi 0, %s12
    %p9 = scmp.ge.s32.totalorder %s8, 4
    %s18 = sphi 0, %s20
    %s21 = sphi 0, %s18
    %s22 = sphi 0, %s21
    %s38 = sphi 0, %s22
    %s42 = sphi 0, %s42
    %s44 = sphi 0, %s42
    %s45 = sphi 0, %s44
    %s59 = sphi 0, %s45
    %s65 = sphi 0, %s67
    %s68 = sphi 0, %s65
    %s69 = sphi 0, %s68
    %s85 = sphi 0, %s69
  $region4: #{tpu_custom_call.1} parent=0 // loop_header_branch
    %11 = sbr.rel (%p9) target = $region8
  $region5: #{tpu_custom_call.1} parent=0 // loop_body
    %s13 = ssub.s32 %s8, 1
    %s14 = ssub.s32 %s8, 2
    %s15 = sadd.s32 %s8, 1
    %s16 = ssub.s32 %s8, %s15
    %p17 = scmp.eq.s32.totalorder %s16, 0
    %s19 = sadd.s32 %s18, 1
    %s20 = scalar_select %p17, %s18, %s19
    %p23 = pneg %p17
    %p24 = scmp.eq.s32.totalorder %s8, 1
    %p25 = por %p23, %p24
    %p26 = scmp.ne.s32.totalorder %s18, %s21
    %p27 = scmp.eq.s32.totalorder %s8, 0
    %p28 = por %p26, %p27
    %p29 = scmp.ne.s32.totalorder %s18, %s21
    %p30 = scmp.eq.s32.totalorder %s13, 1
    %p31 = por %p29, %p30
    %p32 = scmp.ne.s32.totalorder %s21, %s22
    %p33 = scmp.eq.s32.totalorder %s13, 0
    %p34 = por %p32, %p33
    %p35 = scmp.ne.s32.totalorder %s21, %s22
    %p36 = scmp.eq.s32.totalorder %s14, 1
    %p37 = por %p35, %p36
    %p39 = scmp.ne.s32.totalorder %s22, %s38
    %p40 = scmp.eq.s32.totalorder %s14, 0
    %p41 = por %p39, %p40
    %s43 = sadd.s32 %s42, 1
    %p46 = scmp.eq.s32.totalorder %s8, 1
    %p47 = scmp.ne.s32.totalorder %s42, %s44
    %p48 = scmp.eq.s32.totalorder %s8, 0
    %p49 = por %p47, %p48
    %p50 = scmp.ne.s32.totalorder %s42, %s44
    %p51 = scmp.eq.s32.totalorder %s13, 1
    %p52 = por %p50, %p51
    %p53 = scmp.ne.s32.totalorder %s44, %s45
    %p54 = scmp.eq.s32.totalorder %s13, 0
    %p55 = por %p53, %p54
    %p56 = scmp.ne.s32.totalorder %s44, %s45
    %p57 = scmp.eq.s32.totalorder %s14, 1
    %p58 = por %p56, %p57
    %p60 = scmp.ne.s32.totalorder %s45, %s59
    %p61 = scmp.eq.s32.totalorder %s14, 0
    %p62 = por %p60, %p61
    %s63 = ssub.s32 %s8, %s15
    %p64 = scmp.eq.s32.totalorder %s63, 0
    %s66 = sadd.s32 %s65, 1
    %s67 = scalar_select %p64, %s65, %s66
    %p70 = pneg %p64
    %p71 = scmp.eq.s32.totalorder %s8, 1
    %p72 = por %p70, %p71
    %p73 = scmp.ne.s32.totalorder %s65, %s68
    %p74 = scmp.eq.s32.totalorder %s8, 0
    %p75 = por %p73, %p74
    %p76 = scmp.ne.s32.totalorder %s65, %s68
    %p77 = scmp.eq.s32.totalorder %s13, 1
    %p78 = por %p76, %p77
    %p79 = scmp.ne.s32.totalorder %s68, %s69
    %p80 = scmp.eq.s32.totalorder %s13, 0
    %p81 = por %p79, %p80
    %p82 = scmp.ne.s32.totalorder %s68, %s69
    %p83 = scmp.eq.s32.totalorder %s14, 1
    %p84 = por %p82, %p83
    %p86 = scmp.ne.s32.totalorder %s69, %s85
    %p87 = scmp.eq.s32.totalorder %s14, 0
    %p88 = por %p86, %p87
    %p89 = scmp.le.s32.totalorder 1, %s8
    %p90 = scmp.lt.s32.totalorder %s8, 3
    %p91 = pnand %p89, %p90
    %p92 = pneg %p91
    // Predicated region
    $region9: #{tpu_custom_call.1} parent=5 // pred_check
      _
    $region10: #{tpu_custom_call.1} parent=5 // pred_check_branch
      %94 = sbr.rel (%p91) target = $region12
    $region11: #{tpu_custom_call.1} parent=5 // pred_region
      %s95 = ssub.s32 %s8, 1
      // Predicated region
      $region13: #{tpu_custom_call.1} parent=11 // pred_check
        %p96 = pneg %p55
      $region14: #{tpu_custom_call.1} parent=11 // pred_check_branch
        %98 = sbr.rel (%p96) target = $region16
      $region15: #{tpu_custom_call.1} parent=11 // pred_region
        _
      $region16: #{tpu_custom_call.1} parent=11 // pred_fallthru
        _
    $region12: #{tpu_custom_call.1} parent=5 // pred_fallthru
      _
    %p99 = scmp.lt.s32.totalorder %s8, 2
    // Predicated region
    $region17: #{tpu_custom_call.1} parent=5 // pred_check
      %p100 = pneg %p99
    $region18: #{tpu_custom_call.1} parent=5 // pred_check_branch
      %102 = sbr.rel (%p100) target = $region20
    $region19: #{tpu_custom_call.1} parent=5 // pred_region
      // Predicated region
      $region21: #{tpu_custom_call.1} parent=19 // pred_check
        %p103 = pneg %p28
      $region22: #{tpu_custom_call.1} parent=19 // pred_check_branch
        %105 = sbr.rel (%p103) target = $region24
      $region23: #{tpu_custom_call.1} parent=19 // pred_region
        %p106 = scmp.lt.s32.totalorder %s8, 1
        %s107 = scalar_select %p106, %s8, 1
        %s108 = smul.addr %s107, 54
        %s109 = smul.addr %s108, 4
        %s110 = scalar_lea.vmem %s0, %s109
      $region24: #{tpu_custom_call.1} parent=19 // pred_fallthru
        _
    $region20: #{tpu_custom_call.1} parent=5 // pred_fallthru
      _
    %p111 = scmp.le.s32.totalorder 1, %s8
    %p112 = scmp.lt.s32.totalorder %s8, 3
    %p113 = pnand %p111, %p112
    %p114 = pneg %p113
    // Predicated region
    $region25: #{tpu_custom_call.1} parent=5 // pred_check
      _
    $region26: #{tpu_custom_call.1} parent=5 // pred_check_branch
      %116 = sbr.rel (%p113) target = $region28
    $region27: #{tpu_custom_call.1} parent=5 // pred_region
      %s117 = ssub.s32 %s8, 1
      %p118 = scmp.lt.s32.totalorder %s13, 1
      %s119 = scalar_select %p118, %s13, 1
      %s120 = smul.addr %s119, 54
      %s121 = smul.addr %s120, 4
      %s122 = scalar_lea.vmem %s0, %s121
      %p123 = pneg %p34
      %p124 = pneg %p31
      %p125 = pneg %p55
      %p126 = pneg %p52
      %p127 = pneg %p81
      %p128 = pneg %p78
      %p129 = scmp.lt.s32.totalorder %s13, 1
      %s130 = scalar_select %p129, %s13, 1
      %s131 = smul.addr %s130, 32
      %s132 = smul.addr %s131, 8
      %s133 = scalar_lea.vmem %s2, %s132
      %p134 = scmp.lt.s32.totalorder %s13, 1
      %s135 = scalar_select %p134, %s13, 1
      %s136 = smul.addr %s135, 54
      %s137 = smul.addr %s136, 4
      %s138 = scalar_lea.vmem %s0, %s137
      %p139 = scmp.lt.s32.totalorder %s13, 1
      %s140 = scalar_select %p139, %s13, 1
      %s141 = smul.addr %s140, 32
      %s142 = smul.addr %s141, 8
      %s143 = scalar_lea.vmem %s2, %s142
      %v145 = vld [vmem:[%s138] sm:$0xf]
      %v146 = vld [vmem:[%s138 + $0x4] sm:$0xf]
      %v147 = vld [vmem:[%s138 + $0xc] sm:$0xf]
      %v148 = vld [vmem:[%s138 + $0x10] sm:$0xf]
      %v149 = vld [vmem:[%s138 + $0x18] sm:$0xf]
      %v150 = vld [vmem:[%s138 + $0x1c] sm:$0xf]
      %v151 = vld [vmem:[%s138 + $0x24] sm:$0xf]
      %v152 = vld [vmem:[%s138 + $0x28] sm:$0xf]
      %v153 = vld [vmem:[%s138 + $0x30] sm:$0xf]
      %v154 = vld [vmem:[%s138 + $0x34] sm:$0xf]
      %v155 = vld [vmem:[%s138 + $0x3c] sm:$0xf]
      %v156 = vld [vmem:[%s138 + $0x40] sm:$0xf]
      %v157 = vld [vmem:[%s138 + $0x48] sm:$0xf]
      %v158 = vld [vmem:[%s138 + $0x4c] sm:$0xf]
      %v159 = vld [vmem:[%s138 + $0x54] sm:$0xf]
      %v160 = vld [vmem:[%s138 + $0x58] sm:$0xf]
      %v161 = vld [vmem:[%s138 + $0x60] sm:$0xf]
      %v162 = vld [vmem:[%s138 + $0x64] sm:$0xf]
      %v163 = vld [vmem:[%s138 + $0x6c] sm:$0xf]
      %v164 = vld [vmem:[%s138 + $0x70] sm:$0xf]
      %v165 = vld [vmem:[%s138 + $0x78] sm:$0xf]
      %v166 = vld [vmem:[%s138 + $0x7c] sm:$0xf]
      %v167 = vld [vmem:[%s138 + $0x84] sm:$0xf]
      %v168 = vld [vmem:[%s138 + $0x88] sm:$0xf]
      %v169 = vld [vmem:[%s138 + $0x90] sm:$0xf]
      %v170 = vld [vmem:[%s138 + $0x94] sm:$0xf]
      %v171 = vld [vmem:[%s138 + $0x9c] sm:$0xf]
      %v172 = vld [vmem:[%s138 + $0xa0] sm:$0xf]
      %v173 = vld [vmem:[%s138 + $0xa8] sm:$0xf]
      %v174 = vld [vmem:[%s138 + $0xac] sm:$0xf]
      %v175 = vld [vmem:[%s138 + $0xb4] sm:$0xf]
      %v176 = vld [vmem:[%s138 + $0xb8] sm:$0xf]
      %vm177 = vcmask 60416
      %178 = vst.msk [vmem:[#allocation2] sm:$0xf] %vm177, %v145
      %179 = vst.msk [vmem:[#allocation2 + $0x4] sm:$0xf] %vm177, %v146
      %180 = vst.msk [vmem:[#allocation2 + $0x8] sm:$0xf] %vm177, %v147
      %181 = vst.msk [vmem:[#allocation2 + $0xc] sm:$0xf] %vm177, %v148
      %182 = vst.msk [vmem:[#allocation2 + $0x10] sm:$0xf] %vm177, %v149
      %183 = vst.msk [vmem:[#allocation2 + $0x14] sm:$0xf] %vm177, %v150
      %184 = vst.msk [vmem:[#allocation2 + $0x18] sm:$0xf] %vm177, %v151
      %185 = vst.msk [vmem:[#allocation2 + $0x1c] sm:$0xf] %vm177, %v152
      %186 = vst.msk [vmem:[#allocation2 + $0x20] sm:$0xf] %vm177, %v153
      %187 = vst.msk [vmem:[#allocation2 + $0x24] sm:$0xf] %vm177, %v154
      %188 = vst.msk [vmem:[#allocation2 + $0x28] sm:$0xf] %vm177, %v155
      %189 = vst.msk [vmem:[#allocation2 + $0x2c] sm:$0xf] %vm177, %v156
      %190 = vst.msk [vmem:[#allocation2 + $0x30] sm:$0xf] %vm177, %v157
      %191 = vst.msk [vmem:[#allocation2 + $0x34] sm:$0xf] %vm177, %v158
      %192 = vst.msk [vmem:[#allocation2 + $0x38] sm:$0xf] %vm177, %v159
      %193 = vst.msk [vmem:[#allocation2 + $0x3c] sm:$0xf] %vm177, %v160
      %194 = vst.msk [vmem:[#allocation2 + $0x40] sm:$0xf] %vm177, %v161
      %195 = vst.msk [vmem:[#allocation2 + $0x44] sm:$0xf] %vm177, %v162
      %196 = vst.msk [vmem:[#allocation2 + $0x48] sm:$0xf] %vm177, %v163
      %197 = vst.msk [vmem:[#allocation2 + $0x4c] sm:$0xf] %vm177, %v164
      %198 = vst.msk [vmem:[#allocation2 + $0x50] sm:$0xf] %vm177, %v165
      %199 = vst.msk [vmem:[#allocation2 + $0x54] sm:$0xf] %vm177, %v166
      %200 = vst.msk [vmem:[#allocation2 + $0x58] sm:$0xf] %vm177, %v167
      %201 = vst.msk [vmem:[#allocation2 + $0x5c] sm:$0xf] %vm177, %v168
      %202 = vst.msk [vmem:[#allocation2 + $0x60] sm:$0xf] %vm177, %v169
      %203 = vst.msk [vmem:[#allocation2 + $0x64] sm:$0xf] %vm177, %v170
      %204 = vst.msk [vmem:[#allocation2 + $0x68] sm:$0xf] %vm177, %v171
      %205 = vst.msk [vmem:[#allocation2 + $0x6c] sm:$0xf] %vm177, %v172
      %206 = vst.msk [vmem:[#allocation2 + $0x70] sm:$0xf] %vm177, %v173
      %207 = vst.msk [vmem:[#allocation2 + $0x74] sm:$0xf] %vm177, %v174
      %208 = vst.msk [vmem:[#allocation2 + $0x78] sm:$0xf] %vm177, %v175
      %209 = vst.msk [vmem:[#allocation2 + $0x7c] sm:$0xf] %vm177, %v176
      %v210 = vld [vmem:[%s138] sm:$0xf]
      %v211 = vld [vmem:[%s138 + $0x4] sm:$0xf]
      %v212 = vld [vmem:[%s138 + $0x8] sm:$0x1]
      %v213 = vld [vmem:[%s138 + $0xc] sm:$0xf]
      %v214 = vld [vmem:[%s138 + $0x10] sm:$0xf]
      %v215 = vld [vmem:[%s138 + $0x14] sm:$0x1]
      %v216 = vld [vmem:[%s138 + $0x18] sm:$0xf]
      %v217 = vld [vmem:[%s138 + $0x1c] sm:$0xf]
      %v218 = vld [vmem:[%s138 + $0x20] sm:$0x1]
      %v219 = vld [vmem:[%s138 + $0x24] sm:$0xf]
      %v220 = vld [vmem:[%s138 + $0x28] sm:$0xf]
      %v221 = vld [vmem:[%s138 + $0x2c] sm:$0x1]
      %v222 = vld [vmem:[%s138 + $0x30] sm:$0xf]
      %v223 = vld [vmem:[%s138 + $0x34] sm:$0xf]
      %v224 = vld [vmem:[%s138 + $0x38] sm:$0x1]
      %v225 = vld [vmem:[%s138 + $0x3c] sm:$0xf]
      %v226 = vld [vmem:[%s138 + $0x40] sm:$0xf]
      %v227 = vld [vmem:[%s138 + $0x44] sm:$0x1]
      %v228 = vld [vmem:[%s138 + $0x48] sm:$0xf]
      %v229 = vld [vmem:[%s138 + $0x4c] sm:$0xf]
      %v230 = vld [vmem:[%s138 + $0x50] sm:$0x1]
      %v231 = vld [vmem:[%s138 + $0x54] sm:$0xf]
      %v232 = vld [vmem:[%s138 + $0x58] sm:$0xf]
      %v233 = vld [vmem:[%s138 + $0x5c] sm:$0x1]
      %v234 = vld [vmem:[%s138 + $0x60] sm:$0xf]
      %v235 = vld [vmem:[%s138 + $0x64] sm:$0xf]
      %v236 = vld [vmem:[%s138 + $0x68] sm:$0x1]
      %v237 = vld [vmem:[%s138 + $0x6c] sm:$0xf]
      %v238 = vld [vmem:[%s138 + $0x70] sm:$0xf]
      %v239 = vld [vmem:[%s138 + $0x74] sm:$0x1]
      %v240 = vld [vmem:[%s138 + $0x78] sm:$0xf]
      %v241 = vld [vmem:[%s138 + $0x7c] sm:$0xf]
      %v242 = vld [vmem:[%s138 + $0x80] sm:$0x1]
      %v243 = vld [vmem:[%s138 + $0x84] sm:$0xf]
      %v244 = vld [vmem:[%s138 + $0x88] sm:$0xf]
      %v245 = vld [vmem:[%s138 + $0x8c] sm:$0x1]
      %v246 = vld [vmem:[%s138 + $0x90] sm:$0xf]
      %v247 = vld [vmem:[%s138 + $0x94] sm:$0xf]
      %v248 = vld [vmem:[%s138 + $0x98] sm:$0x1]
      %v249 = vld [vmem:[%s138 + $0x9c] sm:$0xf]
      %v250 = vld [vmem:[%s138 + $0xa0] sm:$0xf]
      %v251 = vld [vmem:[%s138 + $0xa4] sm:$0x1]
      %v252 = vld [vmem:[%s138 + $0xa8] sm:$0xf]
      %v253 = vld [vmem:[%s138 + $0xac] sm:$0xf]
      %v254 = vld [vmem:[%s138 + $0xb0] sm:$0x1]
      %v255 = vld [vmem:[%s138 + $0xb4] sm:$0xf]
      %v256 = vld [vmem:[%s138 + $0xb8] sm:$0xf]
      %v257 = vld [vmem:[%s138 + $0xbc] sm:$0x1]
      %vm258 = vsmask.f32 3328
      %vm259 = vsmask.f32 7440
      %vm260 = vmor %vm258, %vm259
      %v262 = vshrl.u32 %v210, 16
      %v264 = vrot.slane %v262, 4
      %v265 = vshll.u32 %v210, 16
      %v267 = vrot.slane %v265, 5
      %v268 = vor.u32 %v264, %v267
      %v269 = vrot.slane %v268, 4
      %v271 = vshll.u32 %v211, 16
      %v273 = vrot.slane %v271, 5
      %v274 = vsel %vm260, %v269, %v273
      %v275 = vshrl.u32 %v211, 16
      %v277 = vrot.slane %v275, 4
      %v278 = vor.u32 %v277, %v273
      %v279 = vrot.slane %v278, 4
      %v281 = vshll.u32 %v212, 16
      %v283 = vrot.slane %v281, 5
      %v284 = vsel %vm260, %v279, %v283
      %v286 = vshrl.u32 %v213, 16
      %v288 = vrot.slane %v286, 4
      %v289 = vshll.u32 %v213, 16
      %v291 = vrot.slane %v289, 5
      %v292 = vor.u32 %v288, %v291
      %v293 = vrot.slane %v292, 4
      %v295 = vshll.u32 %v214, 16
      %v297 = vrot.slane %v295, 5
      %v298 = vsel %vm260, %v293, %v297
      %v299 = vshrl.u32 %v214, 16
      %v301 = vrot.slane %v299, 4
      %v302 = vor.u32 %v301, %v297
      %v303 = vrot.slane %v302, 4
      %v305 = vshll.u32 %v215, 16
      %v307 = vrot.slane %v305, 5
      %v308 = vsel %vm260, %v303, %v307
      %v310 = vshrl.u32 %v216, 16
      %v312 = vrot.slane %v310, 4
      %v313 = vshll.u32 %v216, 16
      %v315 = vrot.slane %v313, 5
      %v316 = vor.u32 %v312, %v315
      %v317 = vrot.slane %v316, 4
      %v319 = vshll.u32 %v217, 16
      %v321 = vrot.slane %v319, 5
      %v322 = vsel %vm260, %v317, %v321
      %v323 = vshrl.u32 %v217, 16
      %v325 = vrot.slane %v323, 4
      %v326 = vor.u32 %v325, %v321
      %v327 = vrot.slane %v326, 4
      %v329 = vshll.u32 %v218, 16
      %v331 = vrot.slane %v329, 5
      %v332 = vsel %vm260, %v327, %v331
      %v334 = vshrl.u32 %v219, 16
      %v336 = vrot.slane %v334, 4
      %v337 = vshll.u32 %v219, 16
      %v339 = vrot.slane %v337, 5
      %v340 = vor.u32 %v336, %v339
      %v341 = vrot.slane %v340, 4
      %v343 = vshll.u32 %v220, 16
      %v345 = vrot.slane %v343, 5
      %v346 = vsel %vm260, %v341, %v345
      %v347 = vshrl.u32 %v220, 16
      %v349 = vrot.slane %v347, 4
      %v350 = vor.u32 %v349, %v345
      %v351 = vrot.slane %v350, 4
      %v353 = vshll.u32 %v221, 16
      %v355 = vrot.slane %v353, 5
      %v356 = vsel %vm260, %v351, %v355
      %v358 = vshrl.u32 %v222, 16
      %v360 = vrot.slane %v358, 4
      %v361 = vshll.u32 %v222, 16
      %v363 = vrot.slane %v361, 5
      %v364 = vor.u32 %v360, %v363
      %v365 = vrot.slane %v364, 4
      %v367 = vshll.u32 %v223, 16
      %v369 = vrot.slane %v367, 5
      %v370 = vsel %vm260, %v365, %v369
      %v371 = vshrl.u32 %v223, 16
      %v373 = vrot.slane %v371, 4
      %v374 = vor.u32 %v373, %v369
      %v375 = vrot.slane %v374, 4
      %v377 = vshll.u32 %v224, 16
      %v379 = vrot.slane %v377, 5
      %v380 = vsel %vm260, %v375, %v379
      %v382 = vshrl.u32 %v225, 16
      %v384 = vrot.slane %v382, 4
      %v385 = vshll.u32 %v225, 16
      %v387 = vrot.slane %v385, 5
      %v388 = vor.u32 %v384, %v387
      %v389 = vrot.slane %v388, 4
      %v391 = vshll.u32 %v226, 16
      %v393 = vrot.slane %v391, 5
      %v394 = vsel %vm260, %v389, %v393
      %v395 = vshrl.u32 %v226, 16
      %v397 = vrot.slane %v395, 4
      %v398 = vor.u32 %v397, %v393
      %v399 = vrot.slane %v398, 4
      %v401 = vshll.u32 %v227, 16
      %v403 = vrot.slane %v401, 5
      %v404 = vsel %vm260, %v399, %v403
      %v406 = vshrl.u32 %v228, 16
      %v408 = vrot.slane %v406, 4
      %v409 = vshll.u32 %v228, 16
      %v411 = vrot.slane %v409, 5
      %v412 = vor.u32 %v408, %v411
      %v413 = vrot.slane %v412, 4
      %v415 = vshll.u32 %v229, 16
      %v417 = vrot.slane %v415, 5
      %v418 = vsel %vm260, %v413, %v417
      %v419 = vshrl.u32 %v229, 16
      %v421 = vrot.slane %v419, 4
      %v422 = vor.u32 %v421, %v417
      %v423 = vrot.slane %v422, 4
      %v425 = vshll.u32 %v230, 16
      %v427 = vrot.slane %v425, 5
      %v428 = vsel %vm260, %v423, %v427
      %v430 = vshrl.u32 %v231, 16
      %v432 = vrot.slane %v430, 4
      %v433 = vshll.u32 %v231, 16
      %v435 = vrot.slane %v433, 5
      %v436 = vor.u32 %v432, %v435
      %v437 = vrot.slane %v436, 4
      %v439 = vshll.u32 %v232, 16
      %v441 = vrot.slane %v439, 5
      %v442 = vsel %vm260, %v437, %v441
      %v443 = vshrl.u32 %v232, 16
      %v445 = vrot.slane %v443, 4
      %v446 = vor.u32 %v445, %v441
      %v447 = vrot.slane %v446, 4
      %v449 = vshll.u32 %v233, 16
      %v451 = vrot.slane %v449, 5
      %v452 = vsel %vm260, %v447, %v451
      %v454 = vshrl.u32 %v234, 16
      %v456 = vrot.slane %v454, 4
      %v457 = vshll.u32 %v234, 16
      %v459 = vrot.slane %v457, 5
      %v460 = vor.u32 %v456, %v459
      %v461 = vrot.slane %v460, 4
      %v463 = vshll.u32 %v235, 16
      %v465 = vrot.slane %v463, 5
      %v466 = vsel %vm260, %v461, %v465
      %v467 = vshrl.u32 %v235, 16
      %v469 = vrot.slane %v467, 4
      %v470 = vor.u32 %v469, %v465
      %v471 = vrot.slane %v470, 4
      %v473 = vshll.u32 %v236, 16
      %v475 = vrot.slane %v473, 5
      %v476 = vsel %vm260, %v471, %v475
      %v478 = vshrl.u32 %v237, 16
      %v480 = vrot.slane %v478, 4
      %v481 = vshll.u32 %v237, 16
      %v483 = vrot.slane %v481, 5
      %v484 = vor.u32 %v480, %v483
      %v485 = vrot.slane %v484, 4
      %v487 = vshll.u32 %v238, 16
      %v489 = vrot.slane %v487, 5
      %v490 = vsel %vm260, %v485, %v489
      %v491 = vshrl.u32 %v238, 16
      %v493 = vrot.slane %v491, 4
      %v494 = vor.u32 %v493, %v489
      %v495 = vrot.slane %v494, 4
      %v497 = vshll.u32 %v239, 16
      %v499 = vrot.slane %v497, 5
      %v500 = vsel %vm260, %v495, %v499
      %v502 = vshrl.u32 %v240, 16
      %v504 = vrot.slane %v502, 4
      %v505 = vshll.u32 %v240, 16
      %v507 = vrot.slane %v505, 5
      %v508 = vor.u32 %v504, %v507
      %v509 = vrot.slane %v508, 4
      %v511 = vshll.u32 %v241, 16
      %v513 = vrot.slane %v511, 5
      %v514 = vsel %vm260, %v509, %v513
      %v515 = vshrl.u32 %v241, 16
      %v517 = vrot.slane %v515, 4
      %v518 = vor.u32 %v517, %v513
      %v519 = vrot.slane %v518, 4
      %v521 = vshll.u32 %v242, 16
      %v523 = vrot.slane %v521, 5
      %v524 = vsel %vm260, %v519, %v523
      %v526 = vshrl.u32 %v243, 16
      %v528 = vrot.slane %v526, 4
      %v529 = vshll.u32 %v243, 16
      %v531 = vrot.slane %v529, 5
      %v532 = vor.u32 %v528, %v531
      %v533 = vrot.slane %v532, 4
      %v535 = vshll.u32 %v244, 16
      %v537 = vrot.slane %v535, 5
      %v538 = vsel %vm260, %v533, %v537
      %v539 = vshrl.u32 %v244, 16
      %v541 = vrot.slane %v539, 4
      %v542 = vor.u32 %v541, %v537
      %v543 = vrot.slane %v542, 4
      %v545 = vshll.u32 %v245, 16
      %v547 = vrot.slane %v545, 5
      %v548 = vsel %vm260, %v543, %v547
      %v550 = vshrl.u32 %v246, 16
      %v552 = vrot.slane %v550, 4
      %v553 = vshll.u32 %v246, 16
      %v555 = vrot.slane %v553, 5
      %v556 = vor.u32 %v552, %v555
      %v557 = vrot.slane %v556, 4
      %v559 = vshll.u32 %v247, 16
      %v561 = vrot.slane %v559, 5
      %v562 = vsel %vm260, %v557, %v561
      %v563 = vshrl.u32 %v247, 16
      %v565 = vrot.slane %v563, 4
      %v566 = vor.u32 %v565, %v561
      %v567 = vrot.slane %v566, 4
      %v569 = vshll.u32 %v248, 16
      %v571 = vrot.slane %v569, 5
      %v572 = vsel %vm260, %v567, %v571
      %v574 = vshrl.u32 %v249, 16
      %v576 = vrot.slane %v574, 4
      %v577 = vshll.u32 %v249, 16
      %v579 = vrot.slane %v577, 5
      %v580 = vor.u32 %v576, %v579
      %v581 = vrot.slane %v580, 4
      %v583 = vshll.u32 %v250, 16
      %v585 = vrot.slane %v583, 5
      %v586 = vsel %vm260, %v581, %v585
      %v587 = vshrl.u32 %v250, 16
      %v589 = vrot.slane %v587, 4
      %v590 = vor.u32 %v589, %v585
      %v591 = vrot.slane %v590, 4
      %v593 = vshll.u32 %v251, 16
      %v595 = vrot.slane %v593, 5
      %v596 = vsel %vm260, %v591, %v595
      %v598 = vshrl.u32 %v252, 16
      %v600 = vrot.slane %v598, 4
      %v601 = vshll.u32 %v252, 16
      %v603 = vrot.slane %v601, 5
      %v604 = vor.u32 %v600, %v603
      %v605 = vrot.slane %v604, 4
      %v607 = vshll.u32 %v253, 16
      %v609 = vrot.slane %v607, 5
      %v610 = vsel %vm260, %v605, %v609
      %v611 = vshrl.u32 %v253, 16
      %v613 = vrot.slane %v611, 4
      %v614 = vor.u32 %v613, %v609
      %v615 = vrot.slane %v614, 4
      %v617 = vshll.u32 %v254, 16
      %v619 = vrot.slane %v617, 5
      %v620 = vsel %vm260, %v615, %v619
      %v622 = vshrl.u32 %v255, 16
      %v624 = vrot.slane %v622, 4
      %v625 = vshll.u32 %v255, 16
      %v627 = vrot.slane %v625, 5
      %v628 = vor.u32 %v624, %v627
      %v629 = vrot.slane %v628, 4
      %v631 = vshll.u32 %v256, 16
      %v633 = vrot.slane %v631, 5
      %v634 = vsel %vm260, %v629, %v633
      %v635 = vshrl.u32 %v256, 16
      %v637 = vrot.slane %v635, 4
      %v638 = vor.u32 %v637, %v633
      %v639 = vrot.slane %v638, 4
      %v641 = vshll.u32 %v257, 16
      %v643 = vrot.slane %v641, 5
      %v644 = vsel %vm260, %v639, %v643
      %645 = vrot.lane.b32.xlu0 %v274, 8
      %v646 = vpop.permute.xlu0 %645
      %647 = vrot.lane.b32.xlu0 %v284, 8
      %v648 = vpop.permute.xlu0 %647
      %649 = vrot.lane.b32.xlu0 %v298, 8
      %v650 = vpop.permute.xlu0 %649
      %651 = vrot.lane.b32.xlu0 %v308, 8
      %v652 = vpop.permute.xlu0 %651
      %653 = vrot.lane.b32.xlu0 %v322, 8
      %v654 = vpop.permute.xlu0 %653
      %655 = vrot.lane.b32.xlu0 %v332, 8
      %v656 = vpop.permute.xlu0 %655
      %657 = vrot.lane.b32.xlu0 %v346, 8
      %v658 = vpop.permute.xlu0 %657
      %659 = vrot.lane.b32.xlu0 %v356, 8
      %v660 = vpop.permute.xlu0 %659
      %661 = vrot.lane.b32.xlu0 %v370, 8
      %v662 = vpop.permute.xlu0 %661
      %663 = vrot.lane.b32.xlu0 %v380, 8
      %v664 = vpop.permute.xlu0 %663
      %665 = vrot.lane.b32.xlu0 %v394, 8
      %v666 = vpop.permute.xlu0 %665
      %667 = vrot.lane.b32.xlu0 %v404, 8
      %v668 = vpop.permute.xlu0 %667
      %669 = vrot.lane.b32.xlu0 %v418, 8
      %v670 = vpop.permute.xlu0 %669
      %671 = vrot.lane.b32.xlu0 %v428, 8
      %v672 = vpop.permute.xlu0 %671
      %673 = vrot.lane.b32.xlu0 %v442, 8
      %v674 = vpop.permute.xlu0 %673
      %675 = vrot.lane.b32.xlu0 %v452, 8
      %v676 = vpop.permute.xlu0 %675
      %677 = vrot.lane.b32.xlu0 %v466, 8
      %v678 = vpop.permute.xlu0 %677
      %679 = vrot.lane.b32.xlu0 %v476, 8
      %v680 = vpop.permute.xlu0 %679
      %681 = vrot.lane.b32.xlu0 %v490, 8
      %v682 = vpop.permute.xlu0 %681
      %683 = vrot.lane.b32.xlu0 %v500, 8
      %v684 = vpop.permute.xlu0 %683
      %685 = vrot.lane.b32.xlu0 %v514, 8
      %v686 = vpop.permute.xlu0 %685
      %687 = vrot.lane.b32.xlu0 %v524, 8
      %v688 = vpop.permute.xlu0 %687
      %689 = vrot.lane.b32.xlu0 %v538, 8
      %v690 = vpop.permute.xlu0 %689
      %691 = vrot.lane.b32.xlu0 %v548, 8
      %v692 = vpop.permute.xlu0 %691
      %693 = vrot.lane.b32.xlu0 %v562, 8
      %v694 = vpop.permute.xlu0 %693
      %695 = vrot.lane.b32.xlu0 %v572, 8
      %v696 = vpop.permute.xlu0 %695
      %697 = vrot.lane.b32.xlu0 %v586, 8
      %v698 = vpop.permute.xlu0 %697
      %699 = vrot.lane.b32.xlu0 %v596, 8
      %v700 = vpop.permute.xlu0 %699
      %701 = vrot.lane.b32.xlu0 %v610, 8
      %v702 = vpop.permute.xlu0 %701
      %703 = vrot.lane.b32.xlu0 %v620, 8
      %v704 = vpop.permute.xlu0 %703
      %705 = vrot.lane.b32.xlu0 %v634, 8
      %v706 = vpop.permute.xlu0 %705
      %707 = vrot.lane.b32.xlu0 %v644, 8
      %v708 = vpop.permute.xlu0 %707
      %vm741 = vcmask 126016
      %742 = vst.msk [vmem:[#allocation2] sm:$0xf] %vm741, %v646
      %743 = vst.msk [vmem:[#allocation2 + $0x4] sm:$0xf] %vm741, %v648
      %744 = vst.msk [vmem:[#allocation2 + $0x8] sm:$0xf] %vm741, %v650
      %745 = vst.msk [vmem:[#allocation2 + $0xc] sm:$0xf] %vm741, %v652
      %746 = vst.msk [vmem:[#allocation2 + $0x10] sm:$0xf] %vm741, %v654
      %747 = vst.msk [vmem:[#allocation2 + $0x14] sm:$0xf] %vm741, %v656
      %748 = vst.msk [vmem:[#allocation2 + $0x18] sm:$0xf] %vm741, %v658
      %749 = vst.msk [vmem:[#allocation2 + $0x1c] sm:$0xf] %vm741, %v660
      %750 = vst.msk [vmem:[#allocation2 + $0x20] sm:$0xf] %vm741, %v662
      %751 = vst.msk [vmem:[#allocation2 + $0x24] sm:$0xf] %vm741, %v664
      %752 = vst.msk [vmem:[#allocation2 + $0x28] sm:$0xf] %vm741, %v666
      %753 = vst.msk [vmem:[#allocation2 + $0x2c] sm:$0xf] %vm741, %v668
      %754 = vst.msk [vmem:[#allocation2 + $0x30] sm:$0xf] %vm741, %v670
      %755 = vst.msk [vmem:[#allocation2 + $0x34] sm:$0xf] %vm741, %v672
      %756 = vst.msk [vmem:[#allocation2 + $0x38] sm:$0xf] %vm741, %v674
      %757 = vst.msk [vmem:[#allocation2 + $0x3c] sm:$0xf] %vm741, %v676
      %758 = vst.msk [vmem:[#allocation2 + $0x40] sm:$0xf] %vm741, %v678
      %759 = vst.msk [vmem:[#allocation2 + $0x44] sm:$0xf] %vm741, %v680
      %760 = vst.msk [vmem:[#allocation2 + $0x48] sm:$0xf] %vm741, %v682
      %761 = vst.msk [vmem:[#allocation2 + $0x4c] sm:$0xf] %vm741, %v684
      %762 = vst.msk [vmem:[#allocation2 + $0x50] sm:$0xf] %vm741, %v686
      %763 = vst.msk [vmem:[#allocation2 + $0x54] sm:$0xf] %vm741, %v688
      %764 = vst.msk [vmem:[#allocation2 + $0x58] sm:$0xf] %vm741, %v690
      %765 = vst.msk [vmem:[#allocation2 + $0x5c] sm:$0xf] %vm741, %v692
      %766 = vst.msk [vmem:[#allocation2 + $0x60] sm:$0xf] %vm741, %v694
      %767 = vst.msk [vmem:[#allocation2 + $0x64] sm:$0xf] %vm741, %v696
      %768 = vst.msk [vmem:[#allocation2 + $0x68] sm:$0xf] %vm741, %v698
      %769 = vst.msk [vmem:[#allocation2 + $0x6c] sm:$0xf] %vm741, %v700
      %770 = vst.msk [vmem:[#allocation2 + $0x70] sm:$0xf] %vm741, %v702
      %771 = vst.msk [vmem:[#allocation2 + $0x74] sm:$0xf] %vm741, %v704
      %772 = vst.msk [vmem:[#allocation2 + $0x78] sm:$0xf] %vm741, %v706
      %773 = vst.msk [vmem:[#allocation2 + $0x7c] sm:$0xf] %vm741, %v708
      %s774 = scalar_lea.vmem %s138, 12
      %v775 = vld [vmem:[%s774] sm:$0xf]
      %v776 = vld [vmem:[%s774 + $0x4] sm:$0xf]
      %v777 = vld [vmem:[%s774 + $0xc] sm:$0xf]
      %v778 = vld [vmem:[%s774 + $0x10] sm:$0xf]
      %v779 = vld [vmem:[%s774 + $0x18] sm:$0xf]
      %v780 = vld [vmem:[%s774 + $0x1c] sm:$0xf]
      %v781 = vld [vmem:[%s774 + $0x24] sm:$0xf]
      %v782 = vld [vmem:[%s774 + $0x28] sm:$0xf]
      %v783 = vld [vmem:[%s774 + $0x30] sm:$0xf]
      %v784 = vld [vmem:[%s774 + $0x34] sm:$0xf]
      %v785 = vld [vmem:[%s774 + $0x3c] sm:$0xf]
      %v786 = vld [vmem:[%s774 + $0x40] sm:$0xf]
      %v787 = vld [vmem:[%s774 + $0x48] sm:$0xf]
      %v788 = vld [vmem:[%s774 + $0x4c] sm:$0xf]
      %v789 = vld [vmem:[%s774 + $0x54] sm:$0xf]
      %v790 = vld [vmem:[%s774 + $0x58] sm:$0xf]
      %v791 = vld [vmem:[%s774 + $0x60] sm:$0xf]
      %v792 = vld [vmem:[%s774 + $0x64] sm:$0xf]
      %v793 = vld [vmem:[%s774 + $0x6c] sm:$0xf]
      %v794 = vld [vmem:[%s774 + $0x70] sm:$0xf]
      %v795 = vld [vmem:[%s774 + $0x78] sm:$0xf]
      %v796 = vld [vmem:[%s774 + $0x7c] sm:$0xf]
      %v797 = vld [vmem:[%s774 + $0x84] sm:$0xf]
      %v798 = vld [vmem:[%s774 + $0x88] sm:$0xf]
      %v799 = vld [vmem:[%s774 + $0x90] sm:$0xf]
      %v800 = vld [vmem:[%s774 + $0x94] sm:$0xf]
      %v801 = vld [vmem:[%s774 + $0x9c] sm:$0xf]
      %v802 = vld [vmem:[%s774 + $0xa0] sm:$0xf]
      %v803 = vld [vmem:[%s774 + $0xa8] sm:$0xf]
      %v804 = vld [vmem:[%s774 + $0xac] sm:$0xf]
      %v805 = vld [vmem:[%s774 + $0xb4] sm:$0xf]
      %v806 = vld [vmem:[%s774 + $0xb8] sm:$0xf]
      %839 = vrot.lane.b32.xlu0 %v775, 16
      %v840 = vpop.permute.xlu0 %839
      %841 = vrot.lane.b32.xlu0 %v776, 16
      %v842 = vpop.permute.xlu0 %841
      %843 = vrot.lane.b32.xlu0 %v777, 16
      %v844 = vpop.permute.xlu0 %843
      %845 = vrot.lane.b32.xlu0 %v778, 16
      %v846 = vpop.permute.xlu0 %845
      %847 = vrot.lane.b32.xlu0 %v779, 16
      %v848 = vpop.permute.xlu0 %847
      %849 = vrot.lane.b32.xlu0 %v780, 16
      %v850 = vpop.permute.xlu0 %849
      %851 = vrot.lane.b32.xlu0 %v781, 16
      %v852 = vpop.permute.xlu0 %851
      %853 = vrot.lane.b32.xlu0 %v782, 16
      %v854 = vpop.permute.xlu0 %853
      %855 = vrot.lane.b32.xlu0 %v783, 16
      %v856 = vpop.permute.xlu0 %855
      %857 = vrot.lane.b32.xlu0 %v784, 16
      %v858 = vpop.permute.xlu0 %857
      %859 = vrot.lane.b32.xlu0 %v785, 16
      %v860 = vpop.permute.xlu0 %859
      %861 = vrot.lane.b32.xlu0 %v786, 16
      %v862 = vpop.permute.xlu0 %861
      %863 = vrot.lane.b32.xlu0 %v787, 16
      %v864 = vpop.permute.xlu0 %863
      %865 = vrot.lane.b32.xlu0 %v788, 16
      %v866 = vpop.permute.xlu0 %865
      %867 = vrot.lane.b32.xlu0 %v789, 16
      %v868 = vpop.permute.xlu0 %867
      %869 = vrot.lane.b32.xlu0 %v790, 16
      %v870 = vpop.permute.xlu0 %869
      %871 = vrot.lane.b32.xlu0 %v791, 16
      %v872 = vpop.permute.xlu0 %871
      %873 = vrot.lane.b32.xlu0 %v792, 16
      %v874 = vpop.permute.xlu0 %873
      %875 = vrot.lane.b32.xlu0 %v793, 16
      %v876 = vpop.permute.xlu0 %875
      %877 = vrot.lane.b32.xlu0 %v794, 16
      %v878 = vpop.permute.xlu0 %877
      %879 = vrot.lane.b32.xlu0 %v795, 16
      %v880 = vpop.permute.xlu0 %879
      %881 = vrot.lane.b32.xlu0 %v796, 16
      %v882 = vpop.permute.xlu0 %881
      %883 = vrot.lane.b32.xlu0 %v797, 16
      %v884 = vpop.permute.xlu0 %883
      %885 = vrot.lane.b32.xlu0 %v798, 16
      %v886 = vpop.permute.xlu0 %885
      %887 = vrot.lane.b32.xlu0 %v799, 16
      %v888 = vpop.permute.xlu0 %887
      %889 = vrot.lane.b32.xlu0 %v800, 16
      %v890 = vpop.permute.xlu0 %889
      %891 = vrot.lane.b32.xlu0 %v801, 16
      %v892 = vpop.permute.xlu0 %891
      %893 = vrot.lane.b32.xlu0 %v802, 16
      %v894 = vpop.permute.xlu0 %893
      %895 = vrot.lane.b32.xlu0 %v803, 16
      %v896 = vpop.permute.xlu0 %895
      %897 = vrot.lane.b32.xlu0 %v804, 16
      %v898 = vpop.permute.xlu0 %897
      %899 = vrot.lane.b32.xlu0 %v805, 16
      %v900 = vpop.permute.xlu0 %899
      %901 = vrot.lane.b32.xlu0 %v806, 16
      %v902 = vpop.permute.xlu0 %901
      %vm935 = vcmask 191616
      %936 = vst.msk [vmem:[#allocation2] sm:$0xf] %vm935, %v840
      %937 = vst.msk [vmem:[#allocation2 + $0x4] sm:$0xf] %vm935, %v842
      %938 = vst.msk [vmem:[#allocation2 + $0x8] sm:$0xf] %vm935, %v844
      %939 = vst.msk [vmem:[#allocation2 + $0xc] sm:$0xf] %vm935, %v846
      %940 = vst.msk [vmem:[#allocation2 + $0x10] sm:$0xf] %vm935, %v848
      %941 = vst.msk [vmem:[#allocation2 + $0x14] sm:$0xf] %vm935, %v850
      %942 = vst.msk [vmem:[#allocation2 + $0x18] sm:$0xf] %vm935, %v852
      %943 = vst.msk [vmem:[#allocation2 + $0x1c] sm:$0xf] %vm935, %v854
      %944 = vst.msk [vmem:[#allocation2 + $0x20] sm:$0xf] %vm935, %v856
      %945 = vst.msk [vmem:[#allocation2 + $0x24] sm:$0xf] %vm935, %v858
      %946 = vst.msk [vmem:[#allocation2 + $0x28] sm:$0xf] %vm935, %v860
      %947 = vst.msk [vmem:[#allocation2 + $0x2c] sm:$0xf] %vm935, %v862
      %948 = vst.msk [vmem:[#allocation2 + $0x30] sm:$0xf] %vm935, %v864
      %949 = vst.msk [vmem:[#allocation2 + $0x34] sm:$0xf] %vm935, %v866
      %950 = vst.msk [vmem:[#allocation2 + $0x38] sm:$0xf] %vm935, %v868
      %951 = vst.msk [vmem:[#allocation2 + $0x3c] sm:$0xf] %vm935, %v870
      %952 = vst.msk [vmem:[#allocation2 + $0x40] sm:$0xf] %vm935, %v872
      %953 = vst.msk [vmem:[#allocation2 + $0x44] sm:$0xf] %vm935, %v874
      %954 = vst.msk [vmem:[#allocation2 + $0x48] sm:$0xf] %vm935, %v876
      %955 = vst.msk [vmem:[#allocation2 + $0x4c] sm:$0xf] %vm935, %v878
      %956 = vst.msk [vmem:[#allocation2 + $0x50] sm:$0xf] %vm935, %v880
      %957 = vst.msk [vmem:[#allocation2 + $0x54] sm:$0xf] %vm935, %v882
      %958 = vst.msk [vmem:[#allocation2 + $0x58] sm:$0xf] %vm935, %v884
      %959 = vst.msk [vmem:[#allocation2 + $0x5c] sm:$0xf] %vm935, %v886
      %960 = vst.msk [vmem:[#allocation2 + $0x60] sm:$0xf] %vm935, %v888
      %961 = vst.msk [vmem:[#allocation2 + $0x64] sm:$0xf] %vm935, %v890
      %962 = vst.msk [vmem:[#allocation2 + $0x68] sm:$0xf] %vm935, %v892
      %963 = vst.msk [vmem:[#allocation2 + $0x6c] sm:$0xf] %vm935, %v894
      %964 = vst.msk [vmem:[#allocation2 + $0x70] sm:$0xf] %vm935, %v896
      %965 = vst.msk [vmem:[#allocation2 + $0x74] sm:$0xf] %vm935, %v898
      %966 = vst.msk [vmem:[#allocation2 + $0x78] sm:$0xf] %vm935, %v900
      %967 = vst.msk [vmem:[#allocation2 + $0x7c] sm:$0xf] %vm935, %v902
      %v968 = vld [vmem:[%s774] sm:$0xf]
      %v969 = vld [vmem:[%s774 + $0x4] sm:$0xf]
      %v970 = vld [vmem:[%s774 + $0x8] sm:$0x1]
      %v971 = vld [vmem:[%s774 + $0xc] sm:$0xf]
      %v972 = vld [vmem:[%s774 + $0x10] sm:$0xf]
      %v973 = vld [vmem:[%s774 + $0x14] sm:$0x1]
      %v974 = vld [vmem:[%s774 + $0x18] sm:$0xf]
      %v975 = vld [vmem:[%s774 + $0x1c] sm:$0xf]
      %v976 = vld [vmem:[%s774 + $0x20] sm:$0x1]
      %v977 = vld [vmem:[%s774 + $0x24] sm:$0xf]
      %v978 = vld [vmem:[%s774 + $0x28] sm:$0xf]
      %v979 = vld [vmem:[%s774 + $0x2c] sm:$0x1]
      %v980 = vld [vmem:[%s774 + $0x30] sm:$0xf]
      %v981 = vld [vmem:[%s774 + $0x34] sm:$0xf]
      %v982 = vld [vmem:[%s774 + $0x38] sm:$0x1]
      %v983 = vld [vmem:[%s774 + $0x3c] sm:$0xf]
      %v984 = vld [vmem:[%s774 + $0x40] sm:$0xf]
      %v985 = vld [vmem:[%s774 + $0x44] sm:$0x1]
      %v986 = vld [vmem:[%s774 + $0x48] sm:$0xf]
      %v987 = vld [vmem:[%s774 + $0x4c] sm:$0xf]
      %v988 = vld [vmem:[%s774 + $0x50] sm:$0x1]
      %v989 = vld [vmem:[%s774 + $0x54] sm:$0xf]
      %v990 = vld [vmem:[%s774 + $0x58] sm:$0xf]
      %v991 = vld [vmem:[%s774 + $0x5c] sm:$0x1]
      %v992 = vld [vmem:[%s774 + $0x60] sm:$0xf]
      %v993 = vld [vmem:[%s774 + $0x64] sm:$0xf]
      %v994 = vld [vmem:[%s774 + $0x68] sm:$0x1]
      %v995 = vld [vmem:[%s774 + $0x6c] sm:$0xf]
      %v996 = vld [vmem:[%s774 + $0x70] sm:$0xf]
      %v997 = vld [vmem:[%s774 + $0x74] sm:$0x1]
      %v998 = vld [vmem:[%s774 + $0x78] sm:$0xf]
      %v999 = vld [vmem:[%s774 + $0x7c] sm:$0xf]
      %v1000 = vld [vmem:[%s774 + $0x80] sm:$0x1]
      %v1001 = vld [vmem:[%s774 + $0x84] sm:$0xf]
      %v1002 = vld [vmem:[%s774 + $0x88] sm:$0xf]
      %v1003 = vld [vmem:[%s774 + $0x8c] sm:$0x1]
      %v1004 = vld [vmem:[%s774 + $0x90] sm:$0xf]
      %v1005 = vld [vmem:[%s774 + $0x94] sm:$0xf]
      %v1006 = vld [vmem:[%s774 + $0x98] sm:$0x1]
      %v1007 = vld [vmem:[%s774 + $0x9c] sm:$0xf]
      %v1008 = vld [vmem:[%s774 + $0xa0] sm:$0xf]
      %v1009 = vld [vmem:[%s774 + $0xa4] sm:$0x1]
      %v1010 = vld [vmem:[%s774 + $0xa8] sm:$0xf]
      %v1011 = vld [vmem:[%s774 + $0xac] sm:$0xf]
      %v1012 = vld [vmem:[%s774 + $0xb0] sm:$0x1]
      %v1013 = vld [vmem:[%s774 + $0xb4] sm:$0xf]
      %v1014 = vld [vmem:[%s774 + $0xb8] sm:$0xf]
      %v1015 = vld [vmem:[%s774 + $0xbc] sm:$0x1]
      %v1017 = vshrl.u32 %v968, 16
      %v1019 = vrot.slane %v1017, 4
      %v1020 = vshll.u32 %v968, 16
      %v1022 = vrot.slane %v1020, 5
      %v1023 = vor.u32 %v1019, %v1022
      %v1024 = vrot.slane %v1023, 4
      %v1026 = vshll.u32 %v969, 16
      %v1028 = vrot.slane %v1026, 5
      %v1029 = vsel %vm260, %v1024, %v1028
      %v1030 = vshrl.u32 %v969, 16
      %v1032 = vrot.slane %v1030, 4
      %v1033 = vor.u32 %v1032, %v1028
      %v1034 = vrot.slane %v1033, 4
      %v1036 = vshll.u32 %v970, 16
      %v1038 = vrot.slane %v1036, 5
      %v1039 = vsel %vm260, %v1034, %v1038
      %v1041 = vshrl.u32 %v971, 16
      %v1043 = vrot.slane %v1041, 4
      %v1044 = vshll.u32 %v971, 16
      %v1046 = vrot.slane %v1044, 5
      %v1047 = vor.u32 %v1043, %v1046
      %v1048 = vrot.slane %v1047, 4
      %v1050 = vshll.u32 %v972, 16
      %v1052 = vrot.slane %v1050, 5
      %v1053 = vsel %vm260, %v1048, %v1052
      %v1054 = vshrl.u32 %v972, 16
      %v1056 = vrot.slane %v1054, 4
      %v1057 = vor.u32 %v1056, %v1052
      %v1058 = vrot.slane %v1057, 4
      %v1060 = vshll.u32 %v973, 16
      %v1062 = vrot.slane %v1060, 5
      %v1063 = vsel %vm260, %v1058, %v1062
      %v1065 = vshrl.u32 %v974, 16
      %v1067 = vrot.slane %v1065, 4
      %v1068 = vshll.u32 %v974, 16
      %v1070 = vrot.slane %v1068, 5
      %v1071 = vor.u32 %v1067, %v1070
      %v1072 = vrot.slane %v1071, 4
      %v1074 = vshll.u32 %v975, 16
      %v1076 = vrot.slane %v1074, 5
      %v1077 = vsel %vm260, %v1072, %v1076
      %v1078 = vshrl.u32 %v975, 16
      %v1080 = vrot.slane %v1078, 4
      %v1081 = vor.u32 %v1080, %v1076
      %v1082 = vrot.slane %v1081, 4
      %v1084 = vshll.u32 %v976, 16
      %v1086 = vrot.slane %v1084, 5
      %v1087 = vsel %vm260, %v1082, %v1086
      %v1089 = vshrl.u32 %v977, 16
      %v1091 = vrot.slane %v1089, 4
      %v1092 = vshll.u32 %v977, 16
      %v1094 = vrot.slane %v1092, 5
      %v1095 = vor.u32 %v1091, %v1094
      %v1096 = vrot.slane %v1095, 4
      %v1098 = vshll.u32 %v978, 16
      %v1100 = vrot.slane %v1098, 5
      %v1101 = vsel %vm260, %v1096, %v1100
      %v1102 = vshrl.u32 %v978, 16
      %v1104 = vrot.slane %v1102, 4
      %v1105 = vor.u32 %v1104, %v1100
      %v1106 = vrot.slane %v1105, 4
      %v1108 = vshll.u32 %v979, 16
      %v1110 = vrot.slane %v1108, 5
      %v1111 = vsel %vm260, %v1106, %v1110
      %v1113 = vshrl.u32 %v980, 16
      %v1115 = vrot.slane %v1113, 4
      %v1116 = vshll.u32 %v980, 16
      %v1118 = vrot.slane %v1116, 5
      %v1119 = vor.u32 %v1115, %v1118
      %v1120 = vrot.slane %v1119, 4
      %v1122 = vshll.u32 %v981, 16
      %v1124 = vrot.slane %v1122, 5
      %v1125 = vsel %vm260, %v1120, %v1124
      %v1126 = vshrl.u32 %v981, 16
      %v1128 = vrot.slane %v1126, 4
      %v1129 = vor.u32 %v1128, %v1124
      %v1130 = vrot.slane %v1129, 4
      %v1132 = vshll.u32 %v982, 16
      %v1134 = vrot.slane %v1132, 5
      %v1135 = vsel %vm260, %v1130, %v1134
      %v1137 = vshrl.u32 %v983, 16
      %v1139 = vrot.slane %v1137, 4
      %v1140 = vshll.u32 %v983, 16
      %v1142 = vrot.slane %v1140, 5
      %v1143 = vor.u32 %v1139, %v1142
      %v1144 = vrot.slane %v1143, 4
      %v1146 = vshll.u32 %v984, 16
      %v1148 = vrot.slane %v1146, 5
      %v1149 = vsel %vm260, %v1144, %v1148
      %v1150 = vshrl.u32 %v984, 16
      %v1152 = vrot.slane %v1150, 4
      %v1153 = vor.u32 %v1152, %v1148
      %v1154 = vrot.slane %v1153, 4
      %v1156 = vshll.u32 %v985, 16
      %v1158 = vrot.slane %v1156, 5
      %v1159 = vsel %vm260, %v1154, %v1158
      %v1161 = vshrl.u32 %v986, 16
      %v1163 = vrot.slane %v1161, 4
      %v1164 = vshll.u32 %v986, 16
      %v1166 = vrot.slane %v1164, 5
      %v1167 = vor.u32 %v1163, %v1166
      %v1168 = vrot.slane %v1167, 4
      %v1170 = vshll.u32 %v987, 16
      %v1172 = vrot.slane %v1170, 5
      %v1173 = vsel %vm260, %v1168, %v1172
      %v1174 = vshrl.u32 %v987, 16
      %v1176 = vrot.slane %v1174, 4
      %v1177 = vor.u32 %v1176, %v1172
      %v1178 = vrot.slane %v1177, 4
      %v1180 = vshll.u32 %v988, 16
      %v1182 = vrot.slane %v1180, 5
      %v1183 = vsel %vm260, %v1178, %v1182
      %v1185 = vshrl.u32 %v989, 16
      %v1187 = vrot.slane %v1185, 4
      %v1188 = vshll.u32 %v989, 16
      %v1190 = vrot.slane %v1188, 5
      %v1191 = vor.u32 %v1187, %v1190
      %v1192 = vrot.slane %v1191, 4
      %v1194 = vshll.u32 %v990, 16
      %v1196 = vrot.slane %v1194, 5
      %v1197 = vsel %vm260, %v1192, %v1196
      %v1198 = vshrl.u32 %v990, 16
      %v1200 = vrot.slane %v1198, 4
      %v1201 = vor.u32 %v1200, %v1196
      %v1202 = vrot.slane %v1201, 4
      %v1204 = vshll.u32 %v991, 16
      %v1206 = vrot.slane %v1204, 5
      %v1207 = vsel %vm260, %v1202, %v1206
      %v1209 = vshrl.u32 %v992, 16
      %v1211 = vrot.slane %v1209, 4
      %v1212 = vshll.u32 %v992, 16
      %v1214 = vrot.slane %v1212, 5
      %v1215 = vor.u32 %v1211, %v1214
      %v1216 = vrot.slane %v1215, 4
      %v1218 = vshll.u32 %v993, 16
      %v1220 = vrot.slane %v1218, 5
      %v1221 = vsel %vm260, %v1216, %v1220
      %v1222 = vshrl.u32 %v993, 16
      %v1224 = vrot.slane %v1222, 4
      %v1225 = vor.u32 %v1224, %v1220
      %v1226 = vrot.slane %v1225, 4
      %v1228 = vshll.u32 %v994, 16
      %v1230 = vrot.slane %v1228, 5
      %v1231 = vsel %vm260, %v1226, %v1230
      %v1233 = vshrl.u32 %v995, 16
      %v1235 = vrot.slane %v1233, 4
      %v1236 = vshll.u32 %v995, 16
      %v1238 = vrot.slane %v1236, 5
      %v1239 = vor.u32 %v1235, %v1238
      %v1240 = vrot.slane %v1239, 4
      %v1242 = vshll.u32 %v996, 16
      %v1244 = vrot.slane %v1242, 5
      %v1245 = vsel %vm260, %v1240, %v1244
      %v1246 = vshrl.u32 %v996, 16
      %v1248 = vrot.slane %v1246, 4
      %v1249 = vor.u32 %v1248, %v1244
      %v1250 = vrot.slane %v1249, 4
      %v1252 = vshll.u32 %v997, 16
      %v1254 = vrot.slane %v1252, 5
      %v1255 = vsel %vm260, %v1250, %v1254
      %v1257 = vshrl.u32 %v998, 16
      %v1259 = vrot.slane %v1257, 4
      %v1260 = vshll.u32 %v998, 16
      %v1262 = vrot.slane %v1260, 5
      %v1263 = vor.u32 %v1259, %v1262
      %v1264 = vrot.slane %v1263, 4
      %v1266 = vshll.u32 %v999, 16
      %v1268 = vrot.slane %v1266, 5
      %v1269 = vsel %vm260, %v1264, %v1268
      %v1270 = vshrl.u32 %v999, 16
      %v1272 = vrot.slane %v1270, 4
      %v1273 = vor.u32 %v1272, %v1268
      %v1274 = vrot.slane %v1273, 4
      %v1276 = vshll.u32 %v1000, 16
      %v1278 = vrot.slane %v1276, 5
      %v1279 = vsel %vm260, %v1274, %v1278
      %v1281 = vshrl.u32 %v1001, 16
      %v1283 = vrot.slane %v1281, 4
      %v1284 = vshll.u32 %v1001, 16
      %v1286 = vrot.slane %v1284, 5
      %v1287 = vor.u32 %v1283, %v1286
      %v1288 = vrot.slane %v1287, 4
      %v1290 = vshll.u32 %v1002, 16
      %v1292 = vrot.slane %v1290, 5
      %v1293 = vsel %vm260, %v1288, %v1292
      %v1294 = vshrl.u32 %v1002, 16
      %v1296 = vrot.slane %v1294, 4
      %v1297 = vor.u32 %v1296, %v1292
      %v1298 = vrot.slane %v1297, 4
      %v1300 = vshll.u32 %v1003, 16
      %v1302 = vrot.slane %v1300, 5
      %v1303 = vsel %vm260, %v1298, %v1302
      %v1305 = vshrl.u32 %v1004, 16
      %v1307 = vrot.slane %v1305, 4
      %v1308 = vshll.u32 %v1004, 16
      %v1310 = vrot.slane %v1308, 5
      %v1311 = vor.u32 %v1307, %v1310
      %v1312 = vrot.slane %v1311, 4
      %v1314 = vshll.u32 %v1005, 16
      %v1316 = vrot.slane %v1314, 5
      %v1317 = vsel %vm260, %v1312, %v1316
      %v1318 = vshrl.u32 %v1005, 16
      %v1320 = vrot.slane %v1318, 4
      %v1321 = vor.u32 %v1320, %v1316
      %v1322 = vrot.slane %v1321, 4
      %v1324 = vshll.u32 %v1006, 16
      %v1326 = vrot.slane %v1324, 5
      %v1327 = vsel %vm260, %v1322, %v1326
      %v1329 = vshrl.u32 %v1007, 16
      %v1331 = vrot.slane %v1329, 4
      %v1332 = vshll.u32 %v1007, 16
      %v1334 = vrot.slane %v1332, 5
      %v1335 = vor.u32 %v1331, %v1334
      %v1336 = vrot.slane %v1335, 4
      %v1338 = vshll.u32 %v1008, 16
      %v1340 = vrot.slane %v1338, 5
      %v1341 = vsel %vm260, %v1336, %v1340
      %v1342 = vshrl.u32 %v1008, 16
      %v1344 = vrot.slane %v1342, 4
      %v1345 = vor.u32 %v1344, %v1340
      %v1346 = vrot.slane %v1345, 4
      %v1348 = vshll.u32 %v1009, 16
      %v1350 = vrot.slane %v1348, 5
      %v1351 = vsel %vm260, %v1346, %v1350
      %v1353 = vshrl.u32 %v1010, 16
      %v1355 = vrot.slane %v1353, 4
      %v1356 = vshll.u32 %v1010, 16
      %v1358 = vrot.slane %v1356, 5
      %v1359 = vor.u32 %v1355, %v1358
      %v1360 = vrot.slane %v1359, 4
      %v1362 = vshll.u32 %v1011, 16
      %v1364 = vrot.slane %v1362, 5
      %v1365 = vsel %vm260, %v1360, %v1364
      %v1366 = vshrl.u32 %v1011, 16
      %v1368 = vrot.slane %v1366, 4
      %v1369 = vor.u32 %v1368, %v1364
      %v1370 = vrot.slane %v1369, 4
      %v1372 = vshll.u32 %v1012, 16
      %v1374 = vrot.slane %v1372, 5
      %v1375 = vsel %vm260, %v1370, %v1374
      %v1377 = vshrl.u32 %v1013, 16
      %v1379 = vrot.slane %v1377, 4
      %v1380 = vshll.u32 %v1013, 16
      %v1382 = vrot.slane %v1380, 5
      %v1383 = vor.u32 %v1379, %v1382
      %v1384 = vrot.slane %v1383, 4
      %v1386 = vshll.u32 %v1014, 16
      %v1388 = vrot.slane %v1386, 5
      %v1389 = vsel %vm260, %v1384, %v1388
      %v1390 = vshrl.u32 %v1014, 16
      %v1392 = vrot.slane %v1390, 4
      %v1393 = vor.u32 %v1392, %v1388
      %v1394 = vrot.slane %v1393, 4
      %v1396 = vshll.u32 %v1015, 16
      %v1398 = vrot.slane %v1396, 5
      %v1399 = vsel %vm260, %v1394, %v1398
      %1400 = vrot.lane.b32.xlu0 %v1029, 24
      %v1401 = vpop.permute.xlu0 %1400
      %1402 = vrot.lane.b32.xlu0 %v1039, 24
      %v1403 = vpop.permute.xlu0 %1402
      %1404 = vrot.lane.b32.xlu0 %v1053, 24
      %v1405 = vpop.permute.xlu0 %1404
      %1406 = vrot.lane.b32.xlu0 %v1063, 24
      %v1407 = vpop.permute.xlu0 %1406
      %1408 = vrot.lane.b32.xlu0 %v1077, 24
      %v1409 = vpop.permute.xlu0 %1408
      %1410 = vrot.lane.b32.xlu0 %v1087, 24
      %v1411 = vpop.permute.xlu0 %1410
      %1412 = vrot.lane.b32.xlu0 %v1101, 24
      %v1413 = vpop.permute.xlu0 %1412
      %1414 = vrot.lane.b32.xlu0 %v1111, 24
      %v1415 = vpop.permute.xlu0 %1414
      %1416 = vrot.lane.b32.xlu0 %v1125, 24
      %v1417 = vpop.permute.xlu0 %1416
      %1418 = vrot.lane.b32.xlu0 %v1135, 24
      %v1419 = vpop.permute.xlu0 %1418
      %1420 = vrot.lane.b32.xlu0 %v1149, 24
      %v1421 = vpop.permute.xlu0 %1420
      %1422 = vrot.lane.b32.xlu0 %v1159, 24
      %v1423 = vpop.permute.xlu0 %1422
      %1424 = vrot.lane.b32.xlu0 %v1173, 24
      %v1425 = vpop.permute.xlu0 %1424
      %1426 = vrot.lane.b32.xlu0 %v1183, 24
      %v1427 = vpop.permute.xlu0 %1426
      %1428 = vrot.lane.b32.xlu0 %v1197, 24
      %v1429 = vpop.permute.xlu0 %1428
      %1430 = vrot.lane.b32.xlu0 %v1207, 24
      %v1431 = vpop.permute.xlu0 %1430
      %1432 = vrot.lane.b32.xlu0 %v1221, 24
      %v1433 = vpop.permute.xlu0 %1432
      %1434 = vrot.lane.b32.xlu0 %v1231, 24
      %v1435 = vpop.permute.xlu0 %1434
      %1436 = vrot.lane.b32.xlu0 %v1245, 24
      %v1437 = vpop.permute.xlu0 %1436
      %1438 = vrot.lane.b32.xlu0 %v1255, 24
      %v1439 = vpop.permute.xlu0 %1438
      %1440 = vrot.lane.b32.xlu0 %v1269, 24
      %v1441 = vpop.permute.xlu0 %1440
      %1442 = vrot.lane.b32.xlu0 %v1279, 24
      %v1443 = vpop.permute.xlu0 %1442
      %1444 = vrot.lane.b32.xlu0 %v1293, 24
      %v1445 = vpop.permute.xlu0 %1444
      %1446 = vrot.lane.b32.xlu0 %v1303, 24
      %v1447 = vpop.permute.xlu0 %1446
      %1448 = vrot.lane.b32.xlu0 %v1317, 24
      %v1449 = vpop.permute.xlu0 %1448
      %1450 = vrot.lane.b32.xlu0 %v1327, 24
      %v1451 = vpop.permute.xlu0 %1450
      %1452 = vrot.lane.b32.xlu0 %v1341, 24
      %v1453 = vpop.permute.xlu0 %1452
      %1454 = vrot.lane.b32.xlu0 %v1351, 24
      %v1455 = vpop.permute.xlu0 %1454
      %1456 = vrot.lane.b32.xlu0 %v1365, 24
      %v1457 = vpop.permute.xlu0 %1456
      %1458 = vrot.lane.b32.xlu0 %v1375, 24
      %v1459 = vpop.permute.xlu0 %1458
      %1460 = vrot.lane.b32.xlu0 %v1389, 24
      %v1461 = vpop.permute.xlu0 %1460
      %1462 = vrot.lane.b32.xlu0 %v1399, 24
      %v1463 = vpop.permute.xlu0 %1462
      %vm1496 = vcmask 257216
      %1497 = vst.msk [vmem:[#allocation2] sm:$0xf] %vm1496, %v1401
      %1498 = vst.msk [vmem:[#allocation2 + $0x4] sm:$0xf] %vm1496, %v1403
      %1499 = vst.msk [vmem:[#allocation2 + $0x8] sm:$0xf] %vm1496, %v1405
      %1500 = vst.msk [vmem:[#allocation2 + $0xc] sm:$0xf] %vm1496, %v1407
      %1501 = vst.msk [vmem:[#allocation2 + $0x10] sm:$0xf] %vm1496, %v1409
      %1502 = vst.msk [vmem:[#allocation2 + $0x14] sm:$0xf] %vm1496, %v1411
      %1503 = vst.msk [vmem:[#allocation2 + $0x18] sm:$0xf] %vm1496, %v1413
      %1504 = vst.msk [vmem:[#allocation2 + $0x1c] sm:$0xf] %vm1496, %v1415
      %1505 = vst.msk [vmem:[#allocation2 + $0x20] sm:$0xf] %vm1496, %v1417
      %1506 = vst.msk [vmem:[#allocation2 + $0x24] sm:$0xf] %vm1496, %v1419
      %1507 = vst.msk [vmem:[#allocation2 + $0x28] sm:$0xf] %vm1496, %v1421
      %1508 = vst.msk [vmem:[#allocation2 + $0x2c] sm:$0xf] %vm1496, %v1423
      %1509 = vst.msk [vmem:[#allocation2 + $0x30] sm:$0xf] %vm1496, %v1425
      %1510 = vst.msk [vmem:[#allocation2 + $0x34] sm:$0xf] %vm1496, %v1427
      %1511 = vst.msk [vmem:[#allocation2 + $0x38] sm:$0xf] %vm1496, %v1429
      %1512 = vst.msk [vmem:[#allocation2 + $0x3c] sm:$0xf] %vm1496, %v1431
      %1513 = vst.msk [vmem:[#allocation2 + $0x40] sm:$0xf] %vm1496, %v1433
      %1514 = vst.msk [vmem:[#allocation2 + $0x44] sm:$0xf] %vm1496, %v1435
      %1515 = vst.msk [vmem:[#allocation2 + $0x48] sm:$0xf] %vm1496, %v1437
      %1516 = vst.msk [vmem:[#allocation2 + $0x4c] sm:$0xf] %vm1496, %v1439
      %1517 = vst.msk [vmem:[#allocation2 + $0x50] sm:$0xf] %vm1496, %v1441
      %1518 = vst.msk [vmem:[#allocation2 + $0x54] sm:$0xf] %vm1496, %v1443
      %1519 = vst.msk [vmem:[#allocation2 + $0x58] sm:$0xf] %vm1496, %v1445
      %1520 = vst.msk [vmem:[#allocation2 + $0x5c] sm:$0xf] %vm1496, %v1447
      %1521 = vst.msk [vmem:[#allocation2 + $0x60] sm:$0xf] %vm1496, %v1449
      %1522 = vst.msk [vmem:[#allocation2 + $0x64] sm:$0xf] %vm1496, %v1451
      %1523 = vst.msk [vmem:[#allocation2 + $0x68] sm:$0xf] %vm1496, %v1453
      %1524 = vst.msk [vmem:[#allocation2 + $0x6c] sm:$0xf] %vm1496, %v1455
      %1525 = vst.msk [vmem:[#allocation2 + $0x70] sm:$0xf] %vm1496, %v1457
      %1526 = vst.msk [vmem:[#allocation2 + $0x74] sm:$0xf] %vm1496, %v1459
      %1527 = vst.msk [vmem:[#allocation2 + $0x78] sm:$0xf] %vm1496, %v1461
      %1528 = vst.msk [vmem:[#allocation2 + $0x7c] sm:$0xf] %vm1496, %v1463
      %v1529 = vld [vmem:[#allocation2] sm:$0xf]
      %v1530 = vld [vmem:[#allocation2 + $0x4] sm:$0xf]
      %v1531 = vld [vmem:[#allocation2 + $0x8] sm:$0xf]
      %v1532 = vld [vmem:[#allocation2 + $0xc] sm:$0xf]
      %v1533 = vld [vmem:[#allocation2 + $0x10] sm:$0xf]
      %v1534 = vld [vmem:[#allocation2 + $0x14] sm:$0xf]
      %v1535 = vld [vmem:[#allocation2 + $0x18] sm:$0xf]
      %v1536 = vld [vmem:[#allocation2 + $0x1c] sm:$0xf]
      %v1537 = vld [vmem:[#allocation2 + $0x20] sm:$0xf]
      %v1538 = vld [vmem:[#allocation2 + $0x24] sm:$0xf]
      %v1539 = vld [vmem:[#allocation2 + $0x28] sm:$0xf]
      %v1540 = vld [vmem:[#allocation2 + $0x2c] sm:$0xf]
      %v1541 = vld [vmem:[#allocation2 + $0x30] sm:$0xf]
      %v1542 = vld [vmem:[#allocation2 + $0x34] sm:$0xf]
      %v1543 = vld [vmem:[#allocation2 + $0x38] sm:$0xf]
      %v1544 = vld [vmem:[#allocation2 + $0x3c] sm:$0xf]
      %v1545 = vld [vmem:[#allocation2 + $0x40] sm:$0xf]
      %v1546 = vld [vmem:[#allocation2 + $0x44] sm:$0xf]
      %v1547 = vld [vmem:[#allocation2 + $0x48] sm:$0xf]
      %v1548 = vld [vmem:[#allocation2 + $0x4c] sm:$0xf]
      %v1549 = vld [vmem:[#allocation2 + $0x50] sm:$0xf]
      %v1550 = vld [vmem:[#allocation2 + $0x54] sm:$0xf]
      %v1551 = vld [vmem:[#allocation2 + $0x58] sm:$0xf]
      %v1552 = vld [vmem:[#allocation2 + $0x5c] sm:$0xf]
      %v1553 = vld [vmem:[#allocation2 + $0x60] sm:$0xf]
      %v1554 = vld [vmem:[#allocation2 + $0x64] sm:$0xf]
      %v1555 = vld [vmem:[#allocation2 + $0x68] sm:$0xf]
      %v1556 = vld [vmem:[#allocation2 + $0x6c] sm:$0xf]
      %v1557 = vld [vmem:[#allocation2 + $0x70] sm:$0xf]
      %v1558 = vld [vmem:[#allocation2 + $0x74] sm:$0xf]
      %v1559 = vld [vmem:[#allocation2 + $0x78] sm:$0xf]
      %v1560 = vld [vmem:[#allocation2 + $0x7c] sm:$0xf]
      %v1561 = vld [vmem:[%s1] sm:$0xf]
      %v1562 = vld [vmem:[%s1 + $0x4] sm:$0xf]
      %v1563 = vld [vmem:[%s1 + $0x8] sm:$0xf]
      %v1564 = vld [vmem:[%s1 + $0xc] sm:$0xf]
      %v1597 = vunpack.c.l.b16 %v1529
      %v1598 = vunpack.c.l.b16 %v1530
      %v1599 = vunpack.c.l.b16 %v1531
      %v1600 = vunpack.c.l.b16 %v1532
      %v1601 = vunpack.c.l.b16 %v1533
      %v1602 = vunpack.c.l.b16 %v1534
      %v1603 = vunpack.c.l.b16 %v1535
      %v1604 = vunpack.c.l.b16 %v1536
      %v1605 = vunpack.c.l.b16 %v1537
      %v1606 = vunpack.c.l.b16 %v1538
      %v1607 = vunpack.c.l.b16 %v1539
      %v1608 = vunpack.c.l.b16 %v1540
      %v1609 = vunpack.c.l.b16 %v1541
      %v1610 = vunpack.c.l.b16 %v1542
      %v1611 = vunpack.c.l.b16 %v1543
      %v1612 = vunpack.c.l.b16 %v1544
      %v1613 = vunpack.c.l.b16 %v1545
      %v1614 = vunpack.c.l.b16 %v1546
      %v1615 = vunpack.c.l.b16 %v1547
      %v1616 = vunpack.c.l.b16 %v1548
      %v1617 = vunpack.c.l.b16 %v1549
      %v1618 = vunpack.c.l.b16 %v1550
      %v1619 = vunpack.c.l.b16 %v1551
      %v1620 = vunpack.c.l.b16 %v1552
      %v1621 = vunpack.c.l.b16 %v1553
      %v1622 = vunpack.c.l.b16 %v1554
      %v1623 = vunpack.c.l.b16 %v1555
      %v1624 = vunpack.c.l.b16 %v1556
      %v1625 = vunpack.c.l.b16 %v1557
      %v1626 = vunpack.c.l.b16 %v1558
      %v1627 = vunpack.c.l.b16 %v1559
      %v1628 = vunpack.c.l.b16 %v1560
      %v1629 = vpack.c.b16 %v1598, %v1597
      %v1630 = vpack.c.b16 %v1600, %v1599
      %v1631 = vpack.c.b16 %v1602, %v1601
      %v1632 = vpack.c.b16 %v1604, %v1603
      %v1633 = vpack.c.b16 %v1606, %v1605
      %v1634 = vpack.c.b16 %v1608, %v1607
      %v1635 = vpack.c.b16 %v1610, %v1609
      %v1636 = vpack.c.b16 %v1612, %v1611
      %v1637 = vpack.c.b16 %v1614, %v1613
      %v1638 = vpack.c.b16 %v1616, %v1615
      %v1639 = vpack.c.b16 %v1618, %v1617
      %v1640 = vpack.c.b16 %v1620, %v1619
      %v1641 = vpack.c.b16 %v1622, %v1621
      %v1642 = vpack.c.b16 %v1624, %v1623
      %v1643 = vpack.c.b16 %v1626, %v1625
      %v1644 = vpack.c.b16 %v1628, %v1627
      %v1649 = vunpack.c.l.b16 %v1561
      %v1650 = vunpack.c.l.b16 %v1562
      %v1651 = vunpack.c.l.b16 %v1563
      %v1652 = vunpack.c.l.b16 %v1564
      %v1653 = vpack.c.b16 %v1650, %v1649
      %v1654 = vpack.c.b16 %v1652, %v1651
      %vm1657 = vcmask 261120
      %v1659 = vsel %vm1657, %v1629, 0
      %v1662 = vsel %vm1657, %v1630, 0
      %v1665 = vsel %vm1657, %v1631, 0
      %v1668 = vsel %vm1657, %v1632, 0
      %v1671 = vsel %vm1657, %v1633, 0
      %v1674 = vsel %vm1657, %v1634, 0
      %v1677 = vsel %vm1657, %v1635, 0
      %v1680 = vsel %vm1657, %v1636, 0
      %v1683 = vsel %vm1657, %v1637, 0
      %v1686 = vsel %vm1657, %v1638, 0
      %v1689 = vsel %vm1657, %v1639, 0
      %v1692 = vsel %vm1657, %v1640, 0
      %v1695 = vsel %vm1657, %v1641, 0
      %v1698 = vsel %vm1657, %v1642, 0
      %v1701 = vsel %vm1657, %v1643, 0
      %v1704 = vsel %vm1657, %v1644, 0
      %1706 = vmatprep.subr.bf16.mxu0 0
      %1707 = vmatpush1.bf16.msra.mxu0 0
      %1708 = vmatprep.subr.bf16.mxu0 0
      %1709 = vmatpush1.bf16.msra.mxu0 0
      %1710 = vmatprep.subr.bf16.mxu0 0
      %1711 = vmatpush1.bf16.msra.mxu0 0
      %1712 = vmatprep.subr.bf16.mxu0 0
      %1713 = vmatpush1.bf16.msra.mxu0 0
      %1714 = vmatprep.subr.bf16.mxu0 0
      %1715 = vmatpush1.bf16.msra.mxu0 0
      %1716 = vmatprep.subr.bf16.mxu0 0
      %1717 = vmatpush1.bf16.msra.mxu0 0
      %1718 = vmatprep.subr.bf16.mxu0 0
      %1719 = vmatpush1.bf16.msra.mxu0 %v1654
      %1720 = vmatprep.subr.bf16.mxu0 0
      %1721 = vmatpush1.bf16.msra.mxu0 %v1653
      %1722 = vmatprep.subr.bf16.mxu0 0
      %1723 = vmatpush2.bf16.msra.mxu0 0
      %1724 = vmatprep.subr.bf16.mxu0 0
      %1725 = vmatpush2.bf16.msra.mxu0 0
      %1726 = vmatprep.subr.bf16.mxu0 0
      %1727 = vmatpush2.bf16.msra.mxu0 0
      %1728 = vmatprep.subr.bf16.mxu0 0
      %1729 = vmatpush2.bf16.msra.mxu0 0
      %1730 = vmatprep.subr.bf16.mxu0 0
      %1731 = vmatpush2.bf16.msra.mxu0 0
      %1732 = vmatprep.subr.bf16.mxu0 0
      %1733 = vmatpush2.bf16.msra.mxu0 0
      %1734 = vmatprep.subr.bf16.mxu0 0
      %1735 = vmatpush2.bf16.msra.mxu0 0
      %1736 = vmatprep.subr.bf16.mxu0 0
      %1737 = vmatpush2.bf16.msra.mxu0 0
      %1738 = vmatprep.mubr.bf16.mxu0 0
      %1739 = vmatmul.mubr.bf16.gmra.mxu0 %v1659
      %v1740 = vpop.f32.mrf.mxu0
      %v1741 = vadd.f32 0.0, %v1740
      %v1742 = vpop.f32.mrf.mxu0
      %v1743 = vpop.f32.mrf.mxu0
      %v1744 = vadd.f32 0.0, %v1743
      %v1745 = vpop.f32.mrf.mxu0
      %1746 = vmatprep.mubr.bf16.mxu0 0
      %1747 = vmatmul.mubr.bf16.gmra.mxu0 %v1662
      %v1748 = vpop.f32.mrf.mxu0
      %v1749 = vadd.f32 0.0, %v1748
      %v1750 = vpop.f32.mrf.mxu0
      %v1751 = vpop.f32.mrf.mxu0
      %v1752 = vadd.f32 0.0, %v1751
      %v1753 = vpop.f32.mrf.mxu0
      %1754 = vmatprep.mubr.bf16.mxu0 0
      %1755 = vmatmul.mubr.bf16.gmra.mxu0 %v1665
      %v1756 = vpop.f32.mrf.mxu0
      %v1757 = vadd.f32 0.0, %v1756
      %v1758 = vpop.f32.mrf.mxu0
      %v1759 = vpop.f32.mrf.mxu0
      %v1760 = vadd.f32 0.0, %v1759
      %v1761 = vpop.f32.mrf.mxu0
      %1762 = vmatprep.mubr.bf16.mxu0 0
      %1763 = vmatmul.mubr.bf16.gmra.mxu0 %v1668
      %v1764 = vpop.f32.mrf.mxu0
      %v1765 = vadd.f32 0.0, %v1764
      %v1766 = vpop.f32.mrf.mxu0
      %v1767 = vpop.f32.mrf.mxu0
      %v1768 = vadd.f32 0.0, %v1767
      %v1769 = vpop.f32.mrf.mxu0
      %1770 = vmatprep.mubr.bf16.mxu0 0
      %1771 = vmatmul.mubr.bf16.gmra.mxu0 %v1671
      %v1772 = vpop.f32.mrf.mxu0
      %v1773 = vadd.f32 0.0, %v1772
      %v1774 = vpop.f32.mrf.mxu0
      %v1775 = vpop.f32.mrf.mxu0
      %v1776 = vadd.f32 0.0, %v1775
      %v1777 = vpop.f32.mrf.mxu0
      %1778 = vmatprep.mubr.bf16.mxu0 0
      %1779 = vmatmul.mubr.bf16.gmra.mxu0 %v1674
      %v1780 = vpop.f32.mrf.mxu0
      %v1781 = vadd.f32 0.0, %v1780
      %v1782 = vpop.f32.mrf.mxu0
      %v1783 = vpop.f32.mrf.mxu0
      %v1784 = vadd.f32 0.0, %v1783
      %v1785 = vpop.f32.mrf.mxu0
      %1786 = vmatprep.mubr.bf16.mxu0 0
      %1787 = vmatmul.mubr.bf16.gmra.mxu0 %v1677
      %v1788 = vpop.f32.mrf.mxu0
      %v1789 = vadd.f32 0.0, %v1788
      %v1790 = vpop.f32.mrf.mxu0
      %v1791 = vpop.f32.mrf.mxu0
      %v1792 = vadd.f32 0.0, %v1791
      %v1793 = vpop.f32.mrf.mxu0
      %1794 = vmatprep.mubr.bf16.mxu0 0
      %1795 = vmatmul.mubr.bf16.gmra.mxu0 %v1680
      %v1796 = vpop.f32.mrf.mxu0
      %v1797 = vadd.f32 0.0, %v1796
      %v1798 = vpop.f32.mrf.mxu0
      %v1799 = vpop.f32.mrf.mxu0
      %v1800 = vadd.f32 0.0, %v1799
      %v1801 = vpop.f32.mrf.mxu0
      %1802 = vmatprep.mubr.bf16.mxu0 0
      %1803 = vmatmul.mubr.bf16.gmra.mxu0 %v1683
      %v1804 = vpop.f32.mrf.mxu0
      %v1805 = vadd.f32 0.0, %v1804
      %v1806 = vpop.f32.mrf.mxu0
      %v1807 = vpop.f32.mrf.mxu0
      %v1808 = vadd.f32 0.0, %v1807
      %v1809 = vpop.f32.mrf.mxu0
      %1810 = vmatprep.mubr.bf16.mxu0 0
      %1811 = vmatmul.mubr.bf16.gmra.mxu0 %v1686
      %v1812 = vpop.f32.mrf.mxu0
      %v1813 = vadd.f32 0.0, %v1812
      %v1814 = vpop.f32.mrf.mxu0
      %v1815 = vpop.f32.mrf.mxu0
      %v1816 = vadd.f32 0.0, %v1815
      %v1817 = vpop.f32.mrf.mxu0
      %1818 = vmatprep.mubr.bf16.mxu0 0
      %1819 = vmatmul.mubr.bf16.gmra.mxu0 %v1689
      %v1820 = vpop.f32.mrf.mxu0
      %v1821 = vadd.f32 0.0, %v1820
      %v1822 = vpop.f32.mrf.mxu0
      %v1823 = vpop.f32.mrf.mxu0
      %v1824 = vadd.f32 0.0, %v1823
      %v1825 = vpop.f32.mrf.mxu0
      %1826 = vmatprep.mubr.bf16.mxu0 0
      %1827 = vmatmul.mubr.bf16.gmra.mxu0 %v1692
      %v1828 = vpop.f32.mrf.mxu0
      %v1829 = vadd.f32 0.0, %v1828
      %v1830 = vpop.f32.mrf.mxu0
      %v1831 = vpop.f32.mrf.mxu0
      %v1832 = vadd.f32 0.0, %v1831
      %v1833 = vpop.f32.mrf.mxu0
      %1834 = vmatprep.mubr.bf16.mxu0 0
      %1835 = vmatmul.mubr.bf16.gmra.mxu0 %v1695
      %v1836 = vpop.f32.mrf.mxu0
      %v1837 = vadd.f32 0.0, %v1836
      %v1838 = vpop.f32.mrf.mxu0
      %v1839 = vpop.f32.mrf.mxu0
      %v1840 = vadd.f32 0.0, %v1839
      %v1841 = vpop.f32.mrf.mxu0
      %1842 = vmatprep.mubr.bf16.mxu0 0
      %1843 = vmatmul.mubr.bf16.gmra.mxu0 %v1698
      %v1844 = vpop.f32.mrf.mxu0
      %v1845 = vadd.f32 0.0, %v1844
      %v1846 = vpop.f32.mrf.mxu0
      %v1847 = vpop.f32.mrf.mxu0
      %v1848 = vadd.f32 0.0, %v1847
      %v1849 = vpop.f32.mrf.mxu0
      %1850 = vmatprep.mubr.bf16.mxu0 0
      %1851 = vmatmul.mubr.bf16.gmra.mxu0 %v1701
      %v1852 = vpop.f32.mrf.mxu0
      %v1853 = vadd.f32 0.0, %v1852
      %v1854 = vpop.f32.mrf.mxu0
      %v1855 = vpop.f32.mrf.mxu0
      %v1856 = vadd.f32 0.0, %v1855
      %v1857 = vpop.f32.mrf.mxu0
      %1858 = vmatprep.mubr.bf16.mxu0 0
      %1859 = vmatmul.mubr.bf16.gmra.mxu0 %v1704
      %v1860 = vpop.f32.mrf.mxu0
      %v1861 = vadd.f32 0.0, %v1860
      %v1862 = vpop.f32.mrf.mxu0
      %v1863 = vpop.f32.mrf.mxu0
      %v1864 = vadd.f32 0.0, %v1863
      %v1865 = vpop.f32.mrf.mxu0
      %1866 = vdwg.mxu0
      %vm1867 = vcmask 31744
      %v1868 = vsel %vm1867, %v1741, 0.0
      %v1869 = vsel %vm1867, %v1744, 0.0
      %v1870 = vadd.f32 %v1868, %v1869
      %v1871 = vsel %vm1867, %v1749, 0.0
      %v1872 = vadd.f32 %v1870, %v1871
      %v1873 = vsel %vm1867, %v1752, 0.0
      %v1874 = vadd.f32 %v1872, %v1873
      %v1875 = vsel %vm1867, %v1757, 0.0
      %v1876 = vadd.f32 %v1874, %v1875
      %v1877 = vsel %vm1867, %v1760, 0.0
      %v1878 = vadd.f32 %v1876, %v1877
      %v1879 = vsel %vm1867, %v1765, 0.0
      %v1880 = vadd.f32 %v1878, %v1879
      %v1881 = vsel %vm1867, %v1768, 0.0
      %v1882 = vadd.f32 %v1880, %v1881
      %v1883 = vsel %vm1867, %v1773, 0.0
      %v1884 = vadd.f32 %v1882, %v1883
      %v1885 = vsel %vm1867, %v1776, 0.0
      %v1886 = vadd.f32 %v1884, %v1885
      %v1887 = vsel %vm1867, %v1781, 0.0
      %v1888 = vadd.f32 %v1886, %v1887
      %v1889 = vsel %vm1867, %v1784, 0.0
      %v1890 = vadd.f32 %v1888, %v1889
      %v1891 = vsel %vm1867, %v1789, 0.0
      %v1892 = vadd.f32 %v1890, %v1891
      %v1893 = vsel %vm1867, %v1792, 0.0
      %v1894 = vadd.f32 %v1892, %v1893
      %v1895 = vsel %vm1867, %v1797, 0.0
      %v1896 = vadd.f32 %v1894, %v1895
      %v1897 = vsel %vm1867, %v1800, 0.0
      %v1898 = vadd.f32 %v1896, %v1897
      %v1899 = vsel %vm1867, %v1805, 0.0
      %v1900 = vadd.f32 %v1898, %v1899
      %v1901 = vsel %vm1867, %v1808, 0.0
      %v1902 = vadd.f32 %v1900, %v1901
      %v1903 = vsel %vm1867, %v1813, 0.0
      %v1904 = vadd.f32 %v1902, %v1903
      %v1905 = vsel %vm1867, %v1816, 0.0
      %v1906 = vadd.f32 %v1904, %v1905
      %v1907 = vsel %vm1867, %v1821, 0.0
      %v1908 = vadd.f32 %v1906, %v1907
      %v1909 = vsel %vm1867, %v1824, 0.0
      %v1910 = vadd.f32 %v1908, %v1909
      %v1911 = vsel %vm1867, %v1829, 0.0
      %v1912 = vadd.f32 %v1910, %v1911
      %v1913 = vsel %vm1867, %v1832, 0.0
      %v1914 = vadd.f32 %v1912, %v1913
      %v1915 = vsel %vm1867, %v1837, 0.0
      %v1916 = vadd.f32 %v1914, %v1915
      %v1917 = vsel %vm1867, %v1840, 0.0
      %v1918 = vadd.f32 %v1916, %v1917
      %v1919 = vsel %vm1867, %v1845, 0.0
      %v1920 = vadd.f32 %v1918, %v1919
      %v1921 = vsel %vm1867, %v1848, 0.0
      %v1922 = vadd.f32 %v1920, %v1921
      %v1923 = vsel %vm1867, %v1853, 0.0
      %v1924 = vadd.f32 %v1922, %v1923
      %v1925 = vsel %vm1867, %v1856, 0.0
      %v1926 = vadd.f32 %v1924, %v1925
      %v1927 = vsel %vm1867, %v1861, 0.0
      %v1928 = vadd.f32 %v1926, %v1927
      %v1929 = vsel %vm1867, %v1864, 0.0
      %v1930 = vadd.f32 %v1928, %v1929
      %v1931 = vrot.slane %v1930, 4
      %v1932 = vadd.f32 %v1930, %v1931
      %v1933 = vrot.slane %v1932, 2
      %v1934 = vadd.f32 %v1932, %v1933
      %v1935 = vrot.slane %v1934, 1
      %v1936 = vadd.f32 %v1934, %v1935
      %v1937 = vadd.f32 %v1936, 0.0
      %v1938 = vmul.f32 %v1741, %v1741
      %v1939 = vmul.f32 %v1744, %v1744
      %v1940 = vmul.f32 %v1749, %v1749
      %v1941 = vmul.f32 %v1752, %v1752
      %v1942 = vmul.f32 %v1757, %v1757
      %v1943 = vmul.f32 %v1760, %v1760
      %v1944 = vmul.f32 %v1765, %v1765
      %v1945 = vmul.f32 %v1768, %v1768
      %v1946 = vmul.f32 %v1773, %v1773
      %v1947 = vmul.f32 %v1776, %v1776
      %v1948 = vmul.f32 %v1781, %v1781
      %v1949 = vmul.f32 %v1784, %v1784
      %v1950 = vmul.f32 %v1789, %v1789
      %v1951 = vmul.f32 %v1792, %v1792
      %v1952 = vmul.f32 %v1797, %v1797
      %v1953 = vmul.f32 %v1800, %v1800
      %v1954 = vmul.f32 %v1805, %v1805
      %v1955 = vmul.f32 %v1808, %v1808
      %v1956 = vmul.f32 %v1813, %v1813
      %v1957 = vmul.f32 %v1816, %v1816
      %v1958 = vmul.f32 %v1821, %v1821
      %v1959 = vmul.f32 %v1824, %v1824
      %v1960 = vmul.f32 %v1829, %v1829
      %v1961 = vmul.f32 %v1832, %v1832
      %v1962 = vmul.f32 %v1837, %v1837
      %v1963 = vmul.f32 %v1840, %v1840
      %v1964 = vmul.f32 %v1845, %v1845
      %v1965 = vmul.f32 %v1848, %v1848
      %v1966 = vmul.f32 %v1853, %v1853
      %v1967 = vmul.f32 %v1856, %v1856
      %v1968 = vmul.f32 %v1861, %v1861
      %v1969 = vmul.f32 %v1864, %v1864
      %v1970 = vsel %vm1867, %v1938, 0.0
      %v1971 = vsel %vm1867, %v1939, 0.0
      %v1972 = vadd.f32 %v1970, %v1971
      %v1973 = vsel %vm1867, %v1940, 0.0
      %v1974 = vadd.f32 %v1972, %v1973
      %v1975 = vsel %vm1867, %v1941, 0.0
      %v1976 = vadd.f32 %v1974, %v1975
      %v1977 = vsel %vm1867, %v1942, 0.0
      %v1978 = vadd.f32 %v1976, %v1977
      %v1979 = vsel %vm1867, %v1943, 0.0
      %v1980 = vadd.f32 %v1978, %v1979
      %v1981 = vsel %vm1867, %v1944, 0.0
      %v1982 = vadd.f32 %v1980, %v1981
      %v1983 = vsel %vm1867, %v1945, 0.0
      %v1984 = vadd.f32 %v1982, %v1983
      %v1985 = vsel %vm1867, %v1946, 0.0
      %v1986 = vadd.f32 %v1984, %v1985
      %v1987 = vsel %vm1867, %v1947, 0.0
      %v1988 = vadd.f32 %v1986, %v1987
      %v1989 = vsel %vm1867, %v1948, 0.0
      %v1990 = vadd.f32 %v1988, %v1989
      %v1991 = vsel %vm1867, %v1949, 0.0
      %v1992 = vadd.f32 %v1990, %v1991
      %v1993 = vsel %vm1867, %v1950, 0.0
      %v1994 = vadd.f32 %v1992, %v1993
      %v1995 = vsel %vm1867, %v1951, 0.0
      %v1996 = vadd.f32 %v1994, %v1995
      %v1997 = vsel %vm1867, %v1952, 0.0
      %v1998 = vadd.f32 %v1996, %v1997
      %v1999 = vsel %vm1867, %v1953, 0.0
      %v2000 = vadd.f32 %v1998, %v1999
      %v2001 = vsel %vm1867, %v1954, 0.0
      %v2002 = vadd.f32 %v2000, %v2001
      %v2003 = vsel %vm1867, %v1955, 0.0
      %v2004 = vadd.f32 %v2002, %v2003
      %v2005 = vsel %vm1867, %v1956, 0.0
      %v2006 = vadd.f32 %v2004, %v2005
      %v2007 = vsel %vm1867, %v1957, 0.0
      %v2008 = vadd.f32 %v2006, %v2007
      %v2009 = vsel %vm1867, %v1958, 0.0
      %v2010 = vadd.f32 %v2008, %v2009
      %v2011 = vsel %vm1867, %v1959, 0.0
      %v2012 = vadd.f32 %v2010, %v2011
      %v2013 = vsel %vm1867, %v1960, 0.0
      %v2014 = vadd.f32 %v2012, %v2013
      %v2015 = vsel %vm1867, %v1961, 0.0
      %v2016 = vadd.f32 %v2014, %v2015
      %v2017 = vsel %vm1867, %v1962, 0.0
      %v2018 = vadd.f32 %v2016, %v2017
      %v2019 = vsel %vm1867, %v1963, 0.0
      %v2020 = vadd.f32 %v2018, %v2019
      %v2021 = vsel %vm1867, %v1964, 0.0
      %v2022 = vadd.f32 %v2020, %v2021
      %v2023 = vsel %vm1867, %v1965, 0.0
      %v2024 = vadd.f32 %v2022, %v2023
      %v2025 = vsel %vm1867, %v1966, 0.0
      %v2026 = vadd.f32 %v2024, %v2025
      %v2027 = vsel %vm1867, %v1967, 0.0
      %v2028 = vadd.f32 %v2026, %v2027
      %v2029 = vsel %vm1867, %v1968, 0.0
      %v2030 = vadd.f32 %v2028, %v2029
      %v2031 = vsel %vm1867, %v1969, 0.0
      %v2032 = vadd.f32 %v2030, %v2031
      %v2033 = vrot.slane %v2032, 4
      %v2034 = vadd.f32 %v2032, %v2033
      %v2035 = vrot.slane %v2034, 2
      %v2036 = vadd.f32 %v2034, %v2035
      %v2037 = vrot.slane %v2036, 1
      %v2038 = vadd.f32 %v2036, %v2037
      %v2039 = vadd.f32 %v2038, 0.0
      %2040 = vst.msk [vmem:[%s143] sm:$0xff] %vm1867, %v1741
      %2041 = vst.msk [vmem:[%s143 + $0x8] sm:$0xff] %vm1867, %v1744
      %2042 = vst.msk [vmem:[%s143 + $0x10] sm:$0xff] %vm1867, %v1749
      %2043 = vst.msk [vmem:[%s143 + $0x18] sm:$0xff] %vm1867, %v1752
      %2044 = vst.msk [vmem:[%s143 + $0x20] sm:$0xff] %vm1867, %v1757
      %2045 = vst.msk [vmem:[%s143 + $0x28] sm:$0xff] %vm1867, %v1760
      %2046 = vst.msk [vmem:[%s143 + $0x30] sm:$0xff] %vm1867, %v1765
      %2047 = vst.msk [vmem:[%s143 + $0x38] sm:$0xff] %vm1867, %v1768
      %2048 = vst.msk [vmem:[%s143 + $0x40] sm:$0xff] %vm1867, %v1773
      %2049 = vst.msk [vmem:[%s143 + $0x48] sm:$0xff] %vm1867, %v1776
      %2050 = vst.msk [vmem:[%s143 + $0x50] sm:$0xff] %vm1867, %v1781
      %2051 = vst.msk [vmem:[%s143 + $0x58] sm:$0xff] %vm1867, %v1784
      %2052 = vst.msk [vmem:[%s143 + $0x60] sm:$0xff] %vm1867, %v1789
      %2053 = vst.msk [vmem:[%s143 + $0x68] sm:$0xff] %vm1867, %v1792
      %2054 = vst.msk [vmem:[%s143 + $0x70] sm:$0xff] %vm1867, %v1797
      %2055 = vst.msk [vmem:[%s143 + $0x78] sm:$0xff] %vm1867, %v1800
      %2056 = vst.msk [vmem:[%s143 + $0x80] sm:$0xff] %vm1867, %v1805
      %2057 = vst.msk [vmem:[%s143 + $0x88] sm:$0xff] %vm1867, %v1808
      %2058 = vst.msk [vmem:[%s143 + $0x90] sm:$0xff] %vm1867, %v1813
      %2059 = vst.msk [vmem:[%s143 + $0x98] sm:$0xff] %vm1867, %v1816
      %2060 = vst.msk [vmem:[%s143 + $0xa0] sm:$0xff] %vm1867, %v1821
      %2061 = vst.msk [vmem:[%s143 + $0xa8] sm:$0xff] %vm1867, %v1824
      %2062 = vst.msk [vmem:[%s143 + $0xb0] sm:$0xff] %vm1867, %v1829
      %2063 = vst.msk [vmem:[%s143 + $0xb8] sm:$0xff] %vm1867, %v1832
      %2064 = vst.msk [vmem:[%s143 + $0xc0] sm:$0xff] %vm1867, %v1837
      %2065 = vst.msk [vmem:[%s143 + $0xc8] sm:$0xff] %vm1867, %v1840
      %2066 = vst.msk [vmem:[%s143 + $0xd0] sm:$0xff] %vm1867, %v1845
      %2067 = vst.msk [vmem:[%s143 + $0xd8] sm:$0xff] %vm1867, %v1848
      %2068 = vst.msk [vmem:[%s143 + $0xe0] sm:$0xff] %vm1867, %v1853
      %2069 = vst.msk [vmem:[%s143 + $0xe8] sm:$0xff] %vm1867, %v1856
      %2070 = vst.msk [vmem:[%s143 + $0xf0] sm:$0xff] %vm1867, %v1861
      %2071 = vst.msk [vmem:[%s143 + $0xf8] sm:$0xff] %vm1867, %v1864
      %v2072 = vld [vmem:[%s138] sm:$0xf]
      %v2073 = vld [vmem:[%s138 + $0x4] sm:$0xf]
      %v2074 = vld [vmem:[%s138 + $0x8] sm:$0x1]
      %v2075 = vld [vmem:[%s138 + $0xc] sm:$0xf]
      %v2076 = vld [vmem:[%s138 + $0x10] sm:$0xf]
      %v2077 = vld [vmem:[%s138 + $0x14] sm:$0x1]
      %v2078 = vld [vmem:[%s138 + $0x18] sm:$0xf]
      %v2079 = vld [vmem:[%s138 + $0x1c] sm:$0xf]
      %v2080 = vld [vmem:[%s138 + $0x20] sm:$0x1]
      %v2081 = vld [vmem:[%s138 + $0x24] sm:$0xf]
      %v2082 = vld [vmem:[%s138 + $0x28] sm:$0xf]
      %v2083 = vld [vmem:[%s138 + $0x2c] sm:$0x1]
      %v2084 = vld [vmem:[%s138 + $0x30] sm:$0xf]
      %v2085 = vld [vmem:[%s138 + $0x34] sm:$0xf]
      %v2086 = vld [vmem:[%s138 + $0x38] sm:$0x1]
      %v2087 = vld [vmem:[%s138 + $0x3c] sm:$0xf]
      %v2088 = vld [vmem:[%s138 + $0x40] sm:$0xf]
      %v2089 = vld [vmem:[%s138 + $0x44] sm:$0x1]
      %v2090 = vld [vmem:[%s138 + $0x48] sm:$0xf]
      %v2091 = vld [vmem:[%s138 + $0x4c] sm:$0xf]
      %v2092 = vld [vmem:[%s138 + $0x50] sm:$0x1]
      %v2093 = vld [vmem:[%s138 + $0x54] sm:$0xf]
      %v2094 = vld [vmem:[%s138 + $0x58] sm:$0xf]
      %v2095 = vld [vmem:[%s138 + $0x5c] sm:$0x1]
      %v2096 = vld [vmem:[%s138 + $0x60] sm:$0xf]
      %v2097 = vld [vmem:[%s138 + $0x64] sm:$0xf]
      %v2098 = vld [vmem:[%s138 + $0x68] sm:$0x1]
      %v2099 = vld [vmem:[%s138 + $0x6c] sm:$0xf]
      %v2100 = vld [vmem:[%s138 + $0x70] sm:$0xf]
      %v2101 = vld [vmem:[%s138 + $0x74] sm:$0x1]
      %v2102 = vld [vmem:[%s138 + $0x78] sm:$0xf]
      %v2103 = vld [vmem:[%s138 + $0x7c] sm:$0xf]
      %v2104 = vld [vmem:[%s138 + $0x80] sm:$0x1]
      %v2105 = vld [vmem:[%s138 + $0x84] sm:$0xf]
      %v2106 = vld [vmem:[%s138 + $0x88] sm:$0xf]
      %v2107 = vld [vmem:[%s138 + $0x8c] sm:$0x1]
      %v2108 = vld [vmem:[%s138 + $0x90] sm:$0xf]
      %v2109 = vld [vmem:[%s138 + $0x94] sm:$0xf]
      %v2110 = vld [vmem:[%s138 + $0x98] sm:$0x1]
      %v2111 = vld [vmem:[%s138 + $0x9c] sm:$0xf]
      %v2112 = vld [vmem:[%s138 + $0xa0] sm:$0xf]
      %v2113 = vld [vmem:[%s138 + $0xa4] sm:$0x1]
      %v2114 = vld [vmem:[%s138 + $0xa8] sm:$0xf]
      %v2115 = vld [vmem:[%s138 + $0xac] sm:$0xf]
      %v2116 = vld [vmem:[%s138 + $0xb0] sm:$0x1]
      %v2117 = vld [vmem:[%s138 + $0xb4] sm:$0xf]
      %v2118 = vld [vmem:[%s138 + $0xb8] sm:$0xf]
      %v2119 = vld [vmem:[%s138 + $0xbc] sm:$0x1]
      %v2121 = vshrl.u32 %v2072, 16
      %v2123 = vrot.slane %v2121, 4
      %v2124 = vshll.u32 %v2072, 16
      %v2126 = vrot.slane %v2124, 5
      %v2127 = vor.u32 %v2123, %v2126
      %v2128 = vrot.slane %v2127, 4
      %v2130 = vshll.u32 %v2073, 16
      %v2132 = vrot.slane %v2130, 5
      %v2133 = vsel %vm260, %v2128, %v2132
      %v2134 = vshrl.u32 %v2073, 16
      %v2136 = vrot.slane %v2134, 4
      %v2137 = vor.u32 %v2136, %v2132
      %v2138 = vrot.slane %v2137, 4
      %v2140 = vshll.u32 %v2074, 16
      %v2142 = vrot.slane %v2140, 5
      %v2143 = vsel %vm260, %v2138, %v2142
      %v2145 = vshrl.u32 %v2075, 16
      %v2147 = vrot.slane %v2145, 4
      %v2148 = vshll.u32 %v2075, 16
      %v2150 = vrot.slane %v2148, 5
      %v2151 = vor.u32 %v2147, %v2150
      %v2152 = vrot.slane %v2151, 4
      %v2154 = vshll.u32 %v2076, 16
      %v2156 = vrot.slane %v2154, 5
      %v2157 = vsel %vm260, %v2152, %v2156
      %v2158 = vshrl.u32 %v2076, 16
      %v2160 = vrot.slane %v2158, 4
      %v2161 = vor.u32 %v2160, %v2156
      %v2162 = vrot.slane %v2161, 4
      %v2164 = vshll.u32 %v2077, 16
      %v2166 = vrot.slane %v2164, 5
      %v2167 = vsel %vm260, %v2162, %v2166
      %v2169 = vshrl.u32 %v2078, 16
      %v2171 = vrot.slane %v2169, 4
      %v2172 = vshll.u32 %v2078, 16
      %v2174 = vrot.slane %v2172, 5
      %v2175 = vor.u32 %v2171, %v2174
      %v2176 = vrot.slane %v2175, 4
      %v2178 = vshll.u32 %v2079, 16
      %v2180 = vrot.slane %v2178, 5
      %v2181 = vsel %vm260, %v2176, %v2180
      %v2182 = vshrl.u32 %v2079, 16
      %v2184 = vrot.slane %v2182, 4
      %v2185 = vor.u32 %v2184, %v2180
      %v2186 = vrot.slane %v2185, 4
      %v2188 = vshll.u32 %v2080, 16
      %v2190 = vrot.slane %v2188, 5
      %v2191 = vsel %vm260, %v2186, %v2190
      %v2193 = vshrl.u32 %v2081, 16
      %v2195 = vrot.slane %v2193, 4
      %v2196 = vshll.u32 %v2081, 16
      %v2198 = vrot.slane %v2196, 5
      %v2199 = vor.u32 %v2195, %v2198
      %v2200 = vrot.slane %v2199, 4
      %v2202 = vshll.u32 %v2082, 16
      %v2204 = vrot.slane %v2202, 5
      %v2205 = vsel %vm260, %v2200, %v2204
      %v2206 = vshrl.u32 %v2082, 16
      %v2208 = vrot.slane %v2206, 4
      %v2209 = vor.u32 %v2208, %v2204
      %v2210 = vrot.slane %v2209, 4
      %v2212 = vshll.u32 %v2083, 16
      %v2214 = vrot.slane %v2212, 5
      %v2215 = vsel %vm260, %v2210, %v2214
      %v2217 = vshrl.u32 %v2084, 16
      %v2219 = vrot.slane %v2217, 4
      %v2220 = vshll.u32 %v2084, 16
      %v2222 = vrot.slane %v2220, 5
      %v2223 = vor.u32 %v2219, %v2222
      %v2224 = vrot.slane %v2223, 4
      %v2226 = vshll.u32 %v2085, 16
      %v2228 = vrot.slane %v2226, 5
      %v2229 = vsel %vm260, %v2224, %v2228
      %v2230 = vshrl.u32 %v2085, 16
      %v2232 = vrot.slane %v2230, 4
      %v2233 = vor.u32 %v2232, %v2228
      %v2234 = vrot.slane %v2233, 4
      %v2236 = vshll.u32 %v2086, 16
      %v2238 = vrot.slane %v2236, 5
      %v2239 = vsel %vm260, %v2234, %v2238
      %v2241 = vshrl.u32 %v2087, 16
      %v2243 = vrot.slane %v2241, 4
      %v2244 = vshll.u32 %v2087, 16
      %v2246 = vrot.slane %v2244, 5
      %v2247 = vor.u32 %v2243, %v2246
      %v2248 = vrot.slane %v2247, 4
      %v2250 = vshll.u32 %v2088, 16
      %v2252 = vrot.slane %v2250, 5
      %v2253 = vsel %vm260, %v2248, %v2252
      %v2254 = vshrl.u32 %v2088, 16
      %v2256 = vrot.slane %v2254, 4
      %v2257 = vor.u32 %v2256, %v2252
      %v2258 = vrot.slane %v2257, 4
      %v2260 = vshll.u32 %v2089, 16
      %v2262 = vrot.slane %v2260, 5
      %v2263 = vsel %vm260, %v2258, %v2262
      %v2265 = vshrl.u32 %v2090, 16
      %v2267 = vrot.slane %v2265, 4
      %v2268 = vshll.u32 %v2090, 16
      %v2270 = vrot.slane %v2268, 5
      %v2271 = vor.u32 %v2267, %v2270
      %v2272 = vrot.slane %v2271, 4
      %v2274 = vshll.u32 %v2091, 16
      %v2276 = vrot.slane %v2274, 5
      %v2277 = vsel %vm260, %v2272, %v2276
      %v2278 = vshrl.u32 %v2091, 16
      %v2280 = vrot.slane %v2278, 4
      %v2281 = vor.u32 %v2280, %v2276
      %v2282 = vrot.slane %v2281, 4
      %v2284 = vshll.u32 %v2092, 16
      %v2286 = vrot.slane %v2284, 5
      %v2287 = vsel %vm260, %v2282, %v2286
      %v2289 = vshrl.u32 %v2093, 16
      %v2291 = vrot.slane %v2289, 4
      %v2292 = vshll.u32 %v2093, 16
      %v2294 = vrot.slane %v2292, 5
      %v2295 = vor.u32 %v2291, %v2294
      %v2296 = vrot.slane %v2295, 4
      %v2298 = vshll.u32 %v2094, 16
      %v2300 = vrot.slane %v2298, 5
      %v2301 = vsel %vm260, %v2296, %v2300
      %v2302 = vshrl.u32 %v2094, 16
      %v2304 = vrot.slane %v2302, 4
      %v2305 = vor.u32 %v2304, %v2300
      %v2306 = vrot.slane %v2305, 4
      %v2308 = vshll.u32 %v2095, 16
      %v2310 = vrot.slane %v2308, 5
      %v2311 = vsel %vm260, %v2306, %v2310
      %v2313 = vshrl.u32 %v2096, 16
      %v2315 = vrot.slane %v2313, 4
      %v2316 = vshll.u32 %v2096, 16
      %v2318 = vrot.slane %v2316, 5
      %v2319 = vor.u32 %v2315, %v2318
      %v2320 = vrot.slane %v2319, 4
      %v2322 = vshll.u32 %v2097, 16
      %v2324 = vrot.slane %v2322, 5
      %v2325 = vsel %vm260, %v2320, %v2324
      %v2326 = vshrl.u32 %v2097, 16
      %v2328 = vrot.slane %v2326, 4
      %v2329 = vor.u32 %v2328, %v2324
      %v2330 = vrot.slane %v2329, 4
      %v2332 = vshll.u32 %v2098, 16
      %v2334 = vrot.slane %v2332, 5
      %v2335 = vsel %vm260, %v2330, %v2334
      %v2337 = vshrl.u32 %v2099, 16
      %v2339 = vrot.slane %v2337, 4
      %v2340 = vshll.u32 %v2099, 16
      %v2342 = vrot.slane %v2340, 5
      %v2343 = vor.u32 %v2339, %v2342
      %v2344 = vrot.slane %v2343, 4
      %v2346 = vshll.u32 %v2100, 16
      %v2348 = vrot.slane %v2346, 5
      %v2349 = vsel %vm260, %v2344, %v2348
      %v2350 = vshrl.u32 %v2100, 16
      %v2352 = vrot.slane %v2350, 4
      %v2353 = vor.u32 %v2352, %v2348
      %v2354 = vrot.slane %v2353, 4
      %v2356 = vshll.u32 %v2101, 16
      %v2358 = vrot.slane %v2356, 5
      %v2359 = vsel %vm260, %v2354, %v2358
      %v2361 = vshrl.u32 %v2102, 16
      %v2363 = vrot.slane %v2361, 4
      %v2364 = vshll.u32 %v2102, 16
      %v2366 = vrot.slane %v2364, 5
      %v2367 = vor.u32 %v2363, %v2366
      %v2368 = vrot.slane %v2367, 4
      %v2370 = vshll.u32 %v2103, 16
      %v2372 = vrot.slane %v2370, 5
      %v2373 = vsel %vm260, %v2368, %v2372
      %v2374 = vshrl.u32 %v2103, 16
      %v2376 = vrot.slane %v2374, 4
      %v2377 = vor.u32 %v2376, %v2372
      %v2378 = vrot.slane %v2377, 4
      %v2380 = vshll.u32 %v2104, 16
      %v2382 = vrot.slane %v2380, 5
      %v2383 = vsel %vm260, %v2378, %v2382
      %v2385 = vshrl.u32 %v2105, 16
      %v2387 = vrot.slane %v2385, 4
      %v2388 = vshll.u32 %v2105, 16
      %v2390 = vrot.slane %v2388, 5
      %v2391 = vor.u32 %v2387, %v2390
      %v2392 = vrot.slane %v2391, 4
      %v2394 = vshll.u32 %v2106, 16
      %v2396 = vrot.slane %v2394, 5
      %v2397 = vsel %vm260, %v2392, %v2396
      %v2398 = vshrl.u32 %v2106, 16
      %v2400 = vrot.slane %v2398, 4
      %v2401 = vor.u32 %v2400, %v2396
      %v2402 = vrot.slane %v2401, 4
      %v2404 = vshll.u32 %v2107, 16
      %v2406 = vrot.slane %v2404, 5
      %v2407 = vsel %vm260, %v2402, %v2406
      %v2409 = vshrl.u32 %v2108, 16
      %v2411 = vrot.slane %v2409, 4
      %v2412 = vshll.u32 %v2108, 16
      %v2414 = vrot.slane %v2412, 5
      %v2415 = vor.u32 %v2411, %v2414
      %v2416 = vrot.slane %v2415, 4
      %v2418 = vshll.u32 %v2109, 16
      %v2420 = vrot.slane %v2418, 5
      %v2421 = vsel %vm260, %v2416, %v2420
      %v2422 = vshrl.u32 %v2109, 16
      %v2424 = vrot.slane %v2422, 4
      %v2425 = vor.u32 %v2424, %v2420
      %v2426 = vrot.slane %v2425, 4
      %v2428 = vshll.u32 %v2110, 16
      %v2430 = vrot.slane %v2428, 5
      %v2431 = vsel %vm260, %v2426, %v2430
      %v2433 = vshrl.u32 %v2111, 16
      %v2435 = vrot.slane %v2433, 4
      %v2436 = vshll.u32 %v2111, 16
      %v2438 = vrot.slane %v2436, 5
      %v2439 = vor.u32 %v2435, %v2438
      %v2440 = vrot.slane %v2439, 4
      %v2442 = vshll.u32 %v2112, 16
      %v2444 = vrot.slane %v2442, 5
      %v2445 = vsel %vm260, %v2440, %v2444
      %v2446 = vshrl.u32 %v2112, 16
      %v2448 = vrot.slane %v2446, 4
      %v2449 = vor.u32 %v2448, %v2444
      %v2450 = vrot.slane %v2449, 4
      %v2452 = vshll.u32 %v2113, 16
      %v2454 = vrot.slane %v2452, 5
      %v2455 = vsel %vm260, %v2450, %v2454
      %v2457 = vshrl.u32 %v2114, 16
      %v2459 = vrot.slane %v2457, 4
      %v2460 = vshll.u32 %v2114, 16
      %v2462 = vrot.slane %v2460, 5
      %v2463 = vor.u32 %v2459, %v2462
      %v2464 = vrot.slane %v2463, 4
      %v2466 = vshll.u32 %v2115, 16
      %v2468 = vrot.slane %v2466, 5
      %v2469 = vsel %vm260, %v2464, %v2468
      %v2470 = vshrl.u32 %v2115, 16
      %v2472 = vrot.slane %v2470, 4
      %v2473 = vor.u32 %v2472, %v2468
      %v2474 = vrot.slane %v2473, 4
      %v2476 = vshll.u32 %v2116, 16
      %v2478 = vrot.slane %v2476, 5
      %v2479 = vsel %vm260, %v2474, %v2478
      %v2481 = vshrl.u32 %v2117, 16
      %v2483 = vrot.slane %v2481, 4
      %v2484 = vshll.u32 %v2117, 16
      %v2486 = vrot.slane %v2484, 5
      %v2487 = vor.u32 %v2483, %v2486
      %v2488 = vrot.slane %v2487, 4
      %v2490 = vshll.u32 %v2118, 16
      %v2492 = vrot.slane %v2490, 5
      %v2493 = vsel %vm260, %v2488, %v2492
      %v2494 = vshrl.u32 %v2118, 16
      %v2496 = vrot.slane %v2494, 4
      %v2497 = vor.u32 %v2496, %v2492
      %v2498 = vrot.slane %v2497, 4
      %v2500 = vshll.u32 %v2119, 16
      %v2502 = vrot.slane %v2500, 5
      %v2503 = vsel %vm260, %v2498, %v2502
      %2536 = vst.msk [vmem:[#allocation2] sm:$0xf] %vm177, %v2133
      %2537 = vst.msk [vmem:[#allocation2 + $0x4] sm:$0xf] %vm177, %v2143
      %2538 = vst.msk [vmem:[#allocation2 + $0x8] sm:$0xf] %vm177, %v2157
      %2539 = vst.msk [vmem:[#allocation2 + $0xc] sm:$0xf] %vm177, %v2167
      %2540 = vst.msk [vmem:[#allocation2 + $0x10] sm:$0xf] %vm177, %v2181
      %2541 = vst.msk [vmem:[#allocation2 + $0x14] sm:$0xf] %vm177, %v2191
      %2542 = vst.msk [vmem:[#allocation2 + $0x18] sm:$0xf] %vm177, %v2205
      %2543 = vst.msk [vmem:[#allocation2 + $0x1c] sm:$0xf] %vm177, %v2215
      %2544 = vst.msk [vmem:[#allocation2 + $0x20] sm:$0xf] %vm177, %v2229
      %2545 = vst.msk [vmem:[#allocation2 + $0x24] sm:$0xf] %vm177, %v2239
      %2546 = vst.msk [vmem:[#allocation2 + $0x28] sm:$0xf] %vm177, %v2253
      %2547 = vst.msk [vmem:[#allocation2 + $0x2c] sm:$0xf] %vm177, %v2263
      %2548 = vst.msk [vmem:[#allocation2 + $0x30] sm:$0xf] %vm177, %v2277
      %2549 = vst.msk [vmem:[#allocation2 + $0x34] sm:$0xf] %vm177, %v2287
      %2550 = vst.msk [vmem:[#allocation2 + $0x38] sm:$0xf] %vm177, %v2301
      %2551 = vst.msk [vmem:[#allocation2 + $0x3c] sm:$0xf] %vm177, %v2311
      %2552 = vst.msk [vmem:[#allocation2 + $0x40] sm:$0xf] %vm177, %v2325
      %2553 = vst.msk [vmem:[#allocation2 + $0x44] sm:$0xf] %vm177, %v2335
      %2554 = vst.msk [vmem:[#allocation2 + $0x48] sm:$0xf] %vm177, %v2349
      %2555 = vst.msk [vmem:[#allocation2 + $0x4c] sm:$0xf] %vm177, %v2359
      %2556 = vst.msk [vmem:[#allocation2 + $0x50] sm:$0xf] %vm177, %v2373
      %2557 = vst.msk [vmem:[#allocation2 + $0x54] sm:$0xf] %vm177, %v2383
      %2558 = vst.msk [vmem:[#allocation2 + $0x58] sm:$0xf] %vm177, %v2397
      %2559 = vst.msk [vmem:[#allocation2 + $0x5c] sm:$0xf] %vm177, %v2407
      %2560 = vst.msk [vmem:[#allocation2 + $0x60] sm:$0xf] %vm177, %v2421
      %2561 = vst.msk [vmem:[#allocation2 + $0x64] sm:$0xf] %vm177, %v2431
      %2562 = vst.msk [vmem:[#allocation2 + $0x68] sm:$0xf] %vm177, %v2445
      %2563 = vst.msk [vmem:[#allocation2 + $0x6c] sm:$0xf] %vm177, %v2455
      %2564 = vst.msk [vmem:[#allocation2 + $0x70] sm:$0xf] %vm177, %v2469
      %2565 = vst.msk [vmem:[#allocation2 + $0x74] sm:$0xf] %vm177, %v2479
      %2566 = vst.msk [vmem:[#allocation2 + $0x78] sm:$0xf] %vm177, %v2493
      %2567 = vst.msk [vmem:[#allocation2 + $0x7c] sm:$0xf] %vm177, %v2503
      %v2568 = vld [vmem:[%s138] sm:$0xe]
      %v2569 = vld [vmem:[%s138 + $0x4] sm:$0xf]
      %v2570 = vld [vmem:[%s138 + $0x8] sm:$0x1]
      %v2571 = vld [vmem:[%s138 + $0xc] sm:$0xe]
      %v2572 = vld [vmem:[%s138 + $0x10] sm:$0xf]
      %v2573 = vld [vmem:[%s138 + $0x14] sm:$0x1]
      %v2574 = vld [vmem:[%s138 + $0x18] sm:$0xe]
      %v2575 = vld [vmem:[%s138 + $0x1c] sm:$0xf]
      %v2576 = vld [vmem:[%s138 + $0x20] sm:$0x1]
      %v2577 = vld [vmem:[%s138 + $0x24] sm:$0xe]
      %v2578 = vld [vmem:[%s138 + $0x28] sm:$0xf]
      %v2579 = vld [vmem:[%s138 + $0x2c] sm:$0x1]
      %v2580 = vld [vmem:[%s138 + $0x30] sm:$0xe]
      %v2581 = vld [vmem:[%s138 + $0x34] sm:$0xf]
      %v2582 = vld [vmem:[%s138 + $0x38] sm:$0x1]
      %v2583 = vld [vmem:[%s138 + $0x3c] sm:$0xe]
      %v2584 = vld [vmem:[%s138 + $0x40] sm:$0xf]
      %v2585 = vld [vmem:[%s138 + $0x44] sm:$0x1]
      %v2586 = vld [vmem:[%s138 + $0x48] sm:$0xe]
      %v2587 = vld [vmem:[%s138 + $0x4c] sm:$0xf]
      %v2588 = vld [vmem:[%s138 + $0x50] sm:$0x1]
      %v2589 = vld [vmem:[%s138 + $0x54] sm:$0xe]
      %v2590 = vld [vmem:[%s138 + $0x58] sm:$0xf]
      %v2591 = vld [vmem:[%s138 + $0x5c] sm:$0x1]
      %v2592 = vld [vmem:[%s138 + $0x60] sm:$0xe]
      %v2593 = vld [vmem:[%s138 + $0x64] sm:$0xf]
      %v2594 = vld [vmem:[%s138 + $0x68] sm:$0x1]
      %v2595 = vld [vmem:[%s138 + $0x6c] sm:$0xe]
      %v2596 = vld [vmem:[%s138 + $0x70] sm:$0xf]
      %v2597 = vld [vmem:[%s138 + $0x74] sm:$0x1]
      %v2598 = vld [vmem:[%s138 + $0x78] sm:$0xe]
      %v2599 = vld [vmem:[%s138 + $0x7c] sm:$0xf]
      %v2600 = vld [vmem:[%s138 + $0x80] sm:$0x1]
      %v2601 = vld [vmem:[%s138 + $0x84] sm:$0xe]
      %v2602 = vld [vmem:[%s138 + $0x88] sm:$0xf]
      %v2603 = vld [vmem:[%s138 + $0x8c] sm:$0x1]
      %v2604 = vld [vmem:[%s138 + $0x90] sm:$0xe]
      %v2605 = vld [vmem:[%s138 + $0x94] sm:$0xf]
      %v2606 = vld [vmem:[%s138 + $0x98] sm:$0x1]
      %v2607 = vld [vmem:[%s138 + $0x9c] sm:$0xe]
      %v2608 = vld [vmem:[%s138 + $0xa0] sm:$0xf]
      %v2609 = vld [vmem:[%s138 + $0xa4] sm:$0x1]
      %v2610 = vld [vmem:[%s138 + $0xa8] sm:$0xe]
      %v2611 = vld [vmem:[%s138 + $0xac] sm:$0xf]
      %v2612 = vld [vmem:[%s138 + $0xb0] sm:$0x1]
      %v2613 = vld [vmem:[%s138 + $0xb4] sm:$0xe]
      %v2614 = vld [vmem:[%s138 + $0xb8] sm:$0xf]
      %v2615 = vld [vmem:[%s138 + $0xbc] sm:$0x1]
      %vm2664 = vcmask 1042432
      %vm2665 = vcmask 1046532
      %vm2666 = vmor %vm2664, %vm2665
      %v2667 = vrot.slane %v2568, 5
      %v2668 = vrot.slane %v2667, 4
      %v2669 = vrot.slane %v2569, 5
      %v2670 = vsel %vm2666, %v2668, %v2669
      %v2671 = vrot.slane %v2669, 4
      %v2672 = vrot.slane %v2570, 5
      %v2673 = vsel %vm2666, %v2671, %v2672
      %v2674 = vrot.slane %v2571, 5
      %v2675 = vrot.slane %v2674, 4
      %v2676 = vrot.slane %v2572, 5
      %v2677 = vsel %vm2666, %v2675, %v2676
      %v2678 = vrot.slane %v2676, 4
      %v2679 = vrot.slane %v2573, 5
      %v2680 = vsel %vm2666, %v2678, %v2679
      %v2681 = vrot.slane %v2574, 5
      %v2682 = vrot.slane %v2681, 4
      %v2683 = vrot.slane %v2575, 5
      %v2684 = vsel %vm2666, %v2682, %v2683
      %v2685 = vrot.slane %v2683, 4
      %v2686 = vrot.slane %v2576, 5
      %v2687 = vsel %vm2666, %v2685, %v2686
      %v2688 = vrot.slane %v2577, 5
      %v2689 = vrot.slane %v2688, 4
      %v2690 = vrot.slane %v2578, 5
      %v2691 = vsel %vm2666, %v2689, %v2690
      %v2692 = vrot.slane %v2690, 4
      %v2693 = vrot.slane %v2579, 5
      %v2694 = vsel %vm2666, %v2692, %v2693
      %v2695 = vrot.slane %v2580, 5
      %v2696 = vrot.slane %v2695, 4
      %v2697 = vrot.slane %v2581, 5
      %v2698 = vsel %vm2666, %v2696, %v2697
      %v2699 = vrot.slane %v2697, 4
      %v2700 = vrot.slane %v2582, 5
      %v2701 = vsel %vm2666, %v2699, %v2700
      %v2702 = vrot.slane %v2583, 5
      %v2703 = vrot.slane %v2702, 4
      %v2704 = vrot.slane %v2584, 5
      %v2705 = vsel %vm2666, %v2703, %v2704
      %v2706 = vrot.slane %v2704, 4
      %v2707 = vrot.slane %v2585, 5
      %v2708 = vsel %vm2666, %v2706, %v2707
      %v2709 = vrot.slane %v2586, 5
      %v2710 = vrot.slane %v2709, 4
      %v2711 = vrot.slane %v2587, 5
      %v2712 = vsel %vm2666, %v2710, %v2711
      %v2713 = vrot.slane %v2711, 4
      %v2714 = vrot.slane %v2588, 5
      %v2715 = vsel %vm2666, %v2713, %v2714
      %v2716 = vrot.slane %v2589, 5
      %v2717 = vrot.slane %v2716, 4
      %v2718 = vrot.slane %v2590, 5
      %v2719 = vsel %vm2666, %v2717, %v2718
      %v2720 = vrot.slane %v2718, 4
      %v2721 = vrot.slane %v2591, 5
      %v2722 = vsel %vm2666, %v2720, %v2721
      %v2723 = vrot.slane %v2592, 5
      %v2724 = vrot.slane %v2723, 4
      %v2725 = vrot.slane %v2593, 5
      %v2726 = vsel %vm2666, %v2724, %v2725
      %v2727 = vrot.slane %v2725, 4
      %v2728 = vrot.slane %v2594, 5
      %v2729 = vsel %vm2666, %v2727, %v2728
      %v2730 = vrot.slane %v2595, 5
      %v2731 = vrot.slane %v2730, 4
      %v2732 = vrot.slane %v2596, 5
      %v2733 = vsel %vm2666, %v2731, %v2732
      %v2734 = vrot.slane %v2732, 4
      %v2735 = vrot.slane %v2597, 5
      %v2736 = vsel %vm2666, %v2734, %v2735
      %v2737 = vrot.slane %v2598, 5
      %v2738 = vrot.slane %v2737, 4
      %v2739 = vrot.slane %v2599, 5
      %v2740 = vsel %vm2666, %v2738, %v2739
      %v2741 = vrot.slane %v2739, 4
      %v2742 = vrot.slane %v2600, 5
      %v2743 = vsel %vm2666, %v2741, %v2742
      %v2744 = vrot.slane %v2601, 5
      %v2745 = vrot.slane %v2744, 4
      %v2746 = vrot.slane %v2602, 5
      %v2747 = vsel %vm2666, %v2745, %v2746
      %v2748 = vrot.slane %v2746, 4
      %v2749 = vrot.slane %v2603, 5
      %v2750 = vsel %vm2666, %v2748, %v2749
      %v2751 = vrot.slane %v2604, 5
      %v2752 = vrot.slane %v2751, 4
      %v2753 = vrot.slane %v2605, 5
      %v2754 = vsel %vm2666, %v2752, %v2753
      %v2755 = vrot.slane %v2753, 4
      %v2756 = vrot.slane %v2606, 5
      %v2757 = vsel %vm2666, %v2755, %v2756
      %v2758 = vrot.slane %v2607, 5
      %v2759 = vrot.slane %v2758, 4
      %v2760 = vrot.slane %v2608, 5
      %v2761 = vsel %vm2666, %v2759, %v2760
      %v2762 = vrot.slane %v2760, 4
      %v2763 = vrot.slane %v2609, 5
      %v2764 = vsel %vm2666, %v2762, %v2763
      %v2765 = vrot.slane %v2610, 5
      %v2766 = vrot.slane %v2765, 4
      %v2767 = vrot.slane %v2611, 5
      %v2768 = vsel %vm2666, %v2766, %v2767
      %v2769 = vrot.slane %v2767, 4
      %v2770 = vrot.slane %v2612, 5
      %v2771 = vsel %vm2666, %v2769, %v2770
      %v2772 = vrot.slane %v2613, 5
      %v2773 = vrot.slane %v2772, 4
      %v2774 = vrot.slane %v2614, 5
      %v2775 = vsel %vm2666, %v2773, %v2774
      %v2776 = vrot.slane %v2774, 4
      %v2777 = vrot.slane %v2615, 5
      %v2778 = vsel %vm2666, %v2776, %v2777
      %2779 = vrot.lane.b32.xlu0 %v2670, 8
      %v2780 = vpop.permute.xlu0 %2779
      %2781 = vrot.lane.b32.xlu0 %v2673, 8
      %v2782 = vpop.permute.xlu0 %2781
      %2783 = vrot.lane.b32.xlu0 %v2677, 8
      %v2784 = vpop.permute.xlu0 %2783
      %2785 = vrot.lane.b32.xlu0 %v2680, 8
      %v2786 = vpop.permute.xlu0 %2785
      %2787 = vrot.lane.b32.xlu0 %v2684, 8
      %v2788 = vpop.permute.xlu0 %2787
      %2789 = vrot.lane.b32.xlu0 %v2687, 8
      %v2790 = vpop.permute.xlu0 %2789
      %2791 = vrot.lane.b32.xlu0 %v2691, 8
      %v2792 = vpop.permute.xlu0 %2791
      %2793 = vrot.lane.b32.xlu0 %v2694, 8
      %v2794 = vpop.permute.xlu0 %2793
      %2795 = vrot.lane.b32.xlu0 %v2698, 8
      %v2796 = vpop.permute.xlu0 %2795
      %2797 = vrot.lane.b32.xlu0 %v2701, 8
      %v2798 = vpop.permute.xlu0 %2797
      %2799 = vrot.lane.b32.xlu0 %v2705, 8
      %v2800 = vpop.permute.xlu0 %2799
      %2801 = vrot.lane.b32.xlu0 %v2708, 8
      %v2802 = vpop.permute.xlu0 %2801
      %2803 = vrot.lane.b32.xlu0 %v2712, 8
      %v2804 = vpop.permute.xlu0 %2803
      %2805 = vrot.lane.b32.xlu0 %v2715, 8
      %v2806 = vpop.permute.xlu0 %2805
      %2807 = vrot.lane.b32.xlu0 %v2719, 8
      %v2808 = vpop.permute.xlu0 %2807
      %2809 = vrot.lane.b32.xlu0 %v2722, 8
      %v2810 = vpop.permute.xlu0 %2809
      %2811 = vrot.lane.b32.xlu0 %v2726, 8
      %v2812 = vpop.permute.xlu0 %2811
      %2813 = vrot.lane.b32.xlu0 %v2729, 8
      %v2814 = vpop.permute.xlu0 %2813
      %2815 = vrot.lane.b32.xlu0 %v2733, 8
      %v2816 = vpop.permute.xlu0 %2815
      %2817 = vrot.lane.b32.xlu0 %v2736, 8
      %v2818 = vpop.permute.xlu0 %2817
      %2819 = vrot.lane.b32.xlu0 %v2740, 8
      %v2820 = vpop.permute.xlu0 %2819
      %2821 = vrot.lane.b32.xlu0 %v2743, 8
      %v2822 = vpop.permute.xlu0 %2821
      %2823 = vrot.lane.b32.xlu0 %v2747, 8
      %v2824 = vpop.permute.xlu0 %2823
      %2825 = vrot.lane.b32.xlu0 %v2750, 8
      %v2826 = vpop.permute.xlu0 %2825
      %2827 = vrot.lane.b32.xlu0 %v2754, 8
      %v2828 = vpop.permute.xlu0 %2827
      %2829 = vrot.lane.b32.xlu0 %v2757, 8
      %v2830 = vpop.permute.xlu0 %2829
      %2831 = vrot.lane.b32.xlu0 %v2761, 8
      %v2832 = vpop.permute.xlu0 %2831
      %2833 = vrot.lane.b32.xlu0 %v2764, 8
      %v2834 = vpop.permute.xlu0 %2833
      %2835 = vrot.lane.b32.xlu0 %v2768, 8
      %v2836 = vpop.permute.xlu0 %2835
      %2837 = vrot.lane.b32.xlu0 %v2771, 8
      %v2838 = vpop.permute.xlu0 %2837
      %2839 = vrot.lane.b32.xlu0 %v2775, 8
      %v2840 = vpop.permute.xlu0 %2839
      %2841 = vrot.lane.b32.xlu0 %v2778, 8
      %v2842 = vpop.permute.xlu0 %2841
      %2875 = vst.msk [vmem:[#allocation2] sm:$0xf] %vm741, %v2780
      %2876 = vst.msk [vmem:[#allocation2 + $0x4] sm:$0xf] %vm741, %v2782
      %2877 = vst.msk [vmem:[#allocation2 + $0x8] sm:$0xf] %vm741, %v2784
      %2878 = vst.msk [vmem:[#allocation2 + $0xc] sm:$0xf] %vm741, %v2786
      %2879 = vst.msk [vmem:[#allocation2 + $0x10] sm:$0xf] %vm741, %v2788
      %2880 = vst.msk [vmem:[#allocation2 + $0x14] sm:$0xf] %vm741, %v2790
      %2881 = vst.msk [vmem:[#allocation2 + $0x18] sm:$0xf] %vm741, %v2792
      %2882 = vst.msk [vmem:[#allocation2 + $0x1c] sm:$0xf] %vm741, %v2794
      %2883 = vst.msk [vmem:[#allocation2 + $0x20] sm:$0xf] %vm741, %v2796
      %2884 = vst.msk [vmem:[#allocation2 + $0x24] sm:$0xf] %vm741, %v2798
      %2885 = vst.msk [vmem:[#allocation2 + $0x28] sm:$0xf] %vm741, %v2800
      %2886 = vst.msk [vmem:[#allocation2 + $0x2c] sm:$0xf] %vm741, %v2802
      %2887 = vst.msk [vmem:[#allocation2 + $0x30] sm:$0xf] %vm741, %v2804
      %2888 = vst.msk [vmem:[#allocation2 + $0x34] sm:$0xf] %vm741, %v2806
      %2889 = vst.msk [vmem:[#allocation2 + $0x38] sm:$0xf] %vm741, %v2808
      %2890 = vst.msk [vmem:[#allocation2 + $0x3c] sm:$0xf] %vm741, %v2810
      %2891 = vst.msk [vmem:[#allocation2 + $0x40] sm:$0xf] %vm741, %v2812
      %2892 = vst.msk [vmem:[#allocation2 + $0x44] sm:$0xf] %vm741, %v2814
      %2893 = vst.msk [vmem:[#allocation2 + $0x48] sm:$0xf] %vm741, %v2816
      %2894 = vst.msk [vmem:[#allocation2 + $0x4c] sm:$0xf] %vm741, %v2818
      %2895 = vst.msk [vmem:[#allocation2 + $0x50] sm:$0xf] %vm741, %v2820
      %2896 = vst.msk [vmem:[#allocation2 + $0x54] sm:$0xf] %vm741, %v2822
      %2897 = vst.msk [vmem:[#allocation2 + $0x58] sm:$0xf] %vm741, %v2824
      %2898 = vst.msk [vmem:[#allocation2 + $0x5c] sm:$0xf] %vm741, %v2826
      %2899 = vst.msk [vmem:[#allocation2 + $0x60] sm:$0xf] %vm741, %v2828
      %2900 = vst.msk [vmem:[#allocation2 + $0x64] sm:$0xf] %vm741, %v2830
      %2901 = vst.msk [vmem:[#allocation2 + $0x68] sm:$0xf] %vm741, %v2832
      %2902 = vst.msk [vmem:[#allocation2 + $0x6c] sm:$0xf] %vm741, %v2834
      %2903 = vst.msk [vmem:[#allocation2 + $0x70] sm:$0xf] %vm741, %v2836
      %2904 = vst.msk [vmem:[#allocation2 + $0x74] sm:$0xf] %vm741, %v2838
      %2905 = vst.msk [vmem:[#allocation2 + $0x78] sm:$0xf] %vm741, %v2840
      %2906 = vst.msk [vmem:[#allocation2 + $0x7c] sm:$0xf] %vm741, %v2842
      %v2907 = vld [vmem:[%s774] sm:$0xf]
      %v2908 = vld [vmem:[%s774 + $0x4] sm:$0xf]
      %v2909 = vld [vmem:[%s774 + $0x8] sm:$0x1]
      %v2910 = vld [vmem:[%s774 + $0xc] sm:$0xf]
      %v2911 = vld [vmem:[%s774 + $0x10] sm:$0xf]
      %v2912 = vld [vmem:[%s774 + $0x14] sm:$0x1]
      %v2913 = vld [vmem:[%s774 + $0x18] sm:$0xf]
      %v2914 = vld [vmem:[%s774 + $0x1c] sm:$0xf]
      %v2915 = vld [vmem:[%s774 + $0x20] sm:$0x1]
      %v2916 = vld [vmem:[%s774 + $0x24] sm:$0xf]
      %v2917 = vld [vmem:[%s774 + $0x28] sm:$0xf]
      %v2918 = vld [vmem:[%s774 + $0x2c] sm:$0x1]
      %v2919 = vld [vmem:[%s774 + $0x30] sm:$0xf]
      %v2920 = vld [vmem:[%s774 + $0x34] sm:$0xf]
      %v2921 = vld [vmem:[%s774 + $0x38] sm:$0x1]
      %v2922 = vld [vmem:[%s774 + $0x3c] sm:$0xf]
      %v2923 = vld [vmem:[%s774 + $0x40] sm:$0xf]
      %v2924 = vld [vmem:[%s774 + $0x44] sm:$0x1]
      %v2925 = vld [vmem:[%s774 + $0x48] sm:$0xf]
      %v2926 = vld [vmem:[%s774 + $0x4c] sm:$0xf]
      %v2927 = vld [vmem:[%s774 + $0x50] sm:$0x1]
      %v2928 = vld [vmem:[%s774 + $0x54] sm:$0xf]
      %v2929 = vld [vmem:[%s774 + $0x58] sm:$0xf]
      %v2930 = vld [vmem:[%s774 + $0x5c] sm:$0x1]
      %v2931 = vld [vmem:[%s774 + $0x60] sm:$0xf]
      %v2932 = vld [vmem:[%s774 + $0x64] sm:$0xf]
      %v2933 = vld [vmem:[%s774 + $0x68] sm:$0x1]
      %v2934 = vld [vmem:[%s774 + $0x6c] sm:$0xf]
      %v2935 = vld [vmem:[%s774 + $0x70] sm:$0xf]
      %v2936 = vld [vmem:[%s774 + $0x74] sm:$0x1]
      %v2937 = vld [vmem:[%s774 + $0x78] sm:$0xf]
      %v2938 = vld [vmem:[%s774 + $0x7c] sm:$0xf]
      %v2939 = vld [vmem:[%s774 + $0x80] sm:$0x1]
      %v2940 = vld [vmem:[%s774 + $0x84] sm:$0xf]
      %v2941 = vld [vmem:[%s774 + $0x88] sm:$0xf]
      %v2942 = vld [vmem:[%s774 + $0x8c] sm:$0x1]
      %v2943 = vld [vmem:[%s774 + $0x90] sm:$0xf]
      %v2944 = vld [vmem:[%s774 + $0x94] sm:$0xf]
      %v2945 = vld [vmem:[%s774 + $0x98] sm:$0x1]
      %v2946 = vld [vmem:[%s774 + $0x9c] sm:$0xf]
      %v2947 = vld [vmem:[%s774 + $0xa0] sm:$0xf]
      %v2948 = vld [vmem:[%s774 + $0xa4] sm:$0x1]
      %v2949 = vld [vmem:[%s774 + $0xa8] sm:$0xf]
      %v2950 = vld [vmem:[%s774 + $0xac] sm:$0xf]
      %v2951 = vld [vmem:[%s774 + $0xb0] sm:$0x1]
      %v2952 = vld [vmem:[%s774 + $0xb4] sm:$0xf]
      %v2953 = vld [vmem:[%s774 + $0xb8] sm:$0xf]
      %v2954 = vld [vmem:[%s774 + $0xbc] sm:$0x1]
      %v2956 = vshrl.u32 %v2907, 16
      %v2958 = vrot.slane %v2956, 4
      %v2959 = vshll.u32 %v2907, 16
      %v2961 = vrot.slane %v2959, 5
      %v2962 = vor.u32 %v2958, %v2961
      %v2963 = vrot.slane %v2962, 4
      %v2965 = vshll.u32 %v2908, 16
      %v2967 = vrot.slane %v2965, 5
      %v2968 = vsel %vm260, %v2963, %v2967
      %v2969 = vshrl.u32 %v2908, 16
      %v2971 = vrot.slane %v2969, 4
      %v2972 = vor.u32 %v2971, %v2967
      %v2973 = vrot.slane %v2972, 4
      %v2975 = vshll.u32 %v2909, 16
      %v2977 = vrot.slane %v2975, 5
      %v2978 = vsel %vm260, %v2973, %v2977
      %v2980 = vshrl.u32 %v2910, 16
      %v2982 = vrot.slane %v2980, 4
      %v2983 = vshll.u32 %v2910, 16
      %v2985 = vrot.slane %v2983, 5
      %v2986 = vor.u32 %v2982, %v2985
      %v2987 = vrot.slane %v2986, 4
      %v2989 = vshll.u32 %v2911, 16
      %v2991 = vrot.slane %v2989, 5
      %v2992 = vsel %vm260, %v2987, %v2991
      %v2993 = vshrl.u32 %v2911, 16
      %v2995 = vrot.slane %v2993, 4
      %v2996 = vor.u32 %v2995, %v2991
      %v2997 = vrot.slane %v2996, 4
      %v2999 = vshll.u32 %v2912, 16
      %v3001 = vrot.slane %v2999, 5
      %v3002 = vsel %vm260, %v2997, %v3001
      %v3004 = vshrl.u32 %v2913, 16
      %v3006 = vrot.slane %v3004, 4
      %v3007 = vshll.u32 %v2913, 16
      %v3009 = vrot.slane %v3007, 5
      %v3010 = vor.u32 %v3006, %v3009
      %v3011 = vrot.slane %v3010, 4
      %v3013 = vshll.u32 %v2914, 16
      %v3015 = vrot.slane %v3013, 5
      %v3016 = vsel %vm260, %v3011, %v3015
      %v3017 = vshrl.u32 %v2914, 16
      %v3019 = vrot.slane %v3017, 4
      %v3020 = vor.u32 %v3019, %v3015
      %v3021 = vrot.slane %v3020, 4
      %v3023 = vshll.u32 %v2915, 16
      %v3025 = vrot.slane %v3023, 5
      %v3026 = vsel %vm260, %v3021, %v3025
      %v3028 = vshrl.u32 %v2916, 16
      %v3030 = vrot.slane %v3028, 4
      %v3031 = vshll.u32 %v2916, 16
      %v3033 = vrot.slane %v3031, 5
      %v3034 = vor.u32 %v3030, %v3033
      %v3035 = vrot.slane %v3034, 4
      %v3037 = vshll.u32 %v2917, 16
      %v3039 = vrot.slane %v3037, 5
      %v3040 = vsel %vm260, %v3035, %v3039
      %v3041 = vshrl.u32 %v2917, 16
      %v3043 = vrot.slane %v3041, 4
      %v3044 = vor.u32 %v3043, %v3039
      %v3045 = vrot.slane %v3044, 4
      %v3047 = vshll.u32 %v2918, 16
      %v3049 = vrot.slane %v3047, 5
      %v3050 = vsel %vm260, %v3045, %v3049
      %v3052 = vshrl.u32 %v2919, 16
      %v3054 = vrot.slane %v3052, 4
      %v3055 = vshll.u32 %v2919, 16
      %v3057 = vrot.slane %v3055, 5
      %v3058 = vor.u32 %v3054, %v3057
      %v3059 = vrot.slane %v3058, 4
      %v3061 = vshll.u32 %v2920, 16
      %v3063 = vrot.slane %v3061, 5
      %v3064 = vsel %vm260, %v3059, %v3063
      %v3065 = vshrl.u32 %v2920, 16
      %v3067 = vrot.slane %v3065, 4
      %v3068 = vor.u32 %v3067, %v3063
      %v3069 = vrot.slane %v3068, 4
      %v3071 = vshll.u32 %v2921, 16
      %v3073 = vrot.slane %v3071, 5
      %v3074 = vsel %vm260, %v3069, %v3073
      %v3076 = vshrl.u32 %v2922, 16
      %v3078 = vrot.slane %v3076, 4
      %v3079 = vshll.u32 %v2922, 16
      %v3081 = vrot.slane %v3079, 5
      %v3082 = vor.u32 %v3078, %v3081
      %v3083 = vrot.slane %v3082, 4
      %v3085 = vshll.u32 %v2923, 16
      %v3087 = vrot.slane %v3085, 5
      %v3088 = vsel %vm260, %v3083, %v3087
      %v3089 = vshrl.u32 %v2923, 16
      %v3091 = vrot.slane %v3089, 4
      %v3092 = vor.u32 %v3091, %v3087
      %v3093 = vrot.slane %v3092, 4
      %v3095 = vshll.u32 %v2924, 16
      %v3097 = vrot.slane %v3095, 5
      %v3098 = vsel %vm260, %v3093, %v3097
      %v3100 = vshrl.u32 %v2925, 16
      %v3102 = vrot.slane %v3100, 4
      %v3103 = vshll.u32 %v2925, 16
      %v3105 = vrot.slane %v3103, 5
      %v3106 = vor.u32 %v3102, %v3105
      %v3107 = vrot.slane %v3106, 4
      %v3109 = vshll.u32 %v2926, 16
      %v3111 = vrot.slane %v3109, 5
      %v3112 = vsel %vm260, %v3107, %v3111
      %v3113 = vshrl.u32 %v2926, 16
      %v3115 = vrot.slane %v3113, 4
      %v3116 = vor.u32 %v3115, %v3111
      %v3117 = vrot.slane %v3116, 4
      %v3119 = vshll.u32 %v2927, 16
      %v3121 = vrot.slane %v3119, 5
      %v3122 = vsel %vm260, %v3117, %v3121
      %v3124 = vshrl.u32 %v2928, 16
      %v3126 = vrot.slane %v3124, 4
      %v3127 = vshll.u32 %v2928, 16
      %v3129 = vrot.slane %v3127, 5
      %v3130 = vor.u32 %v3126, %v3129
      %v3131 = vrot.slane %v3130, 4
      %v3133 = vshll.u32 %v2929, 16
      %v3135 = vrot.slane %v3133, 5
      %v3136 = vsel %vm260, %v3131, %v3135
      %v3137 = vshrl.u32 %v2929, 16
      %v3139 = vrot.slane %v3137, 4
      %v3140 = vor.u32 %v3139, %v3135
      %v3141 = vrot.slane %v3140, 4
      %v3143 = vshll.u32 %v2930, 16
      %v3145 = vrot.slane %v3143, 5
      %v3146 = vsel %vm260, %v3141, %v3145
      %v3148 = vshrl.u32 %v2931, 16
      %v3150 = vrot.slane %v3148, 4
      %v3151 = vshll.u32 %v2931, 16
      %v3153 = vrot.slane %v3151, 5
      %v3154 = vor.u32 %v3150, %v3153
      %v3155 = vrot.slane %v3154, 4
      %v3157 = vshll.u32 %v2932, 16
      %v3159 = vrot.slane %v3157, 5
      %v3160 = vsel %vm260, %v3155, %v3159
      %v3161 = vshrl.u32 %v2932, 16
      %v3163 = vrot.slane %v3161, 4
      %v3164 = vor.u32 %v3163, %v3159
      %v3165 = vrot.slane %v3164, 4
      %v3167 = vshll.u32 %v2933, 16
      %v3169 = vrot.slane %v3167, 5
      %v3170 = vsel %vm260, %v3165, %v3169
      %v3172 = vshrl.u32 %v2934, 16
      %v3174 = vrot.slane %v3172, 4
      %v3175 = vshll.u32 %v2934, 16
      %v3177 = vrot.slane %v3175, 5
      %v3178 = vor.u32 %v3174, %v3177
      %v3179 = vrot.slane %v3178, 4
      %v3181 = vshll.u32 %v2935, 16
      %v3183 = vrot.slane %v3181, 5
      %v3184 = vsel %vm260, %v3179, %v3183
      %v3185 = vshrl.u32 %v2935, 16
      %v3187 = vrot.slane %v3185, 4
      %v3188 = vor.u32 %v3187, %v3183
      %v3189 = vrot.slane %v3188, 4
      %v3191 = vshll.u32 %v2936, 16
      %v3193 = vrot.slane %v3191, 5
      %v3194 = vsel %vm260, %v3189, %v3193
      %v3196 = vshrl.u32 %v2937, 16
      %v3198 = vrot.slane %v3196, 4
      %v3199 = vshll.u32 %v2937, 16
      %v3201 = vrot.slane %v3199, 5
      %v3202 = vor.u32 %v3198, %v3201
      %v3203 = vrot.slane %v3202, 4
      %v3205 = vshll.u32 %v2938, 16
      %v3207 = vrot.slane %v3205, 5
      %v3208 = vsel %vm260, %v3203, %v3207
      %v3209 = vshrl.u32 %v2938, 16
      %v3211 = vrot.slane %v3209, 4
      %v3212 = vor.u32 %v3211, %v3207
      %v3213 = vrot.slane %v3212, 4
      %v3215 = vshll.u32 %v2939, 16
      %v3217 = vrot.slane %v3215, 5
      %v3218 = vsel %vm260, %v3213, %v3217
      %v3220 = vshrl.u32 %v2940, 16
      %v3222 = vrot.slane %v3220, 4
      %v3223 = vshll.u32 %v2940, 16
      %v3225 = vrot.slane %v3223, 5
      %v3226 = vor.u32 %v3222, %v3225
      %v3227 = vrot.slane %v3226, 4
      %v3229 = vshll.u32 %v2941, 16
      %v3231 = vrot.slane %v3229, 5
      %v3232 = vsel %vm260, %v3227, %v3231
      %v3233 = vshrl.u32 %v2941, 16
      %v3235 = vrot.slane %v3233, 4
      %v3236 = vor.u32 %v3235, %v3231
      %v3237 = vrot.slane %v3236, 4
      %v3239 = vshll.u32 %v2942, 16
      %v3241 = vrot.slane %v3239, 5
      %v3242 = vsel %vm260, %v3237, %v3241
      %v3244 = vshrl.u32 %v2943, 16
      %v3246 = vrot.slane %v3244, 4
      %v3247 = vshll.u32 %v2943, 16
      %v3249 = vrot.slane %v3247, 5
      %v3250 = vor.u32 %v3246, %v3249
      %v3251 = vrot.slane %v3250, 4
      %v3253 = vshll.u32 %v2944, 16
      %v3255 = vrot.slane %v3253, 5
      %v3256 = vsel %vm260, %v3251, %v3255
      %v3257 = vshrl.u32 %v2944, 16
      %v3259 = vrot.slane %v3257, 4
      %v3260 = vor.u32 %v3259, %v3255
      %v3261 = vrot.slane %v3260, 4
      %v3263 = vshll.u32 %v2945, 16
      %v3265 = vrot.slane %v3263, 5
      %v3266 = vsel %vm260, %v3261, %v3265
      %v3268 = vshrl.u32 %v2946, 16
      %v3270 = vrot.slane %v3268, 4
      %v3271 = vshll.u32 %v2946, 16
      %v3273 = vrot.slane %v3271, 5
      %v3274 = vor.u32 %v3270, %v3273
      %v3275 = vrot.slane %v3274, 4
      %v3277 = vshll.u32 %v2947, 16
      %v3279 = vrot.slane %v3277, 5
      %v3280 = vsel %vm260, %v3275, %v3279
      %v3281 = vshrl.u32 %v2947, 16
      %v3283 = vrot.slane %v3281, 4
      %v3284 = vor.u32 %v3283, %v3279
      %v3285 = vrot.slane %v3284, 4
      %v3287 = vshll.u32 %v2948, 16
      %v3289 = vrot.slane %v3287, 5
      %v3290 = vsel %vm260, %v3285, %v3289
      %v3292 = vshrl.u32 %v2949, 16
      %v3294 = vrot.slane %v3292, 4
      %v3295 = vshll.u32 %v2949, 16
      %v3297 = vrot.slane %v3295, 5
      %v3298 = vor.u32 %v3294, %v3297
      %v3299 = vrot.slane %v3298, 4
      %v3301 = vshll.u32 %v2950, 16
      %v3303 = vrot.slane %v3301, 5
      %v3304 = vsel %vm260, %v3299, %v3303
      %v3305 = vshrl.u32 %v2950, 16
      %v3307 = vrot.slane %v3305, 4
      %v3308 = vor.u32 %v3307, %v3303
      %v3309 = vrot.slane %v3308, 4
      %v3311 = vshll.u32 %v2951, 16
      %v3313 = vrot.slane %v3311, 5
      %v3314 = vsel %vm260, %v3309, %v3313
      %v3316 = vshrl.u32 %v2952, 16
      %v3318 = vrot.slane %v3316, 4
      %v3319 = vshll.u32 %v2952, 16
      %v3321 = vrot.slane %v3319, 5
      %v3322 = vor.u32 %v3318, %v3321
      %v3323 = vrot.slane %v3322, 4
      %v3325 = vshll.u32 %v2953, 16
      %v3327 = vrot.slane %v3325, 5
      %v3328 = vsel %vm260, %v3323, %v3327
      %v3329 = vshrl.u32 %v2953, 16
      %v3331 = vrot.slane %v3329, 4
      %v3332 = vor.u32 %v3331, %v3327
      %v3333 = vrot.slane %v3332, 4
      %v3335 = vshll.u32 %v2954, 16
      %v3337 = vrot.slane %v3335, 5
      %v3338 = vsel %vm260, %v3333, %v3337
      %3339 = vrot.lane.b32.xlu0 %v2968, 16
      %v3340 = vpop.permute.xlu0 %3339
      %3341 = vrot.lane.b32.xlu0 %v2978, 16
      %v3342 = vpop.permute.xlu0 %3341
      %3343 = vrot.lane.b32.xlu0 %v2992, 16
      %v3344 = vpop.permute.xlu0 %3343
      %3345 = vrot.lane.b32.xlu0 %v3002, 16
      %v3346 = vpop.permute.xlu0 %3345
      %3347 = vrot.lane.b32.xlu0 %v3016, 16
      %v3348 = vpop.permute.xlu0 %3347
      %3349 = vrot.lane.b32.xlu0 %v3026, 16
      %v3350 = vpop.permute.xlu0 %3349
      %3351 = vrot.lane.b32.xlu0 %v3040, 16
      %v3352 = vpop.permute.xlu0 %3351
      %3353 = vrot.lane.b32.xlu0 %v3050, 16
      %v3354 = vpop.permute.xlu0 %3353
      %3355 = vrot.lane.b32.xlu0 %v3064, 16
      %v3356 = vpop.permute.xlu0 %3355
      %3357 = vrot.lane.b32.xlu0 %v3074, 16
      %v3358 = vpop.permute.xlu0 %3357
      %3359 = vrot.lane.b32.xlu0 %v3088, 16
      %v3360 = vpop.permute.xlu0 %3359
      %3361 = vrot.lane.b32.xlu0 %v3098, 16
      %v3362 = vpop.permute.xlu0 %3361
      %3363 = vrot.lane.b32.xlu0 %v3112, 16
      %v3364 = vpop.permute.xlu0 %3363
      %3365 = vrot.lane.b32.xlu0 %v3122, 16
      %v3366 = vpop.permute.xlu0 %3365
      %3367 = vrot.lane.b32.xlu0 %v3136, 16
      %v3368 = vpop.permute.xlu0 %3367
      %3369 = vrot.lane.b32.xlu0 %v3146, 16
      %v3370 = vpop.permute.xlu0 %3369
      %3371 = vrot.lane.b32.xlu0 %v3160, 16
      %v3372 = vpop.permute.xlu0 %3371
      %3373 = vrot.lane.b32.xlu0 %v3170, 16
      %v3374 = vpop.permute.xlu0 %3373
      %3375 = vrot.lane.b32.xlu0 %v3184, 16
      %v3376 = vpop.permute.xlu0 %3375
      %3377 = vrot.lane.b32.xlu0 %v3194, 16
      %v3378 = vpop.permute.xlu0 %3377
      %3379 = vrot.lane.b32.xlu0 %v3208, 16
      %v3380 = vpop.permute.xlu0 %3379
      %3381 = vrot.lane.b32.xlu0 %v3218, 16
      %v3382 = vpop.permute.xlu0 %3381
      %3383 = vrot.lane.b32.xlu0 %v3232, 16
      %v3384 = vpop.permute.xlu0 %3383
      %3385 = vrot.lane.b32.xlu0 %v3242, 16
      %v3386 = vpop.permute.xlu0 %3385
      %3387 = vrot.lane.b32.xlu0 %v3256, 16
      %v3388 = vpop.permute.xlu0 %3387
      %3389 = vrot.lane.b32.xlu0 %v3266, 16
      %v3390 = vpop.permute.xlu0 %3389
      %3391 = vrot.lane.b32.xlu0 %v3280, 16
      %v3392 = vpop.permute.xlu0 %3391
      %3393 = vrot.lane.b32.xlu0 %v3290, 16
      %v3394 = vpop.permute.xlu0 %3393
      %3395 = vrot.lane.b32.xlu0 %v3304, 16
      %v3396 = vpop.permute.xlu0 %3395
      %3397 = vrot.lane.b32.xlu0 %v3314, 16
      %v3398 = vpop.permute.xlu0 %3397
      %3399 = vrot.lane.b32.xlu0 %v3328, 16
      %v3400 = vpop.permute.xlu0 %3399
      %3401 = vrot.lane.b32.xlu0 %v3338, 16
      %v3402 = vpop.permute.xlu0 %3401
      %3435 = vst.msk [vmem:[#allocation2] sm:$0xf] %vm935, %v3340
      %3436 = vst.msk [vmem:[#allocation2 + $0x4] sm:$0xf] %vm935, %v3342
      %3437 = vst.msk [vmem:[#allocation2 + $0x8] sm:$0xf] %vm935, %v3344
      %3438 = vst.msk [vmem:[#allocation2 + $0xc] sm:$0xf] %vm935, %v3346
      %3439 = vst.msk [vmem:[#allocation2 + $0x10] sm:$0xf] %vm935, %v3348
      %3440 = vst.msk [vmem:[#allocation2 + $0x14] sm:$0xf] %vm935, %v3350
      %3441 = vst.msk [vmem:[#allocation2 + $0x18] sm:$0xf] %vm935, %v3352
      %3442 = vst.msk [vmem:[#allocation2 + $0x1c] sm:$0xf] %vm935, %v3354
      %3443 = vst.msk [vmem:[#allocation2 + $0x20] sm:$0xf] %vm935, %v3356
      %3444 = vst.msk [vmem:[#allocation2 + $0x24] sm:$0xf] %vm935, %v3358
      %3445 = vst.msk [vmem:[#allocation2 + $0x28] sm:$0xf] %vm935, %v3360
      %3446 = vst.msk [vmem:[#allocation2 + $0x2c] sm:$0xf] %vm935, %v3362
      %3447 = vst.msk [vmem:[#allocation2 + $0x30] sm:$0xf] %vm935, %v3364
      %3448 = vst.msk [vmem:[#allocation2 + $0x34] sm:$0xf] %vm935, %v3366
      %3449 = vst.msk [vmem:[#allocation2 + $0x38] sm:$0xf] %vm935, %v3368
      %3450 = vst.msk [vmem:[#allocation2 + $0x3c] sm:$0xf] %vm935, %v3370
      %3451 = vst.msk [vmem:[#allocation2 + $0x40] sm:$0xf] %vm935, %v3372
      %3452 = vst.msk [vmem:[#allocation2 + $0x44] sm:$0xf] %vm935, %v3374
      %3453 = vst.msk [vmem:[#allocation2 + $0x48] sm:$0xf] %vm935, %v3376
      %3454 = vst.msk [vmem:[#allocation2 + $0x4c] sm:$0xf] %vm935, %v3378
      %3455 = vst.msk [vmem:[#allocation2 + $0x50] sm:$0xf] %vm935, %v3380
      %3456 = vst.msk [vmem:[#allocation2 + $0x54] sm:$0xf] %vm935, %v3382
      %3457 = vst.msk [vmem:[#allocation2 + $0x58] sm:$0xf] %vm935, %v3384
      %3458 = vst.msk [vmem:[#allocation2 + $0x5c] sm:$0xf] %vm935, %v3386
      %3459 = vst.msk [vmem:[#allocation2 + $0x60] sm:$0xf] %vm935, %v3388
      %3460 = vst.msk [vmem:[#allocation2 + $0x64] sm:$0xf] %vm935, %v3390
      %3461 = vst.msk [vmem:[#allocation2 + $0x68] sm:$0xf] %vm935, %v3392
      %3462 = vst.msk [vmem:[#allocation2 + $0x6c] sm:$0xf] %vm935, %v3394
      %3463 = vst.msk [vmem:[#allocation2 + $0x70] sm:$0xf] %vm935, %v3396
      %3464 = vst.msk [vmem:[#allocation2 + $0x74] sm:$0xf] %vm935, %v3398
      %3465 = vst.msk [vmem:[#allocation2 + $0x78] sm:$0xf] %vm935, %v3400
      %3466 = vst.msk [vmem:[#allocation2 + $0x7c] sm:$0xf] %vm935, %v3402
      %v3467 = vld [vmem:[%s774] sm:$0xe]
      %v3468 = vld [vmem:[%s774 + $0x4] sm:$0xf]
      %v3469 = vld [vmem:[%s774 + $0x8] sm:$0x1]
      %v3470 = vld [vmem:[%s774 + $0xc] sm:$0xe]
      %v3471 = vld [vmem:[%s774 + $0x10] sm:$0xf]
      %v3472 = vld [vmem:[%s774 + $0x14] sm:$0x1]
      %v3473 = vld [vmem:[%s774 + $0x18] sm:$0xe]
      %v3474 = vld [vmem:[%s774 + $0x1c] sm:$0xf]
      %v3475 = vld [vmem:[%s774 + $0x20] sm:$0x1]
      %v3476 = vld [vmem:[%s774 + $0x24] sm:$0xe]
      %v3477 = vld [vmem:[%s774 + $0x28] sm:$0xf]
      %v3478 = vld [vmem:[%s774 + $0x2c] sm:$0x1]
      %v3479 = vld [vmem:[%s774 + $0x30] sm:$0xe]
      %v3480 = vld [vmem:[%s774 + $0x34] sm:$0xf]
      %v3481 = vld [vmem:[%s774 + $0x38] sm:$0x1]
      %v3482 = vld [vmem:[%s774 + $0x3c] sm:$0xe]
      %v3483 = vld [vmem:[%s774 + $0x40] sm:$0xf]
      %v3484 = vld [vmem:[%s774 + $0x44] sm:$0x1]
      %v3485 = vld [vmem:[%s774 + $0x48] sm:$0xe]
      %v3486 = vld [vmem:[%s774 + $0x4c] sm:$0xf]
      %v3487 = vld [vmem:[%s774 + $0x50] sm:$0x1]
      %v3488 = vld [vmem:[%s774 + $0x54] sm:$0xe]
      %v3489 = vld [vmem:[%s774 + $0x58] sm:$0xf]
      %v3490 = vld [vmem:[%s774 + $0x5c] sm:$0x1]
      %v3491 = vld [vmem:[%s774 + $0x60] sm:$0xe]
      %v3492 = vld [vmem:[%s774 + $0x64] sm:$0xf]
      %v3493 = vld [vmem:[%s774 + $0x68] sm:$0x1]
      %v3494 = vld [vmem:[%s774 + $0x6c] sm:$0xe]
      %v3495 = vld [vmem:[%s774 + $0x70] sm:$0xf]
      %v3496 = vld [vmem:[%s774 + $0x74] sm:$0x1]
      %v3497 = vld [vmem:[%s774 + $0x78] sm:$0xe]
      %v3498 = vld [vmem:[%s774 + $0x7c] sm:$0xf]
      %v3499 = vld [vmem:[%s774 + $0x80] sm:$0x1]
      %v3500 = vld [vmem:[%s774 + $0x84] sm:$0xe]
      %v3501 = vld [vmem:[%s774 + $0x88] sm:$0xf]
      %v3502 = vld [vmem:[%s774 + $0x8c] sm:$0x1]
      %v3503 = vld [vmem:[%s774 + $0x90] sm:$0xe]
      %v3504 = vld [vmem:[%s774 + $0x94] sm:$0xf]
      %v3505 = vld [vmem:[%s774 + $0x98] sm:$0x1]
      %v3506 = vld [vmem:[%s774 + $0x9c] sm:$0xe]
      %v3507 = vld [vmem:[%s774 + $0xa0] sm:$0xf]
      %v3508 = vld [vmem:[%s774 + $0xa4] sm:$0x1]
      %v3509 = vld [vmem:[%s774 + $0xa8] sm:$0xe]
      %v3510 = vld [vmem:[%s774 + $0xac] sm:$0xf]
      %v3511 = vld [vmem:[%s774 + $0xb0] sm:$0x1]
      %v3512 = vld [vmem:[%s774 + $0xb4] sm:$0xe]
      %v3513 = vld [vmem:[%s774 + $0xb8] sm:$0xf]
      %v3514 = vld [vmem:[%s774 + $0xbc] sm:$0x1]
      %v3563 = vrot.slane %v3467, 5
      %v3564 = vrot.slane %v3563, 4
      %v3565 = vrot.slane %v3468, 5
      %v3566 = vsel %vm2666, %v3564, %v3565
      %v3567 = vrot.slane %v3565, 4
      %v3568 = vrot.slane %v3469, 5
      %v3569 = vsel %vm2666, %v3567, %v3568
      %v3570 = vrot.slane %v3470, 5
      %v3571 = vrot.slane %v3570, 4
      %v3572 = vrot.slane %v3471, 5
      %v3573 = vsel %vm2666, %v3571, %v3572
      %v3574 = vrot.slane %v3572, 4
      %v3575 = vrot.slane %v3472, 5
      %v3576 = vsel %vm2666, %v3574, %v3575
      %v3577 = vrot.slane %v3473, 5
      %v3578 = vrot.slane %v3577, 4
      %v3579 = vrot.slane %v3474, 5
      %v3580 = vsel %vm2666, %v3578, %v3579
      %v3581 = vrot.slane %v3579, 4
      %v3582 = vrot.slane %v3475, 5
      %v3583 = vsel %vm2666, %v3581, %v3582
      %v3584 = vrot.slane %v3476, 5
      %v3585 = vrot.slane %v3584, 4
      %v3586 = vrot.slane %v3477, 5
      %v3587 = vsel %vm2666, %v3585, %v3586
      %v3588 = vrot.slane %v3586, 4
      %v3589 = vrot.slane %v3478, 5
      %v3590 = vsel %vm2666, %v3588, %v3589
      %v3591 = vrot.slane %v3479, 5
      %v3592 = vrot.slane %v3591, 4
      %v3593 = vrot.slane %v3480, 5
      %v3594 = vsel %vm2666, %v3592, %v3593
      %v3595 = vrot.slane %v3593, 4
      %v3596 = vrot.slane %v3481, 5
      %v3597 = vsel %vm2666, %v3595, %v3596
      %v3598 = vrot.slane %v3482, 5
      %v3599 = vrot.slane %v3598, 4
      %v3600 = vrot.slane %v3483, 5
      %v3601 = vsel %vm2666, %v3599, %v3600
      %v3602 = vrot.slane %v3600, 4
      %v3603 = vrot.slane %v3484, 5
      %v3604 = vsel %vm2666, %v3602, %v3603
      %v3605 = vrot.slane %v3485, 5
      %v3606 = vrot.slane %v3605, 4
      %v3607 = vrot.slane %v3486, 5
      %v3608 = vsel %vm2666, %v3606, %v3607
      %v3609 = vrot.slane %v3607, 4
      %v3610 = vrot.slane %v3487, 5
      %v3611 = vsel %vm2666, %v3609, %v3610
      %v3612 = vrot.slane %v3488, 5
      %v3613 = vrot.slane %v3612, 4
      %v3614 = vrot.slane %v3489, 5
      %v3615 = vsel %vm2666, %v3613, %v3614
      %v3616 = vrot.slane %v3614, 4
      %v3617 = vrot.slane %v3490, 5
      %v3618 = vsel %vm2666, %v3616, %v3617
      %v3619 = vrot.slane %v3491, 5
      %v3620 = vrot.slane %v3619, 4
      %v3621 = vrot.slane %v3492, 5
      %v3622 = vsel %vm2666, %v3620, %v3621
      %v3623 = vrot.slane %v3621, 4
      %v3624 = vrot.slane %v3493, 5
      %v3625 = vsel %vm2666, %v3623, %v3624
      %v3626 = vrot.slane %v3494, 5
      %v3627 = vrot.slane %v3626, 4
      %v3628 = vrot.slane %v3495, 5
      %v3629 = vsel %vm2666, %v3627, %v3628
      %v3630 = vrot.slane %v3628, 4
      %v3631 = vrot.slane %v3496, 5
      %v3632 = vsel %vm2666, %v3630, %v3631
      %v3633 = vrot.slane %v3497, 5
      %v3634 = vrot.slane %v3633, 4
      %v3635 = vrot.slane %v3498, 5
      %v3636 = vsel %vm2666, %v3634, %v3635
      %v3637 = vrot.slane %v3635, 4
      %v3638 = vrot.slane %v3499, 5
      %v3639 = vsel %vm2666, %v3637, %v3638
      %v3640 = vrot.slane %v3500, 5
      %v3641 = vrot.slane %v3640, 4
      %v3642 = vrot.slane %v3501, 5
      %v3643 = vsel %vm2666, %v3641, %v3642
      %v3644 = vrot.slane %v3642, 4
      %v3645 = vrot.slane %v3502, 5
      %v3646 = vsel %vm2666, %v3644, %v3645
      %v3647 = vrot.slane %v3503, 5
      %v3648 = vrot.slane %v3647, 4
      %v3649 = vrot.slane %v3504, 5
      %v3650 = vsel %vm2666, %v3648, %v3649
      %v3651 = vrot.slane %v3649, 4
      %v3652 = vrot.slane %v3505, 5
      %v3653 = vsel %vm2666, %v3651, %v3652
      %v3654 = vrot.slane %v3506, 5
      %v3655 = vrot.slane %v3654, 4
      %v3656 = vrot.slane %v3507, 5
      %v3657 = vsel %vm2666, %v3655, %v3656
      %v3658 = vrot.slane %v3656, 4
      %v3659 = vrot.slane %v3508, 5
      %v3660 = vsel %vm2666, %v3658, %v3659
      %v3661 = vrot.slane %v3509, 5
      %v3662 = vrot.slane %v3661, 4
      %v3663 = vrot.slane %v3510, 5
      %v3664 = vsel %vm2666, %v3662, %v3663
      %v3665 = vrot.slane %v3663, 4
      %v3666 = vrot.slane %v3511, 5
      %v3667 = vsel %vm2666, %v3665, %v3666
      %v3668 = vrot.slane %v3512, 5
      %v3669 = vrot.slane %v3668, 4
      %v3670 = vrot.slane %v3513, 5
      %v3671 = vsel %vm2666, %v3669, %v3670
      %v3672 = vrot.slane %v3670, 4
      %v3673 = vrot.slane %v3514, 5
      %v3674 = vsel %vm2666, %v3672, %v3673
      %3675 = vrot.lane.b32.xlu0 %v3566, 24
      %v3676 = vpop.permute.xlu0 %3675
      %3677 = vrot.lane.b32.xlu0 %v3569, 24
      %v3678 = vpop.permute.xlu0 %3677
      %3679 = vrot.lane.b32.xlu0 %v3573, 24
      %v3680 = vpop.permute.xlu0 %3679
      %3681 = vrot.lane.b32.xlu0 %v3576, 24
      %v3682 = vpop.permute.xlu0 %3681
      %3683 = vrot.lane.b32.xlu0 %v3580, 24
      %v3684 = vpop.permute.xlu0 %3683
      %3685 = vrot.lane.b32.xlu0 %v3583, 24
      %v3686 = vpop.permute.xlu0 %3685
      %3687 = vrot.lane.b32.xlu0 %v3587, 24
      %v3688 = vpop.permute.xlu0 %3687
      %3689 = vrot.lane.b32.xlu0 %v3590, 24
      %v3690 = vpop.permute.xlu0 %3689
      %3691 = vrot.lane.b32.xlu0 %v3594, 24
      %v3692 = vpop.permute.xlu0 %3691
      %3693 = vrot.lane.b32.xlu0 %v3597, 24
      %v3694 = vpop.permute.xlu0 %3693
      %3695 = vrot.lane.b32.xlu0 %v3601, 24
      %v3696 = vpop.permute.xlu0 %3695
      %3697 = vrot.lane.b32.xlu0 %v3604, 24
      %v3698 = vpop.permute.xlu0 %3697
      %3699 = vrot.lane.b32.xlu0 %v3608, 24
      %v3700 = vpop.permute.xlu0 %3699
      %3701 = vrot.lane.b32.xlu0 %v3611, 24
      %v3702 = vpop.permute.xlu0 %3701
      %3703 = vrot.lane.b32.xlu0 %v3615, 24
      %v3704 = vpop.permute.xlu0 %3703
      %3705 = vrot.lane.b32.xlu0 %v3618, 24
      %v3706 = vpop.permute.xlu0 %3705
      %3707 = vrot.lane.b32.xlu0 %v3622, 24
      %v3708 = vpop.permute.xlu0 %3707
      %3709 = vrot.lane.b32.xlu0 %v3625, 24
      %v3710 = vpop.permute.xlu0 %3709
      %3711 = vrot.lane.b32.xlu0 %v3629, 24
      %v3712 = vpop.permute.xlu0 %3711
      %3713 = vrot.lane.b32.xlu0 %v3632, 24
      %v3714 = vpop.permute.xlu0 %3713
      %3715 = vrot.lane.b32.xlu0 %v3636, 24
      %v3716 = vpop.permute.xlu0 %3715
      %3717 = vrot.lane.b32.xlu0 %v3639, 24
      %v3718 = vpop.permute.xlu0 %3717
      %3719 = vrot.lane.b32.xlu0 %v3643, 24
      %v3720 = vpop.permute.xlu0 %3719
      %3721 = vrot.lane.b32.xlu0 %v3646, 24
      %v3722 = vpop.permute.xlu0 %3721
      %3723 = vrot.lane.b32.xlu0 %v3650, 24
      %v3724 = vpop.permute.xlu0 %3723
      %3725 = vrot.lane.b32.xlu0 %v3653, 24
      %v3726 = vpop.permute.xlu0 %3725
      %3727 = vrot.lane.b32.xlu0 %v3657, 24
      %v3728 = vpop.permute.xlu0 %3727
      %3729 = vrot.lane.b32.xlu0 %v3660, 24
      %v3730 = vpop.permute.xlu0 %3729
      %3731 = vrot.lane.b32.xlu0 %v3664, 24
      %v3732 = vpop.permute.xlu0 %3731
      %3733 = vrot.lane.b32.xlu0 %v3667, 24
      %v3734 = vpop.permute.xlu0 %3733
      %3735 = vrot.lane.b32.xlu0 %v3671, 24
      %v3736 = vpop.permute.xlu0 %3735
      %3737 = vrot.lane.b32.xlu0 %v3674, 24
      %v3738 = vpop.permute.xlu0 %3737
      %3771 = vst.msk [vmem:[#allocation2] sm:$0xf] %vm1496, %v3676
      %3772 = vst.msk [vmem:[#allocation2 + $0x4] sm:$0xf] %vm1496, %v3678
      %3773 = vst.msk [vmem:[#allocation2 + $0x8] sm:$0xf] %vm1496, %v3680
      %3774 = vst.msk [vmem:[#allocation2 + $0xc] sm:$0xf] %vm1496, %v3682
      %3775 = vst.msk [vmem:[#allocation2 + $0x10] sm:$0xf] %vm1496, %v3684
      %3776 = vst.msk [vmem:[#allocation2 + $0x14] sm:$0xf] %vm1496, %v3686
      %3777 = vst.msk [vmem:[#allocation2 + $0x18] sm:$0xf] %vm1496, %v3688
      %3778 = vst.msk [vmem:[#allocation2 + $0x1c] sm:$0xf] %vm1496, %v3690
      %3779 = vst.msk [vmem:[#allocation2 + $0x20] sm:$0xf] %vm1496, %v3692
      %3780 = vst.msk [vmem:[#allocation2 + $0x24] sm:$0xf] %vm1496, %v3694
      %3781 = vst.msk [vmem:[#allocation2 + $0x28] sm:$0xf] %vm1496, %v3696
      %3782 = vst.msk [vmem:[#allocation2 + $0x2c] sm:$0xf] %vm1496, %v3698
      %3783 = vst.msk [vmem:[#allocation2 + $0x30] sm:$0xf] %vm1496, %v3700
      %3784 = vst.msk [vmem:[#allocation2 + $0x34] sm:$0xf] %vm1496, %v3702
      %3785 = vst.msk [vmem:[#allocation2 + $0x38] sm:$0xf] %vm1496, %v3704
      %3786 = vst.msk [vmem:[#allocation2 + $0x3c] sm:$0xf] %vm1496, %v3706
      %3787 = vst.msk [vmem:[#allocation2 + $0x40] sm:$0xf] %vm1496, %v3708
      %3788 = vst.msk [vmem:[#allocation2 + $0x44] sm:$0xf] %vm1496, %v3710
      %3789 = vst.msk [vmem:[#allocation2 + $0x48] sm:$0xf] %vm1496, %v3712
      %3790 = vst.msk [vmem:[#allocation2 + $0x4c] sm:$0xf] %vm1496, %v3714
      %3791 = vst.msk [vmem:[#allocation2 + $0x50] sm:$0xf] %vm1496, %v3716
      %3792 = vst.msk [vmem:[#allocation2 + $0x54] sm:$0xf] %vm1496, %v3718
      %3793 = vst.msk [vmem:[#allocation2 + $0x58] sm:$0xf] %vm1496, %v3720
      %3794 = vst.msk [vmem:[#allocation2 + $0x5c] sm:$0xf] %vm1496, %v3722
      %3795 = vst.msk [vmem:[#allocation2 + $0x60] sm:$0xf] %vm1496, %v3724
      %3796 = vst.msk [vmem:[#allocation2 + $0x64] sm:$0xf] %vm1496, %v3726
      %3797 = vst.msk [vmem:[#allocation2 + $0x68] sm:$0xf] %vm1496, %v3728
      %3798 = vst.msk [vmem:[#allocation2 + $0x6c] sm:$0xf] %vm1496, %v3730
      %3799 = vst.msk [vmem:[#allocation2 + $0x70] sm:$0xf] %vm1496, %v3732
      %3800 = vst.msk [vmem:[#allocation2 + $0x74] sm:$0xf] %vm1496, %v3734
      %3801 = vst.msk [vmem:[#allocation2 + $0x78] sm:$0xf] %vm1496, %v3736
      %3802 = vst.msk [vmem:[#allocation2 + $0x7c] sm:$0xf] %vm1496, %v3738
      %v3803 = vld [vmem:[#allocation2] sm:$0xf]
      %v3804 = vld [vmem:[#allocation2 + $0x4] sm:$0xf]
      %v3805 = vld [vmem:[#allocation2 + $0x8] sm:$0xf]
      %v3806 = vld [vmem:[#allocation2 + $0xc] sm:$0xf]
      %v3807 = vld [vmem:[#allocation2 + $0x10] sm:$0xf]
      %v3808 = vld [vmem:[#allocation2 + $0x14] sm:$0xf]
      %v3809 = vld [vmem:[#allocation2 + $0x18] sm:$0xf]
      %v3810 = vld [vmem:[#allocation2 + $0x1c] sm:$0xf]
      %v3811 = vld [vmem:[#allocation2 + $0x20] sm:$0xf]
      %v3812 = vld [vmem:[#allocation2 + $0x24] sm:$0xf]
      %v3813 = vld [vmem:[#allocation2 + $0x28] sm:$0xf]
      %v3814 = vld [vmem:[#allocation2 + $0x2c] sm:$0xf]
      %v3815 = vld [vmem:[#allocation2 + $0x30] sm:$0xf]
      %v3816 = vld [vmem:[#allocation2 + $0x34] sm:$0xf]
      %v3817 = vld [vmem:[#allocation2 + $0x38] sm:$0xf]
      %v3818 = vld [vmem:[#allocation2 + $0x3c] sm:$0xf]
      %v3819 = vld [vmem:[#allocation2 + $0x40] sm:$0xf]
      %v3820 = vld [vmem:[#allocation2 + $0x44] sm:$0xf]
      %v3821 = vld [vmem:[#allocation2 + $0x48] sm:$0xf]
      %v3822 = vld [vmem:[#allocation2 + $0x4c] sm:$0xf]
      %v3823 = vld [vmem:[#allocation2 + $0x50] sm:$0xf]
      %v3824 = vld [vmem:[#allocation2 + $0x54] sm:$0xf]
      %v3825 = vld [vmem:[#allocation2 + $0x58] sm:$0xf]
      %v3826 = vld [vmem:[#allocation2 + $0x5c] sm:$0xf]
      %v3827 = vld [vmem:[#allocation2 + $0x60] sm:$0xf]
      %v3828 = vld [vmem:[#allocation2 + $0x64] sm:$0xf]
      %v3829 = vld [vmem:[#allocation2 + $0x68] sm:$0xf]
      %v3830 = vld [vmem:[#allocation2 + $0x6c] sm:$0xf]
      %v3831 = vld [vmem:[#allocation2 + $0x70] sm:$0xf]
      %v3832 = vld [vmem:[#allocation2 + $0x74] sm:$0xf]
      %v3833 = vld [vmem:[#allocation2 + $0x78] sm:$0xf]
      %v3834 = vld [vmem:[#allocation2 + $0x7c] sm:$0xf]
      %s3835 = scalar_lea.vmem %s1, 16
      %v3836 = vld [vmem:[%s3835] sm:$0xf]
      %v3837 = vld [vmem:[%s3835 + $0x4] sm:$0xf]
      %v3838 = vld [vmem:[%s3835 + $0x8] sm:$0xf]
      %v3839 = vld [vmem:[%s3835 + $0xc] sm:$0xf]
      %v3872 = vunpack.c.l.b16 %v3803
      %v3873 = vunpack.c.l.b16 %v3804
      %v3874 = vunpack.c.l.b16 %v3805
      %v3875 = vunpack.c.l.b16 %v3806
      %v3876 = vunpack.c.l.b16 %v3807
      %v3877 = vunpack.c.l.b16 %v3808
      %v3878 = vunpack.c.l.b16 %v3809
      %v3879 = vunpack.c.l.b16 %v3810
      %v3880 = vunpack.c.l.b16 %v3811
      %v3881 = vunpack.c.l.b16 %v3812
      %v3882 = vunpack.c.l.b16 %v3813
      %v3883 = vunpack.c.l.b16 %v3814
      %v3884 = vunpack.c.l.b16 %v3815
      %v3885 = vunpack.c.l.b16 %v3816
      %v3886 = vunpack.c.l.b16 %v3817
      %v3887 = vunpack.c.l.b16 %v3818
      %v3888 = vunpack.c.l.b16 %v3819
      %v3889 = vunpack.c.l.b16 %v3820
      %v3890 = vunpack.c.l.b16 %v3821
      %v3891 = vunpack.c.l.b16 %v3822
      %v3892 = vunpack.c.l.b16 %v3823
      %v3893 = vunpack.c.l.b16 %v3824
      %v3894 = vunpack.c.l.b16 %v3825
      %v3895 = vunpack.c.l.b16 %v3826
      %v3896 = vunpack.c.l.b16 %v3827
      %v3897 = vunpack.c.l.b16 %v3828
      %v3898 = vunpack.c.l.b16 %v3829
      %v3899 = vunpack.c.l.b16 %v3830
      %v3900 = vunpack.c.l.b16 %v3831
      %v3901 = vunpack.c.l.b16 %v3832
      %v3902 = vunpack.c.l.b16 %v3833
      %v3903 = vunpack.c.l.b16 %v3834
      %v3904 = vpack.c.b16 %v3873, %v3872
      %v3905 = vpack.c.b16 %v3875, %v3874
      %v3906 = vpack.c.b16 %v3877, %v3876
      %v3907 = vpack.c.b16 %v3879, %v3878
      %v3908 = vpack.c.b16 %v3881, %v3880
      %v3909 = vpack.c.b16 %v3883, %v3882
      %v3910 = vpack.c.b16 %v3885, %v3884
      %v3911 = vpack.c.b16 %v3887, %v3886
      %v3912 = vpack.c.b16 %v3889, %v3888
      %v3913 = vpack.c.b16 %v3891, %v3890
      %v3914 = vpack.c.b16 %v3893, %v3892
      %v3915 = vpack.c.b16 %v3895, %v3894
      %v3916 = vpack.c.b16 %v3897, %v3896
      %v3917 = vpack.c.b16 %v3899, %v3898
      %v3918 = vpack.c.b16 %v3901, %v3900
      %v3919 = vpack.c.b16 %v3903, %v3902
      %v3924 = vunpack.c.l.b16 %v3836
      %v3925 = vunpack.c.l.b16 %v3837
      %v3926 = vunpack.c.l.b16 %v3838
      %v3927 = vunpack.c.l.b16 %v3839
      %v3928 = vpack.c.b16 %v3925, %v3924
      %v3929 = vpack.c.b16 %v3927, %v3926
      %v3933 = vsel %vm1657, %v3904, 0
      %v3936 = vsel %vm1657, %v3905, 0
      %v3939 = vsel %vm1657, %v3906, 0
      %v3942 = vsel %vm1657, %v3907, 0
      %v3945 = vsel %vm1657, %v3908, 0
      %v3948 = vsel %vm1657, %v3909, 0
      %v3951 = vsel %vm1657, %v3910, 0
      %v3954 = vsel %vm1657, %v3911, 0
      %v3957 = vsel %vm1657, %v3912, 0
      %v3960 = vsel %vm1657, %v3913, 0
      %v3963 = vsel %vm1657, %v3914, 0
      %v3966 = vsel %vm1657, %v3915, 0
      %v3969 = vsel %vm1657, %v3916, 0
      %v3972 = vsel %vm1657, %v3917, 0
      %v3975 = vsel %vm1657, %v3918, 0
      %v3978 = vsel %vm1657, %v3919, 0
      %3980 = vmatprep.subr.bf16.mxu0 0
      %3981 = vmatpush1.bf16.msra.mxu0 0
      %3982 = vmatprep.subr.bf16.mxu0 0
      %3983 = vmatpush1.bf16.msra.mxu0 0
      %3984 = vmatprep.subr.bf16.mxu0 0
      %3985 = vmatpush1.bf16.msra.mxu0 0
      %3986 = vmatprep.subr.bf16.mxu0 0
      %3987 = vmatpush1.bf16.msra.mxu0 0
      %3988 = vmatprep.subr.bf16.mxu0 0
      %3989 = vmatpush1.bf16.msra.mxu0 0
      %3990 = vmatprep.subr.bf16.mxu0 0
      %3991 = vmatpush1.bf16.msra.mxu0 0
      %3992 = vmatprep.subr.bf16.mxu0 0
      %3993 = vmatpush1.bf16.msra.mxu0 %v3929
      %3994 = vmatprep.subr.bf16.mxu0 0
      %3995 = vmatpush1.bf16.msra.mxu0 %v3928
      %3996 = vmatprep.subr.bf16.mxu0 0
      %3997 = vmatpush2.bf16.msra.mxu0 0
      %3998 = vmatprep.subr.bf16.mxu0 0
      %3999 = vmatpush2.bf16.msra.mxu0 0
      %4000 = vmatprep.subr.bf16.mxu0 0
      %4001 = vmatpush2.bf16.msra.mxu0 0
      %4002 = vmatprep.subr.bf16.mxu0 0
      %4003 = vmatpush2.bf16.msra.mxu0 0
      %4004 = vmatprep.subr.bf16.mxu0 0
      %4005 = vmatpush2.bf16.msra.mxu0 0
      %4006 = vmatprep.subr.bf16.mxu0 0
      %4007 = vmatpush2.bf16.msra.mxu0 0
      %4008 = vmatprep.subr.bf16.mxu0 0
      %4009 = vmatpush2.bf16.msra.mxu0 0
      %4010 = vmatprep.subr.bf16.mxu0 0
      %4011 = vmatpush2.bf16.msra.mxu0 0
      %4012 = vmatprep.mubr.bf16.mxu0 0
      %4013 = vmatmul.mubr.bf16.gmra.mxu0 %v3933
      %v4014 = vpop.f32.mrf.mxu0
      %v4015 = vadd.f32 0.0, %v4014
      %v4016 = vpop.f32.mrf.mxu0
      %v4017 = vpop.f32.mrf.mxu0
      %v4018 = vadd.f32 0.0, %v4017
      %v4019 = vpop.f32.mrf.mxu0
      %4020 = vmatprep.mubr.bf16.mxu0 0
      %4021 = vmatmul.mubr.bf16.gmra.mxu0 %v3936
      %v4022 = vpop.f32.mrf.mxu0
      %v4023 = vadd.f32 0.0, %v4022
      %v4024 = vpop.f32.mrf.mxu0
      %v4025 = vpop.f32.mrf.mxu0
      %v4026 = vadd.f32 0.0, %v4025
      %v4027 = vpop.f32.mrf.mxu0
      %4028 = vmatprep.mubr.bf16.mxu0 0
      %4029 = vmatmul.mubr.bf16.gmra.mxu0 %v3939
      %v4030 = vpop.f32.mrf.mxu0
      %v4031 = vadd.f32 0.0, %v4030
      %v4032 = vpop.f32.mrf.mxu0
      %v4033 = vpop.f32.mrf.mxu0
      %v4034 = vadd.f32 0.0, %v4033
      %v4035 = vpop.f32.mrf.mxu0
      %4036 = vmatprep.mubr.bf16.mxu0 0
      %4037 = vmatmul.mubr.bf16.gmra.mxu0 %v3942
      %v4038 = vpop.f32.mrf.mxu0
      %v4039 = vadd.f32 0.0, %v4038
      %v4040 = vpop.f32.mrf.mxu0
      %v4041 = vpop.f32.mrf.mxu0
      %v4042 = vadd.f32 0.0, %v4041
      %v4043 = vpop.f32.mrf.mxu0
      %4044 = vmatprep.mubr.bf16.mxu0 0
      %4045 = vmatmul.mubr.bf16.gmra.mxu0 %v3945
      %v4046 = vpop.f32.mrf.mxu0
      %v4047 = vadd.f32 0.0, %v4046
      %v4048 = vpop.f32.mrf.mxu0
      %v4049 = vpop.f32.mrf.mxu0
      %v4050 = vadd.f32 0.0, %v4049
      %v4051 = vpop.f32.mrf.mxu0
      %4052 = vmatprep.mubr.bf16.mxu0 0
      %4053 = vmatmul.mubr.bf16.gmra.mxu0 %v3948
      %v4054 = vpop.f32.mrf.mxu0
      %v4055 = vadd.f32 0.0, %v4054
      %v4056 = vpop.f32.mrf.mxu0
      %v4057 = vpop.f32.mrf.mxu0
      %v4058 = vadd.f32 0.0, %v4057
      %v4059 = vpop.f32.mrf.mxu0
      %4060 = vmatprep.mubr.bf16.mxu0 0
      %4061 = vmatmul.mubr.bf16.gmra.mxu0 %v3951
      %v4062 = vpop.f32.mrf.mxu0
      %v4063 = vadd.f32 0.0, %v4062
      %v4064 = vpop.f32.mrf.mxu0
      %v4065 = vpop.f32.mrf.mxu0
      %v4066 = vadd.f32 0.0, %v4065
      %v4067 = vpop.f32.mrf.mxu0
      %4068 = vmatprep.mubr.bf16.mxu0 0
      %4069 = vmatmul.mubr.bf16.gmra.mxu0 %v3954
      %v4070 = vpop.f32.mrf.mxu0
      %v4071 = vadd.f32 0.0, %v4070
      %v4072 = vpop.f32.mrf.mxu0
      %v4073 = vpop.f32.mrf.mxu0
      %v4074 = vadd.f32 0.0, %v4073
      %v4075 = vpop.f32.mrf.mxu0
      %4076 = vmatprep.mubr.bf16.mxu0 0
      %4077 = vmatmul.mubr.bf16.gmra.mxu0 %v3957
      %v4078 = vpop.f32.mrf.mxu0
      %v4079 = vadd.f32 0.0, %v4078
      %v4080 = vpop.f32.mrf.mxu0
      %v4081 = vpop.f32.mrf.mxu0
      %v4082 = vadd.f32 0.0, %v4081
      %v4083 = vpop.f32.mrf.mxu0
      %4084 = vmatprep.mubr.bf16.mxu0 0
      %4085 = vmatmul.mubr.bf16.gmra.mxu0 %v3960
      %v4086 = vpop.f32.mrf.mxu0
      %v4087 = vadd.f32 0.0, %v4086
      %v4088 = vpop.f32.mrf.mxu0
      %v4089 = vpop.f32.mrf.mxu0
      %v4090 = vadd.f32 0.0, %v4089
      %v4091 = vpop.f32.mrf.mxu0
      %4092 = vmatprep.mubr.bf16.mxu0 0
      %4093 = vmatmul.mubr.bf16.gmra.mxu0 %v3963
      %v4094 = vpop.f32.mrf.mxu0
      %v4095 = vadd.f32 0.0, %v4094
      %v4096 = vpop.f32.mrf.mxu0
      %v4097 = vpop.f32.mrf.mxu0
      %v4098 = vadd.f32 0.0, %v4097
      %v4099 = vpop.f32.mrf.mxu0
      %4100 = vmatprep.mubr.bf16.mxu0 0
      %4101 = vmatmul.mubr.bf16.gmra.mxu0 %v3966
      %v4102 = vpop.f32.mrf.mxu0
      %v4103 = vadd.f32 0.0, %v4102
      %v4104 = vpop.f32.mrf.mxu0
      %v4105 = vpop.f32.mrf.mxu0
      %v4106 = vadd.f32 0.0, %v4105
      %v4107 = vpop.f32.mrf.mxu0
      %4108 = vmatprep.mubr.bf16.mxu0 0
      %4109 = vmatmul.mubr.bf16.gmra.mxu0 %v3969
      %v4110 = vpop.f32.mrf.mxu0
      %v4111 = vadd.f32 0.0, %v4110
      %v4112 = vpop.f32.mrf.mxu0
      %v4113 = vpop.f32.mrf.mxu0
      %v4114 = vadd.f32 0.0, %v4113
      %v4115 = vpop.f32.mrf.mxu0
      %4116 = vmatprep.mubr.bf16.mxu0 0
      %4117 = vmatmul.mubr.bf16.gmra.mxu0 %v3972
      %v4118 = vpop.f32.mrf.mxu0
      %v4119 = vadd.f32 0.0, %v4118
      %v4120 = vpop.f32.mrf.mxu0
      %v4121 = vpop.f32.mrf.mxu0
      %v4122 = vadd.f32 0.0, %v4121
      %v4123 = vpop.f32.mrf.mxu0
      %4124 = vmatprep.mubr.bf16.mxu0 0
      %4125 = vmatmul.mubr.bf16.gmra.mxu0 %v3975
      %v4126 = vpop.f32.mrf.mxu0
      %v4127 = vadd.f32 0.0, %v4126
      %v4128 = vpop.f32.mrf.mxu0
      %v4129 = vpop.f32.mrf.mxu0
      %v4130 = vadd.f32 0.0, %v4129
      %v4131 = vpop.f32.mrf.mxu0
      %4132 = vmatprep.mubr.bf16.mxu0 0
      %4133 = vmatmul.mubr.bf16.gmra.mxu0 %v3978
      %v4134 = vpop.f32.mrf.mxu0
      %v4135 = vadd.f32 0.0, %v4134
      %v4136 = vpop.f32.mrf.mxu0
      %v4137 = vpop.f32.mrf.mxu0
      %v4138 = vadd.f32 0.0, %v4137
      %v4139 = vpop.f32.mrf.mxu0
      %4140 = vdwg.mxu0
      %v4141 = vsel %vm1867, %v4015, 0.0
      %v4142 = vsel %vm1867, %v4018, 0.0
      %v4143 = vadd.f32 %v4141, %v4142
      %v4144 = vsel %vm1867, %v4023, 0.0
      %v4145 = vadd.f32 %v4143, %v4144
      %v4146 = vsel %vm1867, %v4026, 0.0
      %v4147 = vadd.f32 %v4145, %v4146
      %v4148 = vsel %vm1867, %v4031, 0.0
      %v4149 = vadd.f32 %v4147, %v4148
      %v4150 = vsel %vm1867, %v4034, 0.0
      %v4151 = vadd.f32 %v4149, %v4150
      %v4152 = vsel %vm1867, %v4039, 0.0
      %v4153 = vadd.f32 %v4151, %v4152
      %v4154 = vsel %vm1867, %v4042, 0.0
      %v4155 = vadd.f32 %v4153, %v4154
      %v4156 = vsel %vm1867, %v4047, 0.0
      %v4157 = vadd.f32 %v4155, %v4156
      %v4158 = vsel %vm1867, %v4050, 0.0
      %v4159 = vadd.f32 %v4157, %v4158
      %v4160 = vsel %vm1867, %v4055, 0.0
      %v4161 = vadd.f32 %v4159, %v4160
      %v4162 = vsel %vm1867, %v4058, 0.0
      %v4163 = vadd.f32 %v4161, %v4162
      %v4164 = vsel %vm1867, %v4063, 0.0
      %v4165 = vadd.f32 %v4163, %v4164
      %v4166 = vsel %vm1867, %v4066, 0.0
      %v4167 = vadd.f32 %v4165, %v4166
      %v4168 = vsel %vm1867, %v4071, 0.0
      %v4169 = vadd.f32 %v4167, %v4168
      %v4170 = vsel %vm1867, %v4074, 0.0
      %v4171 = vadd.f32 %v4169, %v4170
      %v4172 = vsel %vm1867, %v4079, 0.0
      %v4173 = vadd.f32 %v4171, %v4172
      %v4174 = vsel %vm1867, %v4082, 0.0
      %v4175 = vadd.f32 %v4173, %v4174
      %v4176 = vsel %vm1867, %v4087, 0.0
      %v4177 = vadd.f32 %v4175, %v4176
      %v4178 = vsel %vm1867, %v4090, 0.0
      %v4179 = vadd.f32 %v4177, %v4178
      %v4180 = vsel %vm1867, %v4095, 0.0
      %v4181 = vadd.f32 %v4179, %v4180
      %v4182 = vsel %vm1867, %v4098, 0.0
      %v4183 = vadd.f32 %v4181, %v4182
      %v4184 = vsel %vm1867, %v4103, 0.0
      %v4185 = vadd.f32 %v4183, %v4184
      %v4186 = vsel %vm1867, %v4106, 0.0
      %v4187 = vadd.f32 %v4185, %v4186
      %v4188 = vsel %vm1867, %v4111, 0.0
      %v4189 = vadd.f32 %v4187, %v4188
      %v4190 = vsel %vm1867, %v4114, 0.0
      %v4191 = vadd.f32 %v4189, %v4190
      %v4192 = vsel %vm1867, %v4119, 0.0
      %v4193 = vadd.f32 %v4191, %v4192
      %v4194 = vsel %vm1867, %v4122, 0.0
      %v4195 = vadd.f32 %v4193, %v4194
      %v4196 = vsel %vm1867, %v4127, 0.0
      %v4197 = vadd.f32 %v4195, %v4196
      %v4198 = vsel %vm1867, %v4130, 0.0
      %v4199 = vadd.f32 %v4197, %v4198
      %v4200 = vsel %vm1867, %v4135, 0.0
      %v4201 = vadd.f32 %v4199, %v4200
      %v4202 = vsel %vm1867, %v4138, 0.0
      %v4203 = vadd.f32 %v4201, %v4202
      %v4204 = vrot.slane %v4203, 4
      %v4205 = vadd.f32 %v4203, %v4204
      %v4206 = vrot.slane %v4205, 2
      %v4207 = vadd.f32 %v4205, %v4206
      %v4208 = vrot.slane %v4207, 1
      %v4209 = vadd.f32 %v4207, %v4208
      %v4210 = vadd.f32 %v1937, %v4209
      %v4211 = vmul.f32 %v4015, %v4015
      %v4212 = vmul.f32 %v4018, %v4018
      %v4213 = vmul.f32 %v4023, %v4023
      %v4214 = vmul.f32 %v4026, %v4026
      %v4215 = vmul.f32 %v4031, %v4031
      %v4216 = vmul.f32 %v4034, %v4034
      %v4217 = vmul.f32 %v4039, %v4039
      %v4218 = vmul.f32 %v4042, %v4042
      %v4219 = vmul.f32 %v4047, %v4047
      %v4220 = vmul.f32 %v4050, %v4050
      %v4221 = vmul.f32 %v4055, %v4055
      %v4222 = vmul.f32 %v4058, %v4058
      %v4223 = vmul.f32 %v4063, %v4063
      %v4224 = vmul.f32 %v4066, %v4066
      %v4225 = vmul.f32 %v4071, %v4071
      %v4226 = vmul.f32 %v4074, %v4074
      %v4227 = vmul.f32 %v4079, %v4079
      %v4228 = vmul.f32 %v4082, %v4082
      %v4229 = vmul.f32 %v4087, %v4087
      %v4230 = vmul.f32 %v4090, %v4090
      %v4231 = vmul.f32 %v4095, %v4095
      %v4232 = vmul.f32 %v4098, %v4098
      %v4233 = vmul.f32 %v4103, %v4103
      %v4234 = vmul.f32 %v4106, %v4106
      %v4235 = vmul.f32 %v4111, %v4111
      %v4236 = vmul.f32 %v4114, %v4114
      %v4237 = vmul.f32 %v4119, %v4119
      %v4238 = vmul.f32 %v4122, %v4122
      %v4239 = vmul.f32 %v4127, %v4127
      %v4240 = vmul.f32 %v4130, %v4130
      %v4241 = vmul.f32 %v4135, %v4135
      %v4242 = vmul.f32 %v4138, %v4138
      %v4243 = vsel %vm1867, %v4211, 0.0
      %v4244 = vsel %vm1867, %v4212, 0.0
      %v4245 = vadd.f32 %v4243, %v4244
      %v4246 = vsel %vm1867, %v4213, 0.0
      %v4247 = vadd.f32 %v4245, %v4246
      %v4248 = vsel %vm1867, %v4214, 0.0
      %v4249 = vadd.f32 %v4247, %v4248
      %v4250 = vsel %vm1867, %v4215, 0.0
      %v4251 = vadd.f32 %v4249, %v4250
      %v4252 = vsel %vm1867, %v4216, 0.0
      %v4253 = vadd.f32 %v4251, %v4252
      %v4254 = vsel %vm1867, %v4217, 0.0
      %v4255 = vadd.f32 %v4253, %v4254
      %v4256 = vsel %vm1867, %v4218, 0.0
      %v4257 = vadd.f32 %v4255, %v4256
      %v4258 = vsel %vm1867, %v4219, 0.0
      %v4259 = vadd.f32 %v4257, %v4258
      %v4260 = vsel %vm1867, %v4220, 0.0
      %v4261 = vadd.f32 %v4259, %v4260
      %v4262 = vsel %vm1867, %v4221, 0.0
      %v4263 = vadd.f32 %v4261, %v4262
      %v4264 = vsel %vm1867, %v4222, 0.0
      %v4265 = vadd.f32 %v4263, %v4264
      %v4266 = vsel %vm1867, %v4223, 0.0
      %v4267 = vadd.f32 %v4265, %v4266
      %v4268 = vsel %vm1867, %v4224, 0.0
      %v4269 = vadd.f32 %v4267, %v4268
      %v4270 = vsel %vm1867, %v4225, 0.0
      %v4271 = vadd.f32 %v4269, %v4270
      %v4272 = vsel %vm1867, %v4226, 0.0
      %v4273 = vadd.f32 %v4271, %v4272
      %v4274 = vsel %vm1867, %v4227, 0.0
      %v4275 = vadd.f32 %v4273, %v4274
      %v4276 = vsel %vm1867, %v4228, 0.0
      %v4277 = vadd.f32 %v4275, %v4276
      %v4278 = vsel %vm1867, %v4229, 0.0
      %v4279 = vadd.f32 %v4277, %v4278
      %v4280 = vsel %vm1867, %v4230, 0.0
      %v4281 = vadd.f32 %v4279, %v4280
      %v4282 = vsel %vm1867, %v4231, 0.0
      %v4283 = vadd.f32 %v4281, %v4282
      %v4284 = vsel %vm1867, %v4232, 0.0
      %v4285 = vadd.f32 %v4283, %v4284
      %v4286 = vsel %vm1867, %v4233, 0.0
      %v4287 = vadd.f32 %v4285, %v4286
      %v4288 = vsel %vm1867, %v4234, 0.0
      %v4289 = vadd.f32 %v4287, %v4288
      %v4290 = vsel %vm1867, %v4235, 0.0
      %v4291 = vadd.f32 %v4289, %v4290
      %v4292 = vsel %vm1867, %v4236, 0.0
      %v4293 = vadd.f32 %v4291, %v4292
      %v4294 = vsel %vm1867, %v4237, 0.0
      %v4295 = vadd.f32 %v4293, %v4294
      %v4296 = vsel %vm1867, %v4238, 0.0
      %v4297 = vadd.f32 %v4295, %v4296
      %v4298 = vsel %vm1867, %v4239, 0.0
      %v4299 = vadd.f32 %v4297, %v4298
      %v4300 = vsel %vm1867, %v4240, 0.0
      %v4301 = vadd.f32 %v4299, %v4300
      %v4302 = vsel %vm1867, %v4241, 0.0
      %v4303 = vadd.f32 %v4301, %v4302
      %v4304 = vsel %vm1867, %v4242, 0.0
      %v4305 = vadd.f32 %v4303, %v4304
      %v4306 = vrot.slane %v4305, 4
      %v4307 = vadd.f32 %v4305, %v4306
      %v4308 = vrot.slane %v4307, 2
      %v4309 = vadd.f32 %v4307, %v4308
      %v4310 = vrot.slane %v4309, 1
      %v4311 = vadd.f32 %v4309, %v4310
      %v4312 = vadd.f32 %v2039, %v4311
      %4345 = vrot.lane.b32.xlu0 %v4015, 4
      %v4346 = vpop.permute.xlu0 %4345
      %4347 = vrot.lane.b32.xlu0 %v4018, 4
      %v4348 = vpop.permute.xlu0 %4347
      %4349 = vrot.lane.b32.xlu0 %v4023, 4
      %v4350 = vpop.permute.xlu0 %4349
      %4351 = vrot.lane.b32.xlu0 %v4026, 4
      %v4352 = vpop.permute.xlu0 %4351
      %4353 = vrot.lane.b32.xlu0 %v4031, 4
      %v4354 = vpop.permute.xlu0 %4353
      %4355 = vrot.lane.b32.xlu0 %v4034, 4
      %v4356 = vpop.permute.xlu0 %4355
      %4357 = vrot.lane.b32.xlu0 %v4039, 4
      %v4358 = vpop.permute.xlu0 %4357
      %4359 = vrot.lane.b32.xlu0 %v4042, 4
      %v4360 = vpop.permute.xlu0 %4359
      %4361 = vrot.lane.b32.xlu0 %v4047, 4
      %v4362 = vpop.permute.xlu0 %4361
      %4363 = vrot.lane.b32.xlu0 %v4050, 4
      %v4364 = vpop.permute.xlu0 %4363
      %4365 = vrot.lane.b32.xlu0 %v4055, 4
      %v4366 = vpop.permute.xlu0 %4365
      %4367 = vrot.lane.b32.xlu0 %v4058, 4
      %v4368 = vpop.permute.xlu0 %4367
      %4369 = vrot.lane.b32.xlu0 %v4063, 4
      %v4370 = vpop.permute.xlu0 %4369
      %4371 = vrot.lane.b32.xlu0 %v4066, 4
      %v4372 = vpop.permute.xlu0 %4371
      %4373 = vrot.lane.b32.xlu0 %v4071, 4
      %v4374 = vpop.permute.xlu0 %4373
      %4375 = vrot.lane.b32.xlu0 %v4074, 4
      %v4376 = vpop.permute.xlu0 %4375
      %4377 = vrot.lane.b32.xlu0 %v4079, 4
      %v4378 = vpop.permute.xlu0 %4377
      %4379 = vrot.lane.b32.xlu0 %v4082, 4
      %v4380 = vpop.permute.xlu0 %4379
      %4381 = vrot.lane.b32.xlu0 %v4087, 4
      %v4382 = vpop.permute.xlu0 %4381
      %4383 = vrot.lane.b32.xlu0 %v4090, 4
      %v4384 = vpop.permute.xlu0 %4383
      %4385 = vrot.lane.b32.xlu0 %v4095, 4
      %v4386 = vpop.permute.xlu0 %4385
      %4387 = vrot.lane.b32.xlu0 %v4098, 4
      %v4388 = vpop.permute.xlu0 %4387
      %4389 = vrot.lane.b32.xlu0 %v4103, 4
      %v4390 = vpop.permute.xlu0 %4389
      %4391 = vrot.lane.b32.xlu0 %v4106, 4
      %v4392 = vpop.permute.xlu0 %4391
      %4393 = vrot.lane.b32.xlu0 %v4111, 4
      %v4394 = vpop.permute.xlu0 %4393
      %4395 = vrot.lane.b32.xlu0 %v4114, 4
      %v4396 = vpop.permute.xlu0 %4395
      %4397 = vrot.lane.b32.xlu0 %v4119, 4
      %v4398 = vpop.permute.xlu0 %4397
      %4399 = vrot.lane.b32.xlu0 %v4122, 4
      %v4400 = vpop.permute.xlu0 %4399
      %4401 = vrot.lane.b32.xlu0 %v4127, 4
      %v4402 = vpop.permute.xlu0 %4401
      %4403 = vrot.lane.b32.xlu0 %v4130, 4
      %v4404 = vpop.permute.xlu0 %4403
      %4405 = vrot.lane.b32.xlu0 %v4135, 4
      %v4406 = vpop.permute.xlu0 %4405
      %4407 = vrot.lane.b32.xlu0 %v4138, 4
      %v4408 = vpop.permute.xlu0 %4407
      %vm4441 = vcmask 64544
      %4442 = vst.msk [vmem:[%s143] sm:$0xff] %vm4441, %v4346
      %4443 = vst.msk [vmem:[%s143 + $0x8] sm:$0xff] %vm4441, %v4348
      %4444 = vst.msk [vmem:[%s143 + $0x10] sm:$0xff] %vm4441, %v4350
      %4445 = vst.msk [vmem:[%s143 + $0x18] sm:$0xff] %vm4441, %v4352
      %4446 = vst.msk [vmem:[%s143 + $0x20] sm:$0xff] %vm4441, %v4354
      %4447 = vst.msk [vmem:[%s143 + $0x28] sm:$0xff] %vm4441, %v4356
      %4448 = vst.msk [vmem:[%s143 + $0x30] sm:$0xff] %vm4441, %v4358
      %4449 = vst.msk [vmem:[%s143 + $0x38] sm:$0xff] %vm4441, %v4360
      %4450 = vst.msk [vmem:[%s143 + $0x40] sm:$0xff] %vm4441, %v4362
      %4451 = vst.msk [vmem:[%s143 + $0x48] sm:$0xff] %vm4441, %v4364
      %4452 = vst.msk [vmem:[%s143 + $0x50] sm:$0xff] %vm4441, %v4366
      %4453 = vst.msk [vmem:[%s143 + $0x58] sm:$0xff] %vm4441, %v4368
      %4454 = vst.msk [vmem:[%s143 + $0x60] sm:$0xff] %vm4441, %v4370
      %4455 = vst.msk [vmem:[%s143 + $0x68] sm:$0xff] %vm4441, %v4372
      %4456 = vst.msk [vmem:[%s143 + $0x70] sm:$0xff] %vm4441, %v4374
      %4457 = vst.msk [vmem:[%s143 + $0x78] sm:$0xff] %vm4441, %v4376
      %4458 = vst.msk [vmem:[%s143 + $0x80] sm:$0xff] %vm4441, %v4378
      %4459 = vst.msk [vmem:[%s143 + $0x88] sm:$0xff] %vm4441, %v4380
      %4460 = vst.msk [vmem:[%s143 + $0x90] sm:$0xff] %vm4441, %v4382
      %4461 = vst.msk [vmem:[%s143 + $0x98] sm:$0xff] %vm4441, %v4384
      %4462 = vst.msk [vmem:[%s143 + $0xa0] sm:$0xff] %vm4441, %v4386
      %4463 = vst.msk [vmem:[%s143 + $0xa8] sm:$0xff] %vm4441, %v4388
      %4464 = vst.msk [vmem:[%s143 + $0xb0] sm:$0xff] %vm4441, %v4390
      %4465 = vst.msk [vmem:[%s143 + $0xb8] sm:$0xff] %vm4441, %v4392
      %4466 = vst.msk [vmem:[%s143 + $0xc0] sm:$0xff] %vm4441, %v4394
      %4467 = vst.msk [vmem:[%s143 + $0xc8] sm:$0xff] %vm4441, %v4396
      %4468 = vst.msk [vmem:[%s143 + $0xd0] sm:$0xff] %vm4441, %v4398
      %4469 = vst.msk [vmem:[%s143 + $0xd8] sm:$0xff] %vm4441, %v4400
      %4470 = vst.msk [vmem:[%s143 + $0xe0] sm:$0xff] %vm4441, %v4402
      %4471 = vst.msk [vmem:[%s143 + $0xe8] sm:$0xff] %vm4441, %v4404
      %4472 = vst.msk [vmem:[%s143 + $0xf0] sm:$0xff] %vm4441, %v4406
      %4473 = vst.msk [vmem:[%s143 + $0xf8] sm:$0xff] %vm4441, %v4408
      %v4474 = vld [vmem:[%s774] sm:$0xf]
      %v4475 = vld [vmem:[%s774 + $0x4] sm:$0xf]
      %v4476 = vld [vmem:[%s774 + $0xc] sm:$0xf]
      %v4477 = vld [vmem:[%s774 + $0x10] sm:$0xf]
      %v4478 = vld [vmem:[%s774 + $0x18] sm:$0xf]
      %v4479 = vld [vmem:[%s774 + $0x1c] sm:$0xf]
      %v4480 = vld [vmem:[%s774 + $0x24] sm:$0xf]
      %v4481 = vld [vmem:[%s774 + $0x28] sm:$0xf]
      %v4482 = vld [vmem:[%s774 + $0x30] sm:$0xf]
      %v4483 = vld [vmem:[%s774 + $0x34] sm:$0xf]
      %v4484 = vld [vmem:[%s774 + $0x3c] sm:$0xf]
      %v4485 = vld [vmem:[%s774 + $0x40] sm:$0xf]
      %v4486 = vld [vmem:[%s774 + $0x48] sm:$0xf]
      %v4487 = vld [vmem:[%s774 + $0x4c] sm:$0xf]
      %v4488 = vld [vmem:[%s774 + $0x54] sm:$0xf]
      %v4489 = vld [vmem:[%s774 + $0x58] sm:$0xf]
      %v4490 = vld [vmem:[%s774 + $0x60] sm:$0xf]
      %v4491 = vld [vmem:[%s774 + $0x64] sm:$0xf]
      %v4492 = vld [vmem:[%s774 + $0x6c] sm:$0xf]
      %v4493 = vld [vmem:[%s774 + $0x70] sm:$0xf]
      %v4494 = vld [vmem:[%s774 + $0x78] sm:$0xf]
      %v4495 = vld [vmem:[%s774 + $0x7c] sm:$0xf]
      %v4496 = vld [vmem:[%s774 + $0x84] sm:$0xf]
      %v4497 = vld [vmem:[%s774 + $0x88] sm:$0xf]
      %v4498 = vld [vmem:[%s774 + $0x90] sm:$0xf]
      %v4499 = vld [vmem:[%s774 + $0x94] sm:$0xf]
      %v4500 = vld [vmem:[%s774 + $0x9c] sm:$0xf]
      %v4501 = vld [vmem:[%s774 + $0xa0] sm:$0xf]
      %v4502 = vld [vmem:[%s774 + $0xa8] sm:$0xf]
      %v4503 = vld [vmem:[%s774 + $0xac] sm:$0xf]
      %v4504 = vld [vmem:[%s774 + $0xb4] sm:$0xf]
      %v4505 = vld [vmem:[%s774 + $0xb8] sm:$0xf]
      %4506 = vst.msk [vmem:[#allocation2] sm:$0xf] %vm177, %v4474
      %4507 = vst.msk [vmem:[#allocation2 + $0x4] sm:$0xf] %vm177, %v4475
      %4508 = vst.msk [vmem:[#allocation2 + $0x8] sm:$0xf] %vm177, %v4476
      %4509 = vst.msk [vmem:[#allocation2 + $0xc] sm:$0xf] %vm177, %v4477
      %4510 = vst.msk [vmem:[#allocation2 + $0x10] sm:$0xf] %vm177, %v4478
      %4511 = vst.msk [vmem:[#allocation2 + $0x14] sm:$0xf] %vm177, %v4479
      %4512 = vst.msk [vmem:[#allocation2 + $0x18] sm:$0xf] %vm177, %v4480
      %4513 = vst.msk [vmem:[#allocation2 + $0x1c] sm:$0xf] %vm177, %v4481
      %4514 = vst.msk [vmem:[#allocation2 + $0x20] sm:$0xf] %vm177, %v4482
      %4515 = vst.msk [vmem:[#allocation2 + $0x24] sm:$0xf] %vm177, %v4483
      %4516 = vst.msk [vmem:[#allocation2 + $0x28] sm:$0xf] %vm177, %v4484
      %4517 = vst.msk [vmem:[#allocation2 + $0x2c] sm:$0xf] %vm177, %v4485
      %4518 = vst.msk [vmem:[#allocation2 + $0x30] sm:$0xf] %vm177, %v4486
      %4519 = vst.msk [vmem:[#allocation2 + $0x34] sm:$0xf] %vm177, %v4487
      %4520 = vst.msk [vmem:[#allocation2 + $0x38] sm:$0xf] %vm177, %v4488
      %4521 = vst.msk [vmem:[#allocation2 + $0x3c] sm:$0xf] %vm177, %v4489
      %4522 = vst.msk [vmem:[#allocation2 + $0x40] sm:$0xf] %vm177, %v4490
      %4523 = vst.msk [vmem:[#allocation2 + $0x44] sm:$0xf] %vm177, %v4491
      %4524 = vst.msk [vmem:[#allocation2 + $0x48] sm:$0xf] %vm177, %v4492
      %4525 = vst.msk [vmem:[#allocation2 + $0x4c] sm:$0xf] %vm177, %v4493
      %4526 = vst.msk [vmem:[#allocation2 + $0x50] sm:$0xf] %vm177, %v4494
      %4527 = vst.msk [vmem:[#allocation2 + $0x54] sm:$0xf] %vm177, %v4495
      %4528 = vst.msk [vmem:[#allocation2 + $0x58] sm:$0xf] %vm177, %v4496
      %4529 = vst.msk [vmem:[#allocation2 + $0x5c] sm:$0xf] %vm177, %v4497
      %4530 = vst.msk [vmem:[#allocation2 + $0x60] sm:$0xf] %vm177, %v4498
      %4531 = vst.msk [vmem:[#allocation2 + $0x64] sm:$0xf] %vm177, %v4499
      %4532 = vst.msk [vmem:[#allocation2 + $0x68] sm:$0xf] %vm177, %v4500
      %4533 = vst.msk [vmem:[#allocation2 + $0x6c] sm:$0xf] %vm177, %v4501
      %4534 = vst.msk [vmem:[#allocation2 + $0x70] sm:$0xf] %vm177, %v4502
      %4535 = vst.msk [vmem:[#allocation2 + $0x74] sm:$0xf] %vm177, %v4503
      %4536 = vst.msk [vmem:[#allocation2 + $0x78] sm:$0xf] %vm177, %v4504
      %4537 = vst.msk [vmem:[#allocation2 + $0x7c] sm:$0xf] %vm177, %v4505
      %v4538 = vld [vmem:[%s774] sm:$0xf]
      %v4539 = vld [vmem:[%s774 + $0x4] sm:$0xf]
      %v4540 = vld [vmem:[%s774 + $0x8] sm:$0x1]
      %v4541 = vld [vmem:[%s774 + $0xc] sm:$0xf]
      %v4542 = vld [vmem:[%s774 + $0x10] sm:$0xf]
      %v4543 = vld [vmem:[%s774 + $0x14] sm:$0x1]
      %v4544 = vld [vmem:[%s774 + $0x18] sm:$0xf]
      %v4545 = vld [vmem:[%s774 + $0x1c] sm:$0xf]
      %v4546 = vld [vmem:[%s774 + $0x20] sm:$0x1]
      %v4547 = vld [vmem:[%s774 + $0x24] sm:$0xf]
      %v4548 = vld [vmem:[%s774 + $0x28] sm:$0xf]
      %v4549 = vld [vmem:[%s774 + $0x2c] sm:$0x1]
      %v4550 = vld [vmem:[%s774 + $0x30] sm:$0xf]
      %v4551 = vld [vmem:[%s774 + $0x34] sm:$0xf]
      %v4552 = vld [vmem:[%s774 + $0x38] sm:$0x1]
      %v4553 = vld [vmem:[%s774 + $0x3c] sm:$0xf]
      %v4554 = vld [vmem:[%s774 + $0x40] sm:$0xf]
      %v4555 = vld [vmem:[%s774 + $0x44] sm:$0x1]
      %v4556 = vld [vmem:[%s774 + $0x48] sm:$0xf]
      %v4557 = vld [vmem:[%s774 + $0x4c] sm:$0xf]
      %v4558 = vld [vmem:[%s774 + $0x50] sm:$0x1]
      %v4559 = vld [vmem:[%s774 + $0x54] sm:$0xf]
      %v4560 = vld [vmem:[%s774 + $0x58] sm:$0xf]
      %v4561 = vld [vmem:[%s774 + $0x5c] sm:$0x1]
      %v4562 = vld [vmem:[%s774 + $0x60] sm:$0xf]
      %v4563 = vld [vmem:[%s774 + $0x64] sm:$0xf]
      %v4564 = vld [vmem:[%s774 + $0x68] sm:$0x1]
      %v4565 = vld [vmem:[%s774 + $0x6c] sm:$0xf]
      %v4566 = vld [vmem:[%s774 + $0x70] sm:$0xf]
      %v4567 = vld [vmem:[%s774 + $0x74] sm:$0x1]
      %v4568 = vld [vmem:[%s774 + $0x78] sm:$0xf]
      %v4569 = vld [vmem:[%s774 + $0x7c] sm:$0xf]
      %v4570 = vld [vmem:[%s774 + $0x80] sm:$0x1]
      %v4571 = vld [vmem:[%s774 + $0x84] sm:$0xf]
      %v4572 = vld [vmem:[%s774 + $0x88] sm:$0xf]
      %v4573 = vld [vmem:[%s774 + $0x8c] sm:$0x1]
      %v4574 = vld [vmem:[%s774 + $0x90] sm:$0xf]
      %v4575 = vld [vmem:[%s774 + $0x94] sm:$0xf]
      %v4576 = vld [vmem:[%s774 + $0x98] sm:$0x1]
      %v4577 = vld [vmem:[%s774 + $0x9c] sm:$0xf]
      %v4578 = vld [vmem:[%s774 + $0xa0] sm:$0xf]
      %v4579 = vld [vmem:[%s774 + $0xa4] sm:$0x1]
      %v4580 = vld [vmem:[%s774 + $0xa8] sm:$0xf]
      %v4581 = vld [vmem:[%s774 + $0xac] sm:$0xf]
      %v4582 = vld [vmem:[%s774 + $0xb0] sm:$0x1]
      %v4583 = vld [vmem:[%s774 + $0xb4] sm:$0xf]
      %v4584 = vld [vmem:[%s774 + $0xb8] sm:$0xf]
      %v4585 = vld [vmem:[%s774 + $0xbc] sm:$0x1]
      %v4587 = vshrl.u32 %v4538, 16
      %v4589 = vrot.slane %v4587, 4
      %v4590 = vshll.u32 %v4538, 16
      %v4592 = vrot.slane %v4590, 5
      %v4593 = vor.u32 %v4589, %v4592
      %v4594 = vrot.slane %v4593, 4
      %v4596 = vshll.u32 %v4539, 16
      %v4598 = vrot.slane %v4596, 5
      %v4599 = vsel %vm260, %v4594, %v4598
      %v4600 = vshrl.u32 %v4539, 16
      %v4602 = vrot.slane %v4600, 4
      %v4603 = vor.u32 %v4602, %v4598
      %v4604 = vrot.slane %v4603, 4
      %v4606 = vshll.u32 %v4540, 16
      %v4608 = vrot.slane %v4606, 5
      %v4609 = vsel %vm260, %v4604, %v4608
      %v4611 = vshrl.u32 %v4541, 16
      %v4613 = vrot.slane %v4611, 4
      %v4614 = vshll.u32 %v4541, 16
      %v4616 = vrot.slane %v4614, 5
      %v4617 = vor.u32 %v4613, %v4616
      %v4618 = vrot.slane %v4617, 4
      %v4620 = vshll.u32 %v4542, 16
      %v4622 = vrot.slane %v4620, 5
      %v4623 = vsel %vm260, %v4618, %v4622
      %v4624 = vshrl.u32 %v4542, 16
      %v4626 = vrot.slane %v4624, 4
      %v4627 = vor.u32 %v4626, %v4622
      %v4628 = vrot.slane %v4627, 4
      %v4630 = vshll.u32 %v4543, 16
      %v4632 = vrot.slane %v4630, 5
      %v4633 = vsel %vm260, %v4628, %v4632
      %v4635 = vshrl.u32 %v4544, 16
      %v4637 = vrot.slane %v4635, 4
      %v4638 = vshll.u32 %v4544, 16
      %v4640 = vrot.slane %v4638, 5
      %v4641 = vor.u32 %v4637, %v4640
      %v4642 = vrot.slane %v4641, 4
      %v4644 = vshll.u32 %v4545, 16
      %v4646 = vrot.slane %v4644, 5
      %v4647 = vsel %vm260, %v4642, %v4646
      %v4648 = vshrl.u32 %v4545, 16
      %v4650 = vrot.slane %v4648, 4
      %v4651 = vor.u32 %v4650, %v4646
      %v4652 = vrot.slane %v4651, 4
      %v4654 = vshll.u32 %v4546, 16
      %v4656 = vrot.slane %v4654, 5
      %v4657 = vsel %vm260, %v4652, %v4656
      %v4659 = vshrl.u32 %v4547, 16
      %v4661 = vrot.slane %v4659, 4
      %v4662 = vshll.u32 %v4547, 16
      %v4664 = vrot.slane %v4662, 5
      %v4665 = vor.u32 %v4661, %v4664
      %v4666 = vrot.slane %v4665, 4
      %v4668 = vshll.u32 %v4548, 16
      %v4670 = vrot.slane %v4668, 5
      %v4671 = vsel %vm260, %v4666, %v4670
      %v4672 = vshrl.u32 %v4548, 16
      %v4674 = vrot.slane %v4672, 4
      %v4675 = vor.u32 %v4674, %v4670
      %v4676 = vrot.slane %v4675, 4
      %v4678 = vshll.u32 %v4549, 16
      %v4680 = vrot.slane %v4678, 5
      %v4681 = vsel %vm260, %v4676, %v4680
      %v4683 = vshrl.u32 %v4550, 16
      %v4685 = vrot.slane %v4683, 4
      %v4686 = vshll.u32 %v4550, 16
      %v4688 = vrot.slane %v4686, 5
      %v4689 = vor.u32 %v4685, %v4688
      %v4690 = vrot.slane %v4689, 4
      %v4692 = vshll.u32 %v4551, 16
      %v4694 = vrot.slane %v4692, 5
      %v4695 = vsel %vm260, %v4690, %v4694
      %v4696 = vshrl.u32 %v4551, 16
      %v4698 = vrot.slane %v4696, 4
      %v4699 = vor.u32 %v4698, %v4694
      %v4700 = vrot.slane %v4699, 4
      %v4702 = vshll.u32 %v4552, 16
      %v4704 = vrot.slane %v4702, 5
      %v4705 = vsel %vm260, %v4700, %v4704
      %v4707 = vshrl.u32 %v4553, 16
      %v4709 = vrot.slane %v4707, 4
      %v4710 = vshll.u32 %v4553, 16
      %v4712 = vrot.slane %v4710, 5
      %v4713 = vor.u32 %v4709, %v4712
      %v4714 = vrot.slane %v4713, 4
      %v4716 = vshll.u32 %v4554, 16
      %v4718 = vrot.slane %v4716, 5
      %v4719 = vsel %vm260, %v4714, %v4718
      %v4720 = vshrl.u32 %v4554, 16
      %v4722 = vrot.slane %v4720, 4
      %v4723 = vor.u32 %v4722, %v4718
      %v4724 = vrot.slane %v4723, 4
      %v4726 = vshll.u32 %v4555, 16
      %v4728 = vrot.slane %v4726, 5
      %v4729 = vsel %vm260, %v4724, %v4728
      %v4731 = vshrl.u32 %v4556, 16
      %v4733 = vrot.slane %v4731, 4
      %v4734 = vshll.u32 %v4556, 16
      %v4736 = vrot.slane %v4734, 5
      %v4737 = vor.u32 %v4733, %v4736
      %v4738 = vrot.slane %v4737, 4
      %v4740 = vshll.u32 %v4557, 16
      %v4742 = vrot.slane %v4740, 5
      %v4743 = vsel %vm260, %v4738, %v4742
      %v4744 = vshrl.u32 %v4557, 16
      %v4746 = vrot.slane %v4744, 4
      %v4747 = vor.u32 %v4746, %v4742
      %v4748 = vrot.slane %v4747, 4
      %v4750 = vshll.u32 %v4558, 16
      %v4752 = vrot.slane %v4750, 5
      %v4753 = vsel %vm260, %v4748, %v4752
      %v4755 = vshrl.u32 %v4559, 16
      %v4757 = vrot.slane %v4755, 4
      %v4758 = vshll.u32 %v4559, 16
      %v4760 = vrot.slane %v4758, 5
      %v4761 = vor.u32 %v4757, %v4760
      %v4762 = vrot.slane %v4761, 4
      %v4764 = vshll.u32 %v4560, 16
      %v4766 = vrot.slane %v4764, 5
      %v4767 = vsel %vm260, %v4762, %v4766
      %v4768 = vshrl.u32 %v4560, 16
      %v4770 = vrot.slane %v4768, 4
      %v4771 = vor.u32 %v4770, %v4766
      %v4772 = vrot.slane %v4771, 4
      %v4774 = vshll.u32 %v4561, 16
      %v4776 = vrot.slane %v4774, 5
      %v4777 = vsel %vm260, %v4772, %v4776
      %v4779 = vshrl.u32 %v4562, 16
      %v4781 = vrot.slane %v4779, 4
      %v4782 = vshll.u32 %v4562, 16
      %v4784 = vrot.slane %v4782, 5
      %v4785 = vor.u32 %v4781, %v4784
      %v4786 = vrot.slane %v4785, 4
      %v4788 = vshll.u32 %v4563, 16
      %v4790 = vrot.slane %v4788, 5
      %v4791 = vsel %vm260, %v4786, %v4790
      %v4792 = vshrl.u32 %v4563, 16
      %v4794 = vrot.slane %v4792, 4
      %v4795 = vor.u32 %v4794, %v4790
      %v4796 = vrot.slane %v4795, 4
      %v4798 = vshll.u32 %v4564, 16
      %v4800 = vrot.slane %v4798, 5
      %v4801 = vsel %vm260, %v4796, %v4800
      %v4803 = vshrl.u32 %v4565, 16
      %v4805 = vrot.slane %v4803, 4
      %v4806 = vshll.u32 %v4565, 16
      %v4808 = vrot.slane %v4806, 5
      %v4809 = vor.u32 %v4805, %v4808
      %v4810 = vrot.slane %v4809, 4
      %v4812 = vshll.u32 %v4566, 16
      %v4814 = vrot.slane %v4812, 5
      %v4815 = vsel %vm260, %v4810, %v4814
      %v4816 = vshrl.u32 %v4566, 16
      %v4818 = vrot.slane %v4816, 4
      %v4819 = vor.u32 %v4818, %v4814
      %v4820 = vrot.slane %v4819, 4
      %v4822 = vshll.u32 %v4567, 16
      %v4824 = vrot.slane %v4822, 5
      %v4825 = vsel %vm260, %v4820, %v4824
      %v4827 = vshrl.u32 %v4568, 16
      %v4829 = vrot.slane %v4827, 4
      %v4830 = vshll.u32 %v4568, 16
      %v4832 = vrot.slane %v4830, 5
      %v4833 = vor.u32 %v4829, %v4832
      %v4834 = vrot.slane %v4833, 4
      %v4836 = vshll.u32 %v4569, 16
      %v4838 = vrot.slane %v4836, 5
      %v4839 = vsel %vm260, %v4834, %v4838
      %v4840 = vshrl.u32 %v4569, 16
      %v4842 = vrot.slane %v4840, 4
      %v4843 = vor.u32 %v4842, %v4838
      %v4844 = vrot.slane %v4843, 4
      %v4846 = vshll.u32 %v4570, 16
      %v4848 = vrot.slane %v4846, 5
      %v4849 = vsel %vm260, %v4844, %v4848
      %v4851 = vshrl.u32 %v4571, 16
      %v4853 = vrot.slane %v4851, 4
      %v4854 = vshll.u32 %v4571, 16
      %v4856 = vrot.slane %v4854, 5
      %v4857 = vor.u32 %v4853, %v4856
      %v4858 = vrot.slane %v4857, 4
      %v4860 = vshll.u32 %v4572, 16
      %v4862 = vrot.slane %v4860, 5
      %v4863 = vsel %vm260, %v4858, %v4862
      %v4864 = vshrl.u32 %v4572, 16
      %v4866 = vrot.slane %v4864, 4
      %v4867 = vor.u32 %v4866, %v4862
      %v4868 = vrot.slane %v4867, 4
      %v4870 = vshll.u32 %v4573, 16
      %v4872 = vrot.slane %v4870, 5
      %v4873 = vsel %vm260, %v4868, %v4872
      %v4875 = vshrl.u32 %v4574, 16
      %v4877 = vrot.slane %v4875, 4
      %v4878 = vshll.u32 %v4574, 16
      %v4880 = vrot.slane %v4878, 5
      %v4881 = vor.u32 %v4877, %v4880
      %v4882 = vrot.slane %v4881, 4
      %v4884 = vshll.u32 %v4575, 16
      %v4886 = vrot.slane %v4884, 5
      %v4887 = vsel %vm260, %v4882, %v4886
      %v4888 = vshrl.u32 %v4575, 16
      %v4890 = vrot.slane %v4888, 4
      %v4891 = vor.u32 %v4890, %v4886
      %v4892 = vrot.slane %v4891, 4
      %v4894 = vshll.u32 %v4576, 16
      %v4896 = vrot.slane %v4894, 5
      %v4897 = vsel %vm260, %v4892, %v4896
      %v4899 = vshrl.u32 %v4577, 16
      %v4901 = vrot.slane %v4899, 4
      %v4902 = vshll.u32 %v4577, 16
      %v4904 = vrot.slane %v4902, 5
      %v4905 = vor.u32 %v4901, %v4904
      %v4906 = vrot.slane %v4905, 4
      %v4908 = vshll.u32 %v4578, 16
      %v4910 = vrot.slane %v4908, 5
      %v4911 = vsel %vm260, %v4906, %v4910
      %v4912 = vshrl.u32 %v4578, 16
      %v4914 = vrot.slane %v4912, 4
      %v4915 = vor.u32 %v4914, %v4910
      %v4916 = vrot.slane %v4915, 4
      %v4918 = vshll.u32 %v4579, 16
      %v4920 = vrot.slane %v4918, 5
      %v4921 = vsel %vm260, %v4916, %v4920
      %v4923 = vshrl.u32 %v4580, 16
      %v4925 = vrot.slane %v4923, 4
      %v4926 = vshll.u32 %v4580, 16
      %v4928 = vrot.slane %v4926, 5
      %v4929 = vor.u32 %v4925, %v4928
      %v4930 = vrot.slane %v4929, 4
      %v4932 = vshll.u32 %v4581, 16
      %v4934 = vrot.slane %v4932, 5
      %v4935 = vsel %vm260, %v4930, %v4934
      %v4936 = vshrl.u32 %v4581, 16
      %v4938 = vrot.slane %v4936, 4
      %v4939 = vor.u32 %v4938, %v4934
      %v4940 = vrot.slane %v4939, 4
      %v4942 = vshll.u32 %v4582, 16
      %v4944 = vrot.slane %v4942, 5
      %v4945 = vsel %vm260, %v4940, %v4944
      %v4947 = vshrl.u32 %v4583, 16
      %v4949 = vrot.slane %v4947, 4
      %v4950 = vshll.u32 %v4583, 16
      %v4952 = vrot.slane %v4950, 5
      %v4953 = vor.u32 %v4949, %v4952
      %v4954 = vrot.slane %v4953, 4
      %v4956 = vshll.u32 %v4584, 16
      %v4958 = vrot.slane %v4956, 5
      %v4959 = vsel %vm260, %v4954, %v4958
      %v4960 = vshrl.u32 %v4584, 16
      %v4962 = vrot.slane %v4960, 4
      %v4963 = vor.u32 %v4962, %v4958
      %v4964 = vrot.slane %v4963, 4
      %v4966 = vshll.u32 %v4585, 16
      %v4968 = vrot.slane %v4966, 5
      %v4969 = vsel %vm260, %v4964, %v4968
      %4970 = vrot.lane.b32.xlu0 %v4599, 8
      %v4971 = vpop.permute.xlu0 %4970
      %4972 = vrot.lane.b32.xlu0 %v4609, 8
      %v4973 = vpop.permute.xlu0 %4972
      %4974 = vrot.lane.b32.xlu0 %v4623, 8
      %v4975 = vpop.permute.xlu0 %4974
      %4976 = vrot.lane.b32.xlu0 %v4633, 8
      %v4977 = vpop.permute.xlu0 %4976
      %4978 = vrot.lane.b32.xlu0 %v4647, 8
      %v4979 = vpop.permute.xlu0 %4978
      %4980 = vrot.lane.b32.xlu0 %v4657, 8
      %v4981 = vpop.permute.xlu0 %4980
      %4982 = vrot.lane.b32.xlu0 %v4671, 8
      %v4983 = vpop.permute.xlu0 %4982
      %4984 = vrot.lane.b32.xlu0 %v4681, 8
      %v4985 = vpop.permute.xlu0 %4984
      %4986 = vrot.lane.b32.xlu0 %v4695, 8
      %v4987 = vpop.permute.xlu0 %4986
      %4988 = vrot.lane.b32.xlu0 %v4705, 8
      %v4989 = vpop.permute.xlu0 %4988
      %4990 = vrot.lane.b32.xlu0 %v4719, 8
      %v4991 = vpop.permute.xlu0 %4990
      %4992 = vrot.lane.b32.xlu0 %v4729, 8
      %v4993 = vpop.permute.xlu0 %4992
      %4994 = vrot.lane.b32.xlu0 %v4743, 8
      %v4995 = vpop.permute.xlu0 %4994
      %4996 = vrot.lane.b32.xlu0 %v4753, 8
      %v4997 = vpop.permute.xlu0 %4996
      %4998 = vrot.lane.b32.xlu0 %v4767, 8
      %v4999 = vpop.permute.xlu0 %4998
      %5000 = vrot.lane.b32.xlu0 %v4777, 8
      %v5001 = vpop.permute.xlu0 %5000
      %5002 = vrot.lane.b32.xlu0 %v4791, 8
      %v5003 = vpop.permute.xlu0 %5002
      %5004 = vrot.lane.b32.xlu0 %v4801, 8
      %v5005 = vpop.permute.xlu0 %5004
      %5006 = vrot.lane.b32.xlu0 %v4815, 8
      %v5007 = vpop.permute.xlu0 %5006
      %5008 = vrot.lane.b32.xlu0 %v4825, 8
      %v5009 = vpop.permute.xlu0 %5008
      %5010 = vrot.lane.b32.xlu0 %v4839, 8
      %v5011 = vpop.permute.xlu0 %5010
      %5012 = vrot.lane.b32.xlu0 %v4849, 8
      %v5013 = vpop.permute.xlu0 %5012
      %5014 = vrot.lane.b32.xlu0 %v4863, 8
      %v5015 = vpop.permute.xlu0 %5014
      %5016 = vrot.lane.b32.xlu0 %v4873, 8
      %v5017 = vpop.permute.xlu0 %5016
      %5018 = vrot.lane.b32.xlu0 %v4887, 8
      %v5019 = vpop.permute.xlu0 %5018
      %5020 = vrot.lane.b32.xlu0 %v4897, 8
      %v5021 = vpop.permute.xlu0 %5020
      %5022 = vrot.lane.b32.xlu0 %v4911, 8
      %v5023 = vpop.permute.xlu0 %5022
      %5024 = vrot.lane.b32.xlu0 %v4921, 8
      %v5025 = vpop.permute.xlu0 %5024
      %5026 = vrot.lane.b32.xlu0 %v4935, 8
      %v5027 = vpop.permute.xlu0 %5026
      %5028 = vrot.lane.b32.xlu0 %v4945, 8
      %v5029 = vpop.permute.xlu0 %5028
      %5030 = vrot.lane.b32.xlu0 %v4959, 8
      %v5031 = vpop.permute.xlu0 %5030
      %5032 = vrot.lane.b32.xlu0 %v4969, 8
      %v5033 = vpop.permute.xlu0 %5032
      %5066 = vst.msk [vmem:[#allocation2] sm:$0xf] %vm741, %v4971
      %5067 = vst.msk [vmem:[#allocation2 + $0x4] sm:$0xf] %vm741, %v4973
      %5068 = vst.msk [vmem:[#allocation2 + $0x8] sm:$0xf] %vm741, %v4975
      %5069 = vst.msk [vmem:[#allocation2 + $0xc] sm:$0xf] %vm741, %v4977
      %5070 = vst.msk [vmem:[#allocation2 + $0x10] sm:$0xf] %vm741, %v4979
      %5071 = vst.msk [vmem:[#allocation2 + $0x14] sm:$0xf] %vm741, %v4981
      %5072 = vst.msk [vmem:[#allocation2 + $0x18] sm:$0xf] %vm741, %v4983
      %5073 = vst.msk [vmem:[#allocation2 + $0x1c] sm:$0xf] %vm741, %v4985
      %5074 = vst.msk [vmem:[#allocation2 + $0x20] sm:$0xf] %vm741, %v4987
      %5075 = vst.msk [vmem:[#allocation2 + $0x24] sm:$0xf] %vm741, %v4989
      %5076 = vst.msk [vmem:[#allocation2 + $0x28] sm:$0xf] %vm741, %v4991
      %5077 = vst.msk [vmem:[#allocation2 + $0x2c] sm:$0xf] %vm741, %v4993
      %5078 = vst.msk [vmem:[#allocation2 + $0x30] sm:$0xf] %vm741, %v4995
      %5079 = vst.msk [vmem:[#allocation2 + $0x34] sm:$0xf] %vm741, %v4997
      %5080 = vst.msk [vmem:[#allocation2 + $0x38] sm:$0xf] %vm741, %v4999
      %5081 = vst.msk [vmem:[#allocation2 + $0x3c] sm:$0xf] %vm741, %v5001
      %5082 = vst.msk [vmem:[#allocation2 + $0x40] sm:$0xf] %vm741, %v5003
      %5083 = vst.msk [vmem:[#allocation2 + $0x44] sm:$0xf] %vm741, %v5005
      %5084 = vst.msk [vmem:[#allocation2 + $0x48] sm:$0xf] %vm741, %v5007
      %5085 = vst.msk [vmem:[#allocation2 + $0x4c] sm:$0xf] %vm741, %v5009
      %5086 = vst.msk [vmem:[#allocation2 + $0x50] sm:$0xf] %vm741, %v5011
      %5087 = vst.msk [vmem:[#allocation2 + $0x54] sm:$0xf] %vm741, %v5013
      %5088 = vst.msk [vmem:[#allocation2 + $0x58] sm:$0xf] %vm741, %v5015
      %5089 = vst.msk [vmem:[#allocation2 + $0x5c] sm:$0xf] %vm741, %v5017
      %5090 = vst.msk [vmem:[#allocation2 + $0x60] sm:$0xf] %vm741, %v5019
      %5091 = vst.msk [vmem:[#allocation2 + $0x64] sm:$0xf] %vm741, %v5021
      %5092 = vst.msk [vmem:[#allocation2 + $0x68] sm:$0xf] %vm741, %v5023
      %5093 = vst.msk [vmem:[#allocation2 + $0x6c] sm:$0xf] %vm741, %v5025
      %5094 = vst.msk [vmem:[#allocation2 + $0x70] sm:$0xf] %vm741, %v5027
      %5095 = vst.msk [vmem:[#allocation2 + $0x74] sm:$0xf] %vm741, %v5029
      %5096 = vst.msk [vmem:[#allocation2 + $0x78] sm:$0xf] %vm741, %v5031
      %5097 = vst.msk [vmem:[#allocation2 + $0x7c] sm:$0xf] %vm741, %v5033
      %s5098 = scalar_lea.vmem %s138, 24
      %v5099 = vld [vmem:[%s5098] sm:$0xf]
      %v5100 = vld [vmem:[%s5098 + $0x4] sm:$0xf]
      %v5101 = vld [vmem:[%s5098 + $0xc] sm:$0xf]
      %v5102 = vld [vmem:[%s5098 + $0x10] sm:$0xf]
      %v5103 = vld [vmem:[%s5098 + $0x18] sm:$0xf]
      %v5104 = vld [vmem:[%s5098 + $0x1c] sm:$0xf]
      %v5105 = vld [vmem:[%s5098 + $0x24] sm:$0xf]
      %v5106 = vld [vmem:[%s5098 + $0x28] sm:$0xf]
      %v5107 = vld [vmem:[%s5098 + $0x30] sm:$0xf]
      %v5108 = vld [vmem:[%s5098 + $0x34] sm:$0xf]
      %v5109 = vld [vmem:[%s5098 + $0x3c] sm:$0xf]
      %v5110 = vld [vmem:[%s5098 + $0x40] sm:$0xf]
      %v5111 = vld [vmem:[%s5098 + $0x48] sm:$0xf]
      %v5112 = vld [vmem:[%s5098 + $0x4c] sm:$0xf]
      %v5113 = vld [vmem:[%s5098 + $0x54] sm:$0xf]
      %v5114 = vld [vmem:[%s5098 + $0x58] sm:$0xf]
      %v5115 = vld [vmem:[%s5098 + $0x60] sm:$0xf]
      %v5116 = vld [vmem:[%s5098 + $0x64] sm:$0xf]
      %v5117 = vld [vmem:[%s5098 + $0x6c] sm:$0xf]
      %v5118 = vld [vmem:[%s5098 + $0x70] sm:$0xf]
      %v5119 = vld [vmem:[%s5098 + $0x78] sm:$0xf]
      %v5120 = vld [vmem:[%s5098 + $0x7c] sm:$0xf]
      %v5121 = vld [vmem:[%s5098 + $0x84] sm:$0xf]
      %v5122 = vld [vmem:[%s5098 + $0x88] sm:$0xf]
      %v5123 = vld [vmem:[%s5098 + $0x90] sm:$0xf]
      %v5124 = vld [vmem:[%s5098 + $0x94] sm:$0xf]
      %v5125 = vld [vmem:[%s5098 + $0x9c] sm:$0xf]
      %v5126 = vld [vmem:[%s5098 + $0xa0] sm:$0xf]
      %v5127 = vld [vmem:[%s5098 + $0xa8] sm:$0xf]
      %v5128 = vld [vmem:[%s5098 + $0xac] sm:$0xf]
      %v5129 = vld [vmem:[%s5098 + $0xb4] sm:$0xf]
      %v5130 = vld [vmem:[%s5098 + $0xb8] sm:$0xf]
      %5163 = vrot.lane.b32.xlu0 %v5099, 16
      %v5164 = vpop.permute.xlu0 %5163
      %5165 = vrot.lane.b32.xlu0 %v5100, 16
      %v5166 = vpop.permute.xlu0 %5165
      %5167 = vrot.lane.b32.xlu0 %v5101, 16
      %v5168 = vpop.permute.xlu0 %5167
      %5169 = vrot.lane.b32.xlu0 %v5102, 16
      %v5170 = vpop.permute.xlu0 %5169
      %5171 = vrot.lane.b32.xlu0 %v5103, 16
      %v5172 = vpop.permute.xlu0 %5171
      %5173 = vrot.lane.b32.xlu0 %v5104, 16
      %v5174 = vpop.permute.xlu0 %5173
      %5175 = vrot.lane.b32.xlu0 %v5105, 16
      %v5176 = vpop.permute.xlu0 %5175
      %5177 = vrot.lane.b32.xlu0 %v5106, 16
      %v5178 = vpop.permute.xlu0 %5177
      %5179 = vrot.lane.b32.xlu0 %v5107, 16
      %v5180 = vpop.permute.xlu0 %5179
      %5181 = vrot.lane.b32.xlu0 %v5108, 16
      %v5182 = vpop.permute.xlu0 %5181
      %5183 = vrot.lane.b32.xlu0 %v5109, 16
      %v5184 = vpop.permute.xlu0 %5183
      %5185 = vrot.lane.b32.xlu0 %v5110, 16
      %v5186 = vpop.permute.xlu0 %5185
      %5187 = vrot.lane.b32.xlu0 %v5111, 16
      %v5188 = vpop.permute.xlu0 %5187
      %5189 = vrot.lane.b32.xlu0 %v5112, 16
      %v5190 = vpop.permute.xlu0 %5189
      %5191 = vrot.lane.b32.xlu0 %v5113, 16
      %v5192 = vpop.permute.xlu0 %5191
      %5193 = vrot.lane.b32.xlu0 %v5114, 16
      %v5194 = vpop.permute.xlu0 %5193
      %5195 = vrot.lane.b32.xlu0 %v5115, 16
      %v5196 = vpop.permute.xlu0 %5195
      %5197 = vrot.lane.b32.xlu0 %v5116, 16
      %v5198 = vpop.permute.xlu0 %5197
      %5199 = vrot.lane.b32.xlu0 %v5117, 16
      %v5200 = vpop.permute.xlu0 %5199
      %5201 = vrot.lane.b32.xlu0 %v5118, 16
      %v5202 = vpop.permute.xlu0 %5201
      %5203 = vrot.lane.b32.xlu0 %v5119, 16
      %v5204 = vpop.permute.xlu0 %5203
      %5205 = vrot.lane.b32.xlu0 %v5120, 16
      %v5206 = vpop.permute.xlu0 %5205
      %5207 = vrot.lane.b32.xlu0 %v5121, 16
      %v5208 = vpop.permute.xlu0 %5207
      %5209 = vrot.lane.b32.xlu0 %v5122, 16
      %v5210 = vpop.permute.xlu0 %5209
      %5211 = vrot.lane.b32.xlu0 %v5123, 16
      %v5212 = vpop.permute.xlu0 %5211
      %5213 = vrot.lane.b32.xlu0 %v5124, 16
      %v5214 = vpop.permute.xlu0 %5213
      %5215 = vrot.lane.b32.xlu0 %v5125, 16
      %v5216 = vpop.permute.xlu0 %5215
      %5217 = vrot.lane.b32.xlu0 %v5126, 16
      %v5218 = vpop.permute.xlu0 %5217
      %5219 = vrot.lane.b32.xlu0 %v5127, 16
      %v5220 = vpop.permute.xlu0 %5219
      %5221 = vrot.lane.b32.xlu0 %v5128, 16
      %v5222 = vpop.permute.xlu0 %5221
      %5223 = vrot.lane.b32.xlu0 %v5129, 16
      %v5224 = vpop.permute.xlu0 %5223
      %5225 = vrot.lane.b32.xlu0 %v5130, 16
      %v5226 = vpop.permute.xlu0 %5225
      %5259 = vst.msk [vmem:[#allocation2] sm:$0xf] %vm935, %v5164
      %5260 = vst.msk [vmem:[#allocation2 + $0x4] sm:$0xf] %vm935, %v5166
      %5261 = vst.msk [vmem:[#allocation2 + $0x8] sm:$0xf] %vm935, %v5168
      %5262 = vst.msk [vmem:[#allocation2 + $0xc] sm:$0xf] %vm935, %v5170
      %5263 = vst.msk [vmem:[#allocation2 + $0x10] sm:$0xf] %vm935, %v5172
      %5264 = vst.msk [vmem:[#allocation2 + $0x14] sm:$0xf] %vm935, %v5174
      %5265 = vst.msk [vmem:[#allocation2 + $0x18] sm:$0xf] %vm935, %v5176
      %5266 = vst.msk [vmem:[#allocation2 + $0x1c] sm:$0xf] %vm935, %v5178
      %5267 = vst.msk [vmem:[#allocation2 + $0x20] sm:$0xf] %vm935, %v5180
      %5268 = vst.msk [vmem:[#allocation2 + $0x24] sm:$0xf] %vm935, %v5182
      %5269 = vst.msk [vmem:[#allocation2 + $0x28] sm:$0xf] %vm935, %v5184
      %5270 = vst.msk [vmem:[#allocation2 + $0x2c] sm:$0xf] %vm935, %v5186
      %5271 = vst.msk [vmem:[#allocation2 + $0x30] sm:$0xf] %vm935, %v5188
      %5272 = vst.msk [vmem:[#allocation2 + $0x34] sm:$0xf] %vm935, %v5190
      %5273 = vst.msk [vmem:[#allocation2 + $0x38] sm:$0xf] %vm935, %v5192
      %5274 = vst.msk [vmem:[#allocation2 + $0x3c] sm:$0xf] %vm935, %v5194
      %5275 = vst.msk [vmem:[#allocation2 + $0x40] sm:$0xf] %vm935, %v5196
      %5276 = vst.msk [vmem:[#allocation2 + $0x44] sm:$0xf] %vm935, %v5198
      %5277 = vst.msk [vmem:[#allocation2 + $0x48] sm:$0xf] %vm935, %v5200
      %5278 = vst.msk [vmem:[#allocation2 + $0x4c] sm:$0xf] %vm935, %v5202
      %5279 = vst.msk [vmem:[#allocation2 + $0x50] sm:$0xf] %vm935, %v5204
      %5280 = vst.msk [vmem:[#allocation2 + $0x54] sm:$0xf] %vm935, %v5206
      %5281 = vst.msk [vmem:[#allocation2 + $0x58] sm:$0xf] %vm935, %v5208
      %5282 = vst.msk [vmem:[#allocation2 + $0x5c] sm:$0xf] %vm935, %v5210
      %5283 = vst.msk [vmem:[#allocation2 + $0x60] sm:$0xf] %vm935, %v5212
      %5284 = vst.msk [vmem:[#allocation2 + $0x64] sm:$0xf] %vm935, %v5214
      %5285 = vst.msk [vmem:[#allocation2 + $0x68] sm:$0xf] %vm935, %v5216
      %5286 = vst.msk [vmem:[#allocation2 + $0x6c] sm:$0xf] %vm935, %v5218
      %5287 = vst.msk [vmem:[#allocation2 + $0x70] sm:$0xf] %vm935, %v5220
      %5288 = vst.msk [vmem:[#allocation2 + $0x74] sm:$0xf] %vm935, %v5222
      %5289 = vst.msk [vmem:[#allocation2 + $0x78] sm:$0xf] %vm935, %v5224
      %5290 = vst.msk [vmem:[#allocation2 + $0x7c] sm:$0xf] %vm935, %v5226
      %v5291 = vld [vmem:[%s5098] sm:$0xf]
      %v5292 = vld [vmem:[%s5098 + $0x4] sm:$0xf]
      %v5293 = vld [vmem:[%s5098 + $0x8] sm:$0x1]
      %v5294 = vld [vmem:[%s5098 + $0xc] sm:$0xf]
      %v5295 = vld [vmem:[%s5098 + $0x10] sm:$0xf]
      %v5296 = vld [vmem:[%s5098 + $0x14] sm:$0x1]
      %v5297 = vld [vmem:[%s5098 + $0x18] sm:$0xf]
      %v5298 = vld [vmem:[%s5098 + $0x1c] sm:$0xf]
      %v5299 = vld [vmem:[%s5098 + $0x20] sm:$0x1]
      %v5300 = vld [vmem:[%s5098 + $0x24] sm:$0xf]
      %v5301 = vld [vmem:[%s5098 + $0x28] sm:$0xf]
      %v5302 = vld [vmem:[%s5098 + $0x2c] sm:$0x1]
      %v5303 = vld [vmem:[%s5098 + $0x30] sm:$0xf]
      %v5304 = vld [vmem:[%s5098 + $0x34] sm:$0xf]
      %v5305 = vld [vmem:[%s5098 + $0x38] sm:$0x1]
      %v5306 = vld [vmem:[%s5098 + $0x3c] sm:$0xf]
      %v5307 = vld [vmem:[%s5098 + $0x40] sm:$0xf]
      %v5308 = vld [vmem:[%s5098 + $0x44] sm:$0x1]
      %v5309 = vld [vmem:[%s5098 + $0x48] sm:$0xf]
      %v5310 = vld [vmem:[%s5098 + $0x4c] sm:$0xf]
      %v5311 = vld [vmem:[%s5098 + $0x50] sm:$0x1]
      %v5312 = vld [vmem:[%s5098 + $0x54] sm:$0xf]
      %v5313 = vld [vmem:[%s5098 + $0x58] sm:$0xf]
      %v5314 = vld [vmem:[%s5098 + $0x5c] sm:$0x1]
      %v5315 = vld [vmem:[%s5098 + $0x60] sm:$0xf]
      %v5316 = vld [vmem:[%s5098 + $0x64] sm:$0xf]
      %v5317 = vld [vmem:[%s5098 + $0x68] sm:$0x1]
      %v5318 = vld [vmem:[%s5098 + $0x6c] sm:$0xf]
      %v5319 = vld [vmem:[%s5098 + $0x70] sm:$0xf]
      %v5320 = vld [vmem:[%s5098 + $0x74] sm:$0x1]
      %v5321 = vld [vmem:[%s5098 + $0x78] sm:$0xf]
      %v5322 = vld [vmem:[%s5098 + $0x7c] sm:$0xf]
      %v5323 = vld [vmem:[%s5098 + $0x80] sm:$0x1]
      %v5324 = vld [vmem:[%s5098 + $0x84] sm:$0xf]
      %v5325 = vld [vmem:[%s5098 + $0x88] sm:$0xf]
      %v5326 = vld [vmem:[%s5098 + $0x8c] sm:$0x1]
      %v5327 = vld [vmem:[%s5098 + $0x90] sm:$0xf]
      %v5328 = vld [vmem:[%s5098 + $0x94] sm:$0xf]
      %v5329 = vld [vmem:[%s5098 + $0x98] sm:$0x1]
      %v5330 = vld [vmem:[%s5098 + $0x9c] sm:$0xf]
      %v5331 = vld [vmem:[%s5098 + $0xa0] sm:$0xf]
      %v5332 = vld [vmem:[%s5098 + $0xa4] sm:$0x1]
      %v5333 = vld [vmem:[%s5098 + $0xa8] sm:$0xf]
      %v5334 = vld [vmem:[%s5098 + $0xac] sm:$0xf]
      %v5335 = vld [vmem:[%s5098 + $0xb0] sm:$0x1]
      %v5336 = vld [vmem:[%s5098 + $0xb4] sm:$0xf]
      %v5337 = vld [vmem:[%s5098 + $0xb8] sm:$0xf]
      %v5338 = vld [vmem:[%s5098 + $0xbc] sm:$0x1]
      %v5340 = vshrl.u32 %v5291, 16
      %v5342 = vrot.slane %v5340, 4
      %v5343 = vshll.u32 %v5291, 16
      %v5345 = vrot.slane %v5343, 5
      %v5346 = vor.u32 %v5342, %v5345
      %v5347 = vrot.slane %v5346, 4
      %v5349 = vshll.u32 %v5292, 16
      %v5351 = vrot.slane %v5349, 5
      %v5352 = vsel %vm260, %v5347, %v5351
      %v5353 = vshrl.u32 %v5292, 16
      %v5355 = vrot.slane %v5353, 4
      %v5356 = vor.u32 %v5355, %v5351
      %v5357 = vrot.slane %v5356, 4
      %v5359 = vshll.u32 %v5293, 16
      %v5361 = vrot.slane %v5359, 5
      %v5362 = vsel %vm260, %v5357, %v5361
      %v5364 = vshrl.u32 %v5294, 16
      %v5366 = vrot.slane %v5364, 4
      %v5367 = vshll.u32 %v5294, 16
      %v5369 = vrot.slane %v5367, 5
      %v5370 = vor.u32 %v5366, %v5369
      %v5371 = vrot.slane %v5370, 4
      %v5373 = vshll.u32 %v5295, 16
      %v5375 = vrot.slane %v5373, 5
      %v5376 = vsel %vm260, %v5371, %v5375
      %v5377 = vshrl.u32 %v5295, 16
      %v5379 = vrot.slane %v5377, 4
      %v5380 = vor.u32 %v5379, %v5375
      %v5381 = vrot.slane %v5380, 4
      %v5383 = vshll.u32 %v5296, 16
      %v5385 = vrot.slane %v5383, 5
      %v5386 = vsel %vm260, %v5381, %v5385
      %v5388 = vshrl.u32 %v5297, 16
      %v5390 = vrot.slane %v5388, 4
      %v5391 = vshll.u32 %v5297, 16
      %v5393 = vrot.slane %v5391, 5
      %v5394 = vor.u32 %v5390, %v5393
      %v5395 = vrot.slane %v5394, 4
      %v5397 = vshll.u32 %v5298, 16
      %v5399 = vrot.slane %v5397, 5
      %v5400 = vsel %vm260, %v5395, %v5399
      %v5401 = vshrl.u32 %v5298, 16
      %v5403 = vrot.slane %v5401, 4
      %v5404 = vor.u32 %v5403, %v5399
      %v5405 = vrot.slane %v5404, 4
      %v5407 = vshll.u32 %v5299, 16
      %v5409 = vrot.slane %v5407, 5
      %v5410 = vsel %vm260, %v5405, %v5409
      %v5412 = vshrl.u32 %v5300, 16
      %v5414 = vrot.slane %v5412, 4
      %v5415 = vshll.u32 %v5300, 16
      %v5417 = vrot.slane %v5415, 5
      %v5418 = vor.u32 %v5414, %v5417
      %v5419 = vrot.slane %v5418, 4
      %v5421 = vshll.u32 %v5301, 16
      %v5423 = vrot.slane %v5421, 5
      %v5424 = vsel %vm260, %v5419, %v5423
      %v5425 = vshrl.u32 %v5301, 16
      %v5427 = vrot.slane %v5425, 4
      %v5428 = vor.u32 %v5427, %v5423
      %v5429 = vrot.slane %v5428, 4
      %v5431 = vshll.u32 %v5302, 16
      %v5433 = vrot.slane %v5431, 5
      %v5434 = vsel %vm260, %v5429, %v5433
      %v5436 = vshrl.u32 %v5303, 16
      %v5438 = vrot.slane %v5436, 4
      %v5439 = vshll.u32 %v5303, 16
      %v5441 = vrot.slane %v5439, 5
      %v5442 = vor.u32 %v5438, %v5441
      %v5443 = vrot.slane %v5442, 4
      %v5445 = vshll.u32 %v5304, 16
      %v5447 = vrot.slane %v5445, 5
      %v5448 = vsel %vm260, %v5443, %v5447
      %v5449 = vshrl.u32 %v5304, 16
      %v5451 = vrot.slane %v5449, 4
      %v5452 = vor.u32 %v5451, %v5447
      %v5453 = vrot.slane %v5452, 4
      %v5455 = vshll.u32 %v5305, 16
      %v5457 = vrot.slane %v5455, 5
      %v5458 = vsel %vm260, %v5453, %v5457
      %v5460 = vshrl.u32 %v5306, 16
      %v5462 = vrot.slane %v5460, 4
      %v5463 = vshll.u32 %v5306, 16
      %v5465 = vrot.slane %v5463, 5
      %v5466 = vor.u32 %v5462, %v5465
      %v5467 = vrot.slane %v5466, 4
      %v5469 = vshll.u32 %v5307, 16
      %v5471 = vrot.slane %v5469, 5
      %v5472 = vsel %vm260, %v5467, %v5471
      %v5473 = vshrl.u32 %v5307, 16
      %v5475 = vrot.slane %v5473, 4
      %v5476 = vor.u32 %v5475, %v5471
      %v5477 = vrot.slane %v5476, 4
      %v5479 = vshll.u32 %v5308, 16
      %v5481 = vrot.slane %v5479, 5
      %v5482 = vsel %vm260, %v5477, %v5481
      %v5484 = vshrl.u32 %v5309, 16
      %v5486 = vrot.slane %v5484, 4
      %v5487 = vshll.u32 %v5309, 16
      %v5489 = vrot.slane %v5487, 5
      %v5490 = vor.u32 %v5486, %v5489
      %v5491 = vrot.slane %v5490, 4
      %v5493 = vshll.u32 %v5310, 16
      %v5495 = vrot.slane %v5493, 5
      %v5496 = vsel %vm260, %v5491, %v5495
      %v5497 = vshrl.u32 %v5310, 16
      %v5499 = vrot.slane %v5497, 4
      %v5500 = vor.u32 %v5499, %v5495
      %v5501 = vrot.slane %v5500, 4
      %v5503 = vshll.u32 %v5311, 16
      %v5505 = vrot.slane %v5503, 5
      %v5506 = vsel %vm260, %v5501, %v5505
      %v5508 = vshrl.u32 %v5312, 16
      %v5510 = vrot.slane %v5508, 4
      %v5511 = vshll.u32 %v5312, 16
      %v5513 = vrot.slane %v5511, 5
      %v5514 = vor.u32 %v5510, %v5513
      %v5515 = vrot.slane %v5514, 4
      %v5517 = vshll.u32 %v5313, 16
      %v5519 = vrot.slane %v5517, 5
      %v5520 = vsel %vm260, %v5515, %v5519
      %v5521 = vshrl.u32 %v5313, 16
      %v5523 = vrot.slane %v5521, 4
      %v5524 = vor.u32 %v5523, %v5519
      %v5525 = vrot.slane %v5524, 4
      %v5527 = vshll.u32 %v5314, 16
      %v5529 = vrot.slane %v5527, 5
      %v5530 = vsel %vm260, %v5525, %v5529
      %v5532 = vshrl.u32 %v5315, 16
      %v5534 = vrot.slane %v5532, 4
      %v5535 = vshll.u32 %v5315, 16
      %v5537 = vrot.slane %v5535, 5
      %v5538 = vor.u32 %v5534, %v5537
      %v5539 = vrot.slane %v5538, 4
      %v5541 = vshll.u32 %v5316, 16
      %v5543 = vrot.slane %v5541, 5
      %v5544 = vsel %vm260, %v5539, %v5543
      %v5545 = vshrl.u32 %v5316, 16
      %v5547 = vrot.slane %v5545, 4
      %v5548 = vor.u32 %v5547, %v5543
      %v5549 = vrot.slane %v5548, 4
      %v5551 = vshll.u32 %v5317, 16
      %v5553 = vrot.slane %v5551, 5
      %v5554 = vsel %vm260, %v5549, %v5553
      %v5556 = vshrl.u32 %v5318, 16
      %v5558 = vrot.slane %v5556, 4
      %v5559 = vshll.u32 %v5318, 16
      %v5561 = vrot.slane %v5559, 5
      %v5562 = vor.u32 %v5558, %v5561
      %v5563 = vrot.slane %v5562, 4
      %v5565 = vshll.u32 %v5319, 16
      %v5567 = vrot.slane %v5565, 5
      %v5568 = vsel %vm260, %v5563, %v5567
      %v5569 = vshrl.u32 %v5319, 16
      %v5571 = vrot.slane %v5569, 4
      %v5572 = vor.u32 %v5571, %v5567
      %v5573 = vrot.slane %v5572, 4
      %v5575 = vshll.u32 %v5320, 16
      %v5577 = vrot.slane %v5575, 5
      %v5578 = vsel %vm260, %v5573, %v5577
      %v5580 = vshrl.u32 %v5321, 16
      %v5582 = vrot.slane %v5580, 4
      %v5583 = vshll.u32 %v5321, 16
      %v5585 = vrot.slane %v5583, 5
      %v5586 = vor.u32 %v5582, %v5585
      %v5587 = vrot.slane %v5586, 4
      %v5589 = vshll.u32 %v5322, 16
      %v5591 = vrot.slane %v5589, 5
      %v5592 = vsel %vm260, %v5587, %v5591
      %v5593 = vshrl.u32 %v5322, 16
      %v5595 = vrot.slane %v5593, 4
      %v5596 = vor.u32 %v5595, %v5591
      %v5597 = vrot.slane %v5596, 4
      %v5599 = vshll.u32 %v5323, 16
      %v5601 = vrot.slane %v5599, 5
      %v5602 = vsel %vm260, %v5597, %v5601
      %v5604 = vshrl.u32 %v5324, 16
      %v5606 = vrot.slane %v5604, 4
      %v5607 = vshll.u32 %v5324, 16
      %v5609 = vrot.slane %v5607, 5
      %v5610 = vor.u32 %v5606, %v5609
      %v5611 = vrot.slane %v5610, 4
      %v5613 = vshll.u32 %v5325, 16
      %v5615 = vrot.slane %v5613, 5
      %v5616 = vsel %vm260, %v5611, %v5615
      %v5617 = vshrl.u32 %v5325, 16
      %v5619 = vrot.slane %v5617, 4
      %v5620 = vor.u32 %v5619, %v5615
      %v5621 = vrot.slane %v5620, 4
      %v5623 = vshll.u32 %v5326, 16
      %v5625 = vrot.slane %v5623, 5
      %v5626 = vsel %vm260, %v5621, %v5625
      %v5628 = vshrl.u32 %v5327, 16
      %v5630 = vrot.slane %v5628, 4
      %v5631 = vshll.u32 %v5327, 16
      %v5633 = vrot.slane %v5631, 5
      %v5634 = vor.u32 %v5630, %v5633
      %v5635 = vrot.slane %v5634, 4
      %v5637 = vshll.u32 %v5328, 16
      %v5639 = vrot.slane %v5637, 5
      %v5640 = vsel %vm260, %v5635, %v5639
      %v5641 = vshrl.u32 %v5328, 16
      %v5643 = vrot.slane %v5641, 4
      %v5644 = vor.u32 %v5643, %v5639
      %v5645 = vrot.slane %v5644, 4
      %v5647 = vshll.u32 %v5329, 16
      %v5649 = vrot.slane %v5647, 5
      %v5650 = vsel %vm260, %v5645, %v5649
      %v5652 = vshrl.u32 %v5330, 16
      %v5654 = vrot.slane %v5652, 4
      %v5655 = vshll.u32 %v5330, 16
      %v5657 = vrot.slane %v5655, 5
      %v5658 = vor.u32 %v5654, %v5657
      %v5659 = vrot.slane %v5658, 4
      %v5661 = vshll.u32 %v5331, 16
      %v5663 = vrot.slane %v5661, 5
      %v5664 = vsel %vm260, %v5659, %v5663
      %v5665 = vshrl.u32 %v5331, 16
      %v5667 = vrot.slane %v5665, 4
      %v5668 = vor.u32 %v5667, %v5663
      %v5669 = vrot.slane %v5668, 4
      %v5671 = vshll.u32 %v5332, 16
      %v5673 = vrot.slane %v5671, 5
      %v5674 = vsel %vm260, %v5669, %v5673
      %v5676 = vshrl.u32 %v5333, 16
      %v5678 = vrot.slane %v5676, 4
      %v5679 = vshll.u32 %v5333, 16
      %v5681 = vrot.slane %v5679, 5
      %v5682 = vor.u32 %v5678, %v5681
      %v5683 = vrot.slane %v5682, 4
      %v5685 = vshll.u32 %v5334, 16
      %v5687 = vrot.slane %v5685, 5
      %v5688 = vsel %vm260, %v5683, %v5687
      %v5689 = vshrl.u32 %v5334, 16
      %v5691 = vrot.slane %v5689, 4
      %v5692 = vor.u32 %v5691, %v5687
      %v5693 = vrot.slane %v5692, 4
      %v5695 = vshll.u32 %v5335, 16
      %v5697 = vrot.slane %v5695, 5
      %v5698 = vsel %vm260, %v5693, %v5697
      %v5700 = vshrl.u32 %v5336, 16
      %v5702 = vrot.slane %v5700, 4
      %v5703 = vshll.u32 %v5336, 16
      %v5705 = vrot.slane %v5703, 5
      %v5706 = vor.u32 %v5702, %v5705
      %v5707 = vrot.slane %v5706, 4
      %v5709 = vshll.u32 %v5337, 16
      %v5711 = vrot.slane %v5709, 5
      %v5712 = vsel %vm260, %v5707, %v5711
      %v5713 = vshrl.u32 %v5337, 16
      %v5715 = vrot.slane %v5713, 4
      %v5716 = vor.u32 %v5715, %v5711
      %v5717 = vrot.slane %v5716, 4
      %v5719 = vshll.u32 %v5338, 16
      %v5721 = vrot.slane %v5719, 5
      %v5722 = vsel %vm260, %v5717, %v5721
      %5723 = vrot.lane.b32.xlu0 %v5352, 24
      %v5724 = vpop.permute.xlu0 %5723
      %5725 = vrot.lane.b32.xlu0 %v5362, 24
      %v5726 = vpop.permute.xlu0 %5725
      %5727 = vrot.lane.b32.xlu0 %v5376, 24
      %v5728 = vpop.permute.xlu0 %5727
      %5729 = vrot.lane.b32.xlu0 %v5386, 24
      %v5730 = vpop.permute.xlu0 %5729
      %5731 = vrot.lane.b32.xlu0 %v5400, 24
      %v5732 = vpop.permute.xlu0 %5731
      %5733 = vrot.lane.b32.xlu0 %v5410, 24
      %v5734 = vpop.permute.xlu0 %5733
      %5735 = vrot.lane.b32.xlu0 %v5424, 24
      %v5736 = vpop.permute.xlu0 %5735
      %5737 = vrot.lane.b32.xlu0 %v5434, 24
      %v5738 = vpop.permute.xlu0 %5737
      %5739 = vrot.lane.b32.xlu0 %v5448, 24
      %v5740 = vpop.permute.xlu0 %5739
      %5741 = vrot.lane.b32.xlu0 %v5458, 24
      %v5742 = vpop.permute.xlu0 %5741
      %5743 = vrot.lane.b32.xlu0 %v5472, 24
      %v5744 = vpop.permute.xlu0 %5743
      %5745 = vrot.lane.b32.xlu0 %v5482, 24
      %v5746 = vpop.permute.xlu0 %5745
      %5747 = vrot.lane.b32.xlu0 %v5496, 24
      %v5748 = vpop.permute.xlu0 %5747
      %5749 = vrot.lane.b32.xlu0 %v5506, 24
      %v5750 = vpop.permute.xlu0 %5749
      %5751 = vrot.lane.b32.xlu0 %v5520, 24
      %v5752 = vpop.permute.xlu0 %5751
      %5753 = vrot.lane.b32.xlu0 %v5530, 24
      %v5754 = vpop.permute.xlu0 %5753
      %5755 = vrot.lane.b32.xlu0 %v5544, 24
      %v5756 = vpop.permute.xlu0 %5755
      %5757 = vrot.lane.b32.xlu0 %v5554, 24
      %v5758 = vpop.permute.xlu0 %5757
      %5759 = vrot.lane.b32.xlu0 %v5568, 24
      %v5760 = vpop.permute.xlu0 %5759
      %5761 = vrot.lane.b32.xlu0 %v5578, 24
      %v5762 = vpop.permute.xlu0 %5761
      %5763 = vrot.lane.b32.xlu0 %v5592, 24
      %v5764 = vpop.permute.xlu0 %5763
      %5765 = vrot.lane.b32.xlu0 %v5602, 24
      %v5766 = vpop.permute.xlu0 %5765
      %5767 = vrot.lane.b32.xlu0 %v5616, 24
      %v5768 = vpop.permute.xlu0 %5767
      %5769 = vrot.lane.b32.xlu0 %v5626, 24
      %v5770 = vpop.permute.xlu0 %5769
      %5771 = vrot.lane.b32.xlu0 %v5640, 24
      %v5772 = vpop.permute.xlu0 %5771
      %5773 = vrot.lane.b32.xlu0 %v5650, 24
      %v5774 = vpop.permute.xlu0 %5773
      %5775 = vrot.lane.b32.xlu0 %v5664, 24
      %v5776 = vpop.permute.xlu0 %5775
      %5777 = vrot.lane.b32.xlu0 %v5674, 24
      %v5778 = vpop.permute.xlu0 %5777
      %5779 = vrot.lane.b32.xlu0 %v5688, 24
      %v5780 = vpop.permute.xlu0 %5779
      %5781 = vrot.lane.b32.xlu0 %v5698, 24
      %v5782 = vpop.permute.xlu0 %5781
      %5783 = vrot.lane.b32.xlu0 %v5712, 24
      %v5784 = vpop.permute.xlu0 %5783
      %5785 = vrot.lane.b32.xlu0 %v5722, 24
      %v5786 = vpop.permute.xlu0 %5785
      %5819 = vst.msk [vmem:[#allocation2] sm:$0xf] %vm1496, %v5724
      %5820 = vst.msk [vmem:[#allocation2 + $0x4] sm:$0xf] %vm1496, %v5726
      %5821 = vst.msk [vmem:[#allocation2 + $0x8] sm:$0xf] %vm1496, %v5728
      %5822 = vst.msk [vmem:[#allocation2 + $0xc] sm:$0xf] %vm1496, %v5730
      %5823 = vst.msk [vmem:[#allocation2 + $0x10] sm:$0xf] %vm1496, %v5732
      %5824 = vst.msk [vmem:[#allocation2 + $0x14] sm:$0xf] %vm1496, %v5734
      %5825 = vst.msk [vmem:[#allocation2 + $0x18] sm:$0xf] %vm1496, %v5736
      %5826 = vst.msk [vmem:[#allocation2 + $0x1c] sm:$0xf] %vm1496, %v5738
      %5827 = vst.msk [vmem:[#allocation2 + $0x20] sm:$0xf] %vm1496, %v5740
      %5828 = vst.msk [vmem:[#allocation2 + $0x24] sm:$0xf] %vm1496, %v5742
      %5829 = vst.msk [vmem:[#allocation2 + $0x28] sm:$0xf] %vm1496, %v5744
      %5830 = vst.msk [vmem:[#allocation2 + $0x2c] sm:$0xf] %vm1496, %v5746
      %5831 = vst.msk [vmem:[#allocation2 + $0x30] sm:$0xf] %vm1496, %v5748
      %5832 = vst.msk [vmem:[#allocation2 + $0x34] sm:$0xf] %vm1496, %v5750
      %5833 = vst.msk [vmem:[#allocation2 + $0x38] sm:$0xf] %vm1496, %v5752
      %5834 = vst.msk [vmem:[#allocation2 + $0x3c] sm:$0xf] %vm1496, %v5754
      %5835 = vst.msk [vmem:[#allocation2 + $0x40] sm:$0xf] %vm1496, %v5756
      %5836 = vst.msk [vmem:[#allocation2 + $0x44] sm:$0xf] %vm1496, %v5758
      %5837 = vst.msk [vmem:[#allocation2 + $0x48] sm:$0xf] %vm1496, %v5760
      %5838 = vst.msk [vmem:[#allocation2 + $0x4c] sm:$0xf] %vm1496, %v5762
      %5839 = vst.msk [vmem:[#allocation2 + $0x50] sm:$0xf] %vm1496, %v5764
      %5840 = vst.msk [vmem:[#allocation2 + $0x54] sm:$0xf] %vm1496, %v5766
      %5841 = vst.msk [vmem:[#allocation2 + $0x58] sm:$0xf] %vm1496, %v5768
      %5842 = vst.msk [vmem:[#allocation2 + $0x5c] sm:$0xf] %vm1496, %v5770
      %5843 = vst.msk [vmem:[#allocation2 + $0x60] sm:$0xf] %vm1496, %v5772
      %5844 = vst.msk [vmem:[#allocation2 + $0x64] sm:$0xf] %vm1496, %v5774
      %5845 = vst.msk [vmem:[#allocation2 + $0x68] sm:$0xf] %vm1496, %v5776
      %5846 = vst.msk [vmem:[#allocation2 + $0x6c] sm:$0xf] %vm1496, %v5778
      %5847 = vst.msk [vmem:[#allocation2 + $0x70] sm:$0xf] %vm1496, %v5780
      %5848 = vst.msk [vmem:[#allocation2 + $0x74] sm:$0xf] %vm1496, %v5782
      %5849 = vst.msk [vmem:[#allocation2 + $0x78] sm:$0xf] %vm1496, %v5784
      %5850 = vst.msk [vmem:[#allocation2 + $0x7c] sm:$0xf] %vm1496, %v5786
      %v5851 = vld [vmem:[#allocation2] sm:$0xf]
      %v5852 = vld [vmem:[#allocation2 + $0x4] sm:$0xf]
      %v5853 = vld [vmem:[#allocation2 + $0x8] sm:$0xf]
      %v5854 = vld [vmem:[#allocation2 + $0xc] sm:$0xf]
      %v5855 = vld [vmem:[#allocation2 + $0x10] sm:$0xf]
      %v5856 = vld [vmem:[#allocation2 + $0x14] sm:$0xf]
      %v5857 = vld [vmem:[#allocation2 + $0x18] sm:$0xf]
      %v5858 = vld [vmem:[#allocation2 + $0x1c] sm:$0xf]
      %v5859 = vld [vmem:[#allocation2 + $0x20] sm:$0xf]
      %v5860 = vld [vmem:[#allocation2 + $0x24] sm:$0xf]
      %v5861 = vld [vmem:[#allocation2 + $0x28] sm:$0xf]
      %v5862 = vld [vmem:[#allocation2 + $0x2c] sm:$0xf]
      %v5863 = vld [vmem:[#allocation2 + $0x30] sm:$0xf]
      %v5864 = vld [vmem:[#allocation2 + $0x34] sm:$0xf]
      %v5865 = vld [vmem:[#allocation2 + $0x38] sm:$0xf]
      %v5866 = vld [vmem:[#allocation2 + $0x3c] sm:$0xf]
      %v5867 = vld [vmem:[#allocation2 + $0x40] sm:$0xf]
      %v5868 = vld [vmem:[#allocation2 + $0x44] sm:$0xf]
      %v5869 = vld [vmem:[#allocation2 + $0x48] sm:$0xf]
      %v5870 = vld [vmem:[#allocation2 + $0x4c] sm:$0xf]
      %v5871 = vld [vmem:[#allocation2 + $0x50] sm:$0xf]
      %v5872 = vld [vmem:[#allocation2 + $0x54] sm:$0xf]
      %v5873 = vld [vmem:[#allocation2 + $0x58] sm:$0xf]
      %v5874 = vld [vmem:[#allocation2 + $0x5c] sm:$0xf]
      %v5875 = vld [vmem:[#allocation2 + $0x60] sm:$0xf]
      %v5876 = vld [vmem:[#allocation2 + $0x64] sm:$0xf]
      %v5877 = vld [vmem:[#allocation2 + $0x68] sm:$0xf]
      %v5878 = vld [vmem:[#allocation2 + $0x6c] sm:$0xf]
      %v5879 = vld [vmem:[#allocation2 + $0x70] sm:$0xf]
      %v5880 = vld [vmem:[#allocation2 + $0x74] sm:$0xf]
      %v5881 = vld [vmem:[#allocation2 + $0x78] sm:$0xf]
      %v5882 = vld [vmem:[#allocation2 + $0x7c] sm:$0xf]
      %s5883 = scalar_lea.vmem %s1, 32
      %v5884 = vld [vmem:[%s5883] sm:$0xf]
      %v5885 = vld [vmem:[%s5883 + $0x4] sm:$0xf]
      %v5886 = vld [vmem:[%s5883 + $0x8] sm:$0xf]
      %v5887 = vld [vmem:[%s5883 + $0xc] sm:$0xf]
      %v5920 = vunpack.c.l.b16 %v5851
      %v5921 = vunpack.c.l.b16 %v5852
      %v5922 = vunpack.c.l.b16 %v5853
      %v5923 = vunpack.c.l.b16 %v5854
      %v5924 = vunpack.c.l.b16 %v5855
      %v5925 = vunpack.c.l.b16 %v5856
      %v5926 = vunpack.c.l.b16 %v5857
      %v5927 = vunpack.c.l.b16 %v5858
      %v5928 = vunpack.c.l.b16 %v5859
      %v5929 = vunpack.c.l.b16 %v5860
      %v5930 = vunpack.c.l.b16 %v5861
      %v5931 = vunpack.c.l.b16 %v5862
      %v5932 = vunpack.c.l.b16 %v5863
      %v5933 = vunpack.c.l.b16 %v5864
      %v5934 = vunpack.c.l.b16 %v5865
      %v5935 = vunpack.c.l.b16 %v5866
      %v5936 = vunpack.c.l.b16 %v5867
      %v5937 = vunpack.c.l.b16 %v5868
      %v5938 = vunpack.c.l.b16 %v5869
      %v5939 = vunpack.c.l.b16 %v5870
      %v5940 = vunpack.c.l.b16 %v5871
      %v5941 = vunpack.c.l.b16 %v5872
      %v5942 = vunpack.c.l.b16 %v5873
      %v5943 = vunpack.c.l.b16 %v5874
      %v5944 = vunpack.c.l.b16 %v5875
      %v5945 = vunpack.c.l.b16 %v5876
      %v5946 = vunpack.c.l.b16 %v5877
      %v5947 = vunpack.c.l.b16 %v5878
      %v5948 = vunpack.c.l.b16 %v5879
      %v5949 = vunpack.c.l.b16 %v5880
      %v5950 = vunpack.c.l.b16 %v5881
      %v5951 = vunpack.c.l.b16 %v5882
      %v5952 = vpack.c.b16 %v5921, %v5920
      %v5953 = vpack.c.b16 %v5923, %v5922
      %v5954 = vpack.c.b16 %v5925, %v5924
      %v5955 = vpack.c.b16 %v5927, %v5926
      %v5956 = vpack.c.b16 %v5929, %v5928
      %v5957 = vpack.c.b16 %v5931, %v5930
      %v5958 = vpack.c.b16 %v5933, %v5932
      %v5959 = vpack.c.b16 %v5935, %v5934
      %v5960 = vpack.c.b16 %v5937, %v5936
      %v5961 = vpack.c.b16 %v5939, %v5938
      %v5962 = vpack.c.b16 %v5941, %v5940
      %v5963 = vpack.c.b16 %v5943, %v5942
      %v5964 = vpack.c.b16 %v5945, %v5944
      %v5965 = vpack.c.b16 %v5947, %v5946
      %v5966 = vpack.c.b16 %v5949, %v5948
      %v5967 = vpack.c.b16 %v5951, %v5950
      %v5972 = vunpack.c.l.b16 %v5884
      %v5973 = vunpack.c.l.b16 %v5885
      %v5974 = vunpack.c.l.b16 %v5886
      %v5975 = vunpack.c.l.b16 %v5887
      %v5976 = vpack.c.b16 %v5973, %v5972
      %v5977 = vpack.c.b16 %v5975, %v5974
      %v5981 = vsel %vm1657, %v5952, 0
      %v5984 = vsel %vm1657, %v5953, 0
      %v5987 = vsel %vm1657, %v5954, 0
      %v5990 = vsel %vm1657, %v5955, 0
      %v5993 = vsel %vm1657, %v5956, 0
      %v5996 = vsel %vm1657, %v5957, 0
      %v5999 = vsel %vm1657, %v5958, 0
      %v6002 = vsel %vm1657, %v5959, 0
      %v6005 = vsel %vm1657, %v5960, 0
      %v6008 = vsel %vm1657, %v5961, 0
      %v6011 = vsel %vm1657, %v5962, 0
      %v6014 = vsel %vm1657, %v5963, 0
      %v6017 = vsel %vm1657, %v5964, 0
      %v6020 = vsel %vm1657, %v5965, 0
      %v6023 = vsel %vm1657, %v5966, 0
      %v6026 = vsel %vm1657, %v5967, 0
      %6028 = vmatprep.subr.bf16.mxu0 0
      %6029 = vmatpush1.bf16.msra.mxu0 0
      %6030 = vmatprep.subr.bf16.mxu0 0
      %6031 = vmatpush1.bf16.msra.mxu0 0
      %6032 = vmatprep.subr.bf16.mxu0 0
      %6033 = vmatpush1.bf16.msra.mxu0 0
      %6034 = vmatprep.subr.bf16.mxu0 0
      %6035 = vmatpush1.bf16.msra.mxu0 0
      %6036 = vmatprep.subr.bf16.mxu0 0
      %6037 = vmatpush1.bf16.msra.mxu0 0
      %6038 = vmatprep.subr.bf16.mxu0 0
      %6039 = vmatpush1.bf16.msra.mxu0 0
      %6040 = vmatprep.subr.bf16.mxu0 0
      %6041 = vmatpush1.bf16.msra.mxu0 %v5977
      %6042 = vmatprep.subr.bf16.mxu0 0
      %6043 = vmatpush1.bf16.msra.mxu0 %v5976
      %6044 = vmatprep.subr.bf16.mxu0 0
      %6045 = vmatpush2.bf16.msra.mxu0 0
      %6046 = vmatprep.subr.bf16.mxu0 0
      %6047 = vmatpush2.bf16.msra.mxu0 0
      %6048 = vmatprep.subr.bf16.mxu0 0
      %6049 = vmatpush2.bf16.msra.mxu0 0
      %6050 = vmatprep.subr.bf16.mxu0 0
      %6051 = vmatpush2.bf16.msra.mxu0 0
      %6052 = vmatprep.subr.bf16.mxu0 0
      %6053 = vmatpush2.bf16.msra.mxu0 0
      %6054 = vmatprep.subr.bf16.mxu0 0
      %6055 = vmatpush2.bf16.msra.mxu0 0
      %6056 = vmatprep.subr.bf16.mxu0 0
      %6057 = vmatpush2.bf16.msra.mxu0 0
      %6058 = vmatprep.subr.bf16.mxu0 0
      %6059 = vmatpush2.bf16.msra.mxu0 0
      %6060 = vmatprep.mubr.bf16.mxu0 0
      %6061 = vmatmul.mubr.bf16.gmra.mxu0 %v5981
      %v6062 = vpop.f32.mrf.mxu0
      %v6063 = vadd.f32 0.0, %v6062
      %v6064 = vpop.f32.mrf.mxu0
      %v6065 = vpop.f32.mrf.mxu0
      %v6066 = vadd.f32 0.0, %v6065
      %v6067 = vpop.f32.mrf.mxu0
      %6068 = vmatprep.mubr.bf16.mxu0 0
      %6069 = vmatmul.mubr.bf16.gmra.mxu0 %v5984
      %v6070 = vpop.f32.mrf.mxu0
      %v6071 = vadd.f32 0.0, %v6070
      %v6072 = vpop.f32.mrf.mxu0
      %v6073 = vpop.f32.mrf.mxu0
      %v6074 = vadd.f32 0.0, %v6073
      %v6075 = vpop.f32.mrf.mxu0
      %6076 = vmatprep.mubr.bf16.mxu0 0
      %6077 = vmatmul.mubr.bf16.gmra.mxu0 %v5987
      %v6078 = vpop.f32.mrf.mxu0
      %v6079 = vadd.f32 0.0, %v6078
      %v6080 = vpop.f32.mrf.mxu0
      %v6081 = vpop.f32.mrf.mxu0
      %v6082 = vadd.f32 0.0, %v6081
      %v6083 = vpop.f32.mrf.mxu0
      %6084 = vmatprep.mubr.bf16.mxu0 0
      %6085 = vmatmul.mubr.bf16.gmra.mxu0 %v5990
      %v6086 = vpop.f32.mrf.mxu0
      %v6087 = vadd.f32 0.0, %v6086
      %v6088 = vpop.f32.mrf.mxu0
      %v6089 = vpop.f32.mrf.mxu0
      %v6090 = vadd.f32 0.0, %v6089
      %v6091 = vpop.f32.mrf.mxu0
      %6092 = vmatprep.mubr.bf16.mxu0 0
      %6093 = vmatmul.mubr.bf16.gmra.mxu0 %v5993
      %v6094 = vpop.f32.mrf.mxu0
      %v6095 = vadd.f32 0.0, %v6094
      %v6096 = vpop.f32.mrf.mxu0
      %v6097 = vpop.f32.mrf.mxu0
      %v6098 = vadd.f32 0.0, %v6097
      %v6099 = vpop.f32.mrf.mxu0
      %6100 = vmatprep.mubr.bf16.mxu0 0
      %6101 = vmatmul.mubr.bf16.gmra.mxu0 %v5996
      %v6102 = vpop.f32.mrf.mxu0
      %v6103 = vadd.f32 0.0, %v6102
      %v6104 = vpop.f32.mrf.mxu0
      %v6105 = vpop.f32.mrf.mxu0
      %v6106 = vadd.f32 0.0, %v6105
      %v6107 = vpop.f32.mrf.mxu0
      %6108 = vmatprep.mubr.bf16.mxu0 0
      %6109 = vmatmul.mubr.bf16.gmra.mxu0 %v5999
      %v6110 = vpop.f32.mrf.mxu0
      %v6111 = vadd.f32 0.0, %v6110
      %v6112 = vpop.f32.mrf.mxu0
      %v6113 = vpop.f32.mrf.mxu0
      %v6114 = vadd.f32 0.0, %v6113
      %v6115 = vpop.f32.mrf.mxu0
      %6116 = vmatprep.mubr.bf16.mxu0 0
      %6117 = vmatmul.mubr.bf16.gmra.mxu0 %v6002
      %v6118 = vpop.f32.mrf.mxu0
      %v6119 = vadd.f32 0.0, %v6118
      %v6120 = vpop.f32.mrf.mxu0
      %v6121 = vpop.f32.mrf.mxu0
      %v6122 = vadd.f32 0.0, %v6121
      %v6123 = vpop.f32.mrf.mxu0
      %6124 = vmatprep.mubr.bf16.mxu0 0
      %6125 = vmatmul.mubr.bf16.gmra.mxu0 %v6005
      %v6126 = vpop.f32.mrf.mxu0
      %v6127 = vadd.f32 0.0, %v6126
      %v6128 = vpop.f32.mrf.mxu0
      %v6129 = vpop.f32.mrf.mxu0
      %v6130 = vadd.f32 0.0, %v6129
      %v6131 = vpop.f32.mrf.mxu0
      %6132 = vmatprep.mubr.bf16.mxu0 0
      %6133 = vmatmul.mubr.bf16.gmra.mxu0 %v6008
      %v6134 = vpop.f32.mrf.mxu0
      %v6135 = vadd.f32 0.0, %v6134
      %v6136 = vpop.f32.mrf.mxu0
      %v6137 = vpop.f32.mrf.mxu0
      %v6138 = vadd.f32 0.0, %v6137
      %v6139 = vpop.f32.mrf.mxu0
      %6140 = vmatprep.mubr.bf16.mxu0 0
      %6141 = vmatmul.mubr.bf16.gmra.mxu0 %v6011
      %v6142 = vpop.f32.mrf.mxu0
      %v6143 = vadd.f32 0.0, %v6142
      %v6144 = vpop.f32.mrf.mxu0
      %v6145 = vpop.f32.mrf.mxu0
      %v6146 = vadd.f32 0.0, %v6145
      %v6147 = vpop.f32.mrf.mxu0
      %6148 = vmatprep.mubr.bf16.mxu0 0
      %6149 = vmatmul.mubr.bf16.gmra.mxu0 %v6014
      %v6150 = vpop.f32.mrf.mxu0
      %v6151 = vadd.f32 0.0, %v6150
      %v6152 = vpop.f32.mrf.mxu0
      %v6153 = vpop.f32.mrf.mxu0
      %v6154 = vadd.f32 0.0, %v6153
      %v6155 = vpop.f32.mrf.mxu0
      %6156 = vmatprep.mubr.bf16.mxu0 0
      %6157 = vmatmul.mubr.bf16.gmra.mxu0 %v6017
      %v6158 = vpop.f32.mrf.mxu0
      %v6159 = vadd.f32 0.0, %v6158
      %v6160 = vpop.f32.mrf.mxu0
      %v6161 = vpop.f32.mrf.mxu0
      %v6162 = vadd.f32 0.0, %v6161
      %v6163 = vpop.f32.mrf.mxu0
      %6164 = vmatprep.mubr.bf16.mxu0 0
      %6165 = vmatmul.mubr.bf16.gmra.mxu0 %v6020
      %v6166 = vpop.f32.mrf.mxu0
      %v6167 = vadd.f32 0.0, %v6166
      %v6168 = vpop.f32.mrf.mxu0
      %v6169 = vpop.f32.mrf.mxu0
      %v6170 = vadd.f32 0.0, %v6169
      %v6171 = vpop.f32.mrf.mxu0
      %6172 = vmatprep.mubr.bf16.mxu0 0
      %6173 = vmatmul.mubr.bf16.gmra.mxu0 %v6023
      %v6174 = vpop.f32.mrf.mxu0
      %v6175 = vadd.f32 0.0, %v6174
      %v6176 = vpop.f32.mrf.mxu0
      %v6177 = vpop.f32.mrf.mxu0
      %v6178 = vadd.f32 0.0, %v6177
      %v6179 = vpop.f32.mrf.mxu0
      %6180 = vmatprep.mubr.bf16.mxu0 0
      %6181 = vmatmul.mubr.bf16.gmra.mxu0 %v6026
      %v6182 = vpop.f32.mrf.mxu0
      %v6183 = vadd.f32 0.0, %v6182
      %v6184 = vpop.f32.mrf.mxu0
      %v6185 = vpop.f32.mrf.mxu0
      %v6186 = vadd.f32 0.0, %v6185
      %v6187 = vpop.f32.mrf.mxu0
      %6188 = vdwg.mxu0
      %v6189 = vsel %vm1867, %v6063, 0.0
      %v6190 = vsel %vm1867, %v6066, 0.0
      %v6191 = vadd.f32 %v6189, %v6190
      %v6192 = vsel %vm1867, %v6071, 0.0
      %v6193 = vadd.f32 %v6191, %v6192
      %v6194 = vsel %vm1867, %v6074, 0.0
      %v6195 = vadd.f32 %v6193, %v6194
      %v6196 = vsel %vm1867, %v6079, 0.0
      %v6197 = vadd.f32 %v6195, %v6196
      %v6198 = vsel %vm1867, %v6082, 0.0
      %v6199 = vadd.f32 %v6197, %v6198
      %v6200 = vsel %vm1867, %v6087, 0.0
      %v6201 = vadd.f32 %v6199, %v6200
      %v6202 = vsel %vm1867, %v6090, 0.0
      %v6203 = vadd.f32 %v6201, %v6202
      %v6204 = vsel %vm1867, %v6095, 0.0
      %v6205 = vadd.f32 %v6203, %v6204
      %v6206 = vsel %vm1867, %v6098, 0.0
      %v6207 = vadd.f32 %v6205, %v6206
      %v6208 = vsel %vm1867, %v6103, 0.0
      %v6209 = vadd.f32 %v6207, %v6208
      %v6210 = vsel %vm1867, %v6106, 0.0
      %v6211 = vadd.f32 %v6209, %v6210
      %v6212 = vsel %vm1867, %v6111, 0.0
      %v6213 = vadd.f32 %v6211, %v6212
      %v6214 = vsel %vm1867, %v6114, 0.0
      %v6215 = vadd.f32 %v6213, %v6214
      %v6216 = vsel %vm1867, %v6119, 0.0
      %v6217 = vadd.f32 %v6215, %v6216
      %v6218 = vsel %vm1867, %v6122, 0.0
      %v6219 = vadd.f32 %v6217, %v6218
      %v6220 = vsel %vm1867, %v6127, 0.0
      %v6221 = vadd.f32 %v6219, %v6220
      %v6222 = vsel %vm1867, %v6130, 0.0
      %v6223 = vadd.f32 %v6221, %v6222
      %v6224 = vsel %vm1867, %v6135, 0.0
      %v6225 = vadd.f32 %v6223, %v6224
      %v6226 = vsel %vm1867, %v6138, 0.0
      %v6227 = vadd.f32 %v6225, %v6226
      %v6228 = vsel %vm1867, %v6143, 0.0
      %v6229 = vadd.f32 %v6227, %v6228
      %v6230 = vsel %vm1867, %v6146, 0.0
      %v6231 = vadd.f32 %v6229, %v6230
      %v6232 = vsel %vm1867, %v6151, 0.0
      %v6233 = vadd.f32 %v6231, %v6232
      %v6234 = vsel %vm1867, %v6154, 0.0
      %v6235 = vadd.f32 %v6233, %v6234
      %v6236 = vsel %vm1867, %v6159, 0.0
      %v6237 = vadd.f32 %v6235, %v6236
      %v6238 = vsel %vm1867, %v6162, 0.0
      %v6239 = vadd.f32 %v6237, %v6238
      %v6240 = vsel %vm1867, %v6167, 0.0
      %v6241 = vadd.f32 %v6239, %v6240
      %v6242 = vsel %vm1867, %v6170, 0.0
      %v6243 = vadd.f32 %v6241, %v6242
      %v6244 = vsel %vm1867, %v6175, 0.0
      %v6245 = vadd.f32 %v6243, %v6244
      %v6246 = vsel %vm1867, %v6178, 0.0
      %v6247 = vadd.f32 %v6245, %v6246
      %v6248 = vsel %vm1867, %v6183, 0.0
      %v6249 = vadd.f32 %v6247, %v6248
      %v6250 = vsel %vm1867, %v6186, 0.0
      %v6251 = vadd.f32 %v6249, %v6250
      %v6252 = vrot.slane %v6251, 4
      %v6253 = vadd.f32 %v6251, %v6252
      %v6254 = vrot.slane %v6253, 2
      %v6255 = vadd.f32 %v6253, %v6254
      %v6256 = vrot.slane %v6255, 1
      %v6257 = vadd.f32 %v6255, %v6256
      %v6258 = vadd.f32 %v4210, %v6257
      %v6259 = vmul.f32 %v6063, %v6063
      %v6260 = vmul.f32 %v6066, %v6066
      %v6261 = vmul.f32 %v6071, %v6071
      %v6262 = vmul.f32 %v6074, %v6074
      %v6263 = vmul.f32 %v6079, %v6079
      %v6264 = vmul.f32 %v6082, %v6082
      %v6265 = vmul.f32 %v6087, %v6087
      %v6266 = vmul.f32 %v6090, %v6090
      %v6267 = vmul.f32 %v6095, %v6095
      %v6268 = vmul.f32 %v6098, %v6098
      %v6269 = vmul.f32 %v6103, %v6103
      %v6270 = vmul.f32 %v6106, %v6106
      %v6271 = vmul.f32 %v6111, %v6111
      %v6272 = vmul.f32 %v6114, %v6114
      %v6273 = vmul.f32 %v6119, %v6119
      %v6274 = vmul.f32 %v6122, %v6122
      %v6275 = vmul.f32 %v6127, %v6127
      %v6276 = vmul.f32 %v6130, %v6130
      %v6277 = vmul.f32 %v6135, %v6135
      %v6278 = vmul.f32 %v6138, %v6138
      %v6279 = vmul.f32 %v6143, %v6143
      %v6280 = vmul.f32 %v6146, %v6146
      %v6281 = vmul.f32 %v6151, %v6151
      %v6282 = vmul.f32 %v6154, %v6154
      %v6283 = vmul.f32 %v6159, %v6159
      %v6284 = vmul.f32 %v6162, %v6162
      %v6285 = vmul.f32 %v6167, %v6167
      %v6286 = vmul.f32 %v6170, %v6170
      %v6287 = vmul.f32 %v6175, %v6175
      %v6288 = vmul.f32 %v6178, %v6178
      %v6289 = vmul.f32 %v6183, %v6183
      %v6290 = vmul.f32 %v6186, %v6186
      %v6291 = vsel %vm1867, %v6259, 0.0
      %v6292 = vsel %vm1867, %v6260, 0.0
      %v6293 = vadd.f32 %v6291, %v6292
      %v6294 = vsel %vm1867, %v6261, 0.0
      %v6295 = vadd.f32 %v6293, %v6294
      %v6296 = vsel %vm1867, %v6262, 0.0
      %v6297 = vadd.f32 %v6295, %v6296
      %v6298 = vsel %vm1867, %v6263, 0.0
      %v6299 = vadd.f32 %v6297, %v6298
      %v6300 = vsel %vm1867, %v6264, 0.0
      %v6301 = vadd.f32 %v6299, %v6300
      %v6302 = vsel %vm1867, %v6265, 0.0
      %v6303 = vadd.f32 %v6301, %v6302
      %v6304 = vsel %vm1867, %v6266, 0.0
      %v6305 = vadd.f32 %v6303, %v6304
      %v6306 = vsel %vm1867, %v6267, 0.0
      %v6307 = vadd.f32 %v6305, %v6306
      %v6308 = vsel %vm1867, %v6268, 0.0
      %v6309 = vadd.f32 %v6307, %v6308
      %v6310 = vsel %vm1867, %v6269, 0.0
      %v6311 = vadd.f32 %v6309, %v6310
      %v6312 = vsel %vm1867, %v6270, 0.0
      %v6313 = vadd.f32 %v6311, %v6312
      %v6314 = vsel %vm1867, %v6271, 0.0
      %v6315 = vadd.f32 %v6313, %v6314
      %v6316 = vsel %vm1867, %v6272, 0.0
      %v6317 = vadd.f32 %v6315, %v6316
      %v6318 = vsel %vm1867, %v6273, 0.0
      %v6319 = vadd.f32 %v6317, %v6318
      %v6320 = vsel %vm1867, %v6274, 0.0
      %v6321 = vadd.f32 %v6319, %v6320
      %v6322 = vsel %vm1867, %v6275, 0.0
      %v6323 = vadd.f32 %v6321, %v6322
      %v6324 = vsel %vm1867, %v6276, 0.0
      %v6325 = vadd.f32 %v6323, %v6324
      %v6326 = vsel %vm1867, %v6277, 0.0
      %v6327 = vadd.f32 %v6325, %v6326
      %v6328 = vsel %vm1867, %v6278, 0.0
      %v6329 = vadd.f32 %v6327, %v6328
      %v6330 = vsel %vm1867, %v6279, 0.0
      %v6331 = vadd.f32 %v6329, %v6330
      %v6332 = vsel %vm1867, %v6280, 0.0
      %v6333 = vadd.f32 %v6331, %v6332
      %v6334 = vsel %vm1867, %v6281, 0.0
      %v6335 = vadd.f32 %v6333, %v6334
      %v6336 = vsel %vm1867, %v6282, 0.0
      %v6337 = vadd.f32 %v6335, %v6336
      %v6338 = vsel %vm1867, %v6283, 0.0
      %v6339 = vadd.f32 %v6337, %v6338
      %v6340 = vsel %vm1867, %v6284, 0.0
      %v6341 = vadd.f32 %v6339, %v6340
      %v6342 = vsel %vm1867, %v6285, 0.0
      %v6343 = vadd.f32 %v6341, %v6342
      %v6344 = vsel %vm1867, %v6286, 0.0
      %v6345 = vadd.f32 %v6343, %v6344
      %v6346 = vsel %vm1867, %v6287, 0.0
      %v6347 = vadd.f32 %v6345, %v6346
      %v6348 = vsel %vm1867, %v6288, 0.0
      %v6349 = vadd.f32 %v6347, %v6348
      %v6350 = vsel %vm1867, %v6289, 0.0
      %v6351 = vadd.f32 %v6349, %v6350
      %v6352 = vsel %vm1867, %v6290, 0.0
      %v6353 = vadd.f32 %v6351, %v6352
      %v6354 = vrot.slane %v6353, 4
      %v6355 = vadd.f32 %v6353, %v6354
      %v6356 = vrot.slane %v6355, 2
      %v6357 = vadd.f32 %v6355, %v6356
      %v6358 = vrot.slane %v6357, 1
      %v6359 = vadd.f32 %v6357, %v6358
      %v6360 = vadd.f32 %v4312, %v6359
      %6393 = vrot.lane.b32.xlu0 %v6063, 8
      %v6394 = vpop.permute.xlu0 %6393
      %6395 = vrot.lane.b32.xlu0 %v6066, 8
      %v6396 = vpop.permute.xlu0 %6395
      %6397 = vrot.lane.b32.xlu0 %v6071, 8
      %v6398 = vpop.permute.xlu0 %6397
      %6399 = vrot.lane.b32.xlu0 %v6074, 8
      %v6400 = vpop.permute.xlu0 %6399
      %6401 = vrot.lane.b32.xlu0 %v6079, 8
      %v6402 = vpop.permute.xlu0 %6401
      %6403 = vrot.lane.b32.xlu0 %v6082, 8
      %v6404 = vpop.permute.xlu0 %6403
      %6405 = vrot.lane.b32.xlu0 %v6087, 8
      %v6406 = vpop.permute.xlu0 %6405
      %6407 = vrot.lane.b32.xlu0 %v6090, 8
      %v6408 = vpop.permute.xlu0 %6407
      %6409 = vrot.lane.b32.xlu0 %v6095, 8
      %v6410 = vpop.permute.xlu0 %6409
      %6411 = vrot.lane.b32.xlu0 %v6098, 8
      %v6412 = vpop.permute.xlu0 %6411
      %6413 = vrot.lane.b32.xlu0 %v6103, 8
      %v6414 = vpop.permute.xlu0 %6413
      %6415 = vrot.lane.b32.xlu0 %v6106, 8
      %v6416 = vpop.permute.xlu0 %6415
      %6417 = vrot.lane.b32.xlu0 %v6111, 8
      %v6418 = vpop.permute.xlu0 %6417
      %6419 = vrot.lane.b32.xlu0 %v6114, 8
      %v6420 = vpop.permute.xlu0 %6419
      %6421 = vrot.lane.b32.xlu0 %v6119, 8
      %v6422 = vpop.permute.xlu0 %6421
      %6423 = vrot.lane.b32.xlu0 %v6122, 8
      %v6424 = vpop.permute.xlu0 %6423
      %6425 = vrot.lane.b32.xlu0 %v6127, 8
      %v6426 = vpop.permute.xlu0 %6425
      %6427 = vrot.lane.b32.xlu0 %v6130, 8
      %v6428 = vpop.permute.xlu0 %6427
      %6429 = vrot.lane.b32.xlu0 %v6135, 8
      %v6430 = vpop.permute.xlu0 %6429
      %6431 = vrot.lane.b32.xlu0 %v6138, 8
      %v6432 = vpop.permute.xlu0 %6431
      %6433 = vrot.lane.b32.xlu0 %v6143, 8
      %v6434 = vpop.permute.xlu0 %6433
      %6435 = vrot.lane.b32.xlu0 %v6146, 8
      %v6436 = vpop.permute.xlu0 %6435
      %6437 = vrot.lane.b32.xlu0 %v6151, 8
      %v6438 = vpop.permute.xlu0 %6437
      %6439 = vrot.lane.b32.xlu0 %v6154, 8
      %v6440 = vpop.permute.xlu0 %6439
      %6441 = vrot.lane.b32.xlu0 %v6159, 8
      %v6442 = vpop.permute.xlu0 %6441
      %6443 = vrot.lane.b32.xlu0 %v6162, 8
      %v6444 = vpop.permute.xlu0 %6443
      %6445 = vrot.lane.b32.xlu0 %v6167, 8
      %v6446 = vpop.permute.xlu0 %6445
      %6447 = vrot.lane.b32.xlu0 %v6170, 8
      %v6448 = vpop.permute.xlu0 %6447
      %6449 = vrot.lane.b32.xlu0 %v6175, 8
      %v6450 = vpop.permute.xlu0 %6449
      %6451 = vrot.lane.b32.xlu0 %v6178, 8
      %v6452 = vpop.permute.xlu0 %6451
      %6453 = vrot.lane.b32.xlu0 %v6183, 8
      %v6454 = vpop.permute.xlu0 %6453
      %6455 = vrot.lane.b32.xlu0 %v6186, 8
      %v6456 = vpop.permute.xlu0 %6455
      %vm6489 = vcmask 97344
      %6490 = vst.msk [vmem:[%s143] sm:$0xff] %vm6489, %v6394
      %6491 = vst.msk [vmem:[%s143 + $0x8] sm:$0xff] %vm6489, %v6396
      %6492 = vst.msk [vmem:[%s143 + $0x10] sm:$0xff] %vm6489, %v6398
      %6493 = vst.msk [vmem:[%s143 + $0x18] sm:$0xff] %vm6489, %v6400
      %6494 = vst.msk [vmem:[%s143 + $0x20] sm:$0xff] %vm6489, %v6402
      %6495 = vst.msk [vmem:[%s143 + $0x28] sm:$0xff] %vm6489, %v6404
      %6496 = vst.msk [vmem:[%s143 + $0x30] sm:$0xff] %vm6489, %v6406
      %6497 = vst.msk [vmem:[%s143 + $0x38] sm:$0xff] %vm6489, %v6408
      %6498 = vst.msk [vmem:[%s143 + $0x40] sm:$0xff] %vm6489, %v6410
      %6499 = vst.msk [vmem:[%s143 + $0x48] sm:$0xff] %vm6489, %v6412
      %6500 = vst.msk [vmem:[%s143 + $0x50] sm:$0xff] %vm6489, %v6414
      %6501 = vst.msk [vmem:[%s143 + $0x58] sm:$0xff] %vm6489, %v6416
      %6502 = vst.msk [vmem:[%s143 + $0x60] sm:$0xff] %vm6489, %v6418
      %6503 = vst.msk [vmem:[%s143 + $0x68] sm:$0xff] %vm6489, %v6420
      %6504 = vst.msk [vmem:[%s143 + $0x70] sm:$0xff] %vm6489, %v6422
      %6505 = vst.msk [vmem:[%s143 + $0x78] sm:$0xff] %vm6489, %v6424
      %6506 = vst.msk [vmem:[%s143 + $0x80] sm:$0xff] %vm6489, %v6426
      %6507 = vst.msk [vmem:[%s143 + $0x88] sm:$0xff] %vm6489, %v6428
      %6508 = vst.msk [vmem:[%s143 + $0x90] sm:$0xff] %vm6489, %v6430
      %6509 = vst.msk [vmem:[%s143 + $0x98] sm:$0xff] %vm6489, %v6432
      %6510 = vst.msk [vmem:[%s143 + $0xa0] sm:$0xff] %vm6489, %v6434
      %6511 = vst.msk [vmem:[%s143 + $0xa8] sm:$0xff] %vm6489, %v6436
      %6512 = vst.msk [vmem:[%s143 + $0xb0] sm:$0xff] %vm6489, %v6438
      %6513 = vst.msk [vmem:[%s143 + $0xb8] sm:$0xff] %vm6489, %v6440
      %6514 = vst.msk [vmem:[%s143 + $0xc0] sm:$0xff] %vm6489, %v6442
      %6515 = vst.msk [vmem:[%s143 + $0xc8] sm:$0xff] %vm6489, %v6444
      %6516 = vst.msk [vmem:[%s143 + $0xd0] sm:$0xff] %vm6489, %v6446
      %6517 = vst.msk [vmem:[%s143 + $0xd8] sm:$0xff] %vm6489, %v6448
      %6518 = vst.msk [vmem:[%s143 + $0xe0] sm:$0xff] %vm6489, %v6450
      %6519 = vst.msk [vmem:[%s143 + $0xe8] sm:$0xff] %vm6489, %v6452
      %6520 = vst.msk [vmem:[%s143 + $0xf0] sm:$0xff] %vm6489, %v6454
      %6521 = vst.msk [vmem:[%s143 + $0xf8] sm:$0xff] %vm6489, %v6456
      %v6522 = vld [vmem:[%s774] sm:$0xf]
      %v6523 = vld [vmem:[%s774 + $0x4] sm:$0xf]
      %v6524 = vld [vmem:[%s774 + $0x8] sm:$0x1]
      %v6525 = vld [vmem:[%s774 + $0xc] sm:$0xf]
      %v6526 = vld [vmem:[%s774 + $0x10] sm:$0xf]
      %v6527 = vld [vmem:[%s774 + $0x14] sm:$0x1]
      %v6528 = vld [vmem:[%s774 + $0x18] sm:$0xf]
      %v6529 = vld [vmem:[%s774 + $0x1c] sm:$0xf]
      %v6530 = vld [vmem:[%s774 + $0x20] sm:$0x1]
      %v6531 = vld [vmem:[%s774 + $0x24] sm:$0xf]
      %v6532 = vld [vmem:[%s774 + $0x28] sm:$0xf]
      %v6533 = vld [vmem:[%s774 + $0x2c] sm:$0x1]
      %v6534 = vld [vmem:[%s774 + $0x30] sm:$0xf]
      %v6535 = vld [vmem:[%s774 + $0x34] sm:$0xf]
      %v6536 = vld [vmem:[%s774 + $0x38] sm:$0x1]
      %v6537 = vld [vmem:[%s774 + $0x3c] sm:$0xf]
      %v6538 = vld [vmem:[%s774 + $0x40] sm:$0xf]
      %v6539 = vld [vmem:[%s774 + $0x44] sm:$0x1]
      %v6540 = vld [vmem:[%s774 + $0x48] sm:$0xf]
      %v6541 = vld [vmem:[%s774 + $0x4c] sm:$0xf]
      %v6542 = vld [vmem:[%s774 + $0x50] sm:$0x1]
      %v6543 = vld [vmem:[%s774 + $0x54] sm:$0xf]
      %v6544 = vld [vmem:[%s774 + $0x58] sm:$0xf]
      %v6545 = vld [vmem:[%s774 + $0x5c] sm:$0x1]
      %v6546 = vld [vmem:[%s774 + $0x60] sm:$0xf]
      %v6547 = vld [vmem:[%s774 + $0x64] sm:$0xf]
      %v6548 = vld [vmem:[%s774 + $0x68] sm:$0x1]
      %v6549 = vld [vmem:[%s774 + $0x6c] sm:$0xf]
      %v6550 = vld [vmem:[%s774 + $0x70] sm:$0xf]
      %v6551 = vld [vmem:[%s774 + $0x74] sm:$0x1]
      %v6552 = vld [vmem:[%s774 + $0x78] sm:$0xf]
      %v6553 = vld [vmem:[%s774 + $0x7c] sm:$0xf]
      %v6554 = vld [vmem:[%s774 + $0x80] sm:$0x1]
      %v6555 = vld [vmem:[%s774 + $0x84] sm:$0xf]
      %v6556 = vld [vmem:[%s774 + $0x88] sm:$0xf]
      %v6557 = vld [vmem:[%s774 + $0x8c] sm:$0x1]
      %v6558 = vld [vmem:[%s774 + $0x90] sm:$0xf]
      %v6559 = vld [vmem:[%s774 + $0x94] sm:$0xf]
      %v6560 = vld [vmem:[%s774 + $0x98] sm:$0x1]
      %v6561 = vld [vmem:[%s774 + $0x9c] sm:$0xf]
      %v6562 = vld [vmem:[%s774 + $0xa0] sm:$0xf]
      %v6563 = vld [vmem:[%s774 + $0xa4] sm:$0x1]
      %v6564 = vld [vmem:[%s774 + $0xa8] sm:$0xf]
      %v6565 = vld [vmem:[%s774 + $0xac] sm:$0xf]
      %v6566 = vld [vmem:[%s774 + $0xb0] sm:$0x1]
      %v6567 = vld [vmem:[%s774 + $0xb4] sm:$0xf]
      %v6568 = vld [vmem:[%s774 + $0xb8] sm:$0xf]
      %v6569 = vld [vmem:[%s774 + $0xbc] sm:$0x1]
      %v6571 = vshrl.u32 %v6522, 16
      %v6573 = vrot.slane %v6571, 4
      %v6574 = vshll.u32 %v6522, 16
      %v6576 = vrot.slane %v6574, 5
      %v6577 = vor.u32 %v6573, %v6576
      %v6578 = vrot.slane %v6577, 4
      %v6580 = vshll.u32 %v6523, 16
      %v6582 = vrot.slane %v6580, 5
      %v6583 = vsel %vm260, %v6578, %v6582
      %v6584 = vshrl.u32 %v6523, 16
      %v6586 = vrot.slane %v6584, 4
      %v6587 = vor.u32 %v6586, %v6582
      %v6588 = vrot.slane %v6587, 4
      %v6590 = vshll.u32 %v6524, 16
      %v6592 = vrot.slane %v6590, 5
      %v6593 = vsel %vm260, %v6588, %v6592
      %v6595 = vshrl.u32 %v6525, 16
      %v6597 = vrot.slane %v6595, 4
      %v6598 = vshll.u32 %v6525, 16
      %v6600 = vrot.slane %v6598, 5
      %v6601 = vor.u32 %v6597, %v6600
      %v6602 = vrot.slane %v6601, 4
      %v6604 = vshll.u32 %v6526, 16
      %v6606 = vrot.slane %v6604, 5
      %v6607 = vsel %vm260, %v6602, %v6606
      %v6608 = vshrl.u32 %v6526, 16
      %v6610 = vrot.slane %v6608, 4
      %v6611 = vor.u32 %v6610, %v6606
      %v6612 = vrot.slane %v6611, 4
      %v6614 = vshll.u32 %v6527, 16
      %v6616 = vrot.slane %v6614, 5
      %v6617 = vsel %vm260, %v6612, %v6616
      %v6619 = vshrl.u32 %v6528, 16
      %v6621 = vrot.slane %v6619, 4
      %v6622 = vshll.u32 %v6528, 16
      %v6624 = vrot.slane %v6622, 5
      %v6625 = vor.u32 %v6621, %v6624
      %v6626 = vrot.slane %v6625, 4
      %v6628 = vshll.u32 %v6529, 16
      %v6630 = vrot.slane %v6628, 5
      %v6631 = vsel %vm260, %v6626, %v6630
      %v6632 = vshrl.u32 %v6529, 16
      %v6634 = vrot.slane %v6632, 4
      %v6635 = vor.u32 %v6634, %v6630
      %v6636 = vrot.slane %v6635, 4
      %v6638 = vshll.u32 %v6530, 16
      %v6640 = vrot.slane %v6638, 5
      %v6641 = vsel %vm260, %v6636, %v6640
      %v6643 = vshrl.u32 %v6531, 16
      %v6645 = vrot.slane %v6643, 4
      %v6646 = vshll.u32 %v6531, 16
      %v6648 = vrot.slane %v6646, 5
      %v6649 = vor.u32 %v6645, %v6648
      %v6650 = vrot.slane %v6649, 4
      %v6652 = vshll.u32 %v6532, 16
      %v6654 = vrot.slane %v6652, 5
      %v6655 = vsel %vm260, %v6650, %v6654
      %v6656 = vshrl.u32 %v6532, 16
      %v6658 = vrot.slane %v6656, 4
      %v6659 = vor.u32 %v6658, %v6654
      %v6660 = vrot.slane %v6659, 4
      %v6662 = vshll.u32 %v6533, 16
      %v6664 = vrot.slane %v6662, 5
      %v6665 = vsel %vm260, %v6660, %v6664
      %v6667 = vshrl.u32 %v6534, 16
      %v6669 = vrot.slane %v6667, 4
      %v6670 = vshll.u32 %v6534, 16
      %v6672 = vrot.slane %v6670, 5
      %v6673 = vor.u32 %v6669, %v6672
      %v6674 = vrot.slane %v6673, 4
      %v6676 = vshll.u32 %v6535, 16
      %v6678 = vrot.slane %v6676, 5
      %v6679 = vsel %vm260, %v6674, %v6678
      %v6680 = vshrl.u32 %v6535, 16
      %v6682 = vrot.slane %v6680, 4
      %v6683 = vor.u32 %v6682, %v6678
      %v6684 = vrot.slane %v6683, 4
      %v6686 = vshll.u32 %v6536, 16
      %v6688 = vrot.slane %v6686, 5
      %v6689 = vsel %vm260, %v6684, %v6688
      %v6691 = vshrl.u32 %v6537, 16
      %v6693 = vrot.slane %v6691, 4
      %v6694 = vshll.u32 %v6537, 16
      %v6696 = vrot.slane %v6694, 5
      %v6697 = vor.u32 %v6693, %v6696
      %v6698 = vrot.slane %v6697, 4
      %v6700 = vshll.u32 %v6538, 16
      %v6702 = vrot.slane %v6700, 5
      %v6703 = vsel %vm260, %v6698, %v6702
      %v6704 = vshrl.u32 %v6538, 16
      %v6706 = vrot.slane %v6704, 4
      %v6707 = vor.u32 %v6706, %v6702
      %v6708 = vrot.slane %v6707, 4
      %v6710 = vshll.u32 %v6539, 16
      %v6712 = vrot.slane %v6710, 5
      %v6713 = vsel %vm260, %v6708, %v6712
      %v6715 = vshrl.u32 %v6540, 16
      %v6717 = vrot.slane %v6715, 4
      %v6718 = vshll.u32 %v6540, 16
      %v6720 = vrot.slane %v6718, 5
      %v6721 = vor.u32 %v6717, %v6720
      %v6722 = vrot.slane %v6721, 4
      %v6724 = vshll.u32 %v6541, 16
      %v6726 = vrot.slane %v6724, 5
      %v6727 = vsel %vm260, %v6722, %v6726
      %v6728 = vshrl.u32 %v6541, 16
      %v6730 = vrot.slane %v6728, 4
      %v6731 = vor.u32 %v6730, %v6726
      %v6732 = vrot.slane %v6731, 4
      %v6734 = vshll.u32 %v6542, 16
      %v6736 = vrot.slane %v6734, 5
      %v6737 = vsel %vm260, %v6732, %v6736
      %v6739 = vshrl.u32 %v6543, 16
      %v6741 = vrot.slane %v6739, 4
      %v6742 = vshll.u32 %v6543, 16
      %v6744 = vrot.slane %v6742, 5
      %v6745 = vor.u32 %v6741, %v6744
      %v6746 = vrot.slane %v6745, 4
      %v6748 = vshll.u32 %v6544, 16
      %v6750 = vrot.slane %v6748, 5
      %v6751 = vsel %vm260, %v6746, %v6750
      %v6752 = vshrl.u32 %v6544, 16
      %v6754 = vrot.slane %v6752, 4
      %v6755 = vor.u32 %v6754, %v6750
      %v6756 = vrot.slane %v6755, 4
      %v6758 = vshll.u32 %v6545, 16
      %v6760 = vrot.slane %v6758, 5
      %v6761 = vsel %vm260, %v6756, %v6760
      %v6763 = vshrl.u32 %v6546, 16
      %v6765 = vrot.slane %v6763, 4
      %v6766 = vshll.u32 %v6546, 16
      %v6768 = vrot.slane %v6766, 5
      %v6769 = vor.u32 %v6765, %v6768
      %v6770 = vrot.slane %v6769, 4
      %v6772 = vshll.u32 %v6547, 16
      %v6774 = vrot.slane %v6772, 5
      %v6775 = vsel %vm260, %v6770, %v6774
      %v6776 = vshrl.u32 %v6547, 16
      %v6778 = vrot.slane %v6776, 4
      %v6779 = vor.u32 %v6778, %v6774
      %v6780 = vrot.slane %v6779, 4
      %v6782 = vshll.u32 %v6548, 16
      %v6784 = vrot.slane %v6782, 5
      %v6785 = vsel %vm260, %v6780, %v6784
      %v6787 = vshrl.u32 %v6549, 16
      %v6789 = vrot.slane %v6787, 4
      %v6790 = vshll.u32 %v6549, 16
      %v6792 = vrot.slane %v6790, 5
      %v6793 = vor.u32 %v6789, %v6792
      %v6794 = vrot.slane %v6793, 4
      %v6796 = vshll.u32 %v6550, 16
      %v6798 = vrot.slane %v6796, 5
      %v6799 = vsel %vm260, %v6794, %v6798
      %v6800 = vshrl.u32 %v6550, 16
      %v6802 = vrot.slane %v6800, 4
      %v6803 = vor.u32 %v6802, %v6798
      %v6804 = vrot.slane %v6803, 4
      %v6806 = vshll.u32 %v6551, 16
      %v6808 = vrot.slane %v6806, 5
      %v6809 = vsel %vm260, %v6804, %v6808
      %v6811 = vshrl.u32 %v6552, 16
      %v6813 = vrot.slane %v6811, 4
      %v6814 = vshll.u32 %v6552, 16
      %v6816 = vrot.slane %v6814, 5
      %v6817 = vor.u32 %v6813, %v6816
      %v6818 = vrot.slane %v6817, 4
      %v6820 = vshll.u32 %v6553, 16
      %v6822 = vrot.slane %v6820, 5
      %v6823 = vsel %vm260, %v6818, %v6822
      %v6824 = vshrl.u32 %v6553, 16
      %v6826 = vrot.slane %v6824, 4
      %v6827 = vor.u32 %v6826, %v6822
      %v6828 = vrot.slane %v6827, 4
      %v6830 = vshll.u32 %v6554, 16
      %v6832 = vrot.slane %v6830, 5
      %v6833 = vsel %vm260, %v6828, %v6832
      %v6835 = vshrl.u32 %v6555, 16
      %v6837 = vrot.slane %v6835, 4
      %v6838 = vshll.u32 %v6555, 16
      %v6840 = vrot.slane %v6838, 5
      %v6841 = vor.u32 %v6837, %v6840
      %v6842 = vrot.slane %v6841, 4
      %v6844 = vshll.u32 %v6556, 16
      %v6846 = vrot.slane %v6844, 5
      %v6847 = vsel %vm260, %v6842, %v6846
      %v6848 = vshrl.u32 %v6556, 16
      %v6850 = vrot.slane %v6848, 4
      %v6851 = vor.u32 %v6850, %v6846
      %v6852 = vrot.slane %v6851, 4
      %v6854 = vshll.u32 %v6557, 16
      %v6856 = vrot.slane %v6854, 5
      %v6857 = vsel %vm260, %v6852, %v6856
      %v6859 = vshrl.u32 %v6558, 16
      %v6861 = vrot.slane %v6859, 4
      %v6862 = vshll.u32 %v6558, 16
      %v6864 = vrot.slane %v6862, 5
      %v6865 = vor.u32 %v6861, %v6864
      %v6866 = vrot.slane %v6865, 4
      %v6868 = vshll.u32 %v6559, 16
      %v6870 = vrot.slane %v6868, 5
      %v6871 = vsel %vm260, %v6866, %v6870
      %v6872 = vshrl.u32 %v6559, 16
      %v6874 = vrot.slane %v6872, 4
      %v6875 = vor.u32 %v6874, %v6870
      %v6876 = vrot.slane %v6875, 4
      %v6878 = vshll.u32 %v6560, 16
      %v6880 = vrot.slane %v6878, 5
      %v6881 = vsel %vm260, %v6876, %v6880
      %v6883 = vshrl.u32 %v6561, 16
      %v6885 = vrot.slane %v6883, 4
      %v6886 = vshll.u32 %v6561, 16
      %v6888 = vrot.slane %v6886, 5
      %v6889 = vor.u32 %v6885, %v6888
      %v6890 = vrot.slane %v6889, 4
      %v6892 = vshll.u32 %v6562, 16
      %v6894 = vrot.slane %v6892, 5
      %v6895 = vsel %vm260, %v6890, %v6894
      %v6896 = vshrl.u32 %v6562, 16
      %v6898 = vrot.slane %v6896, 4
      %v6899 = vor.u32 %v6898, %v6894
      %v6900 = vrot.slane %v6899, 4
      %v6902 = vshll.u32 %v6563, 16
      %v6904 = vrot.slane %v6902, 5
      %v6905 = vsel %vm260, %v6900, %v6904
      %v6907 = vshrl.u32 %v6564, 16
      %v6909 = vrot.slane %v6907, 4
      %v6910 = vshll.u32 %v6564, 16
      %v6912 = vrot.slane %v6910, 5
      %v6913 = vor.u32 %v6909, %v6912
      %v6914 = vrot.slane %v6913, 4
      %v6916 = vshll.u32 %v6565, 16
      %v6918 = vrot.slane %v6916, 5
      %v6919 = vsel %vm260, %v6914, %v6918
      %v6920 = vshrl.u32 %v6565, 16
      %v6922 = vrot.slane %v6920, 4
      %v6923 = vor.u32 %v6922, %v6918
      %v6924 = vrot.slane %v6923, 4
      %v6926 = vshll.u32 %v6566, 16
      %v6928 = vrot.slane %v6926, 5
      %v6929 = vsel %vm260, %v6924, %v6928
      %v6931 = vshrl.u32 %v6567, 16
      %v6933 = vrot.slane %v6931, 4
      %v6934 = vshll.u32 %v6567, 16
      %v6936 = vrot.slane %v6934, 5
      %v6937 = vor.u32 %v6933, %v6936
      %v6938 = vrot.slane %v6937, 4
      %v6940 = vshll.u32 %v6568, 16
      %v6942 = vrot.slane %v6940, 5
      %v6943 = vsel %vm260, %v6938, %v6942
      %v6944 = vshrl.u32 %v6568, 16
      %v6946 = vrot.slane %v6944, 4
      %v6947 = vor.u32 %v6946, %v6942
      %v6948 = vrot.slane %v6947, 4
      %v6950 = vshll.u32 %v6569, 16
      %v6952 = vrot.slane %v6950, 5
      %v6953 = vsel %vm260, %v6948, %v6952
      %6986 = vst.msk [vmem:[#allocation2] sm:$0xf] %vm177, %v6583
      %6987 = vst.msk [vmem:[#allocation2 + $0x4] sm:$0xf] %vm177, %v6593
      %6988 = vst.msk [vmem:[#allocation2 + $0x8] sm:$0xf] %vm177, %v6607
      %6989 = vst.msk [vmem:[#allocation2 + $0xc] sm:$0xf] %vm177, %v6617
      %6990 = vst.msk [vmem:[#allocation2 + $0x10] sm:$0xf] %vm177, %v6631
      %6991 = vst.msk [vmem:[#allocation2 + $0x14] sm:$0xf] %vm177, %v6641
      %6992 = vst.msk [vmem:[#allocation2 + $0x18] sm:$0xf] %vm177, %v6655
      %6993 = vst.msk [vmem:[#allocation2 + $0x1c] sm:$0xf] %vm177, %v6665
      %6994 = vst.msk [vmem:[#allocation2 + $0x20] sm:$0xf] %vm177, %v6679
      %6995 = vst.msk [vmem:[#allocation2 + $0x24] sm:$0xf] %vm177, %v6689
      %6996 = vst.msk [vmem:[#allocation2 + $0x28] sm:$0xf] %vm177, %v6703
      %6997 = vst.msk [vmem:[#allocation2 + $0x2c] sm:$0xf] %vm177, %v6713
      %6998 = vst.msk [vmem:[#allocation2 + $0x30] sm:$0xf] %vm177, %v6727
      %6999 = vst.msk [vmem:[#allocation2 + $0x34] sm:$0xf] %vm177, %v6737
      %7000 = vst.msk [vmem:[#allocation2 + $0x38] sm:$0xf] %vm177, %v6751
      %7001 = vst.msk [vmem:[#allocation2 + $0x3c] sm:$0xf] %vm177, %v6761
      %7002 = vst.msk [vmem:[#allocation2 + $0x40] sm:$0xf] %vm177, %v6775
      %7003 = vst.msk [vmem:[#allocation2 + $0x44] sm:$0xf] %vm177, %v6785
      %7004 = vst.msk [vmem:[#allocation2 + $0x48] sm:$0xf] %vm177, %v6799
      %7005 = vst.msk [vmem:[#allocation2 + $0x4c] sm:$0xf] %vm177, %v6809
      %7006 = vst.msk [vmem:[#allocation2 + $0x50] sm:$0xf] %vm177, %v6823
      %7007 = vst.msk [vmem:[#allocation2 + $0x54] sm:$0xf] %vm177, %v6833
      %7008 = vst.msk [vmem:[#allocation2 + $0x58] sm:$0xf] %vm177, %v6847
      %7009 = vst.msk [vmem:[#allocation2 + $0x5c] sm:$0xf] %vm177, %v6857
      %7010 = vst.msk [vmem:[#allocation2 + $0x60] sm:$0xf] %vm177, %v6871
      %7011 = vst.msk [vmem:[#allocation2 + $0x64] sm:$0xf] %vm177, %v6881
      %7012 = vst.msk [vmem:[#allocation2 + $0x68] sm:$0xf] %vm177, %v6895
      %7013 = vst.msk [vmem:[#allocation2 + $0x6c] sm:$0xf] %vm177, %v6905
      %7014 = vst.msk [vmem:[#allocation2 + $0x70] sm:$0xf] %vm177, %v6919
      %7015 = vst.msk [vmem:[#allocation2 + $0x74] sm:$0xf] %vm177, %v6929
      %7016 = vst.msk [vmem:[#allocation2 + $0x78] sm:$0xf] %vm177, %v6943
      %7017 = vst.msk [vmem:[#allocation2 + $0x7c] sm:$0xf] %vm177, %v6953
      %v7018 = vld [vmem:[%s774] sm:$0xe]
      %v7019 = vld [vmem:[%s774 + $0x4] sm:$0xf]
      %v7020 = vld [vmem:[%s774 + $0x8] sm:$0x1]
      %v7021 = vld [vmem:[%s774 + $0xc] sm:$0xe]
      %v7022 = vld [vmem:[%s774 + $0x10] sm:$0xf]
      %v7023 = vld [vmem:[%s774 + $0x14] sm:$0x1]
      %v7024 = vld [vmem:[%s774 + $0x18] sm:$0xe]
      %v7025 = vld [vmem:[%s774 + $0x1c] sm:$0xf]
      %v7026 = vld [vmem:[%s774 + $0x20] sm:$0x1]
      %v7027 = vld [vmem:[%s774 + $0x24] sm:$0xe]
      %v7028 = vld [vmem:[%s774 + $0x28] sm:$0xf]
      %v7029 = vld [vmem:[%s774 + $0x2c] sm:$0x1]
      %v7030 = vld [vmem:[%s774 + $0x30] sm:$0xe]
      %v7031 = vld [vmem:[%s774 + $0x34] sm:$0xf]
      %v7032 = vld [vmem:[%s774 + $0x38] sm:$0x1]
      %v7033 = vld [vmem:[%s774 + $0x3c] sm:$0xe]
      %v7034 = vld [vmem:[%s774 + $0x40] sm:$0xf]
      %v7035 = vld [vmem:[%s774 + $0x44] sm:$0x1]
      %v7036 = vld [vmem:[%s774 + $0x48] sm:$0xe]
      %v7037 = vld [vmem:[%s774 + $0x4c] sm:$0xf]
      %v7038 = vld [vmem:[%s774 + $0x50] sm:$0x1]
      %v7039 = vld [vmem:[%s774 + $0x54] sm:$0xe]
      %v7040 = vld [vmem:[%s774 + $0x58] sm:$0xf]
      %v7041 = vld [vmem:[%s774 + $0x5c] sm:$0x1]
      %v7042 = vld [vmem:[%s774 + $0x60] sm:$0xe]
      %v7043 = vld [vmem:[%s774 + $0x64] sm:$0xf]
      %v7044 = vld [vmem:[%s774 + $0x68] sm:$0x1]
      %v7045 = vld [vmem:[%s774 + $0x6c] sm:$0xe]
      %v7046 = vld [vmem:[%s774 + $0x70] sm:$0xf]
      %v7047 = vld [vmem:[%s774 + $0x74] sm:$0x1]
      %v7048 = vld [vmem:[%s774 + $0x78] sm:$0xe]
      %v7049 = vld [vmem:[%s774 + $0x7c] sm:$0xf]
      %v7050 = vld [vmem:[%s774 + $0x80] sm:$0x1]
      %v7051 = vld [vmem:[%s774 + $0x84] sm:$0xe]
      %v7052 = vld [vmem:[%s774 + $0x88] sm:$0xf]
      %v7053 = vld [vmem:[%s774 + $0x8c] sm:$0x1]
      %v7054 = vld [vmem:[%s774 + $0x90] sm:$0xe]
      %v7055 = vld [vmem:[%s774 + $0x94] sm:$0xf]
      %v7056 = vld [vmem:[%s774 + $0x98] sm:$0x1]
      %v7057 = vld [vmem:[%s774 + $0x9c] sm:$0xe]
      %v7058 = vld [vmem:[%s774 + $0xa0] sm:$0xf]
      %v7059 = vld [vmem:[%s774 + $0xa4] sm:$0x1]
      %v7060 = vld [vmem:[%s774 + $0xa8] sm:$0xe]
      %v7061 = vld [vmem:[%s774 + $0xac] sm:$0xf]
      %v7062 = vld [vmem:[%s774 + $0xb0] sm:$0x1]
      %v7063 = vld [vmem:[%s774 + $0xb4] sm:$0xe]
      %v7064 = vld [vmem:[%s774 + $0xb8] sm:$0xf]
      %v7065 = vld [vmem:[%s774 + $0xbc] sm:$0x1]
      %v7114 = vrot.slane %v7018, 5
      %v7115 = vrot.slane %v7114, 4
      %v7116 = vrot.slane %v7019, 5
      %v7117 = vsel %vm2666, %v7115, %v7116
      %v7118 = vrot.slane %v7116, 4
      %v7119 = vrot.slane %v7020, 5
      %v7120 = vsel %vm2666, %v7118, %v7119
      %v7121 = vrot.slane %v7021, 5
      %v7122 = vrot.slane %v7121, 4
      %v7123 = vrot.slane %v7022, 5
      %v7124 = vsel %vm2666, %v7122, %v7123
      %v7125 = vrot.slane %v7123, 4
      %v7126 = vrot.slane %v7023, 5
      %v7127 = vsel %vm2666, %v7125, %v7126
      %v7128 = vrot.slane %v7024, 5
      %v7129 = vrot.slane %v7128, 4
      %v7130 = vrot.slane %v7025, 5
      %v7131 = vsel %vm2666, %v7129, %v7130
      %v7132 = vrot.slane %v7130, 4
      %v7133 = vrot.slane %v7026, 5
      %v7134 = vsel %vm2666, %v7132, %v7133
      %v7135 = vrot.slane %v7027, 5
      %v7136 = vrot.slane %v7135, 4
      %v7137 = vrot.slane %v7028, 5
      %v7138 = vsel %vm2666, %v7136, %v7137
      %v7139 = vrot.slane %v7137, 4
      %v7140 = vrot.slane %v7029, 5
      %v7141 = vsel %vm2666, %v7139, %v7140
      %v7142 = vrot.slane %v7030, 5
      %v7143 = vrot.slane %v7142, 4
      %v7144 = vrot.slane %v7031, 5
      %v7145 = vsel %vm2666, %v7143, %v7144
      %v7146 = vrot.slane %v7144, 4
      %v7147 = vrot.slane %v7032, 5
      %v7148 = vsel %vm2666, %v7146, %v7147
      %v7149 = vrot.slane %v7033, 5
      %v7150 = vrot.slane %v7149, 4
      %v7151 = vrot.slane %v7034, 5
      %v7152 = vsel %vm2666, %v7150, %v7151
      %v7153 = vrot.slane %v7151, 4
      %v7154 = vrot.slane %v7035, 5
      %v7155 = vsel %vm2666, %v7153, %v7154
      %v7156 = vrot.slane %v7036, 5
      %v7157 = vrot.slane %v7156, 4
      %v7158 = vrot.slane %v7037, 5
      %v7159 = vsel %vm2666, %v7157, %v7158
      %v7160 = vrot.slane %v7158, 4
      %v7161 = vrot.slane %v7038, 5
      %v7162 = vsel %vm2666, %v7160, %v7161
      %v7163 = vrot.slane %v7039, 5
      %v7164 = vrot.slane %v7163, 4
      %v7165 = vrot.slane %v7040, 5
      %v7166 = vsel %vm2666, %v7164, %v7165
      %v7167 = vrot.slane %v7165, 4
      %v7168 = vrot.slane %v7041, 5
      %v7169 = vsel %vm2666, %v7167, %v7168
      %v7170 = vrot.slane %v7042, 5
      %v7171 = vrot.slane %v7170, 4
      %v7172 = vrot.slane %v7043, 5
      %v7173 = vsel %vm2666, %v7171, %v7172
      %v7174 = vrot.slane %v7172, 4
      %v7175 = vrot.slane %v7044, 5
      %v7176 = vsel %vm2666, %v7174, %v7175
      %v7177 = vrot.slane %v7045, 5
      %v7178 = vrot.slane %v7177, 4
      %v7179 = vrot.slane %v7046, 5
      %v7180 = vsel %vm2666, %v7178, %v7179
      %v7181 = vrot.slane %v7179, 4
      %v7182 = vrot.slane %v7047, 5
      %v7183 = vsel %vm2666, %v7181, %v7182
      %v7184 = vrot.slane %v7048, 5
      %v7185 = vrot.slane %v7184, 4
      %v7186 = vrot.slane %v7049, 5
      %v7187 = vsel %vm2666, %v7185, %v7186
      %v7188 = vrot.slane %v7186, 4
      %v7189 = vrot.slane %v7050, 5
      %v7190 = vsel %vm2666, %v7188, %v7189
      %v7191 = vrot.slane %v7051, 5
      %v7192 = vrot.slane %v7191, 4
      %v7193 = vrot.slane %v7052, 5
      %v7194 = vsel %vm2666, %v7192, %v7193
      %v7195 = vrot.slane %v7193, 4
      %v7196 = vrot.slane %v7053, 5
      %v7197 = vsel %vm2666, %v7195, %v7196
      %v7198 = vrot.slane %v7054, 5
      %v7199 = vrot.slane %v7198, 4
      %v7200 = vrot.slane %v7055, 5
      %v7201 = vsel %vm2666, %v7199, %v7200
      %v7202 = vrot.slane %v7200, 4
      %v7203 = vrot.slane %v7056, 5
      %v7204 = vsel %vm2666, %v7202, %v7203
      %v7205 = vrot.slane %v7057, 5
      %v7206 = vrot.slane %v7205, 4
      %v7207 = vrot.slane %v7058, 5
      %v7208 = vsel %vm2666, %v7206, %v7207
      %v7209 = vrot.slane %v7207, 4
      %v7210 = vrot.slane %v7059, 5
      %v7211 = vsel %vm2666, %v7209, %v7210
      %v7212 = vrot.slane %v7060, 5
      %v7213 = vrot.slane %v7212, 4
      %v7214 = vrot.slane %v7061, 5
      %v7215 = vsel %vm2666, %v7213, %v7214
      %v7216 = vrot.slane %v7214, 4
      %v7217 = vrot.slane %v7062, 5
      %v7218 = vsel %vm2666, %v7216, %v7217
      %v7219 = vrot.slane %v7063, 5
      %v7220 = vrot.slane %v7219, 4
      %v7221 = vrot.slane %v7064, 5
      %v7222 = vsel %vm2666, %v7220, %v7221
      %v7223 = vrot.slane %v7221, 4
      %v7224 = vrot.slane %v7065, 5
      %v7225 = vsel %vm2666, %v7223, %v7224
      %7226 = vrot.lane.b32.xlu0 %v7117, 8
      %v7227 = vpop.permute.xlu0 %7226
      %7228 = vrot.lane.b32.xlu0 %v7120, 8
      %v7229 = vpop.permute.xlu0 %7228
      %7230 = vrot.lane.b32.xlu0 %v7124, 8
      %v7231 = vpop.permute.xlu0 %7230
      %7232 = vrot.lane.b32.xlu0 %v7127, 8
      %v7233 = vpop.permute.xlu0 %7232
      %7234 = vrot.lane.b32.xlu0 %v7131, 8
      %v7235 = vpop.permute.xlu0 %7234
      %7236 = vrot.lane.b32.xlu0 %v7134, 8
      %v7237 = vpop.permute.xlu0 %7236
      %7238 = vrot.lane.b32.xlu0 %v7138, 8
      %v7239 = vpop.permute.xlu0 %7238
      %7240 = vrot.lane.b32.xlu0 %v7141, 8
      %v7241 = vpop.permute.xlu0 %7240
      %7242 = vrot.lane.b32.xlu0 %v7145, 8
      %v7243 = vpop.permute.xlu0 %7242
      %7244 = vrot.lane.b32.xlu0 %v7148, 8
      %v7245 = vpop.permute.xlu0 %7244
      %7246 = vrot.lane.b32.xlu0 %v7152, 8
      %v7247 = vpop.permute.xlu0 %7246
      %7248 = vrot.lane.b32.xlu0 %v7155, 8
      %v7249 = vpop.permute.xlu0 %7248
      %7250 = vrot.lane.b32.xlu0 %v7159, 8
      %v7251 = vpop.permute.xlu0 %7250
      %7252 = vrot.lane.b32.xlu0 %v7162, 8
      %v7253 = vpop.permute.xlu0 %7252
      %7254 = vrot.lane.b32.xlu0 %v7166, 8
      %v7255 = vpop.permute.xlu0 %7254
      %7256 = vrot.lane.b32.xlu0 %v7169, 8
      %v7257 = vpop.permute.xlu0 %7256
      %7258 = vrot.lane.b32.xlu0 %v7173, 8
      %v7259 = vpop.permute.xlu0 %7258
      %7260 = vrot.lane.b32.xlu0 %v7176, 8
      %v7261 = vpop.permute.xlu0 %7260
      %7262 = vrot.lane.b32.xlu0 %v7180, 8
      %v7263 = vpop.permute.xlu0 %7262
      %7264 = vrot.lane.b32.xlu0 %v7183, 8
      %v7265 = vpop.permute.xlu0 %7264
      %7266 = vrot.lane.b32.xlu0 %v7187, 8
      %v7267 = vpop.permute.xlu0 %7266
      %7268 = vrot.lane.b32.xlu0 %v7190, 8
      %v7269 = vpop.permute.xlu0 %7268
      %7270 = vrot.lane.b32.xlu0 %v7194, 8
      %v7271 = vpop.permute.xlu0 %7270
      %7272 = vrot.lane.b32.xlu0 %v7197, 8
      %v7273 = vpop.permute.xlu0 %7272
      %7274 = vrot.lane.b32.xlu0 %v7201, 8
      %v7275 = vpop.permute.xlu0 %7274
      %7276 = vrot.lane.b32.xlu0 %v7204, 8
      %v7277 = vpop.permute.xlu0 %7276
      %7278 = vrot.lane.b32.xlu0 %v7208, 8
      %v7279 = vpop.permute.xlu0 %7278
      %7280 = vrot.lane.b32.xlu0 %v7211, 8
      %v7281 = vpop.permute.xlu0 %7280
      %7282 = vrot.lane.b32.xlu0 %v7215, 8
      %v7283 = vpop.permute.xlu0 %7282
      %7284 = vrot.lane.b32.xlu0 %v7218, 8
      %v7285 = vpop.permute.xlu0 %7284
      %7286 = vrot.lane.b32.xlu0 %v7222, 8
      %v7287 = vpop.permute.xlu0 %7286
      %7288 = vrot.lane.b32.xlu0 %v7225, 8
      %v7289 = vpop.permute.xlu0 %7288
      %7322 = vst.msk [vmem:[#allocation2] sm:$0xf] %vm741, %v7227
      %7323 = vst.msk [vmem:[#allocation2 + $0x4] sm:$0xf] %vm741, %v7229
      %7324 = vst.msk [vmem:[#allocation2 + $0x8] sm:$0xf] %vm741, %v7231
      %7325 = vst.msk [vmem:[#allocation2 + $0xc] sm:$0xf] %vm741, %v7233
      %7326 = vst.msk [vmem:[#allocation2 + $0x10] sm:$0xf] %vm741, %v7235
      %7327 = vst.msk [vmem:[#allocation2 + $0x14] sm:$0xf] %vm741, %v7237
      %7328 = vst.msk [vmem:[#allocation2 + $0x18] sm:$0xf] %vm741, %v7239
      %7329 = vst.msk [vmem:[#allocation2 + $0x1c] sm:$0xf] %vm741, %v7241
      %7330 = vst.msk [vmem:[#allocation2 + $0x20] sm:$0xf] %vm741, %v7243
      %7331 = vst.msk [vmem:[#allocation2 + $0x24] sm:$0xf] %vm741, %v7245
      %7332 = vst.msk [vmem:[#allocation2 + $0x28] sm:$0xf] %vm741, %v7247
      %7333 = vst.msk [vmem:[#allocation2 + $0x2c] sm:$0xf] %vm741, %v7249
      %7334 = vst.msk [vmem:[#allocation2 + $0x30] sm:$0xf] %vm741, %v7251
      %7335 = vst.msk [vmem:[#allocation2 + $0x34] sm:$0xf] %vm741, %v7253
      %7336 = vst.msk [vmem:[#allocation2 + $0x38] sm:$0xf] %vm741, %v7255
      %7337 = vst.msk [vmem:[#allocation2 + $0x3c] sm:$0xf] %vm741, %v7257
      %7338 = vst.msk [vmem:[#allocation2 + $0x40] sm:$0xf] %vm741, %v7259
      %7339 = vst.msk [vmem:[#allocation2 + $0x44] sm:$0xf] %vm741, %v7261
      %7340 = vst.msk [vmem:[#allocation2 + $0x48] sm:$0xf] %vm741, %v7263
      %7341 = vst.msk [vmem:[#allocation2 + $0x4c] sm:$0xf] %vm741, %v7265
      %7342 = vst.msk [vmem:[#allocation2 + $0x50] sm:$0xf] %vm741, %v7267
      %7343 = vst.msk [vmem:[#allocation2 + $0x54] sm:$0xf] %vm741, %v7269
      %7344 = vst.msk [vmem:[#allocation2 + $0x58] sm:$0xf] %vm741, %v7271
      %7345 = vst.msk [vmem:[#allocation2 + $0x5c] sm:$0xf] %vm741, %v7273
      %7346 = vst.msk [vmem:[#allocation2 + $0x60] sm:$0xf] %vm741, %v7275
      %7347 = vst.msk [vmem:[#allocation2 + $0x64] sm:$0xf] %vm741, %v7277
      %7348 = vst.msk [vmem:[#allocation2 + $0x68] sm:$0xf] %vm741, %v7279
      %7349 = vst.msk [vmem:[#allocation2 + $0x6c] sm:$0xf] %vm741, %v7281
      %7350 = vst.msk [vmem:[#allocation2 + $0x70] sm:$0xf] %vm741, %v7283
      %7351 = vst.msk [vmem:[#allocation2 + $0x74] sm:$0xf] %vm741, %v7285
      %7352 = vst.msk [vmem:[#allocation2 + $0x78] sm:$0xf] %vm741, %v7287
      %7353 = vst.msk [vmem:[#allocation2 + $0x7c] sm:$0xf] %vm741, %v7289
      %v7354 = vld [vmem:[%s5098] sm:$0xf]
      %v7355 = vld [vmem:[%s5098 + $0x4] sm:$0xf]
      %v7356 = vld [vmem:[%s5098 + $0x8] sm:$0x1]
      %v7357 = vld [vmem:[%s5098 + $0xc] sm:$0xf]
      %v7358 = vld [vmem:[%s5098 + $0x10] sm:$0xf]
      %v7359 = vld [vmem:[%s5098 + $0x14] sm:$0x1]
      %v7360 = vld [vmem:[%s5098 + $0x18] sm:$0xf]
      %v7361 = vld [vmem:[%s5098 + $0x1c] sm:$0xf]
      %v7362 = vld [vmem:[%s5098 + $0x20] sm:$0x1]
      %v7363 = vld [vmem:[%s5098 + $0x24] sm:$0xf]
      %v7364 = vld [vmem:[%s5098 + $0x28] sm:$0xf]
      %v7365 = vld [vmem:[%s5098 + $0x2c] sm:$0x1]
      %v7366 = vld [vmem:[%s5098 + $0x30] sm:$0xf]
      %v7367 = vld [vmem:[%s5098 + $0x34] sm:$0xf]
      %v7368 = vld [vmem:[%s5098 + $0x38] sm:$0x1]
      %v7369 = vld [vmem:[%s5098 + $0x3c] sm:$0xf]
      %v7370 = vld [vmem:[%s5098 + $0x40] sm:$0xf]
      %v7371 = vld [vmem:[%s5098 + $0x44] sm:$0x1]
      %v7372 = vld [vmem:[%s5098 + $0x48] sm:$0xf]
      %v7373 = vld [vmem:[%s5098 + $0x4c] sm:$0xf]
      %v7374 = vld [vmem:[%s5098 + $0x50] sm:$0x1]
      %v7375 = vld [vmem:[%s5098 + $0x54] sm:$0xf]
      %v7376 = vld [vmem:[%s5098 + $0x58] sm:$0xf]
      %v7377 = vld [vmem:[%s5098 + $0x5c] sm:$0x1]
      %v7378 = vld [vmem:[%s5098 + $0x60] sm:$0xf]
      %v7379 = vld [vmem:[%s5098 + $0x64] sm:$0xf]
      %v7380 = vld [vmem:[%s5098 + $0x68] sm:$0x1]
      %v7381 = vld [vmem:[%s5098 + $0x6c] sm:$0xf]
      %v7382 = vld [vmem:[%s5098 + $0x70] sm:$0xf]
      %v7383 = vld [vmem:[%s5098 + $0x74] sm:$0x1]
      %v7384 = vld [vmem:[%s5098 + $0x78] sm:$0xf]
      %v7385 = vld [vmem:[%s5098 + $0x7c] sm:$0xf]
      %v7386 = vld [vmem:[%s5098 + $0x80] sm:$0x1]
      %v7387 = vld [vmem:[%s5098 + $0x84] sm:$0xf]
      %v7388 = vld [vmem:[%s5098 + $0x88] sm:$0xf]
      %v7389 = vld [vmem:[%s5098 + $0x8c] sm:$0x1]
      %v7390 = vld [vmem:[%s5098 + $0x90] sm:$0xf]
      %v7391 = vld [vmem:[%s5098 + $0x94] sm:$0xf]
      %v7392 = vld [vmem:[%s5098 + $0x98] sm:$0x1]
      %v7393 = vld [vmem:[%s5098 + $0x9c] sm:$0xf]
      %v7394 = vld [vmem:[%s5098 + $0xa0] sm:$0xf]
      %v7395 = vld [vmem:[%s5098 + $0xa4] sm:$0x1]
      %v7396 = vld [vmem:[%s5098 + $0xa8] sm:$0xf]
      %v7397 = vld [vmem:[%s5098 + $0xac] sm:$0xf]
      %v7398 = vld [vmem:[%s5098 + $0xb0] sm:$0x1]
      %v7399 = vld [vmem:[%s5098 + $0xb4] sm:$0xf]
      %v7400 = vld [vmem:[%s5098 + $0xb8] sm:$0xf]
      %v7401 = vld [vmem:[%s5098 + $0xbc] sm:$0x1]
      %v7403 = vshrl.u32 %v7354, 16
      %v7405 = vrot.slane %v7403, 4
      %v7406 = vshll.u32 %v7354, 16
      %v7408 = vrot.slane %v7406, 5
      %v7409 = vor.u32 %v7405, %v7408
      %v7410 = vrot.slane %v7409, 4
      %v7412 = vshll.u32 %v7355, 16
      %v7414 = vrot.slane %v7412, 5
      %v7415 = vsel %vm260, %v7410, %v7414
      %v7416 = vshrl.u32 %v7355, 16
      %v7418 = vrot.slane %v7416, 4
      %v7419 = vor.u32 %v7418, %v7414
      %v7420 = vrot.slane %v7419, 4
      %v7422 = vshll.u32 %v7356, 16
      %v7424 = vrot.slane %v7422, 5
      %v7425 = vsel %vm260, %v7420, %v7424
      %v7427 = vshrl.u32 %v7357, 16
      %v7429 = vrot.slane %v7427, 4
      %v7430 = vshll.u32 %v7357, 16
      %v7432 = vrot.slane %v7430, 5
      %v7433 = vor.u32 %v7429, %v7432
      %v7434 = vrot.slane %v7433, 4
      %v7436 = vshll.u32 %v7358, 16
      %v7438 = vrot.slane %v7436, 5
      %v7439 = vsel %vm260, %v7434, %v7438
      %v7440 = vshrl.u32 %v7358, 16
      %v7442 = vrot.slane %v7440, 4
      %v7443 = vor.u32 %v7442, %v7438
      %v7444 = vrot.slane %v7443, 4
      %v7446 = vshll.u32 %v7359, 16
      %v7448 = vrot.slane %v7446, 5
      %v7449 = vsel %vm260, %v7444, %v7448
      %v7451 = vshrl.u32 %v7360, 16
      %v7453 = vrot.slane %v7451, 4
      %v7454 = vshll.u32 %v7360, 16
      %v7456 = vrot.slane %v7454, 5
      %v7457 = vor.u32 %v7453, %v7456
      %v7458 = vrot.slane %v7457, 4
      %v7460 = vshll.u32 %v7361, 16
      %v7462 = vrot.slane %v7460, 5
      %v7463 = vsel %vm260, %v7458, %v7462
      %v7464 = vshrl.u32 %v7361, 16
      %v7466 = vrot.slane %v7464, 4
      %v7467 = vor.u32 %v7466, %v7462
      %v7468 = vrot.slane %v7467, 4
      %v7470 = vshll.u32 %v7362, 16
      %v7472 = vrot.slane %v7470, 5
      %v7473 = vsel %vm260, %v7468, %v7472
      %v7475 = vshrl.u32 %v7363, 16
      %v7477 = vrot.slane %v7475, 4
      %v7478 = vshll.u32 %v7363, 16
      %v7480 = vrot.slane %v7478, 5
      %v7481 = vor.u32 %v7477, %v7480
      %v7482 = vrot.slane %v7481, 4
      %v7484 = vshll.u32 %v7364, 16
      %v7486 = vrot.slane %v7484, 5
      %v7487 = vsel %vm260, %v7482, %v7486
      %v7488 = vshrl.u32 %v7364, 16
      %v7490 = vrot.slane %v7488, 4
      %v7491 = vor.u32 %v7490, %v7486
      %v7492 = vrot.slane %v7491, 4
      %v7494 = vshll.u32 %v7365, 16
      %v7496 = vrot.slane %v7494, 5
      %v7497 = vsel %vm260, %v7492, %v7496
      %v7499 = vshrl.u32 %v7366, 16
      %v7501 = vrot.slane %v7499, 4
      %v7502 = vshll.u32 %v7366, 16
      %v7504 = vrot.slane %v7502, 5
      %v7505 = vor.u32 %v7501, %v7504
      %v7506 = vrot.slane %v7505, 4
      %v7508 = vshll.u32 %v7367, 16
      %v7510 = vrot.slane %v7508, 5
      %v7511 = vsel %vm260, %v7506, %v7510
      %v7512 = vshrl.u32 %v7367, 16
      %v7514 = vrot.slane %v7512, 4
      %v7515 = vor.u32 %v7514, %v7510
      %v7516 = vrot.slane %v7515, 4
      %v7518 = vshll.u32 %v7368, 16
      %v7520 = vrot.slane %v7518, 5
      %v7521 = vsel %vm260, %v7516, %v7520
      %v7523 = vshrl.u32 %v7369, 16
      %v7525 = vrot.slane %v7523, 4
      %v7526 = vshll.u32 %v7369, 16
      %v7528 = vrot.slane %v7526, 5
      %v7529 = vor.u32 %v7525, %v7528
      %v7530 = vrot.slane %v7529, 4
      %v7532 = vshll.u32 %v7370, 16
      %v7534 = vrot.slane %v7532, 5
      %v7535 = vsel %vm260, %v7530, %v7534
      %v7536 = vshrl.u32 %v7370, 16
      %v7538 = vrot.slane %v7536, 4
      %v7539 = vor.u32 %v7538, %v7534
      %v7540 = vrot.slane %v7539, 4
      %v7542 = vshll.u32 %v7371, 16
      %v7544 = vrot.slane %v7542, 5
      %v7545 = vsel %vm260, %v7540, %v7544
      %v7547 = vshrl.u32 %v7372, 16
      %v7549 = vrot.slane %v7547, 4
      %v7550 = vshll.u32 %v7372, 16
      %v7552 = vrot.slane %v7550, 5
      %v7553 = vor.u32 %v7549, %v7552
      %v7554 = vrot.slane %v7553, 4
      %v7556 = vshll.u32 %v7373, 16
      %v7558 = vrot.slane %v7556, 5
      %v7559 = vsel %vm260, %v7554, %v7558
      %v7560 = vshrl.u32 %v7373, 16
      %v7562 = vrot.slane %v7560, 4
      %v7563 = vor.u32 %v7562, %v7558
      %v7564 = vrot.slane %v7563, 4
      %v7566 = vshll.u32 %v7374, 16
      %v7568 = vrot.slane %v7566, 5
      %v7569 = vsel %vm260, %v7564, %v7568
      %v7571 = vshrl.u32 %v7375, 16
      %v7573 = vrot.slane %v7571, 4
      %v7574 = vshll.u32 %v7375, 16
      %v7576 = vrot.slane %v7574, 5
      %v7577 = vor.u32 %v7573, %v7576
      %v7578 = vrot.slane %v7577, 4
      %v7580 = vshll.u32 %v7376, 16
      %v7582 = vrot.slane %v7580, 5
      %v7583 = vsel %vm260, %v7578, %v7582
      %v7584 = vshrl.u32 %v7376, 16
      %v7586 = vrot.slane %v7584, 4
      %v7587 = vor.u32 %v7586, %v7582
      %v7588 = vrot.slane %v7587, 4
      %v7590 = vshll.u32 %v7377, 16
      %v7592 = vrot.slane %v7590, 5
      %v7593 = vsel %vm260, %v7588, %v7592
      %v7595 = vshrl.u32 %v7378, 16
      %v7597 = vrot.slane %v7595, 4
      %v7598 = vshll.u32 %v7378, 16
      %v7600 = vrot.slane %v7598, 5
      %v7601 = vor.u32 %v7597, %v7600
      %v7602 = vrot.slane %v7601, 4
      %v7604 = vshll.u32 %v7379, 16
      %v7606 = vrot.slane %v7604, 5
      %v7607 = vsel %vm260, %v7602, %v7606
      %v7608 = vshrl.u32 %v7379, 16
      %v7610 = vrot.slane %v7608, 4
      %v7611 = vor.u32 %v7610, %v7606
      %v7612 = vrot.slane %v7611, 4
      %v7614 = vshll.u32 %v7380, 16
      %v7616 = vrot.slane %v7614, 5
      %v7617 = vsel %vm260, %v7612, %v7616
      %v7619 = vshrl.u32 %v7381, 16
      %v7621 = vrot.slane %v7619, 4
      %v7622 = vshll.u32 %v7381, 16
      %v7624 = vrot.slane %v7622, 5
      %v7625 = vor.u32 %v7621, %v7624
      %v7626 = vrot.slane %v7625, 4
      %v7628 = vshll.u32 %v7382, 16
      %v7630 = vrot.slane %v7628, 5
      %v7631 = vsel %vm260, %v7626, %v7630
      %v7632 = vshrl.u32 %v7382, 16
      %v7634 = vrot.slane %v7632, 4
      %v7635 = vor.u32 %v7634, %v7630
      %v7636 = vrot.slane %v7635, 4
      %v7638 = vshll.u32 %v7383, 16
      %v7640 = vrot.slane %v7638, 5
      %v7641 = vsel %vm260, %v7636, %v7640
      %v7643 = vshrl.u32 %v7384, 16
      %v7645 = vrot.slane %v7643, 4
      %v7646 = vshll.u32 %v7384, 16
      %v7648 = vrot.slane %v7646, 5
      %v7649 = vor.u32 %v7645, %v7648
      %v7650 = vrot.slane %v7649, 4
      %v7652 = vshll.u32 %v7385, 16
      %v7654 = vrot.slane %v7652, 5
      %v7655 = vsel %vm260, %v7650, %v7654
      %v7656 = vshrl.u32 %v7385, 16
      %v7658 = vrot.slane %v7656, 4
      %v7659 = vor.u32 %v7658, %v7654
      %v7660 = vrot.slane %v7659, 4
      %v7662 = vshll.u32 %v7386, 16
      %v7664 = vrot.slane %v7662, 5
      %v7665 = vsel %vm260, %v7660, %v7664
      %v7667 = vshrl.u32 %v7387, 16
      %v7669 = vrot.slane %v7667, 4
      %v7670 = vshll.u32 %v7387, 16
      %v7672 = vrot.slane %v7670, 5
      %v7673 = vor.u32 %v7669, %v7672
      %v7674 = vrot.slane %v7673, 4
      %v7676 = vshll.u32 %v7388, 16
      %v7678 = vrot.slane %v7676, 5
      %v7679 = vsel %vm260, %v7674, %v7678
      %v7680 = vshrl.u32 %v7388, 16
      %v7682 = vrot.slane %v7680, 4
      %v7683 = vor.u32 %v7682, %v7678
      %v7684 = vrot.slane %v7683, 4
      %v7686 = vshll.u32 %v7389, 16
      %v7688 = vrot.slane %v7686, 5
      %v7689 = vsel %vm260, %v7684, %v7688
      %v7691 = vshrl.u32 %v7390, 16
      %v7693 = vrot.slane %v7691, 4
      %v7694 = vshll.u32 %v7390, 16
      %v7696 = vrot.slane %v7694, 5
      %v7697 = vor.u32 %v7693, %v7696
      %v7698 = vrot.slane %v7697, 4
      %v7700 = vshll.u32 %v7391, 16
      %v7702 = vrot.slane %v7700, 5
      %v7703 = vsel %vm260, %v7698, %v7702
      %v7704 = vshrl.u32 %v7391, 16
      %v7706 = vrot.slane %v7704, 4
      %v7707 = vor.u32 %v7706, %v7702
      %v7708 = vrot.slane %v7707, 4
      %v7710 = vshll.u32 %v7392, 16
      %v7712 = vrot.slane %v7710, 5
      %v7713 = vsel %vm260, %v7708, %v7712
      %v7715 = vshrl.u32 %v7393, 16
      %v7717 = vrot.slane %v7715, 4
      %v7718 = vshll.u32 %v7393, 16
      %v7720 = vrot.slane %v7718, 5
      %v7721 = vor.u32 %v7717, %v7720
      %v7722 = vrot.slane %v7721, 4
      %v7724 = vshll.u32 %v7394, 16
      %v7726 = vrot.slane %v7724, 5
      %v7727 = vsel %vm260, %v7722, %v7726
      %v7728 = vshrl.u32 %v7394, 16
      %v7730 = vrot.slane %v7728, 4
      %v7731 = vor.u32 %v7730, %v7726
      %v7732 = vrot.slane %v7731, 4
      %v7734 = vshll.u32 %v7395, 16
      %v7736 = vrot.slane %v7734, 5
      %v7737 = vsel %vm260, %v7732, %v7736
      %v7739 = vshrl.u32 %v7396, 16
      %v7741 = vrot.slane %v7739, 4
      %v7742 = vshll.u32 %v7396, 16
      %v7744 = vrot.slane %v7742, 5
      %v7745 = vor.u32 %v7741, %v7744
      %v7746 = vrot.slane %v7745, 4
      %v7748 = vshll.u32 %v7397, 16
      %v7750 = vrot.slane %v7748, 5
      %v7751 = vsel %vm260, %v7746, %v7750
      %v7752 = vshrl.u32 %v7397, 16
      %v7754 = vrot.slane %v7752, 4
      %v7755 = vor.u32 %v7754, %v7750
      %v7756 = vrot.slane %v7755, 4
      %v7758 = vshll.u32 %v7398, 16
      %v7760 = vrot.slane %v7758, 5
      %v7761 = vsel %vm260, %v7756, %v7760
      %v7763 = vshrl.u32 %v7399, 16
      %v7765 = vrot.slane %v7763, 4
      %v7766 = vshll.u32 %v7399, 16
      %v7768 = vrot.slane %v7766, 5
      %v7769 = vor.u32 %v7765, %v7768
      %v7770 = vrot.slane %v7769, 4
      %v7772 = vshll.u32 %v7400, 16
      %v7774 = vrot.slane %v7772, 5
      %v7775 = vsel %vm260, %v7770, %v7774
      %v7776 = vshrl.u32 %v7400, 16
      %v7778 = vrot.slane %v7776, 4
      %v7779 = vor.u32 %v7778, %v7774
      %v7780 = vrot.slane %v7779, 4
      %v7782 = vshll.u32 %v7401, 16
      %v7784 = vrot.slane %v7782, 5
      %v7785 = vsel %vm260, %v7780, %v7784
      %7786 = vrot.lane.b32.xlu0 %v7415, 16
      %v7787 = vpop.permute.xlu0 %7786
      %7788 = vrot.lane.b32.xlu0 %v7425, 16
      %v7789 = vpop.permute.xlu0 %7788
      %7790 = vrot.lane.b32.xlu0 %v7439, 16
      %v7791 = vpop.permute.xlu0 %7790
      %7792 = vrot.lane.b32.xlu0 %v7449, 16
      %v7793 = vpop.permute.xlu0 %7792
      %7794 = vrot.lane.b32.xlu0 %v7463, 16
      %v7795 = vpop.permute.xlu0 %7794
      %7796 = vrot.lane.b32.xlu0 %v7473, 16
      %v7797 = vpop.permute.xlu0 %7796
      %7798 = vrot.lane.b32.xlu0 %v7487, 16
      %v7799 = vpop.permute.xlu0 %7798
      %7800 = vrot.lane.b32.xlu0 %v7497, 16
      %v7801 = vpop.permute.xlu0 %7800
      %7802 = vrot.lane.b32.xlu0 %v7511, 16
      %v7803 = vpop.permute.xlu0 %7802
      %7804 = vrot.lane.b32.xlu0 %v7521, 16
      %v7805 = vpop.permute.xlu0 %7804
      %7806 = vrot.lane.b32.xlu0 %v7535, 16
      %v7807 = vpop.permute.xlu0 %7806
      %7808 = vrot.lane.b32.xlu0 %v7545, 16
      %v7809 = vpop.permute.xlu0 %7808
      %7810 = vrot.lane.b32.xlu0 %v7559, 16
      %v7811 = vpop.permute.xlu0 %7810
      %7812 = vrot.lane.b32.xlu0 %v7569, 16
      %v7813 = vpop.permute.xlu0 %7812
      %7814 = vrot.lane.b32.xlu0 %v7583, 16
      %v7815 = vpop.permute.xlu0 %7814
      %7816 = vrot.lane.b32.xlu0 %v7593, 16
      %v7817 = vpop.permute.xlu0 %7816
      %7818 = vrot.lane.b32.xlu0 %v7607, 16
      %v7819 = vpop.permute.xlu0 %7818
      %7820 = vrot.lane.b32.xlu0 %v7617, 16
      %v7821 = vpop.permute.xlu0 %7820
      %7822 = vrot.lane.b32.xlu0 %v7631, 16
      %v7823 = vpop.permute.xlu0 %7822
      %7824 = vrot.lane.b32.xlu0 %v7641, 16
      %v7825 = vpop.permute.xlu0 %7824
      %7826 = vrot.lane.b32.xlu0 %v7655, 16
      %v7827 = vpop.permute.xlu0 %7826
      %7828 = vrot.lane.b32.xlu0 %v7665, 16
      %v7829 = vpop.permute.xlu0 %7828
      %7830 = vrot.lane.b32.xlu0 %v7679, 16
      %v7831 = vpop.permute.xlu0 %7830
      %7832 = vrot.lane.b32.xlu0 %v7689, 16
      %v7833 = vpop.permute.xlu0 %7832
      %7834 = vrot.lane.b32.xlu0 %v7703, 16
      %v7835 = vpop.permute.xlu0 %7834
      %7836 = vrot.lane.b32.xlu0 %v7713, 16
      %v7837 = vpop.permute.xlu0 %7836
      %7838 = vrot.lane.b32.xlu0 %v7727, 16
      %v7839 = vpop.permute.xlu0 %7838
      %7840 = vrot.lane.b32.xlu0 %v7737, 16
      %v7841 = vpop.permute.xlu0 %7840
      %7842 = vrot.lane.b32.xlu0 %v7751, 16
      %v7843 = vpop.permute.xlu0 %7842
      %7844 = vrot.lane.b32.xlu0 %v7761, 16
      %v7845 = vpop.permute.xlu0 %7844
      %7846 = vrot.lane.b32.xlu0 %v7775, 16
      %v7847 = vpop.permute.xlu0 %7846
      %7848 = vrot.lane.b32.xlu0 %v7785, 16
      %v7849 = vpop.permute.xlu0 %7848
      %7882 = vst.msk [vmem:[#allocation2] sm:$0xf] %vm935, %v7787
      %7883 = vst.msk [vmem:[#allocation2 + $0x4] sm:$0xf] %vm935, %v7789
      %7884 = vst.msk [vmem:[#allocation2 + $0x8] sm:$0xf] %vm935, %v7791
      %7885 = vst.msk [vmem:[#allocation2 + $0xc] sm:$0xf] %vm935, %v7793
      %7886 = vst.msk [vmem:[#allocation2 + $0x10] sm:$0xf] %vm935, %v7795
      %7887 = vst.msk [vmem:[#allocation2 + $0x14] sm:$0xf] %vm935, %v7797
      %7888 = vst.msk [vmem:[#allocation2 + $0x18] sm:$0xf] %vm935, %v7799
      %7889 = vst.msk [vmem:[#allocation2 + $0x1c] sm:$0xf] %vm935, %v7801
      %7890 = vst.msk [vmem:[#allocation2 + $0x20] sm:$0xf] %vm935, %v7803
      %7891 = vst.msk [vmem:[#allocation2 + $0x24] sm:$0xf] %vm935, %v7805
      %7892 = vst.msk [vmem:[#allocation2 + $0x28] sm:$0xf] %vm935, %v7807
      %7893 = vst.msk [vmem:[#allocation2 + $0x2c] sm:$0xf] %vm935, %v7809
      %7894 = vst.msk [vmem:[#allocation2 + $0x30] sm:$0xf] %vm935, %v7811
      %7895 = vst.msk [vmem:[#allocation2 + $0x34] sm:$0xf] %vm935, %v7813
      %7896 = vst.msk [vmem:[#allocation2 + $0x38] sm:$0xf] %vm935, %v7815
      %7897 = vst.msk [vmem:[#allocation2 + $0x3c] sm:$0xf] %vm935, %v7817
      %7898 = vst.msk [vmem:[#allocation2 + $0x40] sm:$0xf] %vm935, %v7819
      %7899 = vst.msk [vmem:[#allocation2 + $0x44] sm:$0xf] %vm935, %v7821
      %7900 = vst.msk [vmem:[#allocation2 + $0x48] sm:$0xf] %vm935, %v7823
      %7901 = vst.msk [vmem:[#allocation2 + $0x4c] sm:$0xf] %vm935, %v7825
      %7902 = vst.msk [vmem:[#allocation2 + $0x50] sm:$0xf] %vm935, %v7827
      %7903 = vst.msk [vmem:[#allocation2 + $0x54] sm:$0xf] %vm935, %v7829
      %7904 = vst.msk [vmem:[#allocation2 + $0x58] sm:$0xf] %vm935, %v7831
      %7905 = vst.msk [vmem:[#allocation2 + $0x5c] sm:$0xf] %vm935, %v7833
      %7906 = vst.msk [vmem:[#allocation2 + $0x60] sm:$0xf] %vm935, %v7835
      %7907 = vst.msk [vmem:[#allocation2 + $0x64] sm:$0xf] %vm935, %v7837
      %7908 = vst.msk [vmem:[#allocation2 + $0x68] sm:$0xf] %vm935, %v7839
      %7909 = vst.msk [vmem:[#allocation2 + $0x6c] sm:$0xf] %vm935, %v7841
      %7910 = vst.msk [vmem:[#allocation2 + $0x70] sm:$0xf] %vm935, %v7843
      %7911 = vst.msk [vmem:[#allocation2 + $0x74] sm:$0xf] %vm935, %v7845
      %7912 = vst.msk [vmem:[#allocation2 + $0x78] sm:$0xf] %vm935, %v7847
      %7913 = vst.msk [vmem:[#allocation2 + $0x7c] sm:$0xf] %vm935, %v7849
      %v7914 = vld [vmem:[%s5098] sm:$0xe]
      %v7915 = vld [vmem:[%s5098 + $0x4] sm:$0xf]
      %v7916 = vld [vmem:[%s5098 + $0x8] sm:$0x1]
      %v7917 = vld [vmem:[%s5098 + $0xc] sm:$0xe]
      %v7918 = vld [vmem:[%s5098 + $0x10] sm:$0xf]
      %v7919 = vld [vmem:[%s5098 + $0x14] sm:$0x1]
      %v7920 = vld [vmem:[%s5098 + $0x18] sm:$0xe]
      %v7921 = vld [vmem:[%s5098 + $0x1c] sm:$0xf]
      %v7922 = vld [vmem:[%s5098 + $0x20] sm:$0x1]
      %v7923 = vld [vmem:[%s5098 + $0x24] sm:$0xe]
      %v7924 = vld [vmem:[%s5098 + $0x28] sm:$0xf]
      %v7925 = vld [vmem:[%s5098 + $0x2c] sm:$0x1]
      %v7926 = vld [vmem:[%s5098 + $0x30] sm:$0xe]
      %v7927 = vld [vmem:[%s5098 + $0x34] sm:$0xf]
      %v7928 = vld [vmem:[%s5098 + $0x38] sm:$0x1]
      %v7929 = vld [vmem:[%s5098 + $0x3c] sm:$0xe]
      %v7930 = vld [vmem:[%s5098 + $0x40] sm:$0xf]
      %v7931 = vld [vmem:[%s5098 + $0x44] sm:$0x1]
      %v7932 = vld [vmem:[%s5098 + $0x48] sm:$0xe]
      %v7933 = vld [vmem:[%s5098 + $0x4c] sm:$0xf]
      %v7934 = vld [vmem:[%s5098 + $0x50] sm:$0x1]
      %v7935 = vld [vmem:[%s5098 + $0x54] sm:$0xe]
      %v7936 = vld [vmem:[%s5098 + $0x58] sm:$0xf]
      %v7937 = vld [vmem:[%s5098 + $0x5c] sm:$0x1]
      %v7938 = vld [vmem:[%s5098 + $0x60] sm:$0xe]
      %v7939 = vld [vmem:[%s5098 + $0x64] sm:$0xf]
      %v7940 = vld [vmem:[%s5098 + $0x68] sm:$0x1]
      %v7941 = vld [vmem:[%s5098 + $0x6c] sm:$0xe]
      %v7942 = vld [vmem:[%s5098 + $0x70] sm:$0xf]
      %v7943 = vld [vmem:[%s5098 + $0x74] sm:$0x1]
      %v7944 = vld [vmem:[%s5098 + $0x78] sm:$0xe]
      %v7945 = vld [vmem:[%s5098 + $0x7c] sm:$0xf]
      %v7946 = vld [vmem:[%s5098 + $0x80] sm:$0x1]
      %v7947 = vld [vmem:[%s5098 + $0x84] sm:$0xe]
      %v7948 = vld [vmem:[%s5098 + $0x88] sm:$0xf]
      %v7949 = vld [vmem:[%s5098 + $0x8c] sm:$0x1]
      %v7950 = vld [vmem:[%s5098 + $0x90] sm:$0xe]
      %v7951 = vld [vmem:[%s5098 + $0x94] sm:$0xf]
      %v7952 = vld [vmem:[%s5098 + $0x98] sm:$0x1]
      %v7953 = vld [vmem:[%s5098 + $0x9c] sm:$0xe]
      %v7954 = vld [vmem:[%s5098 + $0xa0] sm:$0xf]
      %v7955 = vld [vmem:[%s5098 + $0xa4] sm:$0x1]
      %v7956 = vld [vmem:[%s5098 + $0xa8] sm:$0xe]
      %v7957 = vld [vmem:[%s5098 + $0xac] sm:$0xf]
      %v7958 = vld [vmem:[%s5098 + $0xb0] sm:$0x1]
      %v7959 = vld [vmem:[%s5098 + $0xb4] sm:$0xe]
      %v7960 = vld [vmem:[%s5098 + $0xb8] sm:$0xf]
      %v7961 = vld [vmem:[%s5098 + $0xbc] sm:$0x1]
      %v8010 = vrot.slane %v7914, 5
      %v8011 = vrot.slane %v8010, 4
      %v8012 = vrot.slane %v7915, 5
      %v8013 = vsel %vm2666, %v8011, %v8012
      %v8014 = vrot.slane %v8012, 4
      %v8015 = vrot.slane %v7916, 5
      %v8016 = vsel %vm2666, %v8014, %v8015
      %v8017 = vrot.slane %v7917, 5
      %v8018 = vrot.slane %v8017, 4
      %v8019 = vrot.slane %v7918, 5
      %v8020 = vsel %vm2666, %v8018, %v8019
      %v8021 = vrot.slane %v8019, 4
      %v8022 = vrot.slane %v7919, 5
      %v8023 = vsel %vm2666, %v8021, %v8022
      %v8024 = vrot.slane %v7920, 5
      %v8025 = vrot.slane %v8024, 4
      %v8026 = vrot.slane %v7921, 5
      %v8027 = vsel %vm2666, %v8025, %v8026
      %v8028 = vrot.slane %v8026, 4
      %v8029 = vrot.slane %v7922, 5
      %v8030 = vsel %vm2666, %v8028, %v8029
      %v8031 = vrot.slane %v7923, 5
      %v8032 = vrot.slane %v8031, 4
      %v8033 = vrot.slane %v7924, 5
      %v8034 = vsel %vm2666, %v8032, %v8033
      %v8035 = vrot.slane %v8033, 4
      %v8036 = vrot.slane %v7925, 5
      %v8037 = vsel %vm2666, %v8035, %v8036
      %v8038 = vrot.slane %v7926, 5
      %v8039 = vrot.slane %v8038, 4
      %v8040 = vrot.slane %v7927, 5
      %v8041 = vsel %vm2666, %v8039, %v8040
      %v8042 = vrot.slane %v8040, 4
      %v8043 = vrot.slane %v7928, 5
      %v8044 = vsel %vm2666, %v8042, %v8043
      %v8045 = vrot.slane %v7929, 5
      %v8046 = vrot.slane %v8045, 4
      %v8047 = vrot.slane %v7930, 5
      %v8048 = vsel %vm2666, %v8046, %v8047
      %v8049 = vrot.slane %v8047, 4
      %v8050 = vrot.slane %v7931, 5
      %v8051 = vsel %vm2666, %v8049, %v8050
      %v8052 = vrot.slane %v7932, 5
      %v8053 = vrot.slane %v8052, 4
      %v8054 = vrot.slane %v7933, 5
      %v8055 = vsel %vm2666, %v8053, %v8054
      %v8056 = vrot.slane %v8054, 4
      %v8057 = vrot.slane %v7934, 5
      %v8058 = vsel %vm2666, %v8056, %v8057
      %v8059 = vrot.slane %v7935, 5
      %v8060 = vrot.slane %v8059, 4
      %v8061 = vrot.slane %v7936, 5
      %v8062 = vsel %vm2666, %v8060, %v8061
      %v8063 = vrot.slane %v8061, 4
      %v8064 = vrot.slane %v7937, 5
      %v8065 = vsel %vm2666, %v8063, %v8064
      %v8066 = vrot.slane %v7938, 5
      %v8067 = vrot.slane %v8066, 4
      %v8068 = vrot.slane %v7939, 5
      %v8069 = vsel %vm2666, %v8067, %v8068
      %v8070 = vrot.slane %v8068, 4
      %v8071 = vrot.slane %v7940, 5
      %v8072 = vsel %vm2666, %v8070, %v8071
      %v8073 = vrot.slane %v7941, 5
      %v8074 = vrot.slane %v8073, 4
      %v8075 = vrot.slane %v7942, 5
      %v8076 = vsel %vm2666, %v8074, %v8075
      %v8077 = vrot.slane %v8075, 4
      %v8078 = vrot.slane %v7943, 5
      %v8079 = vsel %vm2666, %v8077, %v8078
      %v8080 = vrot.slane %v7944, 5
      %v8081 = vrot.slane %v8080, 4
      %v8082 = vrot.slane %v7945, 5
      %v8083 = vsel %vm2666, %v8081, %v8082
      %v8084 = vrot.slane %v8082, 4
      %v8085 = vrot.slane %v7946, 5
      %v8086 = vsel %vm2666, %v8084, %v8085
      %v8087 = vrot.slane %v7947, 5
      %v8088 = vrot.slane %v8087, 4
      %v8089 = vrot.slane %v7948, 5
      %v8090 = vsel %vm2666, %v8088, %v8089
      %v8091 = vrot.slane %v8089, 4
      %v8092 = vrot.slane %v7949, 5
      %v8093 = vsel %vm2666, %v8091, %v8092
      %v8094 = vrot.slane %v7950, 5
      %v8095 = vrot.slane %v8094, 4
      %v8096 = vrot.slane %v7951, 5
      %v8097 = vsel %vm2666, %v8095, %v8096
      %v8098 = vrot.slane %v8096, 4
      %v8099 = vrot.slane %v7952, 5
      %v8100 = vsel %vm2666, %v8098, %v8099
      %v8101 = vrot.slane %v7953, 5
      %v8102 = vrot.slane %v8101, 4
      %v8103 = vrot.slane %v7954, 5
      %v8104 = vsel %vm2666, %v8102, %v8103
      %v8105 = vrot.slane %v8103, 4
      %v8106 = vrot.slane %v7955, 5
      %v8107 = vsel %vm2666, %v8105, %v8106
      %v8108 = vrot.slane %v7956, 5
      %v8109 = vrot.slane %v8108, 4
      %v8110 = vrot.slane %v7957, 5
      %v8111 = vsel %vm2666, %v8109, %v8110
      %v8112 = vrot.slane %v8110, 4
      %v8113 = vrot.slane %v7958, 5
      %v8114 = vsel %vm2666, %v8112, %v8113
      %v8115 = vrot.slane %v7959, 5
      %v8116 = vrot.slane %v8115, 4
      %v8117 = vrot.slane %v7960, 5
      %v8118 = vsel %vm2666, %v8116, %v8117
      %v8119 = vrot.slane %v8117, 4
      %v8120 = vrot.slane %v7961, 5
      %v8121 = vsel %vm2666, %v8119, %v8120
      %8122 = vrot.lane.b32.xlu0 %v8013, 24
      %v8123 = vpop.permute.xlu0 %8122
      %8124 = vrot.lane.b32.xlu0 %v8016, 24
      %v8125 = vpop.permute.xlu0 %8124
      %8126 = vrot.lane.b32.xlu0 %v8020, 24
      %v8127 = vpop.permute.xlu0 %8126
      %8128 = vrot.lane.b32.xlu0 %v8023, 24
      %v8129 = vpop.permute.xlu0 %8128
      %8130 = vrot.lane.b32.xlu0 %v8027, 24
      %v8131 = vpop.permute.xlu0 %8130
      %8132 = vrot.lane.b32.xlu0 %v8030, 24
      %v8133 = vpop.permute.xlu0 %8132
      %8134 = vrot.lane.b32.xlu0 %v8034, 24
      %v8135 = vpop.permute.xlu0 %8134
      %8136 = vrot.lane.b32.xlu0 %v8037, 24
      %v8137 = vpop.permute.xlu0 %8136
      %8138 = vrot.lane.b32.xlu0 %v8041, 24
      %v8139 = vpop.permute.xlu0 %8138
      %8140 = vrot.lane.b32.xlu0 %v8044, 24
      %v8141 = vpop.permute.xlu0 %8140
      %8142 = vrot.lane.b32.xlu0 %v8048, 24
      %v8143 = vpop.permute.xlu0 %8142
      %8144 = vrot.lane.b32.xlu0 %v8051, 24
      %v8145 = vpop.permute.xlu0 %8144
      %8146 = vrot.lane.b32.xlu0 %v8055, 24
      %v8147 = vpop.permute.xlu0 %8146
      %8148 = vrot.lane.b32.xlu0 %v8058, 24
      %v8149 = vpop.permute.xlu0 %8148
      %8150 = vrot.lane.b32.xlu0 %v8062, 24
      %v8151 = vpop.permute.xlu0 %8150
      %8152 = vrot.lane.b32.xlu0 %v8065, 24
      %v8153 = vpop.permute.xlu0 %8152
      %8154 = vrot.lane.b32.xlu0 %v8069, 24
      %v8155 = vpop.permute.xlu0 %8154
      %8156 = vrot.lane.b32.xlu0 %v8072, 24
      %v8157 = vpop.permute.xlu0 %8156
      %8158 = vrot.lane.b32.xlu0 %v8076, 24
      %v8159 = vpop.permute.xlu0 %8158
      %8160 = vrot.lane.b32.xlu0 %v8079, 24
      %v8161 = vpop.permute.xlu0 %8160
      %8162 = vrot.lane.b32.xlu0 %v8083, 24
      %v8163 = vpop.permute.xlu0 %8162
      %8164 = vrot.lane.b32.xlu0 %v8086, 24
      %v8165 = vpop.permute.xlu0 %8164
      %8166 = vrot.lane.b32.xlu0 %v8090, 24
      %v8167 = vpop.permute.xlu0 %8166
      %8168 = vrot.lane.b32.xlu0 %v8093, 24
      %v8169 = vpop.permute.xlu0 %8168
      %8170 = vrot.lane.b32.xlu0 %v8097, 24
      %v8171 = vpop.permute.xlu0 %8170
      %8172 = vrot.lane.b32.xlu0 %v8100, 24
      %v8173 = vpop.permute.xlu0 %8172
      %8174 = vrot.lane.b32.xlu0 %v8104, 24
      %v8175 = vpop.permute.xlu0 %8174
      %8176 = vrot.lane.b32.xlu0 %v8107, 24
      %v8177 = vpop.permute.xlu0 %8176
      %8178 = vrot.lane.b32.xlu0 %v8111, 24
      %v8179 = vpop.permute.xlu0 %8178
      %8180 = vrot.lane.b32.xlu0 %v8114, 24
      %v8181 = vpop.permute.xlu0 %8180
      %8182 = vrot.lane.b32.xlu0 %v8118, 24
      %v8183 = vpop.permute.xlu0 %8182
      %8184 = vrot.lane.b32.xlu0 %v8121, 24
      %v8185 = vpop.permute.xlu0 %8184
      %8218 = vst.msk [vmem:[#allocation2] sm:$0xf] %vm1496, %v8123
      %8219 = vst.msk [vmem:[#allocation2 + $0x4] sm:$0xf] %vm1496, %v8125
      %8220 = vst.msk [vmem:[#allocation2 + $0x8] sm:$0xf] %vm1496, %v8127
      %8221 = vst.msk [vmem:[#allocation2 + $0xc] sm:$0xf] %vm1496, %v8129
      %8222 = vst.msk [vmem:[#allocation2 + $0x10] sm:$0xf] %vm1496, %v8131
      %8223 = vst.msk [vmem:[#allocation2 + $0x14] sm:$0xf] %vm1496, %v8133
      %8224 = vst.msk [vmem:[#allocation2 + $0x18] sm:$0xf] %vm1496, %v8135
      %8225 = vst.msk [vmem:[#allocation2 + $0x1c] sm:$0xf] %vm1496, %v8137
      %8226 = vst.msk [vmem:[#allocation2 + $0x20] sm:$0xf] %vm1496, %v8139
      %8227 = vst.msk [vmem:[#allocation2 + $0x24] sm:$0xf] %vm1496, %v8141
      %8228 = vst.msk [vmem:[#allocation2 + $0x28] sm:$0xf] %vm1496, %v8143
      %8229 = vst.msk [vmem:[#allocation2 + $0x2c] sm:$0xf] %vm1496, %v8145
      %8230 = vst.msk [vmem:[#allocation2 + $0x30] sm:$0xf] %vm1496, %v8147
      %8231 = vst.msk [vmem:[#allocation2 + $0x34] sm:$0xf] %vm1496, %v8149
      %8232 = vst.msk [vmem:[#allocation2 + $0x38] sm:$0xf] %vm1496, %v8151
      %8233 = vst.msk [vmem:[#allocation2 + $0x3c] sm:$0xf] %vm1496, %v8153
      %8234 = vst.msk [vmem:[#allocation2 + $0x40] sm:$0xf] %vm1496, %v8155
      %8235 = vst.msk [vmem:[#allocation2 + $0x44] sm:$0xf] %vm1496, %v8157
      %8236 = vst.msk [vmem:[#allocation2 + $0x48] sm:$0xf] %vm1496, %v8159
      %8237 = vst.msk [vmem:[#allocation2 + $0x4c] sm:$0xf] %vm1496, %v8161
      %8238 = vst.msk [vmem:[#allocation2 + $0x50] sm:$0xf] %vm1496, %v8163
      %8239 = vst.msk [vmem:[#allocation2 + $0x54] sm:$0xf] %vm1496, %v8165
      %8240 = vst.msk [vmem:[#allocation2 + $0x58] sm:$0xf] %vm1496, %v8167
      %8241 = vst.msk [vmem:[#allocation2 + $0x5c] sm:$0xf] %vm1496, %v8169
      %8242 = vst.msk [vmem:[#allocation2 + $0x60] sm:$0xf] %vm1496, %v8171
      %8243 = vst.msk [vmem:[#allocation2 + $0x64] sm:$0xf] %vm1496, %v8173
      %8244 = vst.msk [vmem:[#allocation2 + $0x68] sm:$0xf] %vm1496, %v8175
      %8245 = vst.msk [vmem:[#allocation2 + $0x6c] sm:$0xf] %vm1496, %v8177
      %8246 = vst.msk [vmem:[#allocation2 + $0x70] sm:$0xf] %vm1496, %v8179
      %8247 = vst.msk [vmem:[#allocation2 + $0x74] sm:$0xf] %vm1496, %v8181
      %8248 = vst.msk [vmem:[#allocation2 + $0x78] sm:$0xf] %vm1496, %v8183
      %8249 = vst.msk [vmem:[#allocation2 + $0x7c] sm:$0xf] %vm1496, %v8185
      %v8250 = vld [vmem:[#allocation2] sm:$0xf]
      %v8251 = vld [vmem:[#allocation2 + $0x4] sm:$0xf]
      %v8252 = vld [vmem:[#allocation2 + $0x8] sm:$0xf]
      %v8253 = vld [vmem:[#allocation2 + $0xc] sm:$0xf]
      %v8254 = vld [vmem:[#allocation2 + $0x10] sm:$0xf]
      %v8255 = vld [vmem:[#allocation2 + $0x14] sm:$0xf]
      %v8256 = vld [vmem:[#allocation2 + $0x18] sm:$0xf]
      %v8257 = vld [vmem:[#allocation2 + $0x1c] sm:$0xf]
      %v8258 = vld [vmem:[#allocation2 + $0x20] sm:$0xf]
      %v8259 = vld [vmem:[#allocation2 + $0x24] sm:$0xf]
      %v8260 = vld [vmem:[#allocation2 + $0x28] sm:$0xf]
      %v8261 = vld [vmem:[#allocation2 + $0x2c] sm:$0xf]
      %v8262 = vld [vmem:[#allocation2 + $0x30] sm:$0xf]
      %v8263 = vld [vmem:[#allocation2 + $0x34] sm:$0xf]
      %v8264 = vld [vmem:[#allocation2 + $0x38] sm:$0xf]
      %v8265 = vld [vmem:[#allocation2 + $0x3c] sm:$0xf]
      %v8266 = vld [vmem:[#allocation2 + $0x40] sm:$0xf]
      %v8267 = vld [vmem:[#allocation2 + $0x44] sm:$0xf]
      %v8268 = vld [vmem:[#allocation2 + $0x48] sm:$0xf]
      %v8269 = vld [vmem:[#allocation2 + $0x4c] sm:$0xf]
      %v8270 = vld [vmem:[#allocation2 + $0x50] sm:$0xf]
      %v8271 = vld [vmem:[#allocation2 + $0x54] sm:$0xf]
      %v8272 = vld [vmem:[#allocation2 + $0x58] sm:$0xf]
      %v8273 = vld [vmem:[#allocation2 + $0x5c] sm:$0xf]
      %v8274 = vld [vmem:[#allocation2 + $0x60] sm:$0xf]
      %v8275 = vld [vmem:[#allocation2 + $0x64] sm:$0xf]
      %v8276 = vld [vmem:[#allocation2 + $0x68] sm:$0xf]
      %v8277 = vld [vmem:[#allocation2 + $0x6c] sm:$0xf]
      %v8278 = vld [vmem:[#allocation2 + $0x70] sm:$0xf]
      %v8279 = vld [vmem:[#allocation2 + $0x74] sm:$0xf]
      %v8280 = vld [vmem:[#allocation2 + $0x78] sm:$0xf]
      %v8281 = vld [vmem:[#allocation2 + $0x7c] sm:$0xf]
      %s8282 = scalar_lea.vmem %s1, 48
      %v8283 = vld [vmem:[%s8282] sm:$0xf]
      %v8284 = vld [vmem:[%s8282 + $0x4] sm:$0xf]
      %v8285 = vld [vmem:[%s8282 + $0x8] sm:$0xf]
      %v8286 = vld [vmem:[%s8282 + $0xc] sm:$0xf]
      %v8319 = vunpack.c.l.b16 %v8250
      %v8320 = vunpack.c.l.b16 %v8251
      %v8321 = vunpack.c.l.b16 %v8252
      %v8322 = vunpack.c.l.b16 %v8253
      %v8323 = vunpack.c.l.b16 %v8254
      %v8324 = vunpack.c.l.b16 %v8255
      %v8325 = vunpack.c.l.b16 %v8256
      %v8326 = vunpack.c.l.b16 %v8257
      %v8327 = vunpack.c.l.b16 %v8258
      %v8328 = vunpack.c.l.b16 %v8259
      %v8329 = vunpack.c.l.b16 %v8260
      %v8330 = vunpack.c.l.b16 %v8261
      %v8331 = vunpack.c.l.b16 %v8262
      %v8332 = vunpack.c.l.b16 %v8263
      %v8333 = vunpack.c.l.b16 %v8264
      %v8334 = vunpack.c.l.b16 %v8265
      %v8335 = vunpack.c.l.b16 %v8266
      %v8336 = vunpack.c.l.b16 %v8267
      %v8337 = vunpack.c.l.b16 %v8268
      %v8338 = vunpack.c.l.b16 %v8269
      %v8339 = vunpack.c.l.b16 %v8270
      %v8340 = vunpack.c.l.b16 %v8271
      %v8341 = vunpack.c.l.b16 %v8272
      %v8342 = vunpack.c.l.b16 %v8273
      %v8343 = vunpack.c.l.b16 %v8274
      %v8344 = vunpack.c.l.b16 %v8275
      %v8345 = vunpack.c.l.b16 %v8276
      %v8346 = vunpack.c.l.b16 %v8277
      %v8347 = vunpack.c.l.b16 %v8278
      %v8348 = vunpack.c.l.b16 %v8279
      %v8349 = vunpack.c.l.b16 %v8280
      %v8350 = vunpack.c.l.b16 %v8281
      %v8351 = vpack.c.b16 %v8320, %v8319
      %v8352 = vpack.c.b16 %v8322, %v8321
      %v8353 = vpack.c.b16 %v8324, %v8323
      %v8354 = vpack.c.b16 %v8326, %v8325
      %v8355 = vpack.c.b16 %v8328, %v8327
      %v8356 = vpack.c.b16 %v8330, %v8329
      %v8357 = vpack.c.b16 %v8332, %v8331
      %v8358 = vpack.c.b16 %v8334, %v8333
      %v8359 = vpack.c.b16 %v8336, %v8335
      %v8360 = vpack.c.b16 %v8338, %v8337
      %v8361 = vpack.c.b16 %v8340, %v8339
      %v8362 = vpack.c.b16 %v8342, %v8341
      %v8363 = vpack.c.b16 %v8344, %v8343
      %v8364 = vpack.c.b16 %v8346, %v8345
      %v8365 = vpack.c.b16 %v8348, %v8347
      %v8366 = vpack.c.b16 %v8350, %v8349
      %v8371 = vunpack.c.l.b16 %v8283
      %v8372 = vunpack.c.l.b16 %v8284
      %v8373 = vunpack.c.l.b16 %v8285
      %v8374 = vunpack.c.l.b16 %v8286
      %v8375 = vpack.c.b16 %v8372, %v8371
      %v8376 = vpack.c.b16 %v8374, %v8373
      %v8380 = vsel %vm1657, %v8351, 0
      %v8383 = vsel %vm1657, %v8352, 0
      %v8386 = vsel %vm1657, %v8353, 0
      %v8389 = vsel %vm1657, %v8354, 0
      %v8392 = vsel %vm1657, %v8355, 0
      %v8395 = vsel %vm1657, %v8356, 0
      %v8398 = vsel %vm1657, %v8357, 0
      %v8401 = vsel %vm1657, %v8358, 0
      %v8404 = vsel %vm1657, %v8359, 0
      %v8407 = vsel %vm1657, %v8360, 0
      %v8410 = vsel %vm1657, %v8361, 0
      %v8413 = vsel %vm1657, %v8362, 0
      %v8416 = vsel %vm1657, %v8363, 0
      %v8419 = vsel %vm1657, %v8364, 0
      %v8422 = vsel %vm1657, %v8365, 0
      %v8425 = vsel %vm1657, %v8366, 0
      %8427 = vmatprep.subr.bf16.mxu0 0
      %8428 = vmatpush1.bf16.msra.mxu0 0
      %8429 = vmatprep.subr.bf16.mxu0 0
      %8430 = vmatpush1.bf16.msra.mxu0 0
      %8431 = vmatprep.subr.bf16.mxu0 0
      %8432 = vmatpush1.bf16.msra.mxu0 0
      %8433 = vmatprep.subr.bf16.mxu0 0
      %8434 = vmatpush1.bf16.msra.mxu0 0
      %8435 = vmatprep.subr.bf16.mxu0 0
      %8436 = vmatpush1.bf16.msra.mxu0 0
      %8437 = vmatprep.subr.bf16.mxu0 0
      %8438 = vmatpush1.bf16.msra.mxu0 0
      %8439 = vmatprep.subr.bf16.mxu0 0
      %8440 = vmatpush1.bf16.msra.mxu0 %v8376
      %8441 = vmatprep.subr.bf16.mxu0 0
      %8442 = vmatpush1.bf16.msra.mxu0 %v8375
      %8443 = vmatprep.subr.bf16.mxu0 0
      %8444 = vmatpush2.bf16.msra.mxu0 0
      %8445 = vmatprep.subr.bf16.mxu0 0
      %8446 = vmatpush2.bf16.msra.mxu0 0
      %8447 = vmatprep.subr.bf16.mxu0 0
      %8448 = vmatpush2.bf16.msra.mxu0 0
      %8449 = vmatprep.subr.bf16.mxu0 0
      %8450 = vmatpush2.bf16.msra.mxu0 0
      %8451 = vmatprep.subr.bf16.mxu0 0
      %8452 = vmatpush2.bf16.msra.mxu0 0
      %8453 = vmatprep.subr.bf16.mxu0 0
      %8454 = vmatpush2.bf16.msra.mxu0 0
      %8455 = vmatprep.subr.bf16.mxu0 0
      %8456 = vmatpush2.bf16.msra.mxu0 0
      %8457 = vmatprep.subr.bf16.mxu0 0
      %8458 = vmatpush2.bf16.msra.mxu0 0
      %8459 = vmatprep.mubr.bf16.mxu0 0
      %8460 = vmatmul.mubr.bf16.gmra.mxu0 %v8380
      %v8461 = vpop.f32.mrf.mxu0
      %v8462 = vadd.f32 0.0, %v8461
      %v8463 = vpop.f32.mrf.mxu0
      %v8464 = vpop.f32.mrf.mxu0
      %v8465 = vadd.f32 0.0, %v8464
      %v8466 = vpop.f32.mrf.mxu0
      %8467 = vmatprep.mubr.bf16.mxu0 0
      %8468 = vmatmul.mubr.bf16.gmra.mxu0 %v8383
      %v8469 = vpop.f32.mrf.mxu0
      %v8470 = vadd.f32 0.0, %v8469
      %v8471 = vpop.f32.mrf.mxu0
      %v8472 = vpop.f32.mrf.mxu0
      %v8473 = vadd.f32 0.0, %v8472
      %v8474 = vpop.f32.mrf.mxu0
      %8475 = vmatprep.mubr.bf16.mxu0 0
      %8476 = vmatmul.mubr.bf16.gmra.mxu0 %v8386
      %v8477 = vpop.f32.mrf.mxu0
      %v8478 = vadd.f32 0.0, %v8477
      %v8479 = vpop.f32.mrf.mxu0
      %v8480 = vpop.f32.mrf.mxu0
      %v8481 = vadd.f32 0.0, %v8480
      %v8482 = vpop.f32.mrf.mxu0
      %8483 = vmatprep.mubr.bf16.mxu0 0
      %8484 = vmatmul.mubr.bf16.gmra.mxu0 %v8389
      %v8485 = vpop.f32.mrf.mxu0
      %v8486 = vadd.f32 0.0, %v8485
      %v8487 = vpop.f32.mrf.mxu0
      %v8488 = vpop.f32.mrf.mxu0
      %v8489 = vadd.f32 0.0, %v8488
      %v8490 = vpop.f32.mrf.mxu0
      %8491 = vmatprep.mubr.bf16.mxu0 0
      %8492 = vmatmul.mubr.bf16.gmra.mxu0 %v8392
      %v8493 = vpop.f32.mrf.mxu0
      %v8494 = vadd.f32 0.0, %v8493
      %v8495 = vpop.f32.mrf.mxu0
      %v8496 = vpop.f32.mrf.mxu0
      %v8497 = vadd.f32 0.0, %v8496
      %v8498 = vpop.f32.mrf.mxu0
      %8499 = vmatprep.mubr.bf16.mxu0 0
      %8500 = vmatmul.mubr.bf16.gmra.mxu0 %v8395
      %v8501 = vpop.f32.mrf.mxu0
      %v8502 = vadd.f32 0.0, %v8501
      %v8503 = vpop.f32.mrf.mxu0
      %v8504 = vpop.f32.mrf.mxu0
      %v8505 = vadd.f32 0.0, %v8504
      %v8506 = vpop.f32.mrf.mxu0
      %8507 = vmatprep.mubr.bf16.mxu0 0
      %8508 = vmatmul.mubr.bf16.gmra.mxu0 %v8398
      %v8509 = vpop.f32.mrf.mxu0
      %v8510 = vadd.f32 0.0, %v8509
      %v8511 = vpop.f32.mrf.mxu0
      %v8512 = vpop.f32.mrf.mxu0
      %v8513 = vadd.f32 0.0, %v8512
      %v8514 = vpop.f32.mrf.mxu0
      %8515 = vmatprep.mubr.bf16.mxu0 0
      %8516 = vmatmul.mubr.bf16.gmra.mxu0 %v8401
      %v8517 = vpop.f32.mrf.mxu0
      %v8518 = vadd.f32 0.0, %v8517
      %v8519 = vpop.f32.mrf.mxu0
      %v8520 = vpop.f32.mrf.mxu0
      %v8521 = vadd.f32 0.0, %v8520
      %v8522 = vpop.f32.mrf.mxu0
      %8523 = vmatprep.mubr.bf16.mxu0 0
      %8524 = vmatmul.mubr.bf16.gmra.mxu0 %v8404
      %v8525 = vpop.f32.mrf.mxu0
      %v8526 = vadd.f32 0.0, %v8525
      %v8527 = vpop.f32.mrf.mxu0
      %v8528 = vpop.f32.mrf.mxu0
      %v8529 = vadd.f32 0.0, %v8528
      %v8530 = vpop.f32.mrf.mxu0
      %8531 = vmatprep.mubr.bf16.mxu0 0
      %8532 = vmatmul.mubr.bf16.gmra.mxu0 %v8407
      %v8533 = vpop.f32.mrf.mxu0
      %v8534 = vadd.f32 0.0, %v8533
      %v8535 = vpop.f32.mrf.mxu0
      %v8536 = vpop.f32.mrf.mxu0
      %v8537 = vadd.f32 0.0, %v8536
      %v8538 = vpop.f32.mrf.mxu0
      %8539 = vmatprep.mubr.bf16.mxu0 0
      %8540 = vmatmul.mubr.bf16.gmra.mxu0 %v8410
      %v8541 = vpop.f32.mrf.mxu0
      %v8542 = vadd.f32 0.0, %v8541
      %v8543 = vpop.f32.mrf.mxu0
      %v8544 = vpop.f32.mrf.mxu0
      %v8545 = vadd.f32 0.0, %v8544
      %v8546 = vpop.f32.mrf.mxu0
      %8547 = vmatprep.mubr.bf16.mxu0 0
      %8548 = vmatmul.mubr.bf16.gmra.mxu0 %v8413
      %v8549 = vpop.f32.mrf.mxu0
      %v8550 = vadd.f32 0.0, %v8549
      %v8551 = vpop.f32.mrf.mxu0
      %v8552 = vpop.f32.mrf.mxu0
      %v8553 = vadd.f32 0.0, %v8552
      %v8554 = vpop.f32.mrf.mxu0
      %8555 = vmatprep.mubr.bf16.mxu0 0
      %8556 = vmatmul.mubr.bf16.gmra.mxu0 %v8416
      %v8557 = vpop.f32.mrf.mxu0
      %v8558 = vadd.f32 0.0, %v8557
      %v8559 = vpop.f32.mrf.mxu0
      %v8560 = vpop.f32.mrf.mxu0
      %v8561 = vadd.f32 0.0, %v8560
      %v8562 = vpop.f32.mrf.mxu0
      %8563 = vmatprep.mubr.bf16.mxu0 0
      %8564 = vmatmul.mubr.bf16.gmra.mxu0 %v8419
      %v8565 = vpop.f32.mrf.mxu0
      %v8566 = vadd.f32 0.0, %v8565
      %v8567 = vpop.f32.mrf.mxu0
      %v8568 = vpop.f32.mrf.mxu0
      %v8569 = vadd.f32 0.0, %v8568
      %v8570 = vpop.f32.mrf.mxu0
      %8571 = vmatprep.mubr.bf16.mxu0 0
      %8572 = vmatmul.mubr.bf16.gmra.mxu0 %v8422
      %v8573 = vpop.f32.mrf.mxu0
      %v8574 = vadd.f32 0.0, %v8573
      %v8575 = vpop.f32.mrf.mxu0
      %v8576 = vpop.f32.mrf.mxu0
      %v8577 = vadd.f32 0.0, %v8576
      %v8578 = vpop.f32.mrf.mxu0
      %8579 = vmatprep.mubr.bf16.mxu0 0
      %8580 = vmatmul.mubr.bf16.gmra.mxu0 %v8425
      %v8581 = vpop.f32.mrf.mxu0
      %v8582 = vadd.f32 0.0, %v8581
      %v8583 = vpop.f32.mrf.mxu0
      %v8584 = vpop.f32.mrf.mxu0
      %v8585 = vadd.f32 0.0, %v8584
      %v8586 = vpop.f32.mrf.mxu0
      %8587 = vdwg.mxu0
      %v8588 = vsel %vm1867, %v8462, 0.0
      %v8589 = vsel %vm1867, %v8465, 0.0
      %v8590 = vadd.f32 %v8588, %v8589
      %v8591 = vsel %vm1867, %v8470, 0.0
      %v8592 = vadd.f32 %v8590, %v8591
      %v8593 = vsel %vm1867, %v8473, 0.0
      %v8594 = vadd.f32 %v8592, %v8593
      %v8595 = vsel %vm1867, %v8478, 0.0
      %v8596 = vadd.f32 %v8594, %v8595
      %v8597 = vsel %vm1867, %v8481, 0.0
      %v8598 = vadd.f32 %v8596, %v8597
      %v8599 = vsel %vm1867, %v8486, 0.0
      %v8600 = vadd.f32 %v8598, %v8599
      %v8601 = vsel %vm1867, %v8489, 0.0
      %v8602 = vadd.f32 %v8600, %v8601
      %v8603 = vsel %vm1867, %v8494, 0.0
      %v8604 = vadd.f32 %v8602, %v8603
      %v8605 = vsel %vm1867, %v8497, 0.0
      %v8606 = vadd.f32 %v8604, %v8605
      %v8607 = vsel %vm1867, %v8502, 0.0
      %v8608 = vadd.f32 %v8606, %v8607
      %v8609 = vsel %vm1867, %v8505, 0.0
      %v8610 = vadd.f32 %v8608, %v8609
      %v8611 = vsel %vm1867, %v8510, 0.0
      %v8612 = vadd.f32 %v8610, %v8611
      %v8613 = vsel %vm1867, %v8513, 0.0
      %v8614 = vadd.f32 %v8612, %v8613
      %v8615 = vsel %vm1867, %v8518, 0.0
      %v8616 = vadd.f32 %v8614, %v8615
      %v8617 = vsel %vm1867, %v8521, 0.0
      %v8618 = vadd.f32 %v8616, %v8617
      %v8619 = vsel %vm1867, %v8526, 0.0
      %v8620 = vadd.f32 %v8618, %v8619
      %v8621 = vsel %vm1867, %v8529, 0.0
      %v8622 = vadd.f32 %v8620, %v8621
      %v8623 = vsel %vm1867, %v8534, 0.0
      %v8624 = vadd.f32 %v8622, %v8623
      %v8625 = vsel %vm1867, %v8537, 0.0
      %v8626 = vadd.f32 %v8624, %v8625
      %v8627 = vsel %vm1867, %v8542, 0.0
      %v8628 = vadd.f32 %v8626, %v8627
      %v8629 = vsel %vm1867, %v8545, 0.0
      %v8630 = vadd.f32 %v8628, %v8629
      %v8631 = vsel %vm1867, %v8550, 0.0
      %v8632 = vadd.f32 %v8630, %v8631
      %v8633 = vsel %vm1867, %v8553, 0.0
      %v8634 = vadd.f32 %v8632, %v8633
      %v8635 = vsel %vm1867, %v8558, 0.0
      %v8636 = vadd.f32 %v8634, %v8635
      %v8637 = vsel %vm1867, %v8561, 0.0
      %v8638 = vadd.f32 %v8636, %v8637
      %v8639 = vsel %vm1867, %v8566, 0.0
      %v8640 = vadd.f32 %v8638, %v8639
      %v8641 = vsel %vm1867, %v8569, 0.0
      %v8642 = vadd.f32 %v8640, %v8641
      %v8643 = vsel %vm1867, %v8574, 0.0
      %v8644 = vadd.f32 %v8642, %v8643
      %v8645 = vsel %vm1867, %v8577, 0.0
      %v8646 = vadd.f32 %v8644, %v8645
      %v8647 = vsel %vm1867, %v8582, 0.0
      %v8648 = vadd.f32 %v8646, %v8647
      %v8649 = vsel %vm1867, %v8585, 0.0
      %v8650 = vadd.f32 %v8648, %v8649
      %v8651 = vrot.slane %v8650, 4
      %v8652 = vadd.f32 %v8650, %v8651
      %v8653 = vrot.slane %v8652, 2
      %v8654 = vadd.f32 %v8652, %v8653
      %v8655 = vrot.slane %v8654, 1
      %v8656 = vadd.f32 %v8654, %v8655
      %v8657 = vadd.f32 %v6258, %v8656
      %v8658 = vmul.f32 %v8462, %v8462
      %v8659 = vmul.f32 %v8465, %v8465
      %v8660 = vmul.f32 %v8470, %v8470
      %v8661 = vmul.f32 %v8473, %v8473
      %v8662 = vmul.f32 %v8478, %v8478
      %v8663 = vmul.f32 %v8481, %v8481
      %v8664 = vmul.f32 %v8486, %v8486
      %v8665 = vmul.f32 %v8489, %v8489
      %v8666 = vmul.f32 %v8494, %v8494
      %v8667 = vmul.f32 %v8497, %v8497
      %v8668 = vmul.f32 %v8502, %v8502
      %v8669 = vmul.f32 %v8505, %v8505
      %v8670 = vmul.f32 %v8510, %v8510
      %v8671 = vmul.f32 %v8513, %v8513
      %v8672 = vmul.f32 %v8518, %v8518
      %v8673 = vmul.f32 %v8521, %v8521
      %v8674 = vmul.f32 %v8526, %v8526
      %v8675 = vmul.f32 %v8529, %v8529
      %v8676 = vmul.f32 %v8534, %v8534
      %v8677 = vmul.f32 %v8537, %v8537
      %v8678 = vmul.f32 %v8542, %v8542
      %v8679 = vmul.f32 %v8545, %v8545
      %v8680 = vmul.f32 %v8550, %v8550
      %v8681 = vmul.f32 %v8553, %v8553
      %v8682 = vmul.f32 %v8558, %v8558
      %v8683 = vmul.f32 %v8561, %v8561
      %v8684 = vmul.f32 %v8566, %v8566
      %v8685 = vmul.f32 %v8569, %v8569
      %v8686 = vmul.f32 %v8574, %v8574
      %v8687 = vmul.f32 %v8577, %v8577
      %v8688 = vmul.f32 %v8582, %v8582
      %v8689 = vmul.f32 %v8585, %v8585
      %v8690 = vsel %vm1867, %v8658, 0.0
      %v8691 = vsel %vm1867, %v8659, 0.0
      %v8692 = vadd.f32 %v8690, %v8691
      %v8693 = vsel %vm1867, %v8660, 0.0
      %v8694 = vadd.f32 %v8692, %v8693
      %v8695 = vsel %vm1867, %v8661, 0.0
      %v8696 = vadd.f32 %v8694, %v8695
      %v8697 = vsel %vm1867, %v8662, 0.0
      %v8698 = vadd.f32 %v8696, %v8697
      %v8699 = vsel %vm1867, %v8663, 0.0
      %v8700 = vadd.f32 %v8698, %v8699
      %v8701 = vsel %vm1867, %v8664, 0.0
      %v8702 = vadd.f32 %v8700, %v8701
      %v8703 = vsel %vm1867, %v8665, 0.0
      %v8704 = vadd.f32 %v8702, %v8703
      %v8705 = vsel %vm1867, %v8666, 0.0
      %v8706 = vadd.f32 %v8704, %v8705
      %v8707 = vsel %vm1867, %v8667, 0.0
      %v8708 = vadd.f32 %v8706, %v8707
      %v8709 = vsel %vm1867, %v8668, 0.0
      %v8710 = vadd.f32 %v8708, %v8709
      %v8711 = vsel %vm1867, %v8669, 0.0
      %v8712 = vadd.f32 %v8710, %v8711
      %v8713 = vsel %vm1867, %v8670, 0.0
      %v8714 = vadd.f32 %v8712, %v8713
      %v8715 = vsel %vm1867, %v8671, 0.0
      %v8716 = vadd.f32 %v8714, %v8715
      %v8717 = vsel %vm1867, %v8672, 0.0
      %v8718 = vadd.f32 %v8716, %v8717
      %v8719 = vsel %vm1867, %v8673, 0.0
      %v8720 = vadd.f32 %v8718, %v8719
      %v8721 = vsel %vm1867, %v8674, 0.0
      %v8722 = vadd.f32 %v8720, %v8721
      %v8723 = vsel %vm1867, %v8675, 0.0
      %v8724 = vadd.f32 %v8722, %v8723
      %v8725 = vsel %vm1867, %v8676, 0.0
      %v8726 = vadd.f32 %v8724, %v8725
      %v8727 = vsel %vm1867, %v8677, 0.0
      %v8728 = vadd.f32 %v8726, %v8727
      %v8729 = vsel %vm1867, %v8678, 0.0
      %v8730 = vadd.f32 %v8728, %v8729
      %v8731 = vsel %vm1867, %v8679, 0.0
      %v8732 = vadd.f32 %v8730, %v8731
      %v8733 = vsel %vm1867, %v8680, 0.0
      %v8734 = vadd.f32 %v8732, %v8733
      %v8735 = vsel %vm1867, %v8681, 0.0
      %v8736 = vadd.f32 %v8734, %v8735
      %v8737 = vsel %vm1867, %v8682, 0.0
      %v8738 = vadd.f32 %v8736, %v8737
      %v8739 = vsel %vm1867, %v8683, 0.0
      %v8740 = vadd.f32 %v8738, %v8739
      %v8741 = vsel %vm1867, %v8684, 0.0
      %v8742 = vadd.f32 %v8740, %v8741
      %v8743 = vsel %vm1867, %v8685, 0.0
      %v8744 = vadd.f32 %v8742, %v8743
      %v8745 = vsel %vm1867, %v8686, 0.0
      %v8746 = vadd.f32 %v8744, %v8745
      %v8747 = vsel %vm1867, %v8687, 0.0
      %v8748 = vadd.f32 %v8746, %v8747
      %v8749 = vsel %vm1867, %v8688, 0.0
      %v8750 = vadd.f32 %v8748, %v8749
      %v8751 = vsel %vm1867, %v8689, 0.0
      %v8752 = vadd.f32 %v8750, %v8751
      %v8753 = vrot.slane %v8752, 4
      %v8754 = vadd.f32 %v8752, %v8753
      %v8755 = vrot.slane %v8754, 2
      %v8756 = vadd.f32 %v8754, %v8755
      %v8757 = vrot.slane %v8756, 1
      %v8758 = vadd.f32 %v8756, %v8757
      %v8759 = vadd.f32 %v6360, %v8758
      %8792 = vrot.lane.b32.xlu0 %v8462, 12
      %v8793 = vpop.permute.xlu0 %8792
      %8794 = vrot.lane.b32.xlu0 %v8465, 12
      %v8795 = vpop.permute.xlu0 %8794
      %8796 = vrot.lane.b32.xlu0 %v8470, 12
      %v8797 = vpop.permute.xlu0 %8796
      %8798 = vrot.lane.b32.xlu0 %v8473, 12
      %v8799 = vpop.permute.xlu0 %8798
      %8800 = vrot.lane.b32.xlu0 %v8478, 12
      %v8801 = vpop.permute.xlu0 %8800
      %8802 = vrot.lane.b32.xlu0 %v8481, 12
      %v8803 = vpop.permute.xlu0 %8802
      %8804 = vrot.lane.b32.xlu0 %v8486, 12
      %v8805 = vpop.permute.xlu0 %8804
      %8806 = vrot.lane.b32.xlu0 %v8489, 12
      %v8807 = vpop.permute.xlu0 %8806
      %8808 = vrot.lane.b32.xlu0 %v8494, 12
      %v8809 = vpop.permute.xlu0 %8808
      %8810 = vrot.lane.b32.xlu0 %v8497, 12
      %v8811 = vpop.permute.xlu0 %8810
      %8812 = vrot.lane.b32.xlu0 %v8502, 12
      %v8813 = vpop.permute.xlu0 %8812
      %8814 = vrot.lane.b32.xlu0 %v8505, 12
      %v8815 = vpop.permute.xlu0 %8814
      %8816 = vrot.lane.b32.xlu0 %v8510, 12
      %v8817 = vpop.permute.xlu0 %8816
      %8818 = vrot.lane.b32.xlu0 %v8513, 12
      %v8819 = vpop.permute.xlu0 %8818
      %8820 = vrot.lane.b32.xlu0 %v8518, 12
      %v8821 = vpop.permute.xlu0 %8820
      %8822 = vrot.lane.b32.xlu0 %v8521, 12
      %v8823 = vpop.permute.xlu0 %8822
      %8824 = vrot.lane.b32.xlu0 %v8526, 12
      %v8825 = vpop.permute.xlu0 %8824
      %8826 = vrot.lane.b32.xlu0 %v8529, 12
      %v8827 = vpop.permute.xlu0 %8826
      %8828 = vrot.lane.b32.xlu0 %v8534, 12
      %v8829 = vpop.permute.xlu0 %8828
      %8830 = vrot.lane.b32.xlu0 %v8537, 12
      %v8831 = vpop.permute.xlu0 %8830
      %8832 = vrot.lane.b32.xlu0 %v8542, 12
      %v8833 = vpop.permute.xlu0 %8832
      %8834 = vrot.lane.b32.xlu0 %v8545, 12
      %v8835 = vpop.permute.xlu0 %8834
      %8836 = vrot.lane.b32.xlu0 %v8550, 12
      %v8837 = vpop.permute.xlu0 %8836
      %8838 = vrot.lane.b32.xlu0 %v8553, 12
      %v8839 = vpop.permute.xlu0 %8838
      %8840 = vrot.lane.b32.xlu0 %v8558, 12
      %v8841 = vpop.permute.xlu0 %8840
      %8842 = vrot.lane.b32.xlu0 %v8561, 12
      %v8843 = vpop.permute.xlu0 %8842
      %8844 = vrot.lane.b32.xlu0 %v8566, 12
      %v8845 = vpop.permute.xlu0 %8844
      %8846 = vrot.lane.b32.xlu0 %v8569, 12
      %v8847 = vpop.permute.xlu0 %8846
      %8848 = vrot.lane.b32.xlu0 %v8574, 12
      %v8849 = vpop.permute.xlu0 %8848
      %8850 = vrot.lane.b32.xlu0 %v8577, 12
      %v8851 = vpop.permute.xlu0 %8850
      %8852 = vrot.lane.b32.xlu0 %v8582, 12
      %v8853 = vpop.permute.xlu0 %8852
      %8854 = vrot.lane.b32.xlu0 %v8585, 12
      %v8855 = vpop.permute.xlu0 %8854
      %vm8888 = vcmask 130144
      %8889 = vst.msk [vmem:[%s143] sm:$0xff] %vm8888, %v8793
      %8890 = vst.msk [vmem:[%s143 + $0x8] sm:$0xff] %vm8888, %v8795
      %8891 = vst.msk [vmem:[%s143 + $0x10] sm:$0xff] %vm8888, %v8797
      %8892 = vst.msk [vmem:[%s143 + $0x18] sm:$0xff] %vm8888, %v8799
      %8893 = vst.msk [vmem:[%s143 + $0x20] sm:$0xff] %vm8888, %v8801
      %8894 = vst.msk [vmem:[%s143 + $0x28] sm:$0xff] %vm8888, %v8803
      %8895 = vst.msk [vmem:[%s143 + $0x30] sm:$0xff] %vm8888, %v8805
      %8896 = vst.msk [vmem:[%s143 + $0x38] sm:$0xff] %vm8888, %v8807
      %8897 = vst.msk [vmem:[%s143 + $0x40] sm:$0xff] %vm8888, %v8809
      %8898 = vst.msk [vmem:[%s143 + $0x48] sm:$0xff] %vm8888, %v8811
      %8899 = vst.msk [vmem:[%s143 + $0x50] sm:$0xff] %vm8888, %v8813
      %8900 = vst.msk [vmem:[%s143 + $0x58] sm:$0xff] %vm8888, %v8815
      %8901 = vst.msk [vmem:[%s143 + $0x60] sm:$0xff] %vm8888, %v8817
      %8902 = vst.msk [vmem:[%s143 + $0x68] sm:$0xff] %vm8888, %v8819
      %8903 = vst.msk [vmem:[%s143 + $0x70] sm:$0xff] %vm8888, %v8821
      %8904 = vst.msk [vmem:[%s143 + $0x78] sm:$0xff] %vm8888, %v8823
      %8905 = vst.msk [vmem:[%s143 + $0x80] sm:$0xff] %vm8888, %v8825
      %8906 = vst.msk [vmem:[%s143 + $0x88] sm:$0xff] %vm8888, %v8827
      %8907 = vst.msk [vmem:[%s143 + $0x90] sm:$0xff] %vm8888, %v8829
      %8908 = vst.msk [vmem:[%s143 + $0x98] sm:$0xff] %vm8888, %v8831
      %8909 = vst.msk [vmem:[%s143 + $0xa0] sm:$0xff] %vm8888, %v8833
      %8910 = vst.msk [vmem:[%s143 + $0xa8] sm:$0xff] %vm8888, %v8835
      %8911 = vst.msk [vmem:[%s143 + $0xb0] sm:$0xff] %vm8888, %v8837
      %8912 = vst.msk [vmem:[%s143 + $0xb8] sm:$0xff] %vm8888, %v8839
      %8913 = vst.msk [vmem:[%s143 + $0xc0] sm:$0xff] %vm8888, %v8841
      %8914 = vst.msk [vmem:[%s143 + $0xc8] sm:$0xff] %vm8888, %v8843
      %8915 = vst.msk [vmem:[%s143 + $0xd0] sm:$0xff] %vm8888, %v8845
      %8916 = vst.msk [vmem:[%s143 + $0xd8] sm:$0xff] %vm8888, %v8847
      %8917 = vst.msk [vmem:[%s143 + $0xe0] sm:$0xff] %vm8888, %v8849
      %8918 = vst.msk [vmem:[%s143 + $0xe8] sm:$0xff] %vm8888, %v8851
      %8919 = vst.msk [vmem:[%s143 + $0xf0] sm:$0xff] %vm8888, %v8853
      %8920 = vst.msk [vmem:[%s143 + $0xf8] sm:$0xff] %vm8888, %v8855
      %v8921 = vrcp.pop 1024.0
      %v8922 = vmul.f32 %v8657, %v8921
      %v8923 = vmul.f32 %v8759, %v8921
      %v8924 = vmul.f32 %v8922, %v8922
      %v8925 = vsub.f32 %v8923, %v8924
      %v8926 = vmax.f32 %v8925, 0.0
      %v8927 = vadd.f32 %v8926, 1e-05
      %v8928 = vrsqrt.pop %v8927
      %8930 = vrot.lane.b32.xlu0 %v8928, 4
      %v8931 = vpop.permute.xlu0 %8930
      %8933 = vrot.lane.b32.xlu0 %v8928, 8
      %v8934 = vpop.permute.xlu0 %8933
      %8936 = vrot.lane.b32.xlu0 %v8928, 12
      %v8937 = vpop.permute.xlu0 %8936
      %v8939 = vsel %vm1867, %v8928, %v8931
      %vm8940 = vcmask 64512
      %v8941 = vsel %vm8940, %v8939, %v8934
      %vm8942 = vcmask 97280
      %v8943 = vsel %vm8942, %v8941, %v8937
      %v8944 = vsub.f32 0.0, %v8922
      %v8945 = vmul.f32 %v8944, %v8928
      %8947 = vrot.lane.b32.xlu0 %v8945, 4
      %v8948 = vpop.permute.xlu0 %8947
      %8950 = vrot.lane.b32.xlu0 %v8945, 8
      %v8951 = vpop.permute.xlu0 %8950
      %8953 = vrot.lane.b32.xlu0 %v8945, 12
      %v8954 = vpop.permute.xlu0 %8953
      %v8956 = vsel %vm1867, %v8945, %v8948
      %v8957 = vsel %vm8940, %v8956, %v8951
      %v8958 = vsel %vm8942, %v8957, %v8954
      %v8959 = vld [vmem:[%s143] sm:$0xff]
      %v8960 = vld [vmem:[%s143 + $0x8] sm:$0xff]
      %v8961 = vld [vmem:[%s143 + $0x10] sm:$0xff]
      %v8962 = vld [vmem:[%s143 + $0x18] sm:$0xff]
      %v8963 = vld [vmem:[%s143 + $0x20] sm:$0xff]
      %v8964 = vld [vmem:[%s143 + $0x28] sm:$0xff]
      %v8965 = vld [vmem:[%s143 + $0x30] sm:$0xff]
      %v8966 = vld [vmem:[%s143 + $0x38] sm:$0xff]
      %v8967 = vld [vmem:[%s143 + $0x40] sm:$0xff]
      %v8968 = vld [vmem:[%s143 + $0x48] sm:$0xff]
      %v8969 = vld [vmem:[%s143 + $0x50] sm:$0xff]
      %v8970 = vld [vmem:[%s143 + $0x58] sm:$0xff]
      %v8971 = vld [vmem:[%s143 + $0x60] sm:$0xff]
      %v8972 = vld [vmem:[%s143 + $0x68] sm:$0xff]
      %v8973 = vld [vmem:[%s143 + $0x70] sm:$0xff]
      %v8974 = vld [vmem:[%s143 + $0x78] sm:$0xff]
      %v8975 = vld [vmem:[%s143 + $0x80] sm:$0xff]
      %v8976 = vld [vmem:[%s143 + $0x88] sm:$0xff]
      %v8977 = vld [vmem:[%s143 + $0x90] sm:$0xff]
      %v8978 = vld [vmem:[%s143 + $0x98] sm:$0xff]
      %v8979 = vld [vmem:[%s143 + $0xa0] sm:$0xff]
      %v8980 = vld [vmem:[%s143 + $0xa8] sm:$0xff]
      %v8981 = vld [vmem:[%s143 + $0xb0] sm:$0xff]
      %v8982 = vld [vmem:[%s143 + $0xb8] sm:$0xff]
      %v8983 = vld [vmem:[%s143 + $0xc0] sm:$0xff]
      %v8984 = vld [vmem:[%s143 + $0xc8] sm:$0xff]
      %v8985 = vld [vmem:[%s143 + $0xd0] sm:$0xff]
      %v8986 = vld [vmem:[%s143 + $0xd8] sm:$0xff]
      %v8987 = vld [vmem:[%s143 + $0xe0] sm:$0xff]
      %v8988 = vld [vmem:[%s143 + $0xe8] sm:$0xff]
      %v8989 = vld [vmem:[%s143 + $0xf0] sm:$0xff]
      %v8990 = vld [vmem:[%s143 + $0xf8] sm:$0xff]
      %v8991 = vlaneseq
      %v8992 = vshrl.u32 %v8991, 7
      %v8993 = vsub.s32 0, %v8992
      %v8994 = vrot.slane %v8943, %v8993
      %v8995 = vmul.f32 %v8959, %v8994
      %v8996 = vmul.f32 %v8960, %v8994
      %v8997 = vmul.f32 %v8961, %v8994
      %v8998 = vmul.f32 %v8962, %v8994
      %v8999 = vmul.f32 %v8963, %v8994
      %v9000 = vmul.f32 %v8964, %v8994
      %v9001 = vmul.f32 %v8965, %v8994
      %v9002 = vmul.f32 %v8966, %v8994
      %v9003 = vmul.f32 %v8967, %v8994
      %v9004 = vmul.f32 %v8968, %v8994
      %v9005 = vmul.f32 %v8969, %v8994
      %v9006 = vmul.f32 %v8970, %v8994
      %v9007 = vmul.f32 %v8971, %v8994
      %v9008 = vmul.f32 %v8972, %v8994
      %v9009 = vmul.f32 %v8973, %v8994
      %v9010 = vmul.f32 %v8974, %v8994
      %v9011 = vmul.f32 %v8975, %v8994
      %v9012 = vmul.f32 %v8976, %v8994
      %v9013 = vmul.f32 %v8977, %v8994
      %v9014 = vmul.f32 %v8978, %v8994
      %v9015 = vmul.f32 %v8979, %v8994
      %v9016 = vmul.f32 %v8980, %v8994
      %v9017 = vmul.f32 %v8981, %v8994
      %v9018 = vmul.f32 %v8982, %v8994
      %v9019 = vmul.f32 %v8983, %v8994
      %v9020 = vmul.f32 %v8984, %v8994
      %v9021 = vmul.f32 %v8985, %v8994
      %v9022 = vmul.f32 %v8986, %v8994
      %v9023 = vmul.f32 %v8987, %v8994
      %v9024 = vmul.f32 %v8988, %v8994
      %v9025 = vmul.f32 %v8989, %v8994
      %v9026 = vmul.f32 %v8990, %v8994
      %v9027 = vlaneseq
      %v9028 = vshrl.u32 %v9027, 7
      %v9029 = vsub.s32 0, %v9028
      %v9030 = vrot.slane %v8958, %v9029
      %v9031 = vadd.f32 %v8995, %v9030
      %v9032 = vadd.f32 %v8996, %v9030
      %v9033 = vadd.f32 %v8997, %v9030
      %v9034 = vadd.f32 %v8998, %v9030
      %v9035 = vadd.f32 %v8999, %v9030
      %v9036 = vadd.f32 %v9000, %v9030
      %v9037 = vadd.f32 %v9001, %v9030
      %v9038 = vadd.f32 %v9002, %v9030
      %v9039 = vadd.f32 %v9003, %v9030
      %v9040 = vadd.f32 %v9004, %v9030
      %v9041 = vadd.f32 %v9005, %v9030
      %v9042 = vadd.f32 %v9006, %v9030
      %v9043 = vadd.f32 %v9007, %v9030
      %v9044 = vadd.f32 %v9008, %v9030
      %v9045 = vadd.f32 %v9009, %v9030
      %v9046 = vadd.f32 %v9010, %v9030
      %v9047 = vadd.f32 %v9011, %v9030
      %v9048 = vadd.f32 %v9012, %v9030
      %v9049 = vadd.f32 %v9013, %v9030
      %v9050 = vadd.f32 %v9014, %v9030
      %v9051 = vadd.f32 %v9015, %v9030
      %v9052 = vadd.f32 %v9016, %v9030
      %v9053 = vadd.f32 %v9017, %v9030
      %v9054 = vadd.f32 %v9018, %v9030
      %v9055 = vadd.f32 %v9019, %v9030
      %v9056 = vadd.f32 %v9020, %v9030
      %v9057 = vadd.f32 %v9021, %v9030
      %v9058 = vadd.f32 %v9022, %v9030
      %v9059 = vadd.f32 %v9023, %v9030
      %v9060 = vadd.f32 %v9024, %v9030
      %v9061 = vadd.f32 %v9025, %v9030
      %v9062 = vadd.f32 %v9026, %v9030
      %v9063 = vmax.f32 %v9031, 0.0
      %v9064 = vmax.f32 %v9032, 0.0
      %v9065 = vmax.f32 %v9033, 0.0
      %v9066 = vmax.f32 %v9034, 0.0
      %v9067 = vmax.f32 %v9035, 0.0
      %v9068 = vmax.f32 %v9036, 0.0
      %v9069 = vmax.f32 %v9037, 0.0
      %v9070 = vmax.f32 %v9038, 0.0
      %v9071 = vmax.f32 %v9039, 0.0
      %v9072 = vmax.f32 %v9040, 0.0
      %v9073 = vmax.f32 %v9041, 0.0
      %v9074 = vmax.f32 %v9042, 0.0
      %v9075 = vmax.f32 %v9043, 0.0
      %v9076 = vmax.f32 %v9044, 0.0
      %v9077 = vmax.f32 %v9045, 0.0
      %v9078 = vmax.f32 %v9046, 0.0
      %v9079 = vmax.f32 %v9047, 0.0
      %v9080 = vmax.f32 %v9048, 0.0
      %v9081 = vmax.f32 %v9049, 0.0
      %v9082 = vmax.f32 %v9050, 0.0
      %v9083 = vmax.f32 %v9051, 0.0
      %v9084 = vmax.f32 %v9052, 0.0
      %v9085 = vmax.f32 %v9053, 0.0
      %v9086 = vmax.f32 %v9054, 0.0
      %v9087 = vmax.f32 %v9055, 0.0
      %v9088 = vmax.f32 %v9056, 0.0
      %v9089 = vmax.f32 %v9057, 0.0
      %v9090 = vmax.f32 %v9058, 0.0
      %v9091 = vmax.f32 %v9059, 0.0
      %v9092 = vmax.f32 %v9060, 0.0
      %v9093 = vmax.f32 %v9061, 0.0
      %v9094 = vmax.f32 %v9062, 0.0
      %vm9095 = vcmask 130048
      %9096 = vst.msk [vmem:[%s143] sm:$0xff] %vm9095, %v9063
      %9097 = vst.msk [vmem:[%s143 + $0x8] sm:$0xff] %vm9095, %v9064
      %9098 = vst.msk [vmem:[%s143 + $0x10] sm:$0xff] %vm9095, %v9065
      %9099 = vst.msk [vmem:[%s143 + $0x18] sm:$0xff] %vm9095, %v9066
      %9100 = vst.msk [vmem:[%s143 + $0x20] sm:$0xff] %vm9095, %v9067
      %9101 = vst.msk [vmem:[%s143 + $0x28] sm:$0xff] %vm9095, %v9068
      %9102 = vst.msk [vmem:[%s143 + $0x30] sm:$0xff] %vm9095, %v9069
      %9103 = vst.msk [vmem:[%s143 + $0x38] sm:$0xff] %vm9095, %v9070
      %9104 = vst.msk [vmem:[%s143 + $0x40] sm:$0xff] %vm9095, %v9071
      %9105 = vst.msk [vmem:[%s143 + $0x48] sm:$0xff] %vm9095, %v9072
      %9106 = vst.msk [vmem:[%s143 + $0x50] sm:$0xff] %vm9095, %v9073
      %9107 = vst.msk [vmem:[%s143 + $0x58] sm:$0xff] %vm9095, %v9074
      %9108 = vst.msk [vmem:[%s143 + $0x60] sm:$0xff] %vm9095, %v9075
      %9109 = vst.msk [vmem:[%s143 + $0x68] sm:$0xff] %vm9095, %v9076
      %9110 = vst.msk [vmem:[%s143 + $0x70] sm:$0xff] %vm9095, %v9077
      %9111 = vst.msk [vmem:[%s143 + $0x78] sm:$0xff] %vm9095, %v9078
      %9112 = vst.msk [vmem:[%s143 + $0x80] sm:$0xff] %vm9095, %v9079
      %9113 = vst.msk [vmem:[%s143 + $0x88] sm:$0xff] %vm9095, %v9080
      %9114 = vst.msk [vmem:[%s143 + $0x90] sm:$0xff] %vm9095, %v9081
      %9115 = vst.msk [vmem:[%s143 + $0x98] sm:$0xff] %vm9095, %v9082
      %9116 = vst.msk [vmem:[%s143 + $0xa0] sm:$0xff] %vm9095, %v9083
      %9117 = vst.msk [vmem:[%s143 + $0xa8] sm:$0xff] %vm9095, %v9084
      %9118 = vst.msk [vmem:[%s143 + $0xb0] sm:$0xff] %vm9095, %v9085
      %9119 = vst.msk [vmem:[%s143 + $0xb8] sm:$0xff] %vm9095, %v9086
      %9120 = vst.msk [vmem:[%s143 + $0xc0] sm:$0xff] %vm9095, %v9087
      %9121 = vst.msk [vmem:[%s143 + $0xc8] sm:$0xff] %vm9095, %v9088
      %9122 = vst.msk [vmem:[%s143 + $0xd0] sm:$0xff] %vm9095, %v9089
      %9123 = vst.msk [vmem:[%s143 + $0xd8] sm:$0xff] %vm9095, %v9090
      %9124 = vst.msk [vmem:[%s143 + $0xe0] sm:$0xff] %vm9095, %v9091
      %9125 = vst.msk [vmem:[%s143 + $0xe8] sm:$0xff] %vm9095, %v9092
      %9126 = vst.msk [vmem:[%s143 + $0xf0] sm:$0xff] %vm9095, %v9093
      %9127 = vst.msk [vmem:[%s143 + $0xf8] sm:$0xff] %vm9095, %v9094
      %p9128 = scmp.lt.s32.totalorder %s13, 1
      %s9129 = scalar_select %p9128, %s13, 1
      %s9130 = smul.addr %s9129, 32
      %s9131 = smul.addr %s9130, 8
      %s9132 = scalar_lea.vmem %s2, %s9131
      // Predicated region
      $region29: #{tpu_custom_call.1} parent=27 // pred_check
        %p9133 = pneg %p78
      $region30: #{tpu_custom_call.1} parent=27 // pred_check_branch
        %9135 = sbr.rel (%p9133) target = $region32
      $region31: #{tpu_custom_call.1} parent=27 // pred_region
        _
      $region32: #{tpu_custom_call.1} parent=27 // pred_fallthru
        _
    $region28: #{tpu_custom_call.1} parent=5 // pred_fallthru
      _
    %p9136 = scmp.le.s32.totalorder 2, %s8
    // Predicated region
    $region33: #{tpu_custom_call.1} parent=5 // pred_check
      %p9137 = pneg %p9136
    $region34: #{tpu_custom_call.1} parent=5 // pred_check_branch
      %9139 = sbr.rel (%p9137) target = $region36
    $region35: #{tpu_custom_call.1} parent=5 // pred_region
      %s9140 = ssub.s32 %s8, 2
      // Predicated region
      $region37: #{tpu_custom_call.1} parent=35 // pred_check
        %p9141 = pneg %p84
      $region38: #{tpu_custom_call.1} parent=35 // pred_check_branch
        %9143 = sbr.rel (%p9141) target = $region40
      $region39: #{tpu_custom_call.1} parent=35 // pred_region
        %p9144 = scmp.lt.s32.totalorder %s14, 1
        %s9145 = scalar_select %p9144, %s14, 1
        %s9146 = smul.addr %s9145, 32
        %s9147 = smul.addr %s9146, 8
        %s9148 = scalar_lea.vmem %s2, %s9147
      $region40: #{tpu_custom_call.1} parent=35 // pred_fallthru
        _
    $region36: #{tpu_custom_call.1} parent=5 // pred_fallthru
      _
  $region6: #{tpu_custom_call.1} parent=0 // loop_footer
    %s12 = sadd.s32 1, %s8
  $region7: #{tpu_custom_call.1} parent=0 // loop_footer_branch
    %7 = sbr.rel target = $region3
  $region8: #{tpu_custom_call.1} parent=0 // loop_exit
    _

</llo_original>
